<compile_context>
chip_gen: v6e
topology: v6e:2x2x1
jax: 0.10.0
libtpu: 0.0.40
codegen_flags: <defaults>
</compile_context>

<pallas_src>
import math
import jax
import jax.numpy as jnp
from jax import lax
from jax.experimental import pallas as pl
from jax.experimental.pallas import tpu as pltpu


def _pick_gblk(G, target=4):
    """Largest divisor of G that is <= target while keeping >= 2 grid steps
    (so the 'parallel' grid axis can still shard across v7x's 2 TensorCores)."""
    best = 1
    for c in range(1, min(target, G) + 1):
        if G % c == 0 and (G // c >= 2 or G == 1):
            best = c
    return best


def make_attention_kernel(num_heads, head_dim, gblk, lq, lk, mask=False):
    H, hd = num_heads, head_dim

    def kernel(xq_ref, xk_ref, xv_ref, w_qkv_ref, wo_ref, b_qkv_ref, bo_ref,
               out_ref, attn_ref):
        D = xq_ref.shape[1]

        # bf16 MXU operands (weights already bf16); f32 accumulation everywhere.
        xq = xq_ref[...].astype(jnp.bfloat16)    # (gblk*lq, D)
        xk = xk_ref[...].astype(jnp.bfloat16)    # (gblk*lk, D)
        xv = xv_ref[...].astype(jnp.bfloat16)    # (gblk*lk, D)

        if mask:
            row = lax.broadcasted_iota(jnp.int32, (lq, lk), 0)
            col = lax.broadcasted_iota(jnp.int32, (lq, lk), 1)
            keep = (col <= row)[None, :, :]      # computed once, shared by all heads

        out_acc = jnp.zeros((gblk * lq, D), jnp.float32)

        for h in range(H):                       # static unroll: all heads per step
            # Per-head projections: the head split lives in the wrapper-prepared
            # weight layout, so there are no lane-offset activation slices here.
            qh = (jnp.dot(xq, w_qkv_ref[h], preferred_element_type=jnp.float32)
                  + b_qkv_ref[h]).reshape(gblk, lq, hd).astype(jnp.bfloat16)
            kh = (jnp.dot(xk, w_qkv_ref[H + h], preferred_element_type=jnp.float32)
                  + b_qkv_ref[H + h]).reshape(gblk, lk, hd).astype(jnp.bfloat16)
            vh = (jnp.dot(xv, w_qkv_ref[2 * H + h], preferred_element_type=jnp.float32)
                  + b_qkv_ref[2 * H + h]).reshape(gblk, lk, hd).astype(jnp.bfloat16)

            # Scores for all gblk (b, t) items of this head in one batched dot.
            # 1/sqrt(hd) was folded into the Q weights/bias in the wrapper.
            s = jnp.einsum("gqd,gkd->gqk", qh, kh,
                           preferred_element_type=jnp.float32)       # (gblk, lq, lk)
            if mask:
                s = jnp.where(keep, s, -jnp.inf)
            m = jnp.max(s, axis=-1, keepdims=True)
            p = jnp.exp(s - m)
            a = p / jnp.sum(p, axis=-1, keepdims=True)   # exact recip: attn is returned

            # Head-major store: no in-kernel concat, no wrapper transpose.
            attn_ref[h] = a

            av = jnp.einsum("gqk,gkd->gqd", a.astype(jnp.bfloat16), vh,
                            preferred_element_type=jnp.float32)      # (gblk, lq, hd)
            # Output projection accumulated per head (block-row matmul is exactly
            # concat-heads-then-matmul), so no lane concat of AV results either.
            out_acc = out_acc + jnp.dot(
                av.reshape(gblk * lq, hd).astype(jnp.bfloat16), wo_ref[h],
                preferred_element_type=jnp.float32)

        out_ref[...] = out_acc + bo_ref[...]

    return kernel


def attention_layer_forward(query, key, value, params, num_heads, mask=False):
    """query: (B, T, Lq, D); key/value: (B, T, Lk, D).

    Returns (out, attn_score) with the PyTorch module's layout:
      out: (B, T, Lq, D);  attn_score: (H*B, T, Lq, Lk).
    """
    Wq, bq, Wk, bk, Wv, bv, Wo, bo = params
    B, T, Lq, D = query.shape
    Lk = key.shape[2]
    H = num_heads
    hd = D // H
    scale = 1.0 / math.sqrt(hd)

    # --- Per-head weight layout prepared once in the wrapper (trace-time, free).
    # Linear: y = x @ W.T + b; head h uses output columns [h*hd:(h+1)*hd].
    def per_head_in(W):  # (D_out, D_in) -> (H, D_in, hd)
        return jnp.transpose(W.T.reshape(D, H, hd), (1, 0, 2))

    wq_h = per_head_in(Wq) * scale            # fold 1/sqrt(hd) into Q projection
    wk_h = per_head_in(Wk)
    wv_h = per_head_in(Wv)
    w_qkv = jnp.concatenate([wq_h, wk_h, wv_h], axis=0).astype(jnp.bfloat16)  # (3H, D, hd)
    wo_h = Wo.T.reshape(H, hd, D).astype(jnp.bfloat16)                        # (H, hd, D)
    b_qkv = jnp.stack([bq * scale, bk, bv]).reshape(3 * H, 1, hd).astype(jnp.float32)
    bo2 = bo.reshape(1, D).astype(jnp.float32)

    # --- Fuse batch and time; coarsen the grid to GBLK items per step.
    G = B * T
    GBLK = _pick_gblk(G)
    rows_q = GBLK * Lq
    rows_k = GBLK * Lk
    q2 = query.reshape(G * Lq, D)
    k2 = key.reshape(G * Lk, D)
    v2 = value.reshape(G * Lk, D)

    kernel = make_attention_kernel(H, hd, GBLK, Lq, Lk, mask=mask)

    in_specs = [
        pl.BlockSpec((rows_q, D), lambda g: (g, 0)),
        pl.BlockSpec((rows_k, D), lambda g: (g, 0)),
        pl.BlockSpec((rows_k, D), lambda g: (g, 0)),
        pl.BlockSpec((3 * H, D, hd), lambda g: (0, 0, 0)),   # resident bf16 weights
        pl.BlockSpec((H, hd, D), lambda g: (0, 0, 0)),       # resident bf16 weights
        pl.BlockSpec((3 * H, 1, hd), lambda g: (0, 0, 0)),   # packed qkv biases
        pl.BlockSpec((1, D), lambda g: (0, 0)),               # out-proj bias
    ]
    out_shapes = (
        jax.ShapeDtypeStruct((G * Lq, D), jnp.float32),
        jax.ShapeDtypeStruct((H, G, Lq, Lk), jnp.float32),    # head-major attn
    )
    out_specs = (
        pl.BlockSpec((rows_q, D), lambda g: (g, 0)),
        pl.BlockSpec((H, GBLK, Lq, Lk), lambda g: (0, g, 0, 0)),
    )

    out2, attn = pl.pallas_call(
        kernel,
        out_shape=out_shapes,
        grid_spec=pltpu.PrefetchScalarGridSpec(
            num_scalar_prefetch=0,
            grid=(G // GBLK,),
            in_specs=in_specs,
            out_specs=out_specs,
        ),
        compiler_params=pltpu.CompilerParams(
            dimension_semantics=("parallel",)),
    )(q2, k2, v2, w_qkv, wo_h, b_qkv, bo2)

    # Only free leading-dim reshapes remain (no transpose).
    out = out2.reshape(B, T, Lq, D)
    attn = attn.reshape(H * B, T, Lq, Lk)
    return out, attn


def reference_forward(query, key, value, params, num_heads, mask=False):
    """Pure-JAX (f32) replica of the PyTorch forward, for validation."""
    Wq, bq, Wk, bk, Wv, bv, Wo, bo = params
    H = num_heads
    D = query.shape[-1]
    hd = D // H

    Q = query @ Wq.T + bq
    K = key @ Wk.T + bk
    V = value @ Wv.T + bv

    def split_cat(x):  # split heads on last dim, concat on dim 0
        return jnp.concatenate(jnp.split(x, H, axis=-1), axis=0)

    Q, K, V = split_cat(Q), split_cat(K), split_cat(V)
    scores = (Q @ jnp.swapaxes(K, -1, -2)) / math.sqrt(hd)
    if mask:
        lq, lk = scores.shape[-2:]
        tri = jnp.tril(jnp.ones((lq, lk), dtype=bool))
        scores = jnp.where(tri, scores, -jnp.inf)
    attn = jax.nn.softmax(scores, axis=-1)
    out = attn @ V
    out = jnp.concatenate(jnp.split(out, H, axis=0), axis=-1)
    out = out @ Wo.T + bo
    return out, attn


if __name__ == "__main__":
    # Small shapes consistent with the module:
    # input (batch_size, in_steps, num_nodes, model_dim); attention over nodes.
    B, T, N, D, H = 2, 4, 8, 32, 8

    key0 = jax.random.PRNGKey(0)
    ks = jax.random.split(key0, 12)
    s = 1.0 / math.sqrt(D)

    query = jax.random.normal(ks[0], (B, T, N, D), jnp.float32)
    key_t = jax.random.normal(ks[1], (B, T, N, D), jnp.float32)
    value = jax.random.normal(ks[2], (B, T, N, D), jnp.float32)

    params = (
        jax.random.normal(ks[3], (D, D), jnp.float32) * s,   # FC_Q weight (out, in)
        jax.random.normal(ks[4], (D,), jnp.float32) * s,     # FC_Q bias
        jax.random.normal(ks[5], (D, D), jnp.float32) * s,   # FC_K
        jax.random.normal(ks[6], (D,), jnp.float32) * s,
        jax.random.normal(ks[7], (D, D), jnp.float32) * s,   # FC_V
        jax.random.normal(ks[8], (D,), jnp.float32) * s,
        jax.random.normal(ks[9], (D, D), jnp.float32) * s,   # out_proj
        jax.random.normal(ks[10], (D,), jnp.float32) * s,
    )

    out, attn = attention_layer_forward(query, key_t, value, params, H, mask=False)
    out = jax.block_until_ready(out)
    attn = jax.block_until_ready(attn)

    out_ref, attn_ref = reference_forward(query, key_t, value, params, H, mask=False)

    assert out.shape == (B, T, N, D)
    assert attn.shape == (H * B, T, N, N)
    # Tolerance accommodates bf16 MXU operands (f32 accumulation) vs f32 reference.
    assert jnp.allclose(out, out_ref, rtol=5e-2, atol=5e-2), "output mismatch"
    assert jnp.allclose(attn, attn_ref, rtol=5e-2, atol=5e-2), "attn_score mismatch"

    print("KERNEL_OK")
</pallas_src>

<mosaic_0001>
module attributes {stable_mosaic.version = 11 : i64} {
  func.func @kernel(%arg0: i32, %arg1: memref<32x32xf32, #tpu.memory_space<vmem>>, %arg2: memref<32x32xf32, #tpu.memory_space<vmem>>, %arg3: memref<32x32xf32, #tpu.memory_space<vmem>>, %arg4: memref<24x32x4xbf16, #tpu.memory_space<vmem>>, %arg5: memref<8x4x32xbf16, #tpu.memory_space<vmem>>, %arg6: memref<24x1x4xf32, #tpu.memory_space<vmem>>, %arg7: memref<1x32xf32, #tpu.memory_space<vmem>>, %arg8: memref<32x32xf32, #tpu.memory_space<vmem>>, %arg9: memref<8x4x8x8xf32, #tpu.memory_space<vmem>>) attributes {dimension_semantics = [#tpu.dimension_semantics<parallel>], iteration_bounds = array<i64: 2>, scalar_prefetch = 0 : i64, scratch_operands = 0 : i64, tpu.core_type = #tpu.core_type<tc>, window_params = [{transform_indices = @transform_0, window_bounds = array<i64: 32, 32>}, {transform_indices = @transform_1, window_bounds = array<i64: 32, 32>}, {transform_indices = @transform_2, window_bounds = array<i64: 32, 32>}, {pipeline_mode = #tpu.pipeline_mode<synchronous>, transform_indices = @transform_3, window_bounds = array<i64: 24, 32, 4>}, {pipeline_mode = #tpu.pipeline_mode<synchronous>, transform_indices = @transform_4, window_bounds = array<i64: 8, 4, 32>}, {pipeline_mode = #tpu.pipeline_mode<synchronous>, transform_indices = @transform_5, window_bounds = array<i64: 24, 1, 4>}, {pipeline_mode = #tpu.pipeline_mode<synchronous>, transform_indices = @transform_6, window_bounds = array<i64: 1, 32>}, {transform_indices = @transform_7, window_bounds = array<i64: 32, 32>}, {transform_indices = @transform_8, window_bounds = array<i64: 8, 4, 8, 8>}]} {
    %c0 = arith.constant 0 : index
    %c0_0 = arith.constant 0 : index
    %0 = vector.load %arg1[%c0, %c0_0] : memref<32x32xf32, #tpu.memory_space<vmem>>, vector<32x32xf32>
    %1 = arith.truncf %0 : vector<32x32xf32> to vector<32x32xbf16>
    %c0_1 = arith.constant 0 : index
    %c0_2 = arith.constant 0 : index
    %2 = vector.load %arg2[%c0_1, %c0_2] : memref<32x32xf32, #tpu.memory_space<vmem>>, vector<32x32xf32>
    %3 = arith.truncf %2 : vector<32x32xf32> to vector<32x32xbf16>
    %c0_3 = arith.constant 0 : index
    %c0_4 = arith.constant 0 : index
    %4 = vector.load %arg3[%c0_3, %c0_4] : memref<32x32xf32, #tpu.memory_space<vmem>>, vector<32x32xf32>
    %5 = arith.truncf %4 : vector<32x32xf32> to vector<32x32xbf16>
    %cst = arith.constant 0.000000e+00 : f32
    %6 = vector.broadcast %cst : f32 to vector<32x32xf32>
    %c0_5 = arith.constant 0 : index
    %c0_6 = arith.constant 0 : index
    %c0_7 = arith.constant 0 : index
    %7 = vector.load %arg4[%c0_5, %c0_6, %c0_7] : memref<24x32x4xbf16, #tpu.memory_space<vmem>>, vector<1x32x4xbf16>
    %8 = vector.shape_cast %7 : vector<1x32x4xbf16> to vector<32x4xbf16>
    %cst_8 = arith.constant dense<0.000000e+00> : vector<32x4xf32>
    %9 = tpu.matmul %1, %8, %cst_8 {dimension_numbers = #tpu.dot_dimension_numbers<[1], [0], [0], [1], [0, 0, 1, 1], [], []>} : vector<32x32xbf16>, vector<32x4xbf16>, vector<32x4xf32> -> vector<32x4xf32>
    %c0_9 = arith.constant 0 : index
    %c0_10 = arith.constant 0 : index
    %c0_11 = arith.constant 0 : index
    %10 = vector.load %arg6[%c0_9, %c0_10, %c0_11] : memref<24x1x4xf32, #tpu.memory_space<vmem>>, vector<1x1x4xf32>
    %11 = vector.shape_cast %10 : vector<1x1x4xf32> to vector<1x4xf32>
    %12 = vector.broadcast %11 : vector<1x4xf32> to vector<32x4xf32>
    %13 = arith.addf %9, %12 : vector<32x4xf32>
    %14 = vector.shape_cast %13 : vector<32x4xf32> to vector<4x8x4xf32>
    %15 = arith.truncf %14 : vector<4x8x4xf32> to vector<4x8x4xbf16>
    %c8 = arith.constant 8 : index
    %c0_12 = arith.constant 0 : index
    %c0_13 = arith.constant 0 : index
    %16 = vector.load %arg4[%c8, %c0_12, %c0_13] : memref<24x32x4xbf16, #tpu.memory_space<vmem>>, vector<1x32x4xbf16>
    %17 = vector.shape_cast %16 : vector<1x32x4xbf16> to vector<32x4xbf16>
    %cst_14 = arith.constant dense<0.000000e+00> : vector<32x4xf32>
    %18 = tpu.matmul %3, %17, %cst_14 {dimension_numbers = #tpu.dot_dimension_numbers<[1], [0], [0], [1], [0, 0, 1, 1], [], []>} : vector<32x32xbf16>, vector<32x4xbf16>, vector<32x4xf32> -> vector<32x4xf32>
    %c8_15 = arith.constant 8 : index
    %c0_16 = arith.constant 0 : index
    %c0_17 = arith.constant 0 : index
    %19 = vector.load %arg6[%c8_15, %c0_16, %c0_17] : memref<24x1x4xf32, #tpu.memory_space<vmem>>, vector<1x1x4xf32>
    %20 = vector.shape_cast %19 : vector<1x1x4xf32> to vector<1x4xf32>
    %21 = vector.broadcast %20 : vector<1x4xf32> to vector<32x4xf32>
    %22 = arith.addf %18, %21 : vector<32x4xf32>
    %23 = vector.shape_cast %22 : vector<32x4xf32> to vector<4x8x4xf32>
    %24 = arith.truncf %23 : vector<4x8x4xf32> to vector<4x8x4xbf16>
    %c16 = arith.constant 16 : index
    %c0_18 = arith.constant 0 : index
    %c0_19 = arith.constant 0 : index
    %25 = vector.load %arg4[%c16, %c0_18, %c0_19] : memref<24x32x4xbf16, #tpu.memory_space<vmem>>, vector<1x32x4xbf16>
    %26 = vector.shape_cast %25 : vector<1x32x4xbf16> to vector<32x4xbf16>
    %cst_20 = arith.constant dense<0.000000e+00> : vector<32x4xf32>
    %27 = tpu.matmul %5, %26, %cst_20 {dimension_numbers = #tpu.dot_dimension_numbers<[1], [0], [0], [1], [0, 0, 1, 1], [], []>} : vector<32x32xbf16>, vector<32x4xbf16>, vector<32x4xf32> -> vector<32x4xf32>
    %c16_21 = arith.constant 16 : index
    %c0_22 = arith.constant 0 : index
    %c0_23 = arith.constant 0 : index
    %28 = vector.load %arg6[%c16_21, %c0_22, %c0_23] : memref<24x1x4xf32, #tpu.memory_space<vmem>>, vector<1x1x4xf32>
    %29 = vector.shape_cast %28 : vector<1x1x4xf32> to vector<1x4xf32>
    %30 = vector.broadcast %29 : vector<1x4xf32> to vector<32x4xf32>
    %31 = arith.addf %27, %30 : vector<32x4xf32>
    %32 = vector.shape_cast %31 : vector<32x4xf32> to vector<4x8x4xf32>
    %33 = arith.truncf %32 : vector<4x8x4xf32> to vector<4x8x4xbf16>
    "tpu.trace_start"() <{level = 10 : i32, message = "gqd,gkd->gqk"}> : () -> ()
    %cst_24 = arith.constant dense<0.000000e+00> : vector<4x8x8xf32>
    %34 = tpu.matmul %15, %24, %cst_24 {dimension_numbers = #tpu.dot_dimension_numbers<[2], [2], [1], [1], [0, 0, 0, 1, 1, 1], [0], [0]>} : vector<4x8x4xbf16>, vector<4x8x4xbf16>, vector<4x8x8xf32> -> vector<4x8x8xf32>
    "tpu.trace_stop"() : () -> ()
    %cst_25 = arith.constant dense<0xFF800000> : vector<4x8xf32>
    %35 = vector.multi_reduction <maximumf>, %34, %cst_25 [2] : vector<4x8x8xf32> to vector<4x8xf32>
    %36 = vector.shape_cast %35 : vector<4x8xf32> to vector<4x8x1xf32>
    %37 = vector.broadcast %36 : vector<4x8x1xf32> to vector<4x8x8xf32>
    %38 = arith.subf %34, %37 : vector<4x8x8xf32>
    %39 = math.exp %38 : vector<4x8x8xf32>
    %cst_26 = arith.constant dense<0.000000e+00> : vector<4x8xf32>
    %40 = vector.multi_reduction <add>, %39, %cst_26 [2] : vector<4x8x8xf32> to vector<4x8xf32>
    %41 = vector.shape_cast %40 : vector<4x8xf32> to vector<4x8x1xf32>
    %42 = vector.broadcast %41 : vector<4x8x1xf32> to vector<4x8x8xf32>
    %43 = arith.divf %39, %42 : vector<4x8x8xf32>
    %c0_27 = arith.constant 0 : index
    %c0_28 = arith.constant 0 : index
    %c0_29 = arith.constant 0 : index
    %c0_30 = arith.constant 0 : index
    %44 = vector.load %arg9[%c0_27, %c0_28, %c0_29, %c0_30] : memref<8x4x8x8xf32, #tpu.memory_space<vmem>>, vector<1x4x8x8xf32>
    %45 = vector.shape_cast %44 : vector<1x4x8x8xf32> to vector<4x8x8xf32>
    %46 = vector.shape_cast %43 : vector<4x8x8xf32> to vector<1x4x8x8xf32>
    tpu.vector_store %arg9[%c0_27, %c0_28, %c0_29, %c0_30], %46 {strides = array<i32>} : memref<8x4x8x8xf32, #tpu.memory_space<vmem>>, vector<1x4x8x8xf32>,
    %47 = arith.truncf %43 : vector<4x8x8xf32> to vector<4x8x8xbf16>
    "tpu.trace_start"() <{level = 10 : i32, message = "gqk,gkd->gqd"}> : () -> ()
    %cst_31 = arith.constant dense<0.000000e+00> : vector<4x8x4xf32>
    %48 = tpu.matmul %47, %33, %cst_31 {dimension_numbers = #tpu.dot_dimension_numbers<[2], [1], [1], [2], [0, 0, 0, 1, 1, 2], [0], [0]>} : vector<4x8x8xbf16>, vector<4x8x4xbf16>, vector<4x8x4xf32> -> vector<4x8x4xf32>
    "tpu.trace_stop"() : () -> ()
    %49 = vector.shape_cast %48 : vector<4x8x4xf32> to vector<32x4xf32>
    %50 = arith.truncf %49 : vector<32x4xf32> to vector<32x4xbf16>
    %c0_32 = arith.constant 0 : index
    %c0_33 = arith.constant 0 : index
    %c0_34 = arith.constant 0 : index
    %51 = vector.load %arg5[%c0_32, %c0_33, %c0_34] : memref<8x4x32xbf16, #tpu.memory_space<vmem>>, vector<1x4x32xbf16>
    %52 = vector.shape_cast %51 : vector<1x4x32xbf16> to vector<4x32xbf16>
    %cst_35 = arith.constant dense<0.000000e+00> : vector<32x32xf32>
    %53 = tpu.matmul %50, %52, %cst_35 {dimension_numbers = #tpu.dot_dimension_numbers<[1], [0], [0], [1], [0, 0, 1, 1], [], []>} : vector<32x4xbf16>, vector<4x32xbf16>, vector<32x32xf32> -> vector<32x32xf32>
    %54 = arith.addf %6, %53 : vector<32x32xf32>
    %c1 = arith.constant 1 : index
    %c0_36 = arith.constant 0 : index
    %c0_37 = arith.constant 0 : index
    %55 = vector.load %arg4[%c1, %c0_36, %c0_37] : memref<24x32x4xbf16, #tpu.memory_space<vmem>>, vector<1x32x4xbf16>
    %56 = vector.shape_cast %55 : vector<1x32x4xbf16> to vector<32x4xbf16>
    %cst_38 = arith.constant dense<0.000000e+00> : vector<32x4xf32>
    %57 = tpu.matmul %1, %56, %cst_38 {dimension_numbers = #tpu.dot_dimension_numbers<[1], [0], [0], [1], [0, 0, 1, 1], [], []>} : vector<32x32xbf16>, vector<32x4xbf16>, vector<32x4xf32> -> vector<32x4xf32>
    %c1_39 = arith.constant 1 : index
    %c0_40 = arith.constant 0 : index
    %c0_41 = arith.constant 0 : index
    %58 = vector.load %arg6[%c1_39, %c0_40, %c0_41] : memref<24x1x4xf32, #tpu.memory_space<vmem>>, vector<1x1x4xf32>
    %59 = vector.shape_cast %58 : vector<1x1x4xf32> to vector<1x4xf32>
    %60 = vector.broadcast %59 : vector<1x4xf32> to vector<32x4xf32>
    %61 = arith.addf %57, %60 : vector<32x4xf32>
    %62 = vector.shape_cast %61 : vector<32x4xf32> to vector<4x8x4xf32>
    %63 = arith.truncf %62 : vector<4x8x4xf32> to vector<4x8x4xbf16>
    %c9 = arith.constant 9 : index
    %c0_42 = arith.constant 0 : index
    %c0_43 = arith.constant 0 : index
    %64 = vector.load %arg4[%c9, %c0_42, %c0_43] : memref<24x32x4xbf16, #tpu.memory_space<vmem>>, vector<1x32x4xbf16>
    %65 = vector.shape_cast %64 : vector<1x32x4xbf16> to vector<32x4xbf16>
    %cst_44 = arith.constant dense<0.000000e+00> : vector<32x4xf32>
    %66 = tpu.matmul %3, %65, %cst_44 {dimension_numbers = #tpu.dot_dimension_numbers<[1], [0], [0], [1], [0, 0, 1, 1], [], []>} : vector<32x32xbf16>, vector<32x4xbf16>, vector<32x4xf32> -> vector<32x4xf32>
    %c9_45 = arith.constant 9 : index
    %c0_46 = arith.constant 0 : index
    %c0_47 = arith.constant 0 : index
    %67 = vector.load %arg6[%c9_45, %c0_46, %c0_47] : memref<24x1x4xf32, #tpu.memory_space<vmem>>, vector<1x1x4xf32>
    %68 = vector.shape_cast %67 : vector<1x1x4xf32> to vector<1x4xf32>
    %69 = vector.broadcast %68 : vector<1x4xf32> to vector<32x4xf32>
    %70 = arith.addf %66, %69 : vector<32x4xf32>
    %71 = vector.shape_cast %70 : vector<32x4xf32> to vector<4x8x4xf32>
    %72 = arith.truncf %71 : vector<4x8x4xf32> to vector<4x8x4xbf16>
    %c17 = arith.constant 17 : index
    %c0_48 = arith.constant 0 : index
    %c0_49 = arith.constant 0 : index
    %73 = vector.load %arg4[%c17, %c0_48, %c0_49] : memref<24x32x4xbf16, #tpu.memory_space<vmem>>, vector<1x32x4xbf16>
    %74 = vector.shape_cast %73 : vector<1x32x4xbf16> to vector<32x4xbf16>
    %cst_50 = arith.constant dense<0.000000e+00> : vector<32x4xf32>
    %75 = tpu.matmul %5, %74, %cst_50 {dimension_numbers = #tpu.dot_dimension_numbers<[1], [0], [0], [1], [0, 0, 1, 1], [], []>} : vector<32x32xbf16>, vector<32x4xbf16>, vector<32x4xf32> -> vector<32x4xf32>
    %c17_51 = arith.constant 17 : index
    %c0_52 = arith.constant 0 : index
    %c0_53 = arith.constant 0 : index
    %76 = vector.load %arg6[%c17_51, %c0_52, %c0_53] : memref<24x1x4xf32, #tpu.memory_space<vmem>>, vector<1x1x4xf32>
    %77 = vector.shape_cast %76 : vector<1x1x4xf32> to vector<1x4xf32>
    %78 = vector.broadcast %77 : vector<1x4xf32> to vector<32x4xf32>
    %79 = arith.addf %75, %78 : vector<32x4xf32>
    %80 = vector.shape_cast %79 : vector<32x4xf32> to vector<4x8x4xf32>
    %81 = arith.truncf %80 : vector<4x8x4xf32> to vector<4x8x4xbf16>
    "tpu.trace_start"() <{level = 10 : i32, message = "gqd,gkd->gqk"}> : () -> ()
    %cst_54 = arith.constant dense<0.000000e+00> : vector<4x8x8xf32>
    %82 = tpu.matmul %63, %72, %cst_54 {dimension_numbers = #tpu.dot_dimension_numbers<[2], [2], [1], [1], [0, 0, 0, 1, 1, 1], [0], [0]>} : vector<4x8x4xbf16>, vector<4x8x4xbf16>, vector<4x8x8xf32> -> vector<4x8x8xf32>
    "tpu.trace_stop"() : () -> ()
    %cst_55 = arith.constant dense<0xFF800000> : vector<4x8xf32>
    %83 = vector.multi_reduction <maximumf>, %82, %cst_55 [2] : vector<4x8x8xf32> to vector<4x8xf32>
    %84 = vector.shape_cast %83 : vector<4x8xf32> to vector<4x8x1xf32>
    %85 = vector.broadcast %84 : vector<4x8x1xf32> to vector<4x8x8xf32>
    %86 = arith.subf %82, %85 : vector<4x8x8xf32>
    %87 = math.exp %86 : vector<4x8x8xf32>
    %cst_56 = arith.constant dense<0.000000e+00> : vector<4x8xf32>
    %88 = vector.multi_reduction <add>, %87, %cst_56 [2] : vector<4x8x8xf32> to vector<4x8xf32>
    %89 = vector.shape_cast %88 : vector<4x8xf32> to vector<4x8x1xf32>
    %90 = vector.broadcast %89 : vector<4x8x1xf32> to vector<4x8x8xf32>
    %91 = arith.divf %87, %90 : vector<4x8x8xf32>
    %c1_57 = arith.constant 1 : index
    %c0_58 = arith.constant 0 : index
    %c0_59 = arith.constant 0 : index
    %c0_60 = arith.constant 0 : index
    %92 = vector.load %arg9[%c1_57, %c0_58, %c0_59, %c0_60] : memref<8x4x8x8xf32, #tpu.memory_space<vmem>>, vector<1x4x8x8xf32>
    %93 = vector.shape_cast %92 : vector<1x4x8x8xf32> to vector<4x8x8xf32>
    %94 = vector.shape_cast %91 : vector<4x8x8xf32> to vector<1x4x8x8xf32>
    tpu.vector_store %arg9[%c1_57, %c0_58, %c0_59, %c0_60], %94 {strides = array<i32>} : memref<8x4x8x8xf32, #tpu.memory_space<vmem>>, vector<1x4x8x8xf32>,
    %95 = arith.truncf %91 : vector<4x8x8xf32> to vector<4x8x8xbf16>
    "tpu.trace_start"() <{level = 10 : i32, message = "gqk,gkd->gqd"}> : () -> ()
    %cst_61 = arith.constant dense<0.000000e+00> : vector<4x8x4xf32>
    %96 = tpu.matmul %95, %81, %cst_61 {dimension_numbers = #tpu.dot_dimension_numbers<[2], [1], [1], [2], [0, 0, 0, 1, 1, 2], [0], [0]>} : vector<4x8x8xbf16>, vector<4x8x4xbf16>, vector<4x8x4xf32> -> vector<4x8x4xf32>
    "tpu.trace_stop"() : () -> ()
    %97 = vector.shape_cast %96 : vector<4x8x4xf32> to vector<32x4xf32>
    %98 = arith.truncf %97 : vector<32x4xf32> to vector<32x4xbf16>
    %c1_62 = arith.constant 1 : index
    %c0_63 = arith.constant 0 : index
    %c0_64 = arith.constant 0 : index
    %99 = vector.load %arg5[%c1_62, %c0_63, %c0_64] : memref<8x4x32xbf16, #tpu.memory_space<vmem>>, vector<1x4x32xbf16>
    %100 = vector.shape_cast %99 : vector<1x4x32xbf16> to vector<4x32xbf16>
    %cst_65 = arith.constant dense<0.000000e+00> : vector<32x32xf32>
    %101 = tpu.matmul %98, %100, %cst_65 {dimension_numbers = #tpu.dot_dimension_numbers<[1], [0], [0], [1], [0, 0, 1, 1], [], []>} : vector<32x4xbf16>, vector<4x32xbf16>, vector<32x32xf32> -> vector<32x32xf32>
    %102 = arith.addf %54, %101 : vector<32x32xf32>
    %c2 = arith.constant 2 : index
    %c0_66 = arith.constant 0 : index
    %c0_67 = arith.constant 0 : index
    %103 = vector.load %arg4[%c2, %c0_66, %c0_67] : memref<24x32x4xbf16, #tpu.memory_space<vmem>>, vector<1x32x4xbf16>
    %104 = vector.shape_cast %103 : vector<1x32x4xbf16> to vector<32x4xbf16>
    %cst_68 = arith.constant dense<0.000000e+00> : vector<32x4xf32>
    %105 = tpu.matmul %1, %104, %cst_68 {dimension_numbers = #tpu.dot_dimension_numbers<[1], [0], [0], [1], [0, 0, 1, 1], [], []>} : vector<32x32xbf16>, vector<32x4xbf16>, vector<32x4xf32> -> vector<32x4xf32>
    %c2_69 = arith.constant 2 : index
    %c0_70 = arith.constant 0 : index
    %c0_71 = arith.constant 0 : index
    %106 = vector.load %arg6[%c2_69, %c0_70, %c0_71] : memref<24x1x4xf32, #tpu.memory_space<vmem>>, vector<1x1x4xf32>
    %107 = vector.shape_cast %106 : vector<1x1x4xf32> to vector<1x4xf32>
    %108 = vector.broadcast %107 : vector<1x4xf32> to vector<32x4xf32>
    %109 = arith.addf %105, %108 : vector<32x4xf32>
    %110 = vector.shape_cast %109 : vector<32x4xf32> to vector<4x8x4xf32>
    %111 = arith.truncf %110 : vector<4x8x4xf32> to vector<4x8x4xbf16>
    %c10 = arith.constant 10 : index
    %c0_72 = arith.constant 0 : index
    %c0_73 = arith.constant 0 : index
    %112 = vector.load %arg4[%c10, %c0_72, %c0_73] : memref<24x32x4xbf16, #tpu.memory_space<vmem>>, vector<1x32x4xbf16>
    %113 = vector.shape_cast %112 : vector<1x32x4xbf16> to vector<32x4xbf16>
    %cst_74 = arith.constant dense<0.000000e+00> : vector<32x4xf32>
    %114 = tpu.matmul %3, %113, %cst_74 {dimension_numbers = #tpu.dot_dimension_numbers<[1], [0], [0], [1], [0, 0, 1, 1], [], []>} : vector<32x32xbf16>, vector<32x4xbf16>, vector<32x4xf32> -> vector<32x4xf32>
    %c10_75 = arith.constant 10 : index
    %c0_76 = arith.constant 0 : index
    %c0_77 = arith.constant 0 : index
    %115 = vector.load %arg6[%c10_75, %c0_76, %c0_77] : memref<24x1x4xf32, #tpu.memory_space<vmem>>, vector<1x1x4xf32>
    %116 = vector.shape_cast %115 : vector<1x1x4xf32> to vector<1x4xf32>
    %117 = vector.broadcast %116 : vector<1x4xf32> to vector<32x4xf32>
    %118 = arith.addf %114, %117 : vector<32x4xf32>
    %119 = vector.shape_cast %118 : vector<32x4xf32> to vector<4x8x4xf32>
    %120 = arith.truncf %119 : vector<4x8x4xf32> to vector<4x8x4xbf16>
    %c18 = arith.constant 18 : index
    %c0_78 = arith.constant 0 : index
    %c0_79 = arith.constant 0 : index
    %121 = vector.load %arg4[%c18, %c0_78, %c0_79] : memref<24x32x4xbf16, #tpu.memory_space<vmem>>, vector<1x32x4xbf16>
    %122 = vector.shape_cast %121 : vector<1x32x4xbf16> to vector<32x4xbf16>
    %cst_80 = arith.constant dense<0.000000e+00> : vector<32x4xf32>
    %123 = tpu.matmul %5, %122, %cst_80 {dimension_numbers = #tpu.dot_dimension_numbers<[1], [0], [0], [1], [0, 0, 1, 1], [], []>} : vector<32x32xbf16>, vector<32x4xbf16>, vector<32x4xf32> -> vector<32x4xf32>
    %c18_81 = arith.constant 18 : index
    %c0_82 = arith.constant 0 : index
    %c0_83 = arith.constant 0 : index
    %124 = vector.load %arg6[%c18_81, %c0_82, %c0_83] : memref<24x1x4xf32, #tpu.memory_space<vmem>>, vector<1x1x4xf32>
    %125 = vector.shape_cast %124 : vector<1x1x4xf32> to vector<1x4xf32>
    %126 = vector.broadcast %125 : vector<1x4xf32> to vector<32x4xf32>
    %127 = arith.addf %123, %126 : vector<32x4xf32>
    %128 = vector.shape_cast %127 : vector<32x4xf32> to vector<4x8x4xf32>
    %129 = arith.truncf %128 : vector<4x8x4xf32> to vector<4x8x4xbf16>
    "tpu.trace_start"() <{level = 10 : i32, message = "gqd,gkd->gqk"}> : () -> ()
    %cst_84 = arith.constant dense<0.000000e+00> : vector<4x8x8xf32>
    %130 = tpu.matmul %111, %120, %cst_84 {dimension_numbers = #tpu.dot_dimension_numbers<[2], [2], [1], [1], [0, 0, 0, 1, 1, 1], [0], [0]>} : vector<4x8x4xbf16>, vector<4x8x4xbf16>, vector<4x8x8xf32> -> vector<4x8x8xf32>
    "tpu.trace_stop"() : () -> ()
    %cst_85 = arith.constant dense<0xFF800000> : vector<4x8xf32>
    %131 = vector.multi_reduction <maximumf>, %130, %cst_85 [2] : vector<4x8x8xf32> to vector<4x8xf32>
    %132 = vector.shape_cast %131 : vector<4x8xf32> to vector<4x8x1xf32>
    %133 = vector.broadcast %132 : vector<4x8x1xf32> to vector<4x8x8xf32>
    %134 = arith.subf %130, %133 : vector<4x8x8xf32>
    %135 = math.exp %134 : vector<4x8x8xf32>
    %cst_86 = arith.constant dense<0.000000e+00> : vector<4x8xf32>
    %136 = vector.multi_reduction <add>, %135, %cst_86 [2] : vector<4x8x8xf32> to vector<4x8xf32>
    %137 = vector.shape_cast %136 : vector<4x8xf32> to vector<4x8x1xf32>
    %138 = vector.broadcast %137 : vector<4x8x1xf32> to vector<4x8x8xf32>
    %139 = arith.divf %135, %138 : vector<4x8x8xf32>
    %c2_87 = arith.constant 2 : index
    %c0_88 = arith.constant 0 : index
    %c0_89 = arith.constant 0 : index
    %c0_90 = arith.constant 0 : index
    %140 = vector.load %arg9[%c2_87, %c0_88, %c0_89, %c0_90] : memref<8x4x8x8xf32, #tpu.memory_space<vmem>>, vector<1x4x8x8xf32>
    %141 = vector.shape_cast %140 : vector<1x4x8x8xf32> to vector<4x8x8xf32>
    %142 = vector.shape_cast %139 : vector<4x8x8xf32> to vector<1x4x8x8xf32>
    tpu.vector_store %arg9[%c2_87, %c0_88, %c0_89, %c0_90], %142 {strides = array<i32>} : memref<8x4x8x8xf32, #tpu.memory_space<vmem>>, vector<1x4x8x8xf32>,
    %143 = arith.truncf %139 : vector<4x8x8xf32> to vector<4x8x8xbf16>
    "tpu.trace_start"() <{level = 10 : i32, message = "gqk,gkd->gqd"}> : () -> ()
    %cst_91 = arith.constant dense<0.000000e+00> : vector<4x8x4xf32>
    %144 = tpu.matmul %143, %129, %cst_91 {dimension_numbers = #tpu.dot_dimension_numbers<[2], [1], [1], [2], [0, 0, 0, 1, 1, 2], [0], [0]>} : vector<4x8x8xbf16>, vector<4x8x4xbf16>, vector<4x8x4xf32> -> vector<4x8x4xf32>
    "tpu.trace_stop"() : () -> ()
    %145 = vector.shape_cast %144 : vector<4x8x4xf32> to vector<32x4xf32>
    %146 = arith.truncf %145 : vector<32x4xf32> to vector<32x4xbf16>
    %c2_92 = arith.constant 2 : index
    %c0_93 = arith.constant 0 : index
    %c0_94 = arith.constant 0 : index
    %147 = vector.load %arg5[%c2_92, %c0_93, %c0_94] : memref<8x4x32xbf16, #tpu.memory_space<vmem>>, vector<1x4x32xbf16>
    %148 = vector.shape_cast %147 : vector<1x4x32xbf16> to vector<4x32xbf16>
    %cst_95 = arith.constant dense<0.000000e+00> : vector<32x32xf32>
    %149 = tpu.matmul %146, %148, %cst_95 {dimension_numbers = #tpu.dot_dimension_numbers<[1], [0], [0], [1], [0, 0, 1, 1], [], []>} : vector<32x4xbf16>, vector<4x32xbf16>, vector<32x32xf32> -> vector<32x32xf32>
    %150 = arith.addf %102, %149 : vector<32x32xf32>
    %c3 = arith.constant 3 : index
    %c0_96 = arith.constant 0 : index
    %c0_97 = arith.constant 0 : index
    %151 = vector.load %arg4[%c3, %c0_96, %c0_97] : memref<24x32x4xbf16, #tpu.memory_space<vmem>>, vector<1x32x4xbf16>
    %152 = vector.shape_cast %151 : vector<1x32x4xbf16> to vector<32x4xbf16>
    %cst_98 = arith.constant dense<0.000000e+00> : vector<32x4xf32>
    %153 = tpu.matmul %1, %152, %cst_98 {dimension_numbers = #tpu.dot_dimension_numbers<[1], [0], [0], [1], [0, 0, 1, 1], [], []>} : vector<32x32xbf16>, vector<32x4xbf16>, vector<32x4xf32> -> vector<32x4xf32>
    %c3_99 = arith.constant 3 : index
    %c0_100 = arith.constant 0 : index
    %c0_101 = arith.constant 0 : index
    %154 = vector.load %arg6[%c3_99, %c0_100, %c0_101] : memref<24x1x4xf32, #tpu.memory_space<vmem>>, vector<1x1x4xf32>
    %155 = vector.shape_cast %154 : vector<1x1x4xf32> to vector<1x4xf32>
    %156 = vector.broadcast %155 : vector<1x4xf32> to vector<32x4xf32>
    %157 = arith.addf %153, %156 : vector<32x4xf32>
    %158 = vector.shape_cast %157 : vector<32x4xf32> to vector<4x8x4xf32>
    %159 = arith.truncf %158 : vector<4x8x4xf32> to vector<4x8x4xbf16>
    %c11 = arith.constant 11 : index
    %c0_102 = arith.constant 0 : index
    %c0_103 = arith.constant 0 : index
    %160 = vector.load %arg4[%c11, %c0_102, %c0_103] : memref<24x32x4xbf16, #tpu.memory_space<vmem>>, vector<1x32x4xbf16>
    %161 = vector.shape_cast %160 : vector<1x32x4xbf16> to vector<32x4xbf16>
    %cst_104 = arith.constant dense<0.000000e+00> : vector<32x4xf32>
    %162 = tpu.matmul %3, %161, %cst_104 {dimension_numbers = #tpu.dot_dimension_numbers<[1], [0], [0], [1], [0, 0, 1, 1], [], []>} : vector<32x32xbf16>, vector<32x4xbf16>, vector<32x4xf32> -> vector<32x4xf32>
    %c11_105 = arith.constant 11 : index
    %c0_106 = arith.constant 0 : index
    %c0_107 = arith.constant 0 : index
    %163 = vector.load %arg6[%c11_105, %c0_106, %c0_107] : memref<24x1x4xf32, #tpu.memory_space<vmem>>, vector<1x1x4xf32>
    %164 = vector.shape_cast %163 : vector<1x1x4xf32> to vector<1x4xf32>
    %165 = vector.broadcast %164 : vector<1x4xf32> to vector<32x4xf32>
    %166 = arith.addf %162, %165 : vector<32x4xf32>
    %167 = vector.shape_cast %166 : vector<32x4xf32> to vector<4x8x4xf32>
    %168 = arith.truncf %167 : vector<4x8x4xf32> to vector<4x8x4xbf16>
    %c19 = arith.constant 19 : index
    %c0_108 = arith.constant 0 : index
    %c0_109 = arith.constant 0 : index
    %169 = vector.load %arg4[%c19, %c0_108, %c0_109] : memref<24x32x4xbf16, #tpu.memory_space<vmem>>, vector<1x32x4xbf16>
    %170 = vector.shape_cast %169 : vector<1x32x4xbf16> to vector<32x4xbf16>
    %cst_110 = arith.constant dense<0.000000e+00> : vector<32x4xf32>
    %171 = tpu.matmul %5, %170, %cst_110 {dimension_numbers = #tpu.dot_dimension_numbers<[1], [0], [0], [1], [0, 0, 1, 1], [], []>} : vector<32x32xbf16>, vector<32x4xbf16>, vector<32x4xf32> -> vector<32x4xf32>
    %c19_111 = arith.constant 19 : index
    %c0_112 = arith.constant 0 : index
    %c0_113 = arith.constant 0 : index
    %172 = vector.load %arg6[%c19_111, %c0_112, %c0_113] : memref<24x1x4xf32, #tpu.memory_space<vmem>>, vector<1x1x4xf32>
    %173 = vector.shape_cast %172 : vector<1x1x4xf32> to vector<1x4xf32>
    %174 = vector.broadcast %173 : vector<1x4xf32> to vector<32x4xf32>
    %175 = arith.addf %171, %174 : vector<32x4xf32>
    %176 = vector.shape_cast %175 : vector<32x4xf32> to vector<4x8x4xf32>
    %177 = arith.truncf %176 : vector<4x8x4xf32> to vector<4x8x4xbf16>
    "tpu.trace_start"() <{level = 10 : i32, message = "gqd,gkd->gqk"}> : () -> ()
    %cst_114 = arith.constant dense<0.000000e+00> : vector<4x8x8xf32>
    %178 = tpu.matmul %159, %168, %cst_114 {dimension_numbers = #tpu.dot_dimension_numbers<[2], [2], [1], [1], [0, 0, 0, 1, 1, 1], [0], [0]>} : vector<4x8x4xbf16>, vector<4x8x4xbf16>, vector<4x8x8xf32> -> vector<4x8x8xf32>
    "tpu.trace_stop"() : () -> ()
    %cst_115 = arith.constant dense<0xFF800000> : vector<4x8xf32>
    %179 = vector.multi_reduction <maximumf>, %178, %cst_115 [2] : vector<4x8x8xf32> to vector<4x8xf32>
    %180 = vector.shape_cast %179 : vector<4x8xf32> to vector<4x8x1xf32>
    %181 = vector.broadcast %180 : vector<4x8x1xf32> to vector<4x8x8xf32>
    %182 = arith.subf %178, %181 : vector<4x8x8xf32>
    %183 = math.exp %182 : vector<4x8x8xf32>
    %cst_116 = arith.constant dense<0.000000e+00> : vector<4x8xf32>
    %184 = vector.multi_reduction <add>, %183, %cst_116 [2] : vector<4x8x8xf32> to vector<4x8xf32>
    %185 = vector.shape_cast %184 : vector<4x8xf32> to vector<4x8x1xf32>
    %186 = vector.broadcast %185 : vector<4x8x1xf32> to vector<4x8x8xf32>
    %187 = arith.divf %183, %186 : vector<4x8x8xf32>
    %c3_117 = arith.constant 3 : index
    %c0_118 = arith.constant 0 : index
    %c0_119 = arith.constant 0 : index
    %c0_120 = arith.constant 0 : index
    %188 = vector.load %arg9[%c3_117, %c0_118, %c0_119, %c0_120] : memref<8x4x8x8xf32, #tpu.memory_space<vmem>>, vector<1x4x8x8xf32>
    %189 = vector.shape_cast %188 : vector<1x4x8x8xf32> to vector<4x8x8xf32>
    %190 = vector.shape_cast %187 : vector<4x8x8xf32> to vector<1x4x8x8xf32>
    tpu.vector_store %arg9[%c3_117, %c0_118, %c0_119, %c0_120], %190 {strides = array<i32>} : memref<8x4x8x8xf32, #tpu.memory_space<vmem>>, vector<1x4x8x8xf32>,
    %191 = arith.truncf %187 : vector<4x8x8xf32> to vector<4x8x8xbf16>
    "tpu.trace_start"() <{level = 10 : i32, message = "gqk,gkd->gqd"}> : () -> ()
    %cst_121 = arith.constant dense<0.000000e+00> : vector<4x8x4xf32>
    %192 = tpu.matmul %191, %177, %cst_121 {dimension_numbers = #tpu.dot_dimension_numbers<[2], [1], [1], [2], [0, 0, 0, 1, 1, 2], [0], [0]>} : vector<4x8x8xbf16>, vector<4x8x4xbf16>, vector<4x8x4xf32> -> vector<4x8x4xf32>
    "tpu.trace_stop"() : () -> ()
    %193 = vector.shape_cast %192 : vector<4x8x4xf32> to vector<32x4xf32>
    %194 = arith.truncf %193 : vector<32x4xf32> to vector<32x4xbf16>
    %c3_122 = arith.constant 3 : index
    %c0_123 = arith.constant 0 : index
    %c0_124 = arith.constant 0 : index
    %195 = vector.load %arg5[%c3_122, %c0_123, %c0_124] : memref<8x4x32xbf16, #tpu.memory_space<vmem>>, vector<1x4x32xbf16>
    %196 = vector.shape_cast %195 : vector<1x4x32xbf16> to vector<4x32xbf16>
    %cst_125 = arith.constant dense<0.000000e+00> : vector<32x32xf32>
    %197 = tpu.matmul %194, %196, %cst_125 {dimension_numbers = #tpu.dot_dimension_numbers<[1], [0], [0], [1], [0, 0, 1, 1], [], []>} : vector<32x4xbf16>, vector<4x32xbf16>, vector<32x32xf32> -> vector<32x32xf32>
    %198 = arith.addf %150, %197 : vector<32x32xf32>
    %c4 = arith.constant 4 : index
    %c0_126 = arith.constant 0 : index
    %c0_127 = arith.constant 0 : index
    %199 = vector.load %arg4[%c4, %c0_126, %c0_127] : memref<24x32x4xbf16, #tpu.memory_space<vmem>>, vector<1x32x4xbf16>
    %200 = vector.shape_cast %199 : vector<1x32x4xbf16> to vector<32x4xbf16>
    %cst_128 = arith.constant dense<0.000000e+00> : vector<32x4xf32>
    %201 = tpu.matmul %1, %200, %cst_128 {dimension_numbers = #tpu.dot_dimension_numbers<[1], [0], [0], [1], [0, 0, 1, 1], [], []>} : vector<32x32xbf16>, vector<32x4xbf16>, vector<32x4xf32> -> vector<32x4xf32>
    %c4_129 = arith.constant 4 : index
    %c0_130 = arith.constant 0 : index
    %c0_131 = arith.constant 0 : index
    %202 = vector.load %arg6[%c4_129, %c0_130, %c0_131] : memref<24x1x4xf32, #tpu.memory_space<vmem>>, vector<1x1x4xf32>
    %203 = vector.shape_cast %202 : vector<1x1x4xf32> to vector<1x4xf32>
    %204 = vector.broadcast %203 : vector<1x4xf32> to vector<32x4xf32>
    %205 = arith.addf %201, %204 : vector<32x4xf32>
    %206 = vector.shape_cast %205 : vector<32x4xf32> to vector<4x8x4xf32>
    %207 = arith.truncf %206 : vector<4x8x4xf32> to vector<4x8x4xbf16>
    %c12 = arith.constant 12 : index
    %c0_132 = arith.constant 0 : index
    %c0_133 = arith.constant 0 : index
    %208 = vector.load %arg4[%c12, %c0_132, %c0_133] : memref<24x32x4xbf16, #tpu.memory_space<vmem>>, vector<1x32x4xbf16>
    %209 = vector.shape_cast %208 : vector<1x32x4xbf16> to vector<32x4xbf16>
    %cst_134 = arith.constant dense<0.000000e+00> : vector<32x4xf32>
    %210 = tpu.matmul %3, %209, %cst_134 {dimension_numbers = #tpu.dot_dimension_numbers<[1], [0], [0], [1], [0, 0, 1, 1], [], []>} : vector<32x32xbf16>, vector<32x4xbf16>, vector<32x4xf32> -> vector<32x4xf32>
    %c12_135 = arith.constant 12 : index
    %c0_136 = arith.constant 0 : index
    %c0_137 = arith.constant 0 : index
    %211 = vector.load %arg6[%c12_135, %c0_136, %c0_137] : memref<24x1x4xf32, #tpu.memory_space<vmem>>, vector<1x1x4xf32>
    %212 = vector.shape_cast %211 : vector<1x1x4xf32> to vector<1x4xf32>
    %213 = vector.broadcast %212 : vector<1x4xf32> to vector<32x4xf32>
    %214 = arith.addf %210, %213 : vector<32x4xf32>
    %215 = vector.shape_cast %214 : vector<32x4xf32> to vector<4x8x4xf32>
    %216 = arith.truncf %215 : vector<4x8x4xf32> to vector<4x8x4xbf16>
    %c20 = arith.constant 20 : index
    %c0_138 = arith.constant 0 : index
    %c0_139 = arith.constant 0 : index
    %217 = vector.load %arg4[%c20, %c0_138, %c0_139] : memref<24x32x4xbf16, #tpu.memory_space<vmem>>, vector<1x32x4xbf16>
    %218 = vector.shape_cast %217 : vector<1x32x4xbf16> to vector<32x4xbf16>
    %cst_140 = arith.constant dense<0.000000e+00> : vector<32x4xf32>
    %219 = tpu.matmul %5, %218, %cst_140 {dimension_numbers = #tpu.dot_dimension_numbers<[1], [0], [0], [1], [0, 0, 1, 1], [], []>} : vector<32x32xbf16>, vector<32x4xbf16>, vector<32x4xf32> -> vector<32x4xf32>
    %c20_141 = arith.constant 20 : index
    %c0_142 = arith.constant 0 : index
    %c0_143 = arith.constant 0 : index
    %220 = vector.load %arg6[%c20_141, %c0_142, %c0_143] : memref<24x1x4xf32, #tpu.memory_space<vmem>>, vector<1x1x4xf32>
    %221 = vector.shape_cast %220 : vector<1x1x4xf32> to vector<1x4xf32>
    %222 = vector.broadcast %221 : vector<1x4xf32> to vector<32x4xf32>
    %223 = arith.addf %219, %222 : vector<32x4xf32>
    %224 = vector.shape_cast %223 : vector<32x4xf32> to vector<4x8x4xf32>
    %225 = arith.truncf %224 : vector<4x8x4xf32> to vector<4x8x4xbf16>
    "tpu.trace_start"() <{level = 10 : i32, message = "gqd,gkd->gqk"}> : () -> ()
    %cst_144 = arith.constant dense<0.000000e+00> : vector<4x8x8xf32>
    %226 = tpu.matmul %207, %216, %cst_144 {dimension_numbers = #tpu.dot_dimension_numbers<[2], [2], [1], [1], [0, 0, 0, 1, 1, 1], [0], [0]>} : vector<4x8x4xbf16>, vector<4x8x4xbf16>, vector<4x8x8xf32> -> vector<4x8x8xf32>
    "tpu.trace_stop"() : () -> ()
    %cst_145 = arith.constant dense<0xFF800000> : vector<4x8xf32>
    %227 = vector.multi_reduction <maximumf>, %226, %cst_145 [2] : vector<4x8x8xf32> to vector<4x8xf32>
    %228 = vector.shape_cast %227 : vector<4x8xf32> to vector<4x8x1xf32>
    %229 = vector.broadcast %228 : vector<4x8x1xf32> to vector<4x8x8xf32>
    %230 = arith.subf %226, %229 : vector<4x8x8xf32>
    %231 = math.exp %230 : vector<4x8x8xf32>
    %cst_146 = arith.constant dense<0.000000e+00> : vector<4x8xf32>
    %232 = vector.multi_reduction <add>, %231, %cst_146 [2] : vector<4x8x8xf32> to vector<4x8xf32>
    %233 = vector.shape_cast %232 : vector<4x8xf32> to vector<4x8x1xf32>
    %234 = vector.broadcast %233 : vector<4x8x1xf32> to vector<4x8x8xf32>
    %235 = arith.divf %231, %234 : vector<4x8x8xf32>
    %c4_147 = arith.constant 4 : index
    %c0_148 = arith.constant 0 : index
    %c0_149 = arith.constant 0 : index
    %c0_150 = arith.constant 0 : index
    %236 = vector.load %arg9[%c4_147, %c0_148, %c0_149, %c0_150] : memref<8x4x8x8xf32, #tpu.memory_space<vmem>>, vector<1x4x8x8xf32>
    %237 = vector.shape_cast %236 : vector<1x4x8x8xf32> to vector<4x8x8xf32>
    %238 = vector.shape_cast %235 : vector<4x8x8xf32> to vector<1x4x8x8xf32>
    tpu.vector_store %arg9[%c4_147, %c0_148, %c0_149, %c0_150], %238 {strides = array<i32>} : memref<8x4x8x8xf32, #tpu.memory_space<vmem>>, vector<1x4x8x8xf32>,
    %239 = arith.truncf %235 : vector<4x8x8xf32> to vector<4x8x8xbf16>
    "tpu.trace_start"() <{level = 10 : i32, message = "gqk,gkd->gqd"}> : () -> ()
    %cst_151 = arith.constant dense<0.000000e+00> : vector<4x8x4xf32>
    %240 = tpu.matmul %239, %225, %cst_151 {dimension_numbers = #tpu.dot_dimension_numbers<[2], [1], [1], [2], [0, 0, 0, 1, 1, 2], [0], [0]>} : vector<4x8x8xbf16>, vector<4x8x4xbf16>, vector<4x8x4xf32> -> vector<4x8x4xf32>
    "tpu.trace_stop"() : () -> ()
    %241 = vector.shape_cast %240 : vector<4x8x4xf32> to vector<32x4xf32>
    %242 = arith.truncf %241 : vector<32x4xf32> to vector<32x4xbf16>
    %c4_152 = arith.constant 4 : index
    %c0_153 = arith.constant 0 : index
    %c0_154 = arith.constant 0 : index
    %243 = vector.load %arg5[%c4_152, %c0_153, %c0_154] : memref<8x4x32xbf16, #tpu.memory_space<vmem>>, vector<1x4x32xbf16>
    %244 = vector.shape_cast %243 : vector<1x4x32xbf16> to vector<4x32xbf16>
    %cst_155 = arith.constant dense<0.000000e+00> : vector<32x32xf32>
    %245 = tpu.matmul %242, %244, %cst_155 {dimension_numbers = #tpu.dot_dimension_numbers<[1], [0], [0], [1], [0, 0, 1, 1], [], []>} : vector<32x4xbf16>, vector<4x32xbf16>, vector<32x32xf32> -> vector<32x32xf32>
    %246 = arith.addf %198, %245 : vector<32x32xf32>
    %c5 = arith.constant 5 : index
    %c0_156 = arith.constant 0 : index
    %c0_157 = arith.constant 0 : index
    %247 = vector.load %arg4[%c5, %c0_156, %c0_157] : memref<24x32x4xbf16, #tpu.memory_space<vmem>>, vector<1x32x4xbf16>
    %248 = vector.shape_cast %247 : vector<1x32x4xbf16> to vector<32x4xbf16>
    %cst_158 = arith.constant dense<0.000000e+00> : vector<32x4xf32>
    %249 = tpu.matmul %1, %248, %cst_158 {dimension_numbers = #tpu.dot_dimension_numbers<[1], [0], [0], [1], [0, 0, 1, 1], [], []>} : vector<32x32xbf16>, vector<32x4xbf16>, vector<32x4xf32> -> vector<32x4xf32>
    %c5_159 = arith.constant 5 : index
    %c0_160 = arith.constant 0 : index
    %c0_161 = arith.constant 0 : index
    %250 = vector.load %arg6[%c5_159, %c0_160, %c0_161] : memref<24x1x4xf32, #tpu.memory_space<vmem>>, vector<1x1x4xf32>
    %251 = vector.shape_cast %250 : vector<1x1x4xf32> to vector<1x4xf32>
    %252 = vector.broadcast %251 : vector<1x4xf32> to vector<32x4xf32>
    %253 = arith.addf %249, %252 : vector<32x4xf32>
    %254 = vector.shape_cast %253 : vector<32x4xf32> to vector<4x8x4xf32>
    %255 = arith.truncf %254 : vector<4x8x4xf32> to vector<4x8x4xbf16>
    %c13 = arith.constant 13 : index
    %c0_162 = arith.constant 0 : index
    %c0_163 = arith.constant 0 : index
    %256 = vector.load %arg4[%c13, %c0_162, %c0_163] : memref<24x32x4xbf16, #tpu.memory_space<vmem>>, vector<1x32x4xbf16>
    %257 = vector.shape_cast %256 : vector<1x32x4xbf16> to vector<32x4xbf16>
    %cst_164 = arith.constant dense<0.000000e+00> : vector<32x4xf32>
    %258 = tpu.matmul %3, %257, %cst_164 {dimension_numbers = #tpu.dot_dimension_numbers<[1], [0], [0], [1], [0, 0, 1, 1], [], []>} : vector<32x32xbf16>, vector<32x4xbf16>, vector<32x4xf32> -> vector<32x4xf32>
    %c13_165 = arith.constant 13 : index
    %c0_166 = arith.constant 0 : index
    %c0_167 = arith.constant 0 : index
    %259 = vector.load %arg6[%c13_165, %c0_166, %c0_167] : memref<24x1x4xf32, #tpu.memory_space<vmem>>, vector<1x1x4xf32>
    %260 = vector.shape_cast %259 : vector<1x1x4xf32> to vector<1x4xf32>
    %261 = vector.broadcast %260 : vector<1x4xf32> to vector<32x4xf32>
    %262 = arith.addf %258, %261 : vector<32x4xf32>
    %263 = vector.shape_cast %262 : vector<32x4xf32> to vector<4x8x4xf32>
    %264 = arith.truncf %263 : vector<4x8x4xf32> to vector<4x8x4xbf16>
    %c21 = arith.constant 21 : index
    %c0_168 = arith.constant 0 : index
    %c0_169 = arith.constant 0 : index
    %265 = vector.load %arg4[%c21, %c0_168, %c0_169] : memref<24x32x4xbf16, #tpu.memory_space<vmem>>, vector<1x32x4xbf16>
    %266 = vector.shape_cast %265 : vector<1x32x4xbf16> to vector<32x4xbf16>
    %cst_170 = arith.constant dense<0.000000e+00> : vector<32x4xf32>
    %267 = tpu.matmul %5, %266, %cst_170 {dimension_numbers = #tpu.dot_dimension_numbers<[1], [0], [0], [1], [0, 0, 1, 1], [], []>} : vector<32x32xbf16>, vector<32x4xbf16>, vector<32x4xf32> -> vector<32x4xf32>
    %c21_171 = arith.constant 21 : index
    %c0_172 = arith.constant 0 : index
    %c0_173 = arith.constant 0 : index
    %268 = vector.load %arg6[%c21_171, %c0_172, %c0_173] : memref<24x1x4xf32, #tpu.memory_space<vmem>>, vector<1x1x4xf32>
    %269 = vector.shape_cast %268 : vector<1x1x4xf32> to vector<1x4xf32>
    %270 = vector.broadcast %269 : vector<1x4xf32> to vector<32x4xf32>
    %271 = arith.addf %267, %270 : vector<32x4xf32>
    %272 = vector.shape_cast %271 : vector<32x4xf32> to vector<4x8x4xf32>
    %273 = arith.truncf %272 : vector<4x8x4xf32> to vector<4x8x4xbf16>
    "tpu.trace_start"() <{level = 10 : i32, message = "gqd,gkd->gqk"}> : () -> ()
    %cst_174 = arith.constant dense<0.000000e+00> : vector<4x8x8xf32>
    %274 = tpu.matmul %255, %264, %cst_174 {dimension_numbers = #tpu.dot_dimension_numbers<[2], [2], [1], [1], [0, 0, 0, 1, 1, 1], [0], [0]>} : vector<4x8x4xbf16>, vector<4x8x4xbf16>, vector<4x8x8xf32> -> vector<4x8x8xf32>
    "tpu.trace_stop"() : () -> ()
    %cst_175 = arith.constant dense<0xFF800000> : vector<4x8xf32>
    %275 = vector.multi_reduction <maximumf>, %274, %cst_175 [2] : vector<4x8x8xf32> to vector<4x8xf32>
    %276 = vector.shape_cast %275 : vector<4x8xf32> to vector<4x8x1xf32>
    %277 = vector.broadcast %276 : vector<4x8x1xf32> to vector<4x8x8xf32>
    %278 = arith.subf %274, %277 : vector<4x8x8xf32>
    %279 = math.exp %278 : vector<4x8x8xf32>
    %cst_176 = arith.constant dense<0.000000e+00> : vector<4x8xf32>
    %280 = vector.multi_reduction <add>, %279, %cst_176 [2] : vector<4x8x8xf32> to vector<4x8xf32>
    %281 = vector.shape_cast %280 : vector<4x8xf32> to vector<4x8x1xf32>
    %282 = vector.broadcast %281 : vector<4x8x1xf32> to vector<4x8x8xf32>
    %283 = arith.divf %279, %282 : vector<4x8x8xf32>
    %c5_177 = arith.constant 5 : index
    %c0_178 = arith.constant 0 : index
    %c0_179 = arith.constant 0 : index
    %c0_180 = arith.constant 0 : index
    %284 = vector.load %arg9[%c5_177, %c0_178, %c0_179, %c0_180] : memref<8x4x8x8xf32, #tpu.memory_space<vmem>>, vector<1x4x8x8xf32>
    %285 = vector.shape_cast %284 : vector<1x4x8x8xf32> to vector<4x8x8xf32>
    %286 = vector.shape_cast %283 : vector<4x8x8xf32> to vector<1x4x8x8xf32>
    tpu.vector_store %arg9[%c5_177, %c0_178, %c0_179, %c0_180], %286 {strides = array<i32>} : memref<8x4x8x8xf32, #tpu.memory_space<vmem>>, vector<1x4x8x8xf32>,
    %287 = arith.truncf %283 : vector<4x8x8xf32> to vector<4x8x8xbf16>
    "tpu.trace_start"() <{level = 10 : i32, message = "gqk,gkd->gqd"}> : () -> ()
    %cst_181 = arith.constant dense<0.000000e+00> : vector<4x8x4xf32>
    %288 = tpu.matmul %287, %273, %cst_181 {dimension_numbers = #tpu.dot_dimension_numbers<[2], [1], [1], [2], [0, 0, 0, 1, 1, 2], [0], [0]>} : vector<4x8x8xbf16>, vector<4x8x4xbf16>, vector<4x8x4xf32> -> vector<4x8x4xf32>
    "tpu.trace_stop"() : () -> ()
    %289 = vector.shape_cast %288 : vector<4x8x4xf32> to vector<32x4xf32>
    %290 = arith.truncf %289 : vector<32x4xf32> to vector<32x4xbf16>
    %c5_182 = arith.constant 5 : index
    %c0_183 = arith.constant 0 : index
    %c0_184 = arith.constant 0 : index
    %291 = vector.load %arg5[%c5_182, %c0_183, %c0_184] : memref<8x4x32xbf16, #tpu.memory_space<vmem>>, vector<1x4x32xbf16>
    %292 = vector.shape_cast %291 : vector<1x4x32xbf16> to vector<4x32xbf16>
    %cst_185 = arith.constant dense<0.000000e+00> : vector<32x32xf32>
    %293 = tpu.matmul %290, %292, %cst_185 {dimension_numbers = #tpu.dot_dimension_numbers<[1], [0], [0], [1], [0, 0, 1, 1], [], []>} : vector<32x4xbf16>, vector<4x32xbf16>, vector<32x32xf32> -> vector<32x32xf32>
    %294 = arith.addf %246, %293 : vector<32x32xf32>
    %c6 = arith.constant 6 : index
    %c0_186 = arith.constant 0 : index
    %c0_187 = arith.constant 0 : index
    %295 = vector.load %arg4[%c6, %c0_186, %c0_187] : memref<24x32x4xbf16, #tpu.memory_space<vmem>>, vector<1x32x4xbf16>
    %296 = vector.shape_cast %295 : vector<1x32x4xbf16> to vector<32x4xbf16>
    %cst_188 = arith.constant dense<0.000000e+00> : vector<32x4xf32>
    %297 = tpu.matmul %1, %296, %cst_188 {dimension_numbers = #tpu.dot_dimension_numbers<[1], [0], [0], [1], [0, 0, 1, 1], [], []>} : vector<32x32xbf16>, vector<32x4xbf16>, vector<32x4xf32> -> vector<32x4xf32>
    %c6_189 = arith.constant 6 : index
    %c0_190 = arith.constant 0 : index
    %c0_191 = arith.constant 0 : index
    %298 = vector.load %arg6[%c6_189, %c0_190, %c0_191] : memref<24x1x4xf32, #tpu.memory_space<vmem>>, vector<1x1x4xf32>
    %299 = vector.shape_cast %298 : vector<1x1x4xf32> to vector<1x4xf32>
    %300 = vector.broadcast %299 : vector<1x4xf32> to vector<32x4xf32>
    %301 = arith.addf %297, %300 : vector<32x4xf32>
    %302 = vector.shape_cast %301 : vector<32x4xf32> to vector<4x8x4xf32>
    %303 = arith.truncf %302 : vector<4x8x4xf32> to vector<4x8x4xbf16>
    %c14 = arith.constant 14 : index
    %c0_192 = arith.constant 0 : index
    %c0_193 = arith.constant 0 : index
    %304 = vector.load %arg4[%c14, %c0_192, %c0_193] : memref<24x32x4xbf16, #tpu.memory_space<vmem>>, vector<1x32x4xbf16>
    %305 = vector.shape_cast %304 : vector<1x32x4xbf16> to vector<32x4xbf16>
    %cst_194 = arith.constant dense<0.000000e+00> : vector<32x4xf32>
    %306 = tpu.matmul %3, %305, %cst_194 {dimension_numbers = #tpu.dot_dimension_numbers<[1], [0], [0], [1], [0, 0, 1, 1], [], []>} : vector<32x32xbf16>, vector<32x4xbf16>, vector<32x4xf32> -> vector<32x4xf32>
    %c14_195 = arith.constant 14 : index
    %c0_196 = arith.constant 0 : index
    %c0_197 = arith.constant 0 : index
    %307 = vector.load %arg6[%c14_195, %c0_196, %c0_197] : memref<24x1x4xf32, #tpu.memory_space<vmem>>, vector<1x1x4xf32>
    %308 = vector.shape_cast %307 : vector<1x1x4xf32> to vector<1x4xf32>
    %309 = vector.broadcast %308 : vector<1x4xf32> to vector<32x4xf32>
    %310 = arith.addf %306, %309 : vector<32x4xf32>
    %311 = vector.shape_cast %310 : vector<32x4xf32> to vector<4x8x4xf32>
    %312 = arith.truncf %311 : vector<4x8x4xf32> to vector<4x8x4xbf16>
    %c22 = arith.constant 22 : index
    %c0_198 = arith.constant 0 : index
    %c0_199 = arith.constant 0 : index
    %313 = vector.load %arg4[%c22, %c0_198, %c0_199] : memref<24x32x4xbf16, #tpu.memory_space<vmem>>, vector<1x32x4xbf16>
    %314 = vector.shape_cast %313 : vector<1x32x4xbf16> to vector<32x4xbf16>
    %cst_200 = arith.constant dense<0.000000e+00> : vector<32x4xf32>
    %315 = tpu.matmul %5, %314, %cst_200 {dimension_numbers = #tpu.dot_dimension_numbers<[1], [0], [0], [1], [0, 0, 1, 1], [], []>} : vector<32x32xbf16>, vector<32x4xbf16>, vector<32x4xf32> -> vector<32x4xf32>
    %c22_201 = arith.constant 22 : index
    %c0_202 = arith.constant 0 : index
    %c0_203 = arith.constant 0 : index
    %316 = vector.load %arg6[%c22_201, %c0_202, %c0_203] : memref<24x1x4xf32, #tpu.memory_space<vmem>>, vector<1x1x4xf32>
    %317 = vector.shape_cast %316 : vector<1x1x4xf32> to vector<1x4xf32>
    %318 = vector.broadcast %317 : vector<1x4xf32> to vector<32x4xf32>
    %319 = arith.addf %315, %318 : vector<32x4xf32>
    %320 = vector.shape_cast %319 : vector<32x4xf32> to vector<4x8x4xf32>
    %321 = arith.truncf %320 : vector<4x8x4xf32> to vector<4x8x4xbf16>
    "tpu.trace_start"() <{level = 10 : i32, message = "gqd,gkd->gqk"}> : () -> ()
    %cst_204 = arith.constant dense<0.000000e+00> : vector<4x8x8xf32>
    %322 = tpu.matmul %303, %312, %cst_204 {dimension_numbers = #tpu.dot_dimension_numbers<[2], [2], [1], [1], [0, 0, 0, 1, 1, 1], [0], [0]>} : vector<4x8x4xbf16>, vector<4x8x4xbf16>, vector<4x8x8xf32> -> vector<4x8x8xf32>
    "tpu.trace_stop"() : () -> ()
    %cst_205 = arith.constant dense<0xFF800000> : vector<4x8xf32>
    %323 = vector.multi_reduction <maximumf>, %322, %cst_205 [2] : vector<4x8x8xf32> to vector<4x8xf32>
    %324 = vector.shape_cast %323 : vector<4x8xf32> to vector<4x8x1xf32>
    %325 = vector.broadcast %324 : vector<4x8x1xf32> to vector<4x8x8xf32>
    %326 = arith.subf %322, %325 : vector<4x8x8xf32>
    %327 = math.exp %326 : vector<4x8x8xf32>
    %cst_206 = arith.constant dense<0.000000e+00> : vector<4x8xf32>
    %328 = vector.multi_reduction <add>, %327, %cst_206 [2] : vector<4x8x8xf32> to vector<4x8xf32>
    %329 = vector.shape_cast %328 : vector<4x8xf32> to vector<4x8x1xf32>
    %330 = vector.broadcast %329 : vector<4x8x1xf32> to vector<4x8x8xf32>
    %331 = arith.divf %327, %330 : vector<4x8x8xf32>
    %c6_207 = arith.constant 6 : index
    %c0_208 = arith.constant 0 : index
    %c0_209 = arith.constant 0 : index
    %c0_210 = arith.constant 0 : index
    %332 = vector.load %arg9[%c6_207, %c0_208, %c0_209, %c0_210] : memref<8x4x8x8xf32, #tpu.memory_space<vmem>>, vector<1x4x8x8xf32>
    %333 = vector.shape_cast %332 : vector<1x4x8x8xf32> to vector<4x8x8xf32>
    %334 = vector.shape_cast %331 : vector<4x8x8xf32> to vector<1x4x8x8xf32>
    tpu.vector_store %arg9[%c6_207, %c0_208, %c0_209, %c0_210], %334 {strides = array<i32>} : memref<8x4x8x8xf32, #tpu.memory_space<vmem>>, vector<1x4x8x8xf32>,
    %335 = arith.truncf %331 : vector<4x8x8xf32> to vector<4x8x8xbf16>
    "tpu.trace_start"() <{level = 10 : i32, message = "gqk,gkd->gqd"}> : () -> ()
    %cst_211 = arith.constant dense<0.000000e+00> : vector<4x8x4xf32>
    %336 = tpu.matmul %335, %321, %cst_211 {dimension_numbers = #tpu.dot_dimension_numbers<[2], [1], [1], [2], [0, 0, 0, 1, 1, 2], [0], [0]>} : vector<4x8x8xbf16>, vector<4x8x4xbf16>, vector<4x8x4xf32> -> vector<4x8x4xf32>
    "tpu.trace_stop"() : () -> ()
    %337 = vector.shape_cast %336 : vector<4x8x4xf32> to vector<32x4xf32>
    %338 = arith.truncf %337 : vector<32x4xf32> to vector<32x4xbf16>
    %c6_212 = arith.constant 6 : index
    %c0_213 = arith.constant 0 : index
    %c0_214 = arith.constant 0 : index
    %339 = vector.load %arg5[%c6_212, %c0_213, %c0_214] : memref<8x4x32xbf16, #tpu.memory_space<vmem>>, vector<1x4x32xbf16>
    %340 = vector.shape_cast %339 : vector<1x4x32xbf16> to vector<4x32xbf16>
    %cst_215 = arith.constant dense<0.000000e+00> : vector<32x32xf32>
    %341 = tpu.matmul %338, %340, %cst_215 {dimension_numbers = #tpu.dot_dimension_numbers<[1], [0], [0], [1], [0, 0, 1, 1], [], []>} : vector<32x4xbf16>, vector<4x32xbf16>, vector<32x32xf32> -> vector<32x32xf32>
    %342 = arith.addf %294, %341 : vector<32x32xf32>
    %c7 = arith.constant 7 : index
    %c0_216 = arith.constant 0 : index
    %c0_217 = arith.constant 0 : index
    %343 = vector.load %arg4[%c7, %c0_216, %c0_217] : memref<24x32x4xbf16, #tpu.memory_space<vmem>>, vector<1x32x4xbf16>
    %344 = vector.shape_cast %343 : vector<1x32x4xbf16> to vector<32x4xbf16>
    %cst_218 = arith.constant dense<0.000000e+00> : vector<32x4xf32>
    %345 = tpu.matmul %1, %344, %cst_218 {dimension_numbers = #tpu.dot_dimension_numbers<[1], [0], [0], [1], [0, 0, 1, 1], [], []>} : vector<32x32xbf16>, vector<32x4xbf16>, vector<32x4xf32> -> vector<32x4xf32>
    %c7_219 = arith.constant 7 : index
    %c0_220 = arith.constant 0 : index
    %c0_221 = arith.constant 0 : index
    %346 = vector.load %arg6[%c7_219, %c0_220, %c0_221] : memref<24x1x4xf32, #tpu.memory_space<vmem>>, vector<1x1x4xf32>
    %347 = vector.shape_cast %346 : vector<1x1x4xf32> to vector<1x4xf32>
    %348 = vector.broadcast %347 : vector<1x4xf32> to vector<32x4xf32>
    %349 = arith.addf %345, %348 : vector<32x4xf32>
    %350 = vector.shape_cast %349 : vector<32x4xf32> to vector<4x8x4xf32>
    %351 = arith.truncf %350 : vector<4x8x4xf32> to vector<4x8x4xbf16>
    %c15 = arith.constant 15 : index
    %c0_222 = arith.constant 0 : index
    %c0_223 = arith.constant 0 : index
    %352 = vector.load %arg4[%c15, %c0_222, %c0_223] : memref<24x32x4xbf16, #tpu.memory_space<vmem>>, vector<1x32x4xbf16>
    %353 = vector.shape_cast %352 : vector<1x32x4xbf16> to vector<32x4xbf16>
    %cst_224 = arith.constant dense<0.000000e+00> : vector<32x4xf32>
    %354 = tpu.matmul %3, %353, %cst_224 {dimension_numbers = #tpu.dot_dimension_numbers<[1], [0], [0], [1], [0, 0, 1, 1], [], []>} : vector<32x32xbf16>, vector<32x4xbf16>, vector<32x4xf32> -> vector<32x4xf32>
    %c15_225 = arith.constant 15 : index
    %c0_226 = arith.constant 0 : index
    %c0_227 = arith.constant 0 : index
    %355 = vector.load %arg6[%c15_225, %c0_226, %c0_227] : memref<24x1x4xf32, #tpu.memory_space<vmem>>, vector<1x1x4xf32>
    %356 = vector.shape_cast %355 : vector<1x1x4xf32> to vector<1x4xf32>
    %357 = vector.broadcast %356 : vector<1x4xf32> to vector<32x4xf32>
    %358 = arith.addf %354, %357 : vector<32x4xf32>
    %359 = vector.shape_cast %358 : vector<32x4xf32> to vector<4x8x4xf32>
    %360 = arith.truncf %359 : vector<4x8x4xf32> to vector<4x8x4xbf16>
    %c23 = arith.constant 23 : index
    %c0_228 = arith.constant 0 : index
    %c0_229 = arith.constant 0 : index
    %361 = vector.load %arg4[%c23, %c0_228, %c0_229] : memref<24x32x4xbf16, #tpu.memory_space<vmem>>, vector<1x32x4xbf16>
    %362 = vector.shape_cast %361 : vector<1x32x4xbf16> to vector<32x4xbf16>
    %cst_230 = arith.constant dense<0.000000e+00> : vector<32x4xf32>
    %363 = tpu.matmul %5, %362, %cst_230 {dimension_numbers = #tpu.dot_dimension_numbers<[1], [0], [0], [1], [0, 0, 1, 1], [], []>} : vector<32x32xbf16>, vector<32x4xbf16>, vector<32x4xf32> -> vector<32x4xf32>
    %c23_231 = arith.constant 23 : index
    %c0_232 = arith.constant 0 : index
    %c0_233 = arith.constant 0 : index
    %364 = vector.load %arg6[%c23_231, %c0_232, %c0_233] : memref<24x1x4xf32, #tpu.memory_space<vmem>>, vector<1x1x4xf32>
    %365 = vector.shape_cast %364 : vector<1x1x4xf32> to vector<1x4xf32>
    %366 = vector.broadcast %365 : vector<1x4xf32> to vector<32x4xf32>
    %367 = arith.addf %363, %366 : vector<32x4xf32>
    %368 = vector.shape_cast %367 : vector<32x4xf32> to vector<4x8x4xf32>
    %369 = arith.truncf %368 : vector<4x8x4xf32> to vector<4x8x4xbf16>
    "tpu.trace_start"() <{level = 10 : i32, message = "gqd,gkd->gqk"}> : () -> ()
    %cst_234 = arith.constant dense<0.000000e+00> : vector<4x8x8xf32>
    %370 = tpu.matmul %351, %360, %cst_234 {dimension_numbers = #tpu.dot_dimension_numbers<[2], [2], [1], [1], [0, 0, 0, 1, 1, 1], [0], [0]>} : vector<4x8x4xbf16>, vector<4x8x4xbf16>, vector<4x8x8xf32> -> vector<4x8x8xf32>
    "tpu.trace_stop"() : () -> ()
    %cst_235 = arith.constant dense<0xFF800000> : vector<4x8xf32>
    %371 = vector.multi_reduction <maximumf>, %370, %cst_235 [2] : vector<4x8x8xf32> to vector<4x8xf32>
    %372 = vector.shape_cast %371 : vector<4x8xf32> to vector<4x8x1xf32>
    %373 = vector.broadcast %372 : vector<4x8x1xf32> to vector<4x8x8xf32>
    %374 = arith.subf %370, %373 : vector<4x8x8xf32>
    %375 = math.exp %374 : vector<4x8x8xf32>
    %cst_236 = arith.constant dense<0.000000e+00> : vector<4x8xf32>
    %376 = vector.multi_reduction <add>, %375, %cst_236 [2] : vector<4x8x8xf32> to vector<4x8xf32>
    %377 = vector.shape_cast %376 : vector<4x8xf32> to vector<4x8x1xf32>
    %378 = vector.broadcast %377 : vector<4x8x1xf32> to vector<4x8x8xf32>
    %379 = arith.divf %375, %378 : vector<4x8x8xf32>
    %c7_237 = arith.constant 7 : index
    %c0_238 = arith.constant 0 : index
    %c0_239 = arith.constant 0 : index
    %c0_240 = arith.constant 0 : index
    %380 = vector.load %arg9[%c7_237, %c0_238, %c0_239, %c0_240] : memref<8x4x8x8xf32, #tpu.memory_space<vmem>>, vector<1x4x8x8xf32>
    %381 = vector.shape_cast %380 : vector<1x4x8x8xf32> to vector<4x8x8xf32>
    %382 = vector.shape_cast %379 : vector<4x8x8xf32> to vector<1x4x8x8xf32>
    tpu.vector_store %arg9[%c7_237, %c0_238, %c0_239, %c0_240], %382 {strides = array<i32>} : memref<8x4x8x8xf32, #tpu.memory_space<vmem>>, vector<1x4x8x8xf32>,
    %383 = arith.truncf %379 : vector<4x8x8xf32> to vector<4x8x8xbf16>
    "tpu.trace_start"() <{level = 10 : i32, message = "gqk,gkd->gqd"}> : () -> ()
    %cst_241 = arith.constant dense<0.000000e+00> : vector<4x8x4xf32>
    %384 = tpu.matmul %383, %369, %cst_241 {dimension_numbers = #tpu.dot_dimension_numbers<[2], [1], [1], [2], [0, 0, 0, 1, 1, 2], [0], [0]>} : vector<4x8x8xbf16>, vector<4x8x4xbf16>, vector<4x8x4xf32> -> vector<4x8x4xf32>
    "tpu.trace_stop"() : () -> ()
    %385 = vector.shape_cast %384 : vector<4x8x4xf32> to vector<32x4xf32>
    %386 = arith.truncf %385 : vector<32x4xf32> to vector<32x4xbf16>
    %c7_242 = arith.constant 7 : index
    %c0_243 = arith.constant 0 : index
    %c0_244 = arith.constant 0 : index
    %387 = vector.load %arg5[%c7_242, %c0_243, %c0_244] : memref<8x4x32xbf16, #tpu.memory_space<vmem>>, vector<1x4x32xbf16>
    %388 = vector.shape_cast %387 : vector<1x4x32xbf16> to vector<4x32xbf16>
    %cst_245 = arith.constant dense<0.000000e+00> : vector<32x32xf32>
    %389 = tpu.matmul %386, %388, %cst_245 {dimension_numbers = #tpu.dot_dimension_numbers<[1], [0], [0], [1], [0, 0, 1, 1], [], []>} : vector<32x4xbf16>, vector<4x32xbf16>, vector<32x32xf32> -> vector<32x32xf32>
    %390 = arith.addf %342, %389 : vector<32x32xf32>
    %c0_246 = arith.constant 0 : index
    %c0_247 = arith.constant 0 : index
    %391 = vector.load %arg7[%c0_246, %c0_247] : memref<1x32xf32, #tpu.memory_space<vmem>>, vector<1x32xf32>
    %392 = vector.broadcast %391 : vector<1x32xf32> to vector<32x32xf32>
    %393 = arith.addf %390, %392 : vector<32x32xf32>
    %c0_248 = arith.constant 0 : index
    %c0_249 = arith.constant 0 : index
    %394 = vector.load %arg8[%c0_248, %c0_249] : memref<32x32xf32, #tpu.memory_space<vmem>>, vector<32x32xf32>
    tpu.vector_store %arg8[%c0_248, %c0_249], %393 {strides = array<i32>} : memref<32x32xf32, #tpu.memory_space<vmem>>, vector<32x32xf32>,
    return
  }
  func.func @transform_0(%arg0: i32) -> (i32, i32) {
    %c0_i32 = arith.constant 0 : i32
    %c0_i32_0 = arith.constant 0 : i32
    return %arg0, %c0_i32 : i32, i32
  }
  func.func @transform_1(%arg0: i32) -> (i32, i32) {
    %c0_i32 = arith.constant 0 : i32
    %c0_i32_0 = arith.constant 0 : i32
    return %arg0, %c0_i32 : i32, i32
  }
  func.func @transform_2(%arg0: i32) -> (i32, i32) {
    %c0_i32 = arith.constant 0 : i32
    %c0_i32_0 = arith.constant 0 : i32
    return %arg0, %c0_i32 : i32, i32
  }
  func.func @transform_3(%arg0: i32) -> (i32, i32, i32) {
    %c0_i32 = arith.constant 0 : i32
    %c0_i32_0 = arith.constant 0 : i32
    %c0_i32_1 = arith.constant 0 : i32
    %c0_i32_2 = arith.constant 0 : i32
    return %c0_i32, %c0_i32_0, %c0_i32_1 : i32, i32, i32
  }
  func.func @transform_4(%arg0: i32) -> (i32, i32, i32) {
    %c0_i32 = arith.constant 0 : i32
    %c0_i32_0 = arith.constant 0 : i32
    %c0_i32_1 = arith.constant 0 : i32
    %c0_i32_2 = arith.constant 0 : i32
    return %c0_i32, %c0_i32_0, %c0_i32_1 : i32, i32, i32
  }
  func.func @transform_5(%arg0: i32) -> (i32, i32, i32) {
    %c0_i32 = arith.constant 0 : i32
    %c0_i32_0 = arith.constant 0 : i32
    %c0_i32_1 = arith.constant 0 : i32
    %c0_i32_2 = arith.constant 0 : i32
    return %c0_i32, %c0_i32_0, %c0_i32_1 : i32, i32, i32
  }
  func.func @transform_6(%arg0: i32) -> (i32, i32) {
    %c0_i32 = arith.constant 0 : i32
    %c0_i32_0 = arith.constant 0 : i32
    %c0_i32_1 = arith.constant 0 : i32
    return %c0_i32, %c0_i32_0 : i32, i32
  }
  func.func @transform_7(%arg0: i32) -> (i32, i32) {
    %c0_i32 = arith.constant 0 : i32
    %c0_i32_0 = arith.constant 0 : i32
    return %arg0, %c0_i32 : i32, i32
  }
  func.func @transform_8(%arg0: i32) -> (i32, i32, i32, i32) {
    %c0_i32 = arith.constant 0 : i32
    %c0_i32_0 = arith.constant 0 : i32
    %c0_i32_1 = arith.constant 0 : i32
    %c0_i32_2 = arith.constant 0 : i32
    return %c0_i32, %arg0, %c0_i32_0, %c0_i32_1 : i32, i32, i32, i32
  }
}

</mosaic_0001>

<llo_original>
// kernel: tpu_custom_call.1
$region0: #{tpu_custom_call.1}
  #allocation0 [shape = 'u32[]', space=smem, size = 0x4, offset = 0x4, fixed_abs, tag = 'smem constant byte address 0x4 - core index']
  #allocation1 [shape = 'u32[144,128]{1,0:T(1,128)}', space=vmem, size = 0x12000, scoped, tag = 'internal scratch']
  #allocation4 [shape = 's32[]', space=sflag, size = 0x4, offset = 0, fixed_abs, tag = 'sflag constant byte address 0x0 - dummy sync flag']
  %s0 = inlined_call_operand.vmem [shape: f32[64,32], index: 0, kind: input, shape index: {}]
  %s1 = inlined_call_operand.vmem [shape: f32[64,32], index: 1, kind: input, shape index: {}]
  %s2 = inlined_call_operand.vmem [shape: f32[64,32], index: 2, kind: input, shape index: {}]
  %s3 = inlined_call_operand.vmem [shape: bf16[24,32,4], index: 3, kind: input, shape index: {}]
  %s4 = inlined_call_operand.vmem [shape: bf16[8,4,32], index: 4, kind: input, shape index: {}]
  %s5 = inlined_call_operand.vmem [shape: f32[24,1,4], index: 5, kind: input, shape index: {}]
  %s6 = inlined_call_operand.vmem [shape: f32[1,32], index: 6, kind: input, shape index: {}]
  %s7 = inlined_call_operand.vmem [shape: f32[64,32], index: 7, kind: output, shape index: {0}]
  %s8 = inlined_call_operand.hbm [shape: f32[8,8,8,8], index: 8, kind: output, shape index: {1}]
  %9 = xla_tuple %s7, %s8
  %s10 = sld [smem:[#allocation0]]
  $region69: #{tpu_custom_call.1} parent=0
    _
  %s12 = ssub.s32 1, %s10
  %s13 = scalar_select 0, %s12, %s10
  $region1: #{tpu_custom_call.1} parent=0
    #allocation2 [shape = 'u8[262144]{0}', space=vmem, size = 0x40000, scoped, tag = 'output window, operand 1']
    #allocation3 [shape = 's32[2]{0}', space=sflag, size = 0x8, scoped, tag = 'scoped memory for tpu_custom_call.1']
    %14 = vsyncpa [#allocation3], 0
    %s15 = scalar_lea.sflag [#allocation3], 1
    %16 = vsyncpa %s15, 0
    loop: start=0, step=1, limit=4
    $region2: #{tpu_custom_call.1} parent=1 // loop_pre_header
      _
    $region3: #{tpu_custom_call.1} parent=1 // loop_header
      %s18 = sphi 0, %s22
      %p19 = scmp.ge.s32.totalorder %s18, 4
      %s28 = sphi 0, %s30
      %s31 = sphi 0, %s28
      %s32 = sphi 0, %s31
      %s48 = sphi 0, %s32
      %s54 = sphi 0, %s56
      %s57 = sphi 0, %s54
      %s58 = sphi 0, %s57
      %s74 = sphi 0, %s58
      %s80 = sphi 0, %s82
      %s83 = sphi 0, %s80
      %s84 = sphi 0, %s83
      %s100 = sphi 0, %s84
      %s104 = sphi 0, %s104
      %s106 = sphi 0, %s104
      %s107 = sphi 0, %s106
      %s121 = sphi 0, %s107
      %s125 = sphi 0, %s125
      %s127 = sphi 0, %s125
      %s128 = sphi 0, %s127
      %s142 = sphi 0, %s128
      %s146 = sphi 0, %s146
      %s148 = sphi 0, %s146
      %s149 = sphi 0, %s148
      %s163 = sphi 0, %s149
      %s167 = sphi 0, %s167
      %s169 = sphi 0, %s167
      %s170 = sphi 0, %s169
      %s184 = sphi 0, %s170
      %s190 = sphi 0, %s192
      %s193 = sphi 0, %s190
      %s194 = sphi 0, %s193
      %s210 = sphi 0, %s194
      %s216 = sphi 0, %s218
      %s219 = sphi 0, %s216
      %s220 = sphi 0, %s219
      %s236 = sphi 0, %s220
    $region4: #{tpu_custom_call.1} parent=1 // loop_header_branch
      %21 = sbr.rel (%p19) target = $region8
    $region5: #{tpu_custom_call.1} parent=1 // loop_body
      %s23 = ssub.s32 %s18, 1
      %s24 = ssub.s32 %s18, 2
      %s25 = sadd.s32 %s18, 1
      %s26 = ssub.s32 %s18, %s25
      %p27 = scmp.eq.s32.totalorder %s26, 0
      %s29 = sadd.s32 %s28, 1
      %s30 = scalar_select %p27, %s28, %s29
      %p33 = pneg %p27
      %p34 = scmp.eq.s32.totalorder %s18, 1
      %p35 = por %p33, %p34
      %p36 = scmp.ne.s32.totalorder %s28, %s31
      %p37 = scmp.eq.s32.totalorder %s18, 0
      %p38 = por %p36, %p37
      %p39 = scmp.ne.s32.totalorder %s28, %s31
      %p40 = scmp.eq.s32.totalorder %s23, 1
      %p41 = por %p39, %p40
      %p42 = scmp.ne.s32.totalorder %s31, %s32
      %p43 = scmp.eq.s32.totalorder %s23, 0
      %p44 = por %p42, %p43
      %p45 = scmp.ne.s32.totalorder %s31, %s32
      %p46 = scmp.eq.s32.totalorder %s24, 1
      %p47 = por %p45, %p46
      %p49 = scmp.ne.s32.totalorder %s32, %s48
      %p50 = scmp.eq.s32.totalorder %s24, 0
      %p51 = por %p49, %p50
      %s52 = ssub.s32 %s18, %s25
      %p53 = scmp.eq.s32.totalorder %s52, 0
      %s55 = sadd.s32 %s54, 1
      %s56 = scalar_select %p53, %s54, %s55
      %p59 = pneg %p53
      %p60 = scmp.eq.s32.totalorder %s18, 1
      %p61 = por %p59, %p60
      %p62 = scmp.ne.s32.totalorder %s54, %s57
      %p63 = scmp.eq.s32.totalorder %s18, 0
      %p64 = por %p62, %p63
      %p65 = scmp.ne.s32.totalorder %s54, %s57
      %p66 = scmp.eq.s32.totalorder %s23, 1
      %p67 = por %p65, %p66
      %p68 = scmp.ne.s32.totalorder %s57, %s58
      %p69 = scmp.eq.s32.totalorder %s23, 0
      %p70 = por %p68, %p69
      %p71 = scmp.ne.s32.totalorder %s57, %s58
      %p72 = scmp.eq.s32.totalorder %s24, 1
      %p73 = por %p71, %p72
      %p75 = scmp.ne.s32.totalorder %s58, %s74
      %p76 = scmp.eq.s32.totalorder %s24, 0
      %p77 = por %p75, %p76
      %s78 = ssub.s32 %s18, %s25
      %p79 = scmp.eq.s32.totalorder %s78, 0
      %s81 = sadd.s32 %s80, 1
      %s82 = scalar_select %p79, %s80, %s81
      %p85 = pneg %p79
      %p86 = scmp.eq.s32.totalorder %s18, 1
      %p87 = por %p85, %p86
      %p88 = scmp.ne.s32.totalorder %s80, %s83
      %p89 = scmp.eq.s32.totalorder %s18, 0
      %p90 = por %p88, %p89
      %p91 = scmp.ne.s32.totalorder %s80, %s83
      %p92 = scmp.eq.s32.totalorder %s23, 1
      %p93 = por %p91, %p92
      %p94 = scmp.ne.s32.totalorder %s83, %s84
      %p95 = scmp.eq.s32.totalorder %s23, 0
      %p96 = por %p94, %p95
      %p97 = scmp.ne.s32.totalorder %s83, %s84
      %p98 = scmp.eq.s32.totalorder %s24, 1
      %p99 = por %p97, %p98
      %p101 = scmp.ne.s32.totalorder %s84, %s100
      %p102 = scmp.eq.s32.totalorder %s24, 0
      %p103 = por %p101, %p102
      %s105 = sadd.s32 %s104, 1
      %p108 = scmp.eq.s32.totalorder %s18, 1
      %p109 = scmp.ne.s32.totalorder %s104, %s106
      %p110 = scmp.eq.s32.totalorder %s18, 0
      %p111 = por %p109, %p110
      %p112 = scmp.ne.s32.totalorder %s104, %s106
      %p113 = scmp.eq.s32.totalorder %s23, 1
      %p114 = por %p112, %p113
      %p115 = scmp.ne.s32.totalorder %s106, %s107
      %p116 = scmp.eq.s32.totalorder %s23, 0
      %p117 = por %p115, %p116
      %p118 = scmp.ne.s32.totalorder %s106, %s107
      %p119 = scmp.eq.s32.totalorder %s24, 1
      %p120 = por %p118, %p119
      %p122 = scmp.ne.s32.totalorder %s107, %s121
      %p123 = scmp.eq.s32.totalorder %s24, 0
      %p124 = por %p122, %p123
      %s126 = sadd.s32 %s125, 1
      %p129 = scmp.eq.s32.totalorder %s18, 1
      %p130 = scmp.ne.s32.totalorder %s125, %s127
      %p131 = scmp.eq.s32.totalorder %s18, 0
      %p132 = por %p130, %p131
      %p133 = scmp.ne.s32.totalorder %s125, %s127
      %p134 = scmp.eq.s32.totalorder %s23, 1
      %p135 = por %p133, %p134
      %p136 = scmp.ne.s32.totalorder %s127, %s128
      %p137 = scmp.eq.s32.totalorder %s23, 0
      %p138 = por %p136, %p137
      %p139 = scmp.ne.s32.totalorder %s127, %s128
      %p140 = scmp.eq.s32.totalorder %s24, 1
      %p141 = por %p139, %p140
      %p143 = scmp.ne.s32.totalorder %s128, %s142
      %p144 = scmp.eq.s32.totalorder %s24, 0
      %p145 = por %p143, %p144
      %s147 = sadd.s32 %s146, 1
      %p150 = scmp.eq.s32.totalorder %s18, 1
      %p151 = scmp.ne.s32.totalorder %s146, %s148
      %p152 = scmp.eq.s32.totalorder %s18, 0
      %p153 = por %p151, %p152
      %p154 = scmp.ne.s32.totalorder %s146, %s148
      %p155 = scmp.eq.s32.totalorder %s23, 1
      %p156 = por %p154, %p155
      %p157 = scmp.ne.s32.totalorder %s148, %s149
      %p158 = scmp.eq.s32.totalorder %s23, 0
      %p159 = por %p157, %p158
      %p160 = scmp.ne.s32.totalorder %s148, %s149
      %p161 = scmp.eq.s32.totalorder %s24, 1
      %p162 = por %p160, %p161
      %p164 = scmp.ne.s32.totalorder %s149, %s163
      %p165 = scmp.eq.s32.totalorder %s24, 0
      %p166 = por %p164, %p165
      %s168 = sadd.s32 %s167, 1
      %p171 = scmp.eq.s32.totalorder %s18, 1
      %p172 = scmp.ne.s32.totalorder %s167, %s169
      %p173 = scmp.eq.s32.totalorder %s18, 0
      %p174 = por %p172, %p173
      %p175 = scmp.ne.s32.totalorder %s167, %s169
      %p176 = scmp.eq.s32.totalorder %s23, 1
      %p177 = por %p175, %p176
      %p178 = scmp.ne.s32.totalorder %s169, %s170
      %p179 = scmp.eq.s32.totalorder %s23, 0
      %p180 = por %p178, %p179
      %p181 = scmp.ne.s32.totalorder %s169, %s170
      %p182 = scmp.eq.s32.totalorder %s24, 1
      %p183 = por %p181, %p182
      %p185 = scmp.ne.s32.totalorder %s170, %s184
      %p186 = scmp.eq.s32.totalorder %s24, 0
      %p187 = por %p185, %p186
      %s188 = ssub.s32 %s18, %s25
      %p189 = scmp.eq.s32.totalorder %s188, 0
      %s191 = sadd.s32 %s190, 1
      %s192 = scalar_select %p189, %s190, %s191
      %p195 = pneg %p189
      %p196 = scmp.eq.s32.totalorder %s18, 1
      %p197 = por %p195, %p196
      %p198 = scmp.ne.s32.totalorder %s190, %s193
      %p199 = scmp.eq.s32.totalorder %s18, 0
      %p200 = por %p198, %p199
      %p201 = scmp.ne.s32.totalorder %s190, %s193
      %p202 = scmp.eq.s32.totalorder %s23, 1
      %p203 = por %p201, %p202
      %p204 = scmp.ne.s32.totalorder %s193, %s194
      %p205 = scmp.eq.s32.totalorder %s23, 0
      %p206 = por %p204, %p205
      %p207 = scmp.ne.s32.totalorder %s193, %s194
      %p208 = scmp.eq.s32.totalorder %s24, 1
      %p209 = por %p207, %p208
      %p211 = scmp.ne.s32.totalorder %s194, %s210
      %p212 = scmp.eq.s32.totalorder %s24, 0
      %p213 = por %p211, %p212
      %s214 = ssub.s32 %s18, %s25
      %p215 = scmp.eq.s32.totalorder %s214, 0
      %s217 = sadd.s32 %s216, 1
      %s218 = scalar_select %p215, %s216, %s217
      %p221 = pneg %p215
      %p222 = scmp.eq.s32.totalorder %s18, 1
      %p223 = por %p221, %p222
      %p224 = scmp.ne.s32.totalorder %s216, %s219
      %p225 = scmp.eq.s32.totalorder %s18, 0
      %p226 = por %p224, %p225
      %p227 = scmp.ne.s32.totalorder %s216, %s219
      %p228 = scmp.eq.s32.totalorder %s23, 1
      %p229 = por %p227, %p228
      %p230 = scmp.ne.s32.totalorder %s219, %s220
      %p231 = scmp.eq.s32.totalorder %s23, 0
      %p232 = por %p230, %p231
      %p233 = scmp.ne.s32.totalorder %s219, %s220
      %p234 = scmp.eq.s32.totalorder %s24, 1
      %p235 = por %p233, %p234
      %p237 = scmp.ne.s32.totalorder %s220, %s236
      %p238 = scmp.eq.s32.totalorder %s24, 0
      %p239 = por %p237, %p238
      %p240 = scmp.le.s32.totalorder 1, %s18
      %p241 = scmp.lt.s32.totalorder %s18, 3
      %p242 = pnand %p240, %p241
      %p243 = pneg %p242
      // Predicated region
      $region9: #{tpu_custom_call.1} parent=5 // pred_check
        _
      $region10: #{tpu_custom_call.1} parent=5 // pred_check_branch
        %245 = sbr.rel (%p242) target = $region12
      $region11: #{tpu_custom_call.1} parent=5 // pred_region
        %s246 = ssub.s32 %s18, 1
        // Predicated region
        $region13: #{tpu_custom_call.1} parent=11 // pred_check
          %p247 = pneg %p117
        $region14: #{tpu_custom_call.1} parent=11 // pred_check_branch
          %249 = sbr.rel (%p247) target = $region16
        $region15: #{tpu_custom_call.1} parent=11 // pred_region
          _
        $region16: #{tpu_custom_call.1} parent=11 // pred_fallthru
          _
        // Predicated region
        $region17: #{tpu_custom_call.1} parent=11 // pred_check
          %p250 = pneg %p138
        $region18: #{tpu_custom_call.1} parent=11 // pred_check_branch
          %252 = sbr.rel (%p250) target = $region20
        $region19: #{tpu_custom_call.1} parent=11 // pred_region
          _
        $region20: #{tpu_custom_call.1} parent=11 // pred_fallthru
          _
        // Predicated region
        $region21: #{tpu_custom_call.1} parent=11 // pred_check
          %p253 = pneg %p159
        $region22: #{tpu_custom_call.1} parent=11 // pred_check_branch
          %255 = sbr.rel (%p253) target = $region24
        $region23: #{tpu_custom_call.1} parent=11 // pred_region
          _
        $region24: #{tpu_custom_call.1} parent=11 // pred_fallthru
          _
        // Predicated region
        $region25: #{tpu_custom_call.1} parent=11 // pred_check
          %p256 = pneg %p180
        $region26: #{tpu_custom_call.1} parent=11 // pred_check_branch
          %258 = sbr.rel (%p256) target = $region28
        $region27: #{tpu_custom_call.1} parent=11 // pred_region
          _
        $region28: #{tpu_custom_call.1} parent=11 // pred_fallthru
          _
      $region12: #{tpu_custom_call.1} parent=5 // pred_fallthru
        _
      %p259 = scmp.lt.s32.totalorder %s18, 2
      // Predicated region
      $region29: #{tpu_custom_call.1} parent=5 // pred_check
        %p260 = pneg %p259
      $region30: #{tpu_custom_call.1} parent=5 // pred_check_branch
        %262 = sbr.rel (%p260) target = $region32
      $region31: #{tpu_custom_call.1} parent=5 // pred_region
        // Predicated region
        $region33: #{tpu_custom_call.1} parent=31 // pred_check
          %p263 = pneg %p38
        $region34: #{tpu_custom_call.1} parent=31 // pred_check_branch
          %265 = sbr.rel (%p263) target = $region36
        $region35: #{tpu_custom_call.1} parent=31 // pred_region
          %s266 = smul.u32 4, %s18
          %p267 = scmp.lt.s32.totalorder %s266, 7
          %s268 = scalar_select %p267, %s266, 7
          %s269 = smul.addr %s268, 8
          %s270 = scalar_lea.vmem %s0, %s269
          %s271 = smul.u32 4, %s18
        $region36: #{tpu_custom_call.1} parent=31 // pred_fallthru
          _
        // Predicated region
        $region37: #{tpu_custom_call.1} parent=31 // pred_check
          %p272 = pneg %p64
        $region38: #{tpu_custom_call.1} parent=31 // pred_check_branch
          %274 = sbr.rel (%p272) target = $region40
        $region39: #{tpu_custom_call.1} parent=31 // pred_region
          %s275 = smul.u32 4, %s18
          %p276 = scmp.lt.s32.totalorder %s275, 7
          %s277 = scalar_select %p276, %s275, 7
          %s278 = smul.addr %s277, 8
          %s279 = scalar_lea.vmem %s1, %s278
          %s280 = smul.u32 4, %s18
        $region40: #{tpu_custom_call.1} parent=31 // pred_fallthru
          _
        // Predicated region
        $region41: #{tpu_custom_call.1} parent=31 // pred_check
          %p281 = pneg %p90
        $region42: #{tpu_custom_call.1} parent=31 // pred_check_branch
          %283 = sbr.rel (%p281) target = $region44
        $region43: #{tpu_custom_call.1} parent=31 // pred_region
          %s284 = smul.u32 4, %s18
          %p285 = scmp.lt.s32.totalorder %s284, 7
          %s286 = scalar_select %p285, %s284, 7
          %s287 = smul.addr %s286, 8
          %s288 = scalar_lea.vmem %s2, %s287
          %s289 = smul.u32 4, %s18
        $region44: #{tpu_custom_call.1} parent=31 // pred_fallthru
          _
      $region32: #{tpu_custom_call.1} parent=5 // pred_fallthru
        _
      %p290 = scmp.le.s32.totalorder 1, %s18
      %p291 = scmp.lt.s32.totalorder %s18, 3
      %p292 = pnand %p290, %p291
      %p293 = pneg %p292
      // Predicated region
      $region45: #{tpu_custom_call.1} parent=5 // pred_check
        _
      $region46: #{tpu_custom_call.1} parent=5 // pred_check_branch
        %295 = sbr.rel (%p292) target = $region48
      $region47: #{tpu_custom_call.1} parent=5 // pred_region
        %s296 = ssub.s32 %s18, 1
        %s297 = smul.u32 4, %s23
        %p298 = scmp.lt.s32.totalorder %s297, 7
        %s299 = scalar_select %p298, %s297, 7
        %s300 = smul.addr %s299, 8
        %s301 = scalar_lea.vmem %s0, %s300
        %p302 = pneg %p44
        %p303 = pneg %p41
        %s304 = smul.u32 4, %s23
        %p305 = scmp.lt.s32.totalorder %s304, 7
        %s306 = scalar_select %p305, %s304, 7
        %s307 = smul.addr %s306, 8
        %s308 = scalar_lea.vmem %s1, %s307
        %p309 = pneg %p70
        %p310 = pneg %p67
        %s311 = smul.u32 4, %s23
        %p312 = scmp.lt.s32.totalorder %s311, 7
        %s313 = scalar_select %p312, %s311, 7
        %s314 = smul.addr %s313, 8
        %s315 = scalar_lea.vmem %s2, %s314
        %p316 = pneg %p96
        %p317 = pneg %p93
        %p318 = pneg %p117
        %p319 = pneg %p114
        %p320 = pneg %p138
        %p321 = pneg %p135
        %p322 = pneg %p159
        %p323 = pneg %p156
        %p324 = pneg %p180
        %p325 = pneg %p177
        %p326 = pneg %p206
        %p327 = pneg %p203
        %s328 = smul.u32 4, %s23
        %p329 = scmp.lt.s32.totalorder %s328, 7
        %s330 = scalar_select %p329, %s328, 7
        %s331 = smul.addr %s330, 8
        %s332 = scalar_lea.vmem %s7, %s331
        %p333 = pneg %p232
        %p334 = pneg %p229
        %s335 = sand.u32 %s219, 1
        %s336 = scalar_lea.sflag [#allocation3], %s335
        %s337 = sand.u32 %s219, 1
        %s338 = smul.addr %s337, 256
        %s339 = scalar_lea.vmem [#allocation2], %s338
        %s340 = smul.u32 4, %s23
        %p341 = scmp.lt.s32.totalorder %s340, 7
        %s342 = scalar_select %p341, %s340, 7
        %s343 = smul.addr %s342, 8
        %s344 = scalar_lea.vmem %s0, %s343
        %s345 = smul.u32 4, %s23
        %s346 = smul.u32 4, %s23
        %p347 = scmp.lt.s32.totalorder %s346, 7
        %s348 = scalar_select %p347, %s346, 7
        %s349 = smul.addr %s348, 8
        %s350 = scalar_lea.vmem %s1, %s349
        %s351 = smul.u32 4, %s23
        %s352 = smul.u32 4, %s23
        %p353 = scmp.lt.s32.totalorder %s352, 7
        %s354 = scalar_select %p353, %s352, 7
        %s355 = smul.addr %s354, 8
        %s356 = scalar_lea.vmem %s2, %s355
        %s357 = smul.u32 4, %s23
        %s358 = smul.u32 4, %s23
        %p359 = scmp.lt.s32.totalorder %s358, 7
        %s360 = scalar_select %p359, %s358, 7
        %s361 = smul.addr %s360, 8
        %s362 = scalar_lea.vmem %s7, %s361
        %s363 = smul.u32 4, %s23
        %s364 = smul.u32 4, %s23
        %v366 = vld [vmem:[%s344] sm:$0xff]
        %v367 = vld [vmem:[%s344 + $0x8] sm:$0xff]
        %v368 = vld [vmem:[%s344 + $0x10] sm:$0xff]
        %v369 = vld [vmem:[%s344 + $0x18] sm:$0xff]
        %v370 = vpack.c.bf16 %v367, %v366
        %v371 = vpack.c.bf16 %v369, %v368
        %v372 = vld [vmem:[%s350] sm:$0xff]
        %v373 = vld [vmem:[%s350 + $0x8] sm:$0xff]
        %v374 = vld [vmem:[%s350 + $0x10] sm:$0xff]
        %v375 = vld [vmem:[%s350 + $0x18] sm:$0xff]
        %v376 = vpack.c.bf16 %v373, %v372
        %v377 = vpack.c.bf16 %v375, %v374
        %v378 = vld [vmem:[%s356] sm:$0xff]
        %v379 = vld [vmem:[%s356 + $0x8] sm:$0xff]
        %v380 = vld [vmem:[%s356 + $0x10] sm:$0xff]
        %v381 = vld [vmem:[%s356 + $0x18] sm:$0xff]
        %v382 = vpack.c.bf16 %v379, %v378
        %v383 = vpack.c.bf16 %v381, %v380
        %v384 = vld [vmem:[%s3] sm:$0xf]
        %v385 = vld [vmem:[%s3 + $0x4] sm:$0xf]
        %v386 = vld [vmem:[%s3 + $0x8] sm:$0xf]
        %v387 = vld [vmem:[%s3 + $0xc] sm:$0xf]
        %v388 = vld [vmem:[%s5] sm:$0x1]
        %v390 = vlaneseq
        %v391 = vshrl.u32 %v390, 7
        %v392 = vsub.s32 0, %v391
        %v393 = vrot.slane %v388, %v392
        %v399 = vunpack.c.l.b16 %v384
        %v400 = vunpack.c.l.b16 %v385
        %v401 = vunpack.c.l.b16 %v386
        %v402 = vunpack.c.l.b16 %v387
        %v403 = vpack.c.b16 %v400, %v399
        %v404 = vpack.c.b16 %v402, %v401
        %vm407 = vcmask 261120
        %v409 = vsel %vm407, %v370, 0
        %v412 = vsel %vm407, %v371, 0
        %414 = vmatprep.subr.bf16.mxu0 0
        %415 = vmatpush1.bf16.msra.mxu0 0
        %416 = vmatprep.subr.bf16.mxu0 0
        %417 = vmatpush1.bf16.msra.mxu0 0
        %418 = vmatprep.subr.bf16.mxu0 0
        %419 = vmatpush1.bf16.msra.mxu0 0
        %420 = vmatprep.subr.bf16.mxu0 0
        %421 = vmatpush1.bf16.msra.mxu0 0
        %422 = vmatprep.subr.bf16.mxu0 0
        %423 = vmatpush1.bf16.msra.mxu0 0
        %424 = vmatprep.subr.bf16.mxu0 0
        %425 = vmatpush1.bf16.msra.mxu0 0
        %426 = vmatprep.subr.bf16.mxu0 0
        %427 = vmatpush1.bf16.msra.mxu0 %v404
        %428 = vmatprep.subr.bf16.mxu0 0
        %429 = vmatpush1.bf16.msra.mxu0 %v403
        %430 = vmatprep.subr.bf16.mxu0 0
        %431 = vmatpush2.bf16.msra.mxu0 0
        %432 = vmatprep.subr.bf16.mxu0 0
        %433 = vmatpush2.bf16.msra.mxu0 0
        %434 = vmatprep.subr.bf16.mxu0 0
        %435 = vmatpush2.bf16.msra.mxu0 0
        %436 = vmatprep.subr.bf16.mxu0 0
        %437 = vmatpush2.bf16.msra.mxu0 0
        %438 = vmatprep.subr.bf16.mxu0 0
        %439 = vmatpush2.bf16.msra.mxu0 0
        %440 = vmatprep.subr.bf16.mxu0 0
        %441 = vmatpush2.bf16.msra.mxu0 0
        %442 = vmatprep.subr.bf16.mxu0 0
        %443 = vmatpush2.bf16.msra.mxu0 0
        %444 = vmatprep.subr.bf16.mxu0 0
        %445 = vmatpush2.bf16.msra.mxu0 0
        %446 = vmatprep.mubr.bf16.mxu0 0
        %447 = vmatmul.mubr.bf16.gmra.mxu0 %v409
        %v448 = vpop.f32.mrf.mxu0
        %v449 = vadd.f32 %v393, %v448
        %v450 = vpop.f32.mrf.mxu0
        %v451 = vpop.f32.mrf.mxu0
        %v452 = vadd.f32 %v393, %v451
        %v453 = vpop.f32.mrf.mxu0
        %454 = vmatprep.mubr.bf16.mxu0 0
        %455 = vmatmul.mubr.bf16.gmra.mxu0 %v412
        %v456 = vpop.f32.mrf.mxu0
        %v457 = vadd.f32 %v393, %v456
        %v458 = vpop.f32.mrf.mxu0
        %v459 = vpop.f32.mrf.mxu0
        %v460 = vadd.f32 %v393, %v459
        %v461 = vpop.f32.mrf.mxu0
        %462 = vdwg.mxu0
        %v463 = vpack.c.bf16 %v449, %v449
        %v464 = vpack.c.bf16 %v452, %v452
        %v465 = vpack.c.bf16 %v457, %v457
        %v466 = vpack.c.bf16 %v460, %v460
        %s467 = scalar_lea.vmem %s3, 128
        %v468 = vld [vmem:[%s467] sm:$0xf]
        %v469 = vld [vmem:[%s467 + $0x4] sm:$0xf]
        %v470 = vld [vmem:[%s467 + $0x8] sm:$0xf]
        %v471 = vld [vmem:[%s467 + $0xc] sm:$0xf]
        %s472 = scalar_lea.vmem %s5, 8
        %v473 = vld [vmem:[%s472] sm:$0x1]
        %v475 = vlaneseq
        %v476 = vshrl.u32 %v475, 7
        %v477 = vsub.s32 0, %v476
        %v478 = vrot.slane %v473, %v477
        %v484 = vunpack.c.l.b16 %v468
        %v485 = vunpack.c.l.b16 %v469
        %v486 = vunpack.c.l.b16 %v470
        %v487 = vunpack.c.l.b16 %v471
        %v488 = vpack.c.b16 %v485, %v484
        %v489 = vpack.c.b16 %v487, %v486
        %v493 = vsel %vm407, %v376, 0
        %v496 = vsel %vm407, %v377, 0
        %498 = vmatprep.subr.bf16.mxu0 0
        %499 = vmatpush1.bf16.msra.mxu0 0
        %500 = vmatprep.subr.bf16.mxu0 0
        %501 = vmatpush1.bf16.msra.mxu0 0
        %502 = vmatprep.subr.bf16.mxu0 0
        %503 = vmatpush1.bf16.msra.mxu0 0
        %504 = vmatprep.subr.bf16.mxu0 0
        %505 = vmatpush1.bf16.msra.mxu0 0
        %506 = vmatprep.subr.bf16.mxu0 0
        %507 = vmatpush1.bf16.msra.mxu0 0
        %508 = vmatprep.subr.bf16.mxu0 0
        %509 = vmatpush1.bf16.msra.mxu0 0
        %510 = vmatprep.subr.bf16.mxu0 0
        %511 = vmatpush1.bf16.msra.mxu0 %v489
        %512 = vmatprep.subr.bf16.mxu0 0
        %513 = vmatpush1.bf16.msra.mxu0 %v488
        %514 = vmatprep.subr.bf16.mxu0 0
        %515 = vmatpush2.bf16.msra.mxu0 0
        %516 = vmatprep.subr.bf16.mxu0 0
        %517 = vmatpush2.bf16.msra.mxu0 0
        %518 = vmatprep.subr.bf16.mxu0 0
        %519 = vmatpush2.bf16.msra.mxu0 0
        %520 = vmatprep.subr.bf16.mxu0 0
        %521 = vmatpush2.bf16.msra.mxu0 0
        %522 = vmatprep.subr.bf16.mxu0 0
        %523 = vmatpush2.bf16.msra.mxu0 0
        %524 = vmatprep.subr.bf16.mxu0 0
        %525 = vmatpush2.bf16.msra.mxu0 0
        %526 = vmatprep.subr.bf16.mxu0 0
        %527 = vmatpush2.bf16.msra.mxu0 0
        %528 = vmatprep.subr.bf16.mxu0 0
        %529 = vmatpush2.bf16.msra.mxu0 0
        %530 = vmatprep.mubr.bf16.mxu0 0
        %531 = vmatmul.mubr.bf16.gmra.mxu0 %v493
        %v532 = vpop.f32.mrf.mxu0
        %v533 = vadd.f32 %v478, %v532
        %v534 = vpop.f32.mrf.mxu0
        %v535 = vpop.f32.mrf.mxu0
        %v536 = vadd.f32 %v478, %v535
        %v537 = vpop.f32.mrf.mxu0
        %538 = vmatprep.mubr.bf16.mxu0 0
        %539 = vmatmul.mubr.bf16.gmra.mxu0 %v496
        %v540 = vpop.f32.mrf.mxu0
        %v541 = vadd.f32 %v478, %v540
        %v542 = vpop.f32.mrf.mxu0
        %v543 = vpop.f32.mrf.mxu0
        %v544 = vadd.f32 %v478, %v543
        %v545 = vpop.f32.mrf.mxu0
        %546 = vdwg.mxu0
        %v547 = vpack.c.bf16 %v533, %v533
        %v548 = vpack.c.bf16 %v536, %v536
        %v549 = vpack.c.bf16 %v541, %v541
        %v550 = vpack.c.bf16 %v544, %v544
        %s551 = scalar_lea.vmem %s3, 256
        %v552 = vld [vmem:[%s551] sm:$0xf]
        %v553 = vld [vmem:[%s551 + $0x4] sm:$0xf]
        %v554 = vld [vmem:[%s551 + $0x8] sm:$0xf]
        %v555 = vld [vmem:[%s551 + $0xc] sm:$0xf]
        %s556 = scalar_lea.vmem %s5, 16
        %v557 = vld [vmem:[%s556] sm:$0x1]
        %v559 = vlaneseq
        %v560 = vshrl.u32 %v559, 7
        %v561 = vsub.s32 0, %v560
        %v562 = vrot.slane %v557, %v561
        %v568 = vunpack.c.l.b16 %v552
        %v569 = vunpack.c.l.b16 %v553
        %v570 = vunpack.c.l.b16 %v554
        %v571 = vunpack.c.l.b16 %v555
        %v572 = vpack.c.b16 %v569, %v568
        %v573 = vpack.c.b16 %v571, %v570
        %v577 = vsel %vm407, %v382, 0
        %v580 = vsel %vm407, %v383, 0
        %582 = vmatprep.subr.bf16.mxu0 0
        %583 = vmatpush1.bf16.msra.mxu0 0
        %584 = vmatprep.subr.bf16.mxu0 0
        %585 = vmatpush1.bf16.msra.mxu0 0
        %586 = vmatprep.subr.bf16.mxu0 0
        %587 = vmatpush1.bf16.msra.mxu0 0
        %588 = vmatprep.subr.bf16.mxu0 0
        %589 = vmatpush1.bf16.msra.mxu0 0
        %590 = vmatprep.subr.bf16.mxu0 0
        %591 = vmatpush1.bf16.msra.mxu0 0
        %592 = vmatprep.subr.bf16.mxu0 0
        %593 = vmatpush1.bf16.msra.mxu0 0
        %594 = vmatprep.subr.bf16.mxu0 0
        %595 = vmatpush1.bf16.msra.mxu0 %v573
        %596 = vmatprep.subr.bf16.mxu0 0
        %597 = vmatpush1.bf16.msra.mxu0 %v572
        %598 = vmatprep.subr.bf16.mxu0 0
        %599 = vmatpush2.bf16.msra.mxu0 0
        %600 = vmatprep.subr.bf16.mxu0 0
        %601 = vmatpush2.bf16.msra.mxu0 0
        %602 = vmatprep.subr.bf16.mxu0 0
        %603 = vmatpush2.bf16.msra.mxu0 0
        %604 = vmatprep.subr.bf16.mxu0 0
        %605 = vmatpush2.bf16.msra.mxu0 0
        %606 = vmatprep.subr.bf16.mxu0 0
        %607 = vmatpush2.bf16.msra.mxu0 0
        %608 = vmatprep.subr.bf16.mxu0 0
        %609 = vmatpush2.bf16.msra.mxu0 0
        %610 = vmatprep.subr.bf16.mxu0 0
        %611 = vmatpush2.bf16.msra.mxu0 0
        %612 = vmatprep.subr.bf16.mxu0 0
        %613 = vmatpush2.bf16.msra.mxu0 0
        %614 = vmatprep.mubr.bf16.mxu0 0
        %615 = vmatmul.mubr.bf16.gmra.mxu0 %v577
        %v616 = vpop.f32.mrf.mxu0
        %v617 = vadd.f32 %v562, %v616
        %v618 = vpop.f32.mrf.mxu0
        %v619 = vpop.f32.mrf.mxu0
        %v620 = vadd.f32 %v562, %v619
        %v621 = vpop.f32.mrf.mxu0
        %622 = vmatprep.mubr.bf16.mxu0 0
        %623 = vmatmul.mubr.bf16.gmra.mxu0 %v580
        %v624 = vpop.f32.mrf.mxu0
        %v625 = vadd.f32 %v562, %v624
        %v626 = vpop.f32.mrf.mxu0
        %v627 = vpop.f32.mrf.mxu0
        %v628 = vadd.f32 %v562, %v627
        %v629 = vpop.f32.mrf.mxu0
        %630 = vdwg.mxu0
        %v631 = vpack.c.bf16 %v617, %v617
        %v632 = vpack.c.bf16 %v620, %v620
        %v633 = vpack.c.bf16 %v625, %v625
        %v634 = vpack.c.bf16 %v628, %v628
        %vm635 = vcmask 31744
        %v637 = vsel %vm635, %v463, 0
        %v640 = vsel %vm635, %v547, 0
        %642 = vmatprep.subr.bf16.mxu0 0
        %643 = vmatpush1.bf16.xpose.msra.mxu0 0
        %644 = vmatprep.subr.bf16.mxu0 0
        %645 = vmatpush1.bf16.xpose.msra.mxu0 0
        %646 = vmatprep.subr.bf16.mxu0 0
        %647 = vmatpush1.bf16.xpose.msra.mxu0 0
        %648 = vmatprep.subr.bf16.mxu0 0
        %649 = vmatpush1.bf16.xpose.msra.mxu0 0
        %650 = vmatprep.subr.bf16.mxu0 0
        %651 = vmatpush1.bf16.xpose.msra.mxu0 0
        %652 = vmatprep.subr.bf16.mxu0 0
        %653 = vmatpush1.bf16.xpose.msra.mxu0 0
        %654 = vmatprep.subr.bf16.mxu0 0
        %655 = vmatpush1.bf16.xpose.msra.mxu0 0
        %656 = vmatprep.subr.bf16.mxu0 0
        %657 = vmatpush1.bf16.xpose.msra.mxu0 %v640
        %658 = vmatprep.subr.bf16.mxu0 0
        %659 = vmatpush2.bf16.xpose.msra.mxu0 0
        %660 = vmatprep.subr.bf16.mxu0 0
        %661 = vmatpush2.bf16.xpose.msra.mxu0 0
        %662 = vmatprep.subr.bf16.mxu0 0
        %663 = vmatpush2.bf16.xpose.msra.mxu0 0
        %664 = vmatprep.subr.bf16.mxu0 0
        %665 = vmatpush2.bf16.xpose.msra.mxu0 0
        %666 = vmatprep.subr.bf16.mxu0 0
        %667 = vmatpush2.bf16.xpose.msra.mxu0 0
        %668 = vmatprep.subr.bf16.mxu0 0
        %669 = vmatpush2.bf16.xpose.msra.mxu0 0
        %670 = vmatprep.subr.bf16.mxu0 0
        %671 = vmatpush2.bf16.xpose.msra.mxu0 0
        %672 = vmatprep.subr.bf16.mxu0 0
        %673 = vmatpush2.bf16.xpose.msra.mxu0 0
        %674 = vmatprep.mubr.bf16.mxu0 0
        %675 = vmatmul.mubr.bf16.gmra.mxu0 %v637
        %v676 = vpop.f32.mrf.mxu0
        %v677 = vadd.f32 0.0, %v676
        %v678 = vpop.f32.mrf.mxu0
        %v679 = vpop.f32.mrf.mxu0
        %v680 = vpop.f32.mrf.mxu0
        %681 = vdwg.mxu0
        %v683 = vsel %vm635, %v464, 0
        %v686 = vsel %vm635, %v548, 0
        %688 = vmatprep.subr.bf16.mxu0 0
        %689 = vmatpush1.bf16.xpose.msra.mxu0 0
        %690 = vmatprep.subr.bf16.mxu0 0
        %691 = vmatpush1.bf16.xpose.msra.mxu0 0
        %692 = vmatprep.subr.bf16.mxu0 0
        %693 = vmatpush1.bf16.xpose.msra.mxu0 0
        %694 = vmatprep.subr.bf16.mxu0 0
        %695 = vmatpush1.bf16.xpose.msra.mxu0 0
        %696 = vmatprep.subr.bf16.mxu0 0
        %697 = vmatpush1.bf16.xpose.msra.mxu0 0
        %698 = vmatprep.subr.bf16.mxu0 0
        %699 = vmatpush1.bf16.xpose.msra.mxu0 0
        %700 = vmatprep.subr.bf16.mxu0 0
        %701 = vmatpush1.bf16.xpose.msra.mxu0 0
        %702 = vmatprep.subr.bf16.mxu0 0
        %703 = vmatpush1.bf16.xpose.msra.mxu0 %v686
        %704 = vmatprep.subr.bf16.mxu0 0
        %705 = vmatpush2.bf16.xpose.msra.mxu0 0
        %706 = vmatprep.subr.bf16.mxu0 0
        %707 = vmatpush2.bf16.xpose.msra.mxu0 0
        %708 = vmatprep.subr.bf16.mxu0 0
        %709 = vmatpush2.bf16.xpose.msra.mxu0 0
        %710 = vmatprep.subr.bf16.mxu0 0
        %711 = vmatpush2.bf16.xpose.msra.mxu0 0
        %712 = vmatprep.subr.bf16.mxu0 0
        %713 = vmatpush2.bf16.xpose.msra.mxu0 0
        %714 = vmatprep.subr.bf16.mxu0 0
        %715 = vmatpush2.bf16.xpose.msra.mxu0 0
        %716 = vmatprep.subr.bf16.mxu0 0
        %717 = vmatpush2.bf16.xpose.msra.mxu0 0
        %718 = vmatprep.subr.bf16.mxu0 0
        %719 = vmatpush2.bf16.xpose.msra.mxu0 0
        %720 = vmatprep.mubr.bf16.mxu0 0
        %721 = vmatmul.mubr.bf16.gmra.mxu0 %v683
        %v722 = vpop.f32.mrf.mxu0
        %v723 = vadd.f32 0.0, %v722
        %v724 = vpop.f32.mrf.mxu0
        %v725 = vpop.f32.mrf.mxu0
        %v726 = vpop.f32.mrf.mxu0
        %727 = vdwg.mxu0
        %v729 = vsel %vm635, %v465, 0
        %v732 = vsel %vm635, %v549, 0
        %734 = vmatprep.subr.bf16.mxu0 0
        %735 = vmatpush1.bf16.xpose.msra.mxu0 0
        %736 = vmatprep.subr.bf16.mxu0 0
        %737 = vmatpush1.bf16.xpose.msra.mxu0 0
        %738 = vmatprep.subr.bf16.mxu0 0
        %739 = vmatpush1.bf16.xpose.msra.mxu0 0
        %740 = vmatprep.subr.bf16.mxu0 0
        %741 = vmatpush1.bf16.xpose.msra.mxu0 0
        %742 = vmatprep.subr.bf16.mxu0 0
        %743 = vmatpush1.bf16.xpose.msra.mxu0 0
        %744 = vmatprep.subr.bf16.mxu0 0
        %745 = vmatpush1.bf16.xpose.msra.mxu0 0
        %746 = vmatprep.subr.bf16.mxu0 0
        %747 = vmatpush1.bf16.xpose.msra.mxu0 0
        %748 = vmatprep.subr.bf16.mxu0 0
        %749 = vmatpush1.bf16.xpose.msra.mxu0 %v732
        %750 = vmatprep.subr.bf16.mxu0 0
        %751 = vmatpush2.bf16.xpose.msra.mxu0 0
        %752 = vmatprep.subr.bf16.mxu0 0
        %753 = vmatpush2.bf16.xpose.msra.mxu0 0
        %754 = vmatprep.subr.bf16.mxu0 0
        %755 = vmatpush2.bf16.xpose.msra.mxu0 0
        %756 = vmatprep.subr.bf16.mxu0 0
        %757 = vmatpush2.bf16.xpose.msra.mxu0 0
        %758 = vmatprep.subr.bf16.mxu0 0
        %759 = vmatpush2.bf16.xpose.msra.mxu0 0
        %760 = vmatprep.subr.bf16.mxu0 0
        %761 = vmatpush2.bf16.xpose.msra.mxu0 0
        %762 = vmatprep.subr.bf16.mxu0 0
        %763 = vmatpush2.bf16.xpose.msra.mxu0 0
        %764 = vmatprep.subr.bf16.mxu0 0
        %765 = vmatpush2.bf16.xpose.msra.mxu0 0
        %766 = vmatprep.mubr.bf16.mxu0 0
        %767 = vmatmul.mubr.bf16.gmra.mxu0 %v729
        %v768 = vpop.f32.mrf.mxu0
        %v769 = vadd.f32 0.0, %v768
        %v770 = vpop.f32.mrf.mxu0
        %v771 = vpop.f32.mrf.mxu0
        %v772 = vpop.f32.mrf.mxu0
        %773 = vdwg.mxu0
        %v775 = vsel %vm635, %v466, 0
        %v778 = vsel %vm635, %v550, 0
        %780 = vmatprep.subr.bf16.mxu0 0
        %781 = vmatpush1.bf16.xpose.msra.mxu0 0
        %782 = vmatprep.subr.bf16.mxu0 0
        %783 = vmatpush1.bf16.xpose.msra.mxu0 0
        %784 = vmatprep.subr.bf16.mxu0 0
        %785 = vmatpush1.bf16.xpose.msra.mxu0 0
        %786 = vmatprep.subr.bf16.mxu0 0
        %787 = vmatpush1.bf16.xpose.msra.mxu0 0
        %788 = vmatprep.subr.bf16.mxu0 0
        %789 = vmatpush1.bf16.xpose.msra.mxu0 0
        %790 = vmatprep.subr.bf16.mxu0 0
        %791 = vmatpush1.bf16.xpose.msra.mxu0 0
        %792 = vmatprep.subr.bf16.mxu0 0
        %793 = vmatpush1.bf16.xpose.msra.mxu0 0
        %794 = vmatprep.subr.bf16.mxu0 0
        %795 = vmatpush1.bf16.xpose.msra.mxu0 %v778
        %796 = vmatprep.subr.bf16.mxu0 0
        %797 = vmatpush2.bf16.xpose.msra.mxu0 0
        %798 = vmatprep.subr.bf16.mxu0 0
        %799 = vmatpush2.bf16.xpose.msra.mxu0 0
        %800 = vmatprep.subr.bf16.mxu0 0
        %801 = vmatpush2.bf16.xpose.msra.mxu0 0
        %802 = vmatprep.subr.bf16.mxu0 0
        %803 = vmatpush2.bf16.xpose.msra.mxu0 0
        %804 = vmatprep.subr.bf16.mxu0 0
        %805 = vmatpush2.bf16.xpose.msra.mxu0 0
        %806 = vmatprep.subr.bf16.mxu0 0
        %807 = vmatpush2.bf16.xpose.msra.mxu0 0
        %808 = vmatprep.subr.bf16.mxu0 0
        %809 = vmatpush2.bf16.xpose.msra.mxu0 0
        %810 = vmatprep.subr.bf16.mxu0 0
        %811 = vmatpush2.bf16.xpose.msra.mxu0 0
        %812 = vmatprep.mubr.bf16.mxu0 0
        %813 = vmatmul.mubr.bf16.gmra.mxu0 %v775
        %v814 = vpop.f32.mrf.mxu0
        %v815 = vadd.f32 0.0, %v814
        %v816 = vpop.f32.mrf.mxu0
        %v817 = vpop.f32.mrf.mxu0
        %v818 = vpop.f32.mrf.mxu0
        %819 = vdwg.mxu0
        %vm820 = vcmask 64512
        %v821 = vsel %vm820, %v677, -inf
        %822 = vmax.xlane.f32.xlu0 %v821
        %v823 = vpop.xlane.xlu0 %822
        %v824 = vsel %vm820, %v723, -inf
        %825 = vmax.xlane.f32.xlu0 %v824
        %v826 = vpop.xlane.xlu0 %825
        %v827 = vsel %vm820, %v769, -inf
        %828 = vmax.xlane.f32.xlu0 %v827
        %v829 = vpop.xlane.xlu0 %828
        %v830 = vsel %vm820, %v815, -inf
        %831 = vmax.xlane.f32.xlu0 %v830
        %v832 = vpop.xlane.xlu0 %831
        %v833 = vsub.f32 %v677, %v823
        %v834 = vsub.f32 %v723, %v826
        %v835 = vsub.f32 %v769, %v829
        %v836 = vsub.f32 %v815, %v832
        %v837 = vmul.f32 %v833, 1.442695
        %v838 = vpow.pop %v837
        %v839 = vmul.f32 %v834, 1.442695
        %v840 = vpow.pop %v839
        %v841 = vmul.f32 %v835, 1.442695
        %v842 = vpow.pop %v841
        %v843 = vmul.f32 %v836, 1.442695
        %v844 = vpow.pop %v843
        %v845 = vsel %vm820, %v838, 0.0
        %846 = vadd.xlane.f32.xlu0 %v845
        %v847 = vpop.xlane.xlu0 %846
        %v848 = vsel %vm820, %v840, 0.0
        %849 = vadd.xlane.f32.xlu0 %v848
        %v850 = vpop.xlane.xlu0 %849
        %v851 = vsel %vm820, %v842, 0.0
        %852 = vadd.xlane.f32.xlu0 %v851
        %v853 = vpop.xlane.xlu0 %852
        %v854 = vsel %vm820, %v844, 0.0
        %855 = vadd.xlane.f32.xlu0 %v854
        %v856 = vpop.xlane.xlu0 %855
        %v857 = vrcp.pop %v847
        %v858 = vmul.f32 %v838, %v857
        %v859 = vrcp.pop %v850
        %v860 = vmul.f32 %v840, %v859
        %v861 = vrcp.pop %v853
        %v862 = vmul.f32 %v842, %v861
        %v863 = vrcp.pop %v856
        %v864 = vmul.f32 %v844, %v863
        %865 = vst.msk [vmem:[%s339] sm:$0xff] %vm820, %v858
        %866 = vst.msk [vmem:[%s339 + $0x8] sm:$0xff] %vm820, %v860
        %867 = vst.msk [vmem:[%s339 + $0x10] sm:$0xff] %vm820, %v862
        %868 = vst.msk [vmem:[%s339 + $0x18] sm:$0xff] %vm820, %v864
        %v869 = vpack.c.bf16 %v858, %v858
        %v870 = vpack.c.bf16 %v860, %v860
        %v871 = vpack.c.bf16 %v862, %v862
        %v872 = vpack.c.bf16 %v864, %v864
        %v874 = vsel %vm820, %v869, 0
        %vm876 = vcmask 1043456
        %v878 = vsel %vm876, %v631, 0
        %880 = vmatprep.subr.bf16.mxu0 0
        %881 = vmatpush1.bf16.msra.mxu0 0
        %882 = vmatprep.subr.bf16.mxu0 0
        %883 = vmatpush1.bf16.msra.mxu0 0
        %884 = vmatprep.subr.bf16.mxu0 0
        %885 = vmatpush1.bf16.msra.mxu0 0
        %886 = vmatprep.subr.bf16.mxu0 0
        %887 = vmatpush1.bf16.msra.mxu0 0
        %888 = vmatprep.subr.bf16.mxu0 0
        %889 = vmatpush1.bf16.msra.mxu0 0
        %890 = vmatprep.subr.bf16.mxu0 0
        %891 = vmatpush1.bf16.msra.mxu0 0
        %892 = vmatprep.subr.bf16.mxu0 0
        %893 = vmatpush1.bf16.msra.mxu0 0
        %894 = vmatprep.subr.bf16.mxu0 0
        %895 = vmatpush1.bf16.msra.mxu0 %v878
        %896 = vmatprep.subr.bf16.mxu0 0
        %897 = vmatpush2.bf16.msra.mxu0 0
        %898 = vmatprep.subr.bf16.mxu0 0
        %899 = vmatpush2.bf16.msra.mxu0 0
        %900 = vmatprep.subr.bf16.mxu0 0
        %901 = vmatpush2.bf16.msra.mxu0 0
        %902 = vmatprep.subr.bf16.mxu0 0
        %903 = vmatpush2.bf16.msra.mxu0 0
        %904 = vmatprep.subr.bf16.mxu0 0
        %905 = vmatpush2.bf16.msra.mxu0 0
        %906 = vmatprep.subr.bf16.mxu0 0
        %907 = vmatpush2.bf16.msra.mxu0 0
        %908 = vmatprep.subr.bf16.mxu0 0
        %909 = vmatpush2.bf16.msra.mxu0 0
        %910 = vmatprep.subr.bf16.mxu0 0
        %911 = vmatpush2.bf16.msra.mxu0 0
        %912 = vmatprep.mubr.bf16.mxu0 0
        %913 = vmatmul.mubr.bf16.gmra.mxu0 %v874
        %v914 = vpop.f32.mrf.mxu0
        %v915 = vadd.f32 0.0, %v914
        %v916 = vpop.f32.mrf.mxu0
        %v917 = vpop.f32.mrf.mxu0
        %v918 = vpop.f32.mrf.mxu0
        %919 = vdwg.mxu0
        %v921 = vsel %vm820, %v870, 0
        %v924 = vsel %vm876, %v632, 0
        %926 = vmatprep.subr.bf16.mxu0 0
        %927 = vmatpush1.bf16.msra.mxu0 0
        %928 = vmatprep.subr.bf16.mxu0 0
        %929 = vmatpush1.bf16.msra.mxu0 0
        %930 = vmatprep.subr.bf16.mxu0 0
        %931 = vmatpush1.bf16.msra.mxu0 0
        %932 = vmatprep.subr.bf16.mxu0 0
        %933 = vmatpush1.bf16.msra.mxu0 0
        %934 = vmatprep.subr.bf16.mxu0 0
        %935 = vmatpush1.bf16.msra.mxu0 0
        %936 = vmatprep.subr.bf16.mxu0 0
        %937 = vmatpush1.bf16.msra.mxu0 0
        %938 = vmatprep.subr.bf16.mxu0 0
        %939 = vmatpush1.bf16.msra.mxu0 0
        %940 = vmatprep.subr.bf16.mxu0 0
        %941 = vmatpush1.bf16.msra.mxu0 %v924
        %942 = vmatprep.subr.bf16.mxu0 0
        %943 = vmatpush2.bf16.msra.mxu0 0
        %944 = vmatprep.subr.bf16.mxu0 0
        %945 = vmatpush2.bf16.msra.mxu0 0
        %946 = vmatprep.subr.bf16.mxu0 0
        %947 = vmatpush2.bf16.msra.mxu0 0
        %948 = vmatprep.subr.bf16.mxu0 0
        %949 = vmatpush2.bf16.msra.mxu0 0
        %950 = vmatprep.subr.bf16.mxu0 0
        %951 = vmatpush2.bf16.msra.mxu0 0
        %952 = vmatprep.subr.bf16.mxu0 0
        %953 = vmatpush2.bf16.msra.mxu0 0
        %954 = vmatprep.subr.bf16.mxu0 0
        %955 = vmatpush2.bf16.msra.mxu0 0
        %956 = vmatprep.subr.bf16.mxu0 0
        %957 = vmatpush2.bf16.msra.mxu0 0
        %958 = vmatprep.mubr.bf16.mxu0 0
        %959 = vmatmul.mubr.bf16.gmra.mxu0 %v921
        %v960 = vpop.f32.mrf.mxu0
        %v961 = vadd.f32 0.0, %v960
        %v962 = vpop.f32.mrf.mxu0
        %v963 = vpop.f32.mrf.mxu0
        %v964 = vpop.f32.mrf.mxu0
        %965 = vdwg.mxu0
        %v967 = vsel %vm820, %v871, 0
        %v970 = vsel %vm876, %v633, 0
        %972 = vmatprep.subr.bf16.mxu0 0
        %973 = vmatpush1.bf16.msra.mxu0 0
        %974 = vmatprep.subr.bf16.mxu0 0
        %975 = vmatpush1.bf16.msra.mxu0 0
        %976 = vmatprep.subr.bf16.mxu0 0
        %977 = vmatpush1.bf16.msra.mxu0 0
        %978 = vmatprep.subr.bf16.mxu0 0
        %979 = vmatpush1.bf16.msra.mxu0 0
        %980 = vmatprep.subr.bf16.mxu0 0
        %981 = vmatpush1.bf16.msra.mxu0 0
        %982 = vmatprep.subr.bf16.mxu0 0
        %983 = vmatpush1.bf16.msra.mxu0 0
        %984 = vmatprep.subr.bf16.mxu0 0
        %985 = vmatpush1.bf16.msra.mxu0 0
        %986 = vmatprep.subr.bf16.mxu0 0
        %987 = vmatpush1.bf16.msra.mxu0 %v970
        %988 = vmatprep.subr.bf16.mxu0 0
        %989 = vmatpush2.bf16.msra.mxu0 0
        %990 = vmatprep.subr.bf16.mxu0 0
        %991 = vmatpush2.bf16.msra.mxu0 0
        %992 = vmatprep.subr.bf16.mxu0 0
        %993 = vmatpush2.bf16.msra.mxu0 0
        %994 = vmatprep.subr.bf16.mxu0 0
        %995 = vmatpush2.bf16.msra.mxu0 0
        %996 = vmatprep.subr.bf16.mxu0 0
        %997 = vmatpush2.bf16.msra.mxu0 0
        %998 = vmatprep.subr.bf16.mxu0 0
        %999 = vmatpush2.bf16.msra.mxu0 0
        %1000 = vmatprep.subr.bf16.mxu0 0
        %1001 = vmatpush2.bf16.msra.mxu0 0
        %1002 = vmatprep.subr.bf16.mxu0 0
        %1003 = vmatpush2.bf16.msra.mxu0 0
        %1004 = vmatprep.mubr.bf16.mxu0 0
        %1005 = vmatmul.mubr.bf16.gmra.mxu0 %v967
        %v1006 = vpop.f32.mrf.mxu0
        %v1007 = vadd.f32 0.0, %v1006
        %v1008 = vpop.f32.mrf.mxu0
        %v1009 = vpop.f32.mrf.mxu0
        %v1010 = vpop.f32.mrf.mxu0
        %1011 = vdwg.mxu0
        %v1013 = vsel %vm820, %v872, 0
        %v1016 = vsel %vm876, %v634, 0
        %1018 = vmatprep.subr.bf16.mxu0 0
        %1019 = vmatpush1.bf16.msra.mxu0 0
        %1020 = vmatprep.subr.bf16.mxu0 0
        %1021 = vmatpush1.bf16.msra.mxu0 0
        %1022 = vmatprep.subr.bf16.mxu0 0
        %1023 = vmatpush1.bf16.msra.mxu0 0
        %1024 = vmatprep.subr.bf16.mxu0 0
        %1025 = vmatpush1.bf16.msra.mxu0 0
        %1026 = vmatprep.subr.bf16.mxu0 0
        %1027 = vmatpush1.bf16.msra.mxu0 0
        %1028 = vmatprep.subr.bf16.mxu0 0
        %1029 = vmatpush1.bf16.msra.mxu0 0
        %1030 = vmatprep.subr.bf16.mxu0 0
        %1031 = vmatpush1.bf16.msra.mxu0 0
        %1032 = vmatprep.subr.bf16.mxu0 0
        %1033 = vmatpush1.bf16.msra.mxu0 %v1016
        %1034 = vmatprep.subr.bf16.mxu0 0
        %1035 = vmatpush2.bf16.msra.mxu0 0
        %1036 = vmatprep.subr.bf16.mxu0 0
        %1037 = vmatpush2.bf16.msra.mxu0 0
        %1038 = vmatprep.subr.bf16.mxu0 0
        %1039 = vmatpush2.bf16.msra.mxu0 0
        %1040 = vmatprep.subr.bf16.mxu0 0
        %1041 = vmatpush2.bf16.msra.mxu0 0
        %1042 = vmatprep.subr.bf16.mxu0 0
        %1043 = vmatpush2.bf16.msra.mxu0 0
        %1044 = vmatprep.subr.bf16.mxu0 0
        %1045 = vmatpush2.bf16.msra.mxu0 0
        %1046 = vmatprep.subr.bf16.mxu0 0
        %1047 = vmatpush2.bf16.msra.mxu0 0
        %1048 = vmatprep.subr.bf16.mxu0 0
        %1049 = vmatpush2.bf16.msra.mxu0 0
        %1050 = vmatprep.mubr.bf16.mxu0 0
        %1051 = vmatmul.mubr.bf16.gmra.mxu0 %v1013
        %v1052 = vpop.f32.mrf.mxu0
        %v1053 = vadd.f32 0.0, %v1052
        %v1054 = vpop.f32.mrf.mxu0
        %v1055 = vpop.f32.mrf.mxu0
        %v1056 = vpop.f32.mrf.mxu0
        %1057 = vdwg.mxu0
        %v1058 = vpack.c.bf16 %v961, %v915
        %v1059 = vpack.c.bf16 %v1053, %v1007
        %v1060 = vld [vmem:[%s4] sm:$0x3]
        %s1061 = scalar_lea.vmem %s3, 16
        %v1062 = vld [vmem:[%s1061] sm:$0xf]
        %v1063 = vld [vmem:[%s1061 + $0x4] sm:$0xf]
        %v1064 = vld [vmem:[%s1061 + $0x8] sm:$0xf]
        %v1065 = vld [vmem:[%s1061 + $0xc] sm:$0xf]
        %s1066 = scalar_lea.vmem %s5, 1
        %v1067 = vld [vmem:[%s1066] sm:$0x1]
        %v1069 = vlaneseq
        %v1070 = vshrl.u32 %v1069, 7
        %v1071 = vsub.s32 0, %v1070
        %v1072 = vrot.slane %v1067, %v1071
        %v1078 = vunpack.c.l.b16 %v1062
        %v1079 = vunpack.c.l.b16 %v1063
        %v1080 = vunpack.c.l.b16 %v1064
        %v1081 = vunpack.c.l.b16 %v1065
        %v1082 = vpack.c.b16 %v1079, %v1078
        %v1083 = vpack.c.b16 %v1081, %v1080
        %1086 = vmatprep.subr.bf16.mxu0 0
        %1087 = vmatpush1.bf16.msra.mxu0 0
        %1088 = vmatprep.subr.bf16.mxu0 0
        %1089 = vmatpush1.bf16.msra.mxu0 0
        %1090 = vmatprep.subr.bf16.mxu0 0
        %1091 = vmatpush1.bf16.msra.mxu0 0
        %1092 = vmatprep.subr.bf16.mxu0 0
        %1093 = vmatpush1.bf16.msra.mxu0 0
        %1094 = vmatprep.subr.bf16.mxu0 0
        %1095 = vmatpush1.bf16.msra.mxu0 0
        %1096 = vmatprep.subr.bf16.mxu0 0
        %1097 = vmatpush1.bf16.msra.mxu0 0
        %1098 = vmatprep.subr.bf16.mxu0 0
        %1099 = vmatpush1.bf16.msra.mxu0 %v1083
        %1100 = vmatprep.subr.bf16.mxu0 0
        %1101 = vmatpush1.bf16.msra.mxu0 %v1082
        %1102 = vmatprep.subr.bf16.mxu0 0
        %1103 = vmatpush2.bf16.msra.mxu0 0
        %1104 = vmatprep.subr.bf16.mxu0 0
        %1105 = vmatpush2.bf16.msra.mxu0 0
        %1106 = vmatprep.subr.bf16.mxu0 0
        %1107 = vmatpush2.bf16.msra.mxu0 0
        %1108 = vmatprep.subr.bf16.mxu0 0
        %1109 = vmatpush2.bf16.msra.mxu0 0
        %1110 = vmatprep.subr.bf16.mxu0 0
        %1111 = vmatpush2.bf16.msra.mxu0 0
        %1112 = vmatprep.subr.bf16.mxu0 0
        %1113 = vmatpush2.bf16.msra.mxu0 0
        %1114 = vmatprep.subr.bf16.mxu0 0
        %1115 = vmatpush2.bf16.msra.mxu0 0
        %1116 = vmatprep.subr.bf16.mxu0 0
        %1117 = vmatpush2.bf16.msra.mxu0 0
        %1118 = vmatprep.mubr.bf16.mxu0 0
        %1119 = vmatmul.mubr.bf16.gmra.mxu0 %v409
        %v1120 = vpop.f32.mrf.mxu0
        %v1121 = vadd.f32 %v1072, %v1120
        %v1122 = vpop.f32.mrf.mxu0
        %v1123 = vpop.f32.mrf.mxu0
        %v1124 = vadd.f32 %v1072, %v1123
        %v1125 = vpop.f32.mrf.mxu0
        %1126 = vmatprep.mubr.bf16.mxu0 0
        %1127 = vmatmul.mubr.bf16.gmra.mxu0 %v412
        %v1128 = vpop.f32.mrf.mxu0
        %v1129 = vadd.f32 %v1072, %v1128
        %v1130 = vpop.f32.mrf.mxu0
        %v1131 = vpop.f32.mrf.mxu0
        %v1132 = vadd.f32 %v1072, %v1131
        %v1133 = vpop.f32.mrf.mxu0
        %1134 = vdwg.mxu0
        %v1135 = vpack.c.bf16 %v1121, %v1121
        %v1136 = vpack.c.bf16 %v1124, %v1124
        %v1137 = vpack.c.bf16 %v1129, %v1129
        %v1138 = vpack.c.bf16 %v1132, %v1132
        %s1139 = scalar_lea.vmem %s3, 144
        %v1140 = vld [vmem:[%s1139] sm:$0xf]
        %v1141 = vld [vmem:[%s1139 + $0x4] sm:$0xf]
        %v1142 = vld [vmem:[%s1139 + $0x8] sm:$0xf]
        %v1143 = vld [vmem:[%s1139 + $0xc] sm:$0xf]
        %s1144 = scalar_lea.vmem %s5, 9
        %v1145 = vld [vmem:[%s1144] sm:$0x1]
        %v1147 = vlaneseq
        %v1148 = vshrl.u32 %v1147, 7
        %v1149 = vsub.s32 0, %v1148
        %v1150 = vrot.slane %v1145, %v1149
        %v1156 = vunpack.c.l.b16 %v1140
        %v1157 = vunpack.c.l.b16 %v1141
        %v1158 = vunpack.c.l.b16 %v1142
        %v1159 = vunpack.c.l.b16 %v1143
        %v1160 = vpack.c.b16 %v1157, %v1156
        %v1161 = vpack.c.b16 %v1159, %v1158
        %1164 = vmatprep.subr.bf16.mxu0 0
        %1165 = vmatpush1.bf16.msra.mxu0 0
        %1166 = vmatprep.subr.bf16.mxu0 0
        %1167 = vmatpush1.bf16.msra.mxu0 0
        %1168 = vmatprep.subr.bf16.mxu0 0
        %1169 = vmatpush1.bf16.msra.mxu0 0
        %1170 = vmatprep.subr.bf16.mxu0 0
        %1171 = vmatpush1.bf16.msra.mxu0 0
        %1172 = vmatprep.subr.bf16.mxu0 0
        %1173 = vmatpush1.bf16.msra.mxu0 0
        %1174 = vmatprep.subr.bf16.mxu0 0
        %1175 = vmatpush1.bf16.msra.mxu0 0
        %1176 = vmatprep.subr.bf16.mxu0 0
        %1177 = vmatpush1.bf16.msra.mxu0 %v1161
        %1178 = vmatprep.subr.bf16.mxu0 0
        %1179 = vmatpush1.bf16.msra.mxu0 %v1160
        %1180 = vmatprep.subr.bf16.mxu0 0
        %1181 = vmatpush2.bf16.msra.mxu0 0
        %1182 = vmatprep.subr.bf16.mxu0 0
        %1183 = vmatpush2.bf16.msra.mxu0 0
        %1184 = vmatprep.subr.bf16.mxu0 0
        %1185 = vmatpush2.bf16.msra.mxu0 0
        %1186 = vmatprep.subr.bf16.mxu0 0
        %1187 = vmatpush2.bf16.msra.mxu0 0
        %1188 = vmatprep.subr.bf16.mxu0 0
        %1189 = vmatpush2.bf16.msra.mxu0 0
        %1190 = vmatprep.subr.bf16.mxu0 0
        %1191 = vmatpush2.bf16.msra.mxu0 0
        %1192 = vmatprep.subr.bf16.mxu0 0
        %1193 = vmatpush2.bf16.msra.mxu0 0
        %1194 = vmatprep.subr.bf16.mxu0 0
        %1195 = vmatpush2.bf16.msra.mxu0 0
        %1196 = vmatprep.mubr.bf16.mxu0 0
        %1197 = vmatmul.mubr.bf16.gmra.mxu0 %v493
        %v1198 = vpop.f32.mrf.mxu0
        %v1199 = vadd.f32 %v1150, %v1198
        %v1200 = vpop.f32.mrf.mxu0
        %v1201 = vpop.f32.mrf.mxu0
        %v1202 = vadd.f32 %v1150, %v1201
        %v1203 = vpop.f32.mrf.mxu0
        %1204 = vmatprep.mubr.bf16.mxu0 0
        %1205 = vmatmul.mubr.bf16.gmra.mxu0 %v496
        %v1206 = vpop.f32.mrf.mxu0
        %v1207 = vadd.f32 %v1150, %v1206
        %v1208 = vpop.f32.mrf.mxu0
        %v1209 = vpop.f32.mrf.mxu0
        %v1210 = vadd.f32 %v1150, %v1209
        %v1211 = vpop.f32.mrf.mxu0
        %1212 = vdwg.mxu0
        %v1213 = vpack.c.bf16 %v1199, %v1199
        %v1214 = vpack.c.bf16 %v1202, %v1202
        %v1215 = vpack.c.bf16 %v1207, %v1207
        %v1216 = vpack.c.bf16 %v1210, %v1210
        %s1217 = scalar_lea.vmem %s3, 272
        %v1218 = vld [vmem:[%s1217] sm:$0xf]
        %v1219 = vld [vmem:[%s1217 + $0x4] sm:$0xf]
        %v1220 = vld [vmem:[%s1217 + $0x8] sm:$0xf]
        %v1221 = vld [vmem:[%s1217 + $0xc] sm:$0xf]
        %s1222 = scalar_lea.vmem %s5, 17
        %v1223 = vld [vmem:[%s1222] sm:$0x1]
        %v1225 = vlaneseq
        %v1226 = vshrl.u32 %v1225, 7
        %v1227 = vsub.s32 0, %v1226
        %v1228 = vrot.slane %v1223, %v1227
        %v1234 = vunpack.c.l.b16 %v1218
        %v1235 = vunpack.c.l.b16 %v1219
        %v1236 = vunpack.c.l.b16 %v1220
        %v1237 = vunpack.c.l.b16 %v1221
        %v1238 = vpack.c.b16 %v1235, %v1234
        %v1239 = vpack.c.b16 %v1237, %v1236
        %1242 = vmatprep.subr.bf16.mxu0 0
        %1243 = vmatpush1.bf16.msra.mxu0 0
        %1244 = vmatprep.subr.bf16.mxu0 0
        %1245 = vmatpush1.bf16.msra.mxu0 0
        %1246 = vmatprep.subr.bf16.mxu0 0
        %1247 = vmatpush1.bf16.msra.mxu0 0
        %1248 = vmatprep.subr.bf16.mxu0 0
        %1249 = vmatpush1.bf16.msra.mxu0 0
        %1250 = vmatprep.subr.bf16.mxu0 0
        %1251 = vmatpush1.bf16.msra.mxu0 0
        %1252 = vmatprep.subr.bf16.mxu0 0
        %1253 = vmatpush1.bf16.msra.mxu0 0
        %1254 = vmatprep.subr.bf16.mxu0 0
        %1255 = vmatpush1.bf16.msra.mxu0 %v1239
        %1256 = vmatprep.subr.bf16.mxu0 0
        %1257 = vmatpush1.bf16.msra.mxu0 %v1238
        %1258 = vmatprep.subr.bf16.mxu0 0
        %1259 = vmatpush2.bf16.msra.mxu0 0
        %1260 = vmatprep.subr.bf16.mxu0 0
        %1261 = vmatpush2.bf16.msra.mxu0 0
        %1262 = vmatprep.subr.bf16.mxu0 0
        %1263 = vmatpush2.bf16.msra.mxu0 0
        %1264 = vmatprep.subr.bf16.mxu0 0
        %1265 = vmatpush2.bf16.msra.mxu0 0
        %1266 = vmatprep.subr.bf16.mxu0 0
        %1267 = vmatpush2.bf16.msra.mxu0 0
        %1268 = vmatprep.subr.bf16.mxu0 0
        %1269 = vmatpush2.bf16.msra.mxu0 0
        %1270 = vmatprep.subr.bf16.mxu0 0
        %1271 = vmatpush2.bf16.msra.mxu0 0
        %1272 = vmatprep.subr.bf16.mxu0 0
        %1273 = vmatpush2.bf16.msra.mxu0 0
        %1274 = vmatprep.mubr.bf16.mxu0 0
        %1275 = vmatmul.mubr.bf16.gmra.mxu0 %v577
        %v1276 = vpop.f32.mrf.mxu0
        %v1277 = vadd.f32 %v1228, %v1276
        %v1278 = vpop.f32.mrf.mxu0
        %v1279 = vpop.f32.mrf.mxu0
        %v1280 = vadd.f32 %v1228, %v1279
        %v1281 = vpop.f32.mrf.mxu0
        %1282 = vmatprep.mubr.bf16.mxu0 0
        %1283 = vmatmul.mubr.bf16.gmra.mxu0 %v580
        %v1284 = vpop.f32.mrf.mxu0
        %v1285 = vadd.f32 %v1228, %v1284
        %v1286 = vpop.f32.mrf.mxu0
        %v1287 = vpop.f32.mrf.mxu0
        %v1288 = vadd.f32 %v1228, %v1287
        %v1289 = vpop.f32.mrf.mxu0
        %1290 = vdwg.mxu0
        %v1291 = vpack.c.bf16 %v1277, %v1277
        %v1292 = vpack.c.bf16 %v1280, %v1280
        %v1293 = vpack.c.bf16 %v1285, %v1285
        %v1294 = vpack.c.bf16 %v1288, %v1288
        %v1296 = vsel %vm635, %v1135, 0
        %v1299 = vsel %vm635, %v1213, 0
        %1301 = vmatprep.subr.bf16.mxu0 0
        %1302 = vmatpush1.bf16.xpose.msra.mxu0 0
        %1303 = vmatprep.subr.bf16.mxu0 0
        %1304 = vmatpush1.bf16.xpose.msra.mxu0 0
        %1305 = vmatprep.subr.bf16.mxu0 0
        %1306 = vmatpush1.bf16.xpose.msra.mxu0 0
        %1307 = vmatprep.subr.bf16.mxu0 0
        %1308 = vmatpush1.bf16.xpose.msra.mxu0 0
        %1309 = vmatprep.subr.bf16.mxu0 0
        %1310 = vmatpush1.bf16.xpose.msra.mxu0 0
        %1311 = vmatprep.subr.bf16.mxu0 0
        %1312 = vmatpush1.bf16.xpose.msra.mxu0 0
        %1313 = vmatprep.subr.bf16.mxu0 0
        %1314 = vmatpush1.bf16.xpose.msra.mxu0 0
        %1315 = vmatprep.subr.bf16.mxu0 0
        %1316 = vmatpush1.bf16.xpose.msra.mxu0 %v1299
        %1317 = vmatprep.subr.bf16.mxu0 0
        %1318 = vmatpush2.bf16.xpose.msra.mxu0 0
        %1319 = vmatprep.subr.bf16.mxu0 0
        %1320 = vmatpush2.bf16.xpose.msra.mxu0 0
        %1321 = vmatprep.subr.bf16.mxu0 0
        %1322 = vmatpush2.bf16.xpose.msra.mxu0 0
        %1323 = vmatprep.subr.bf16.mxu0 0
        %1324 = vmatpush2.bf16.xpose.msra.mxu0 0
        %1325 = vmatprep.subr.bf16.mxu0 0
        %1326 = vmatpush2.bf16.xpose.msra.mxu0 0
        %1327 = vmatprep.subr.bf16.mxu0 0
        %1328 = vmatpush2.bf16.xpose.msra.mxu0 0
        %1329 = vmatprep.subr.bf16.mxu0 0
        %1330 = vmatpush2.bf16.xpose.msra.mxu0 0
        %1331 = vmatprep.subr.bf16.mxu0 0
        %1332 = vmatpush2.bf16.xpose.msra.mxu0 0
        %1333 = vmatprep.mubr.bf16.mxu0 0
        %1334 = vmatmul.mubr.bf16.gmra.mxu0 %v1296
        %v1335 = vpop.f32.mrf.mxu0
        %v1336 = vadd.f32 0.0, %v1335
        %v1337 = vpop.f32.mrf.mxu0
        %v1338 = vpop.f32.mrf.mxu0
        %v1339 = vpop.f32.mrf.mxu0
        %1340 = vdwg.mxu0
        %v1342 = vsel %vm635, %v1136, 0
        %v1345 = vsel %vm635, %v1214, 0
        %1347 = vmatprep.subr.bf16.mxu0 0
        %1348 = vmatpush1.bf16.xpose.msra.mxu0 0
        %1349 = vmatprep.subr.bf16.mxu0 0
        %1350 = vmatpush1.bf16.xpose.msra.mxu0 0
        %1351 = vmatprep.subr.bf16.mxu0 0
        %1352 = vmatpush1.bf16.xpose.msra.mxu0 0
        %1353 = vmatprep.subr.bf16.mxu0 0
        %1354 = vmatpush1.bf16.xpose.msra.mxu0 0
        %1355 = vmatprep.subr.bf16.mxu0 0
        %1356 = vmatpush1.bf16.xpose.msra.mxu0 0
        %1357 = vmatprep.subr.bf16.mxu0 0
        %1358 = vmatpush1.bf16.xpose.msra.mxu0 0
        %1359 = vmatprep.subr.bf16.mxu0 0
        %1360 = vmatpush1.bf16.xpose.msra.mxu0 0
        %1361 = vmatprep.subr.bf16.mxu0 0
        %1362 = vmatpush1.bf16.xpose.msra.mxu0 %v1345
        %1363 = vmatprep.subr.bf16.mxu0 0
        %1364 = vmatpush2.bf16.xpose.msra.mxu0 0
        %1365 = vmatprep.subr.bf16.mxu0 0
        %1366 = vmatpush2.bf16.xpose.msra.mxu0 0
        %1367 = vmatprep.subr.bf16.mxu0 0
        %1368 = vmatpush2.bf16.xpose.msra.mxu0 0
        %1369 = vmatprep.subr.bf16.mxu0 0
        %1370 = vmatpush2.bf16.xpose.msra.mxu0 0
        %1371 = vmatprep.subr.bf16.mxu0 0
        %1372 = vmatpush2.bf16.xpose.msra.mxu0 0
        %1373 = vmatprep.subr.bf16.mxu0 0
        %1374 = vmatpush2.bf16.xpose.msra.mxu0 0
        %1375 = vmatprep.subr.bf16.mxu0 0
        %1376 = vmatpush2.bf16.xpose.msra.mxu0 0
        %1377 = vmatprep.subr.bf16.mxu0 0
        %1378 = vmatpush2.bf16.xpose.msra.mxu0 0
        %1379 = vmatprep.mubr.bf16.mxu0 0
        %1380 = vmatmul.mubr.bf16.gmra.mxu0 %v1342
        %v1381 = vpop.f32.mrf.mxu0
        %v1382 = vadd.f32 0.0, %v1381
        %v1383 = vpop.f32.mrf.mxu0
        %v1384 = vpop.f32.mrf.mxu0
        %v1385 = vpop.f32.mrf.mxu0
        %1386 = vdwg.mxu0
        %v1388 = vsel %vm635, %v1137, 0
        %v1391 = vsel %vm635, %v1215, 0
        %1393 = vmatprep.subr.bf16.mxu0 0
        %1394 = vmatpush1.bf16.xpose.msra.mxu0 0
        %1395 = vmatprep.subr.bf16.mxu0 0
        %1396 = vmatpush1.bf16.xpose.msra.mxu0 0
        %1397 = vmatprep.subr.bf16.mxu0 0
        %1398 = vmatpush1.bf16.xpose.msra.mxu0 0
        %1399 = vmatprep.subr.bf16.mxu0 0
        %1400 = vmatpush1.bf16.xpose.msra.mxu0 0
        %1401 = vmatprep.subr.bf16.mxu0 0
        %1402 = vmatpush1.bf16.xpose.msra.mxu0 0
        %1403 = vmatprep.subr.bf16.mxu0 0
        %1404 = vmatpush1.bf16.xpose.msra.mxu0 0
        %1405 = vmatprep.subr.bf16.mxu0 0
        %1406 = vmatpush1.bf16.xpose.msra.mxu0 0
        %1407 = vmatprep.subr.bf16.mxu0 0
        %1408 = vmatpush1.bf16.xpose.msra.mxu0 %v1391
        %1409 = vmatprep.subr.bf16.mxu0 0
        %1410 = vmatpush2.bf16.xpose.msra.mxu0 0
        %1411 = vmatprep.subr.bf16.mxu0 0
        %1412 = vmatpush2.bf16.xpose.msra.mxu0 0
        %1413 = vmatprep.subr.bf16.mxu0 0
        %1414 = vmatpush2.bf16.xpose.msra.mxu0 0
        %1415 = vmatprep.subr.bf16.mxu0 0
        %1416 = vmatpush2.bf16.xpose.msra.mxu0 0
        %1417 = vmatprep.subr.bf16.mxu0 0
        %1418 = vmatpush2.bf16.xpose.msra.mxu0 0
        %1419 = vmatprep.subr.bf16.mxu0 0
        %1420 = vmatpush2.bf16.xpose.msra.mxu0 0
        %1421 = vmatprep.subr.bf16.mxu0 0
        %1422 = vmatpush2.bf16.xpose.msra.mxu0 0
        %1423 = vmatprep.subr.bf16.mxu0 0
        %1424 = vmatpush2.bf16.xpose.msra.mxu0 0
        %1425 = vmatprep.mubr.bf16.mxu0 0
        %1426 = vmatmul.mubr.bf16.gmra.mxu0 %v1388
        %v1427 = vpop.f32.mrf.mxu0
        %v1428 = vadd.f32 0.0, %v1427
        %v1429 = vpop.f32.mrf.mxu0
        %v1430 = vpop.f32.mrf.mxu0
        %v1431 = vpop.f32.mrf.mxu0
        %1432 = vdwg.mxu0
        %v1434 = vsel %vm635, %v1138, 0
        %v1437 = vsel %vm635, %v1216, 0
        %1439 = vmatprep.subr.bf16.mxu0 0
        %1440 = vmatpush1.bf16.xpose.msra.mxu0 0
        %1441 = vmatprep.subr.bf16.mxu0 0
        %1442 = vmatpush1.bf16.xpose.msra.mxu0 0
        %1443 = vmatprep.subr.bf16.mxu0 0
        %1444 = vmatpush1.bf16.xpose.msra.mxu0 0
        %1445 = vmatprep.subr.bf16.mxu0 0
        %1446 = vmatpush1.bf16.xpose.msra.mxu0 0
        %1447 = vmatprep.subr.bf16.mxu0 0
        %1448 = vmatpush1.bf16.xpose.msra.mxu0 0
        %1449 = vmatprep.subr.bf16.mxu0 0
        %1450 = vmatpush1.bf16.xpose.msra.mxu0 0
        %1451 = vmatprep.subr.bf16.mxu0 0
        %1452 = vmatpush1.bf16.xpose.msra.mxu0 0
        %1453 = vmatprep.subr.bf16.mxu0 0
        %1454 = vmatpush1.bf16.xpose.msra.mxu0 %v1437
        %1455 = vmatprep.subr.bf16.mxu0 0
        %1456 = vmatpush2.bf16.xpose.msra.mxu0 0
        %1457 = vmatprep.subr.bf16.mxu0 0
        %1458 = vmatpush2.bf16.xpose.msra.mxu0 0
        %1459 = vmatprep.subr.bf16.mxu0 0
        %1460 = vmatpush2.bf16.xpose.msra.mxu0 0
        %1461 = vmatprep.subr.bf16.mxu0 0
        %1462 = vmatpush2.bf16.xpose.msra.mxu0 0
        %1463 = vmatprep.subr.bf16.mxu0 0
        %1464 = vmatpush2.bf16.xpose.msra.mxu0 0
        %1465 = vmatprep.subr.bf16.mxu0 0
        %1466 = vmatpush2.bf16.xpose.msra.mxu0 0
        %1467 = vmatprep.subr.bf16.mxu0 0
        %1468 = vmatpush2.bf16.xpose.msra.mxu0 0
        %1469 = vmatprep.subr.bf16.mxu0 0
        %1470 = vmatpush2.bf16.xpose.msra.mxu0 0
        %1471 = vmatprep.mubr.bf16.mxu0 0
        %1472 = vmatmul.mubr.bf16.gmra.mxu0 %v1434
        %v1473 = vpop.f32.mrf.mxu0
        %v1474 = vadd.f32 0.0, %v1473
        %v1475 = vpop.f32.mrf.mxu0
        %v1476 = vpop.f32.mrf.mxu0
        %v1477 = vpop.f32.mrf.mxu0
        %1478 = vdwg.mxu0
        %v1479 = vsel %vm820, %v1336, -inf
        %1480 = vmax.xlane.f32.xlu0 %v1479
        %v1481 = vpop.xlane.xlu0 %1480
        %v1482 = vsel %vm820, %v1382, -inf
        %1483 = vmax.xlane.f32.xlu0 %v1482
        %v1484 = vpop.xlane.xlu0 %1483
        %v1485 = vsel %vm820, %v1428, -inf
        %1486 = vmax.xlane.f32.xlu0 %v1485
        %v1487 = vpop.xlane.xlu0 %1486
        %v1488 = vsel %vm820, %v1474, -inf
        %1489 = vmax.xlane.f32.xlu0 %v1488
        %v1490 = vpop.xlane.xlu0 %1489
        %v1491 = vsub.f32 %v1336, %v1481
        %v1492 = vsub.f32 %v1382, %v1484
        %v1493 = vsub.f32 %v1428, %v1487
        %v1494 = vsub.f32 %v1474, %v1490
        %v1495 = vmul.f32 %v1491, 1.442695
        %v1496 = vpow.pop %v1495
        %v1497 = vmul.f32 %v1492, 1.442695
        %v1498 = vpow.pop %v1497
        %v1499 = vmul.f32 %v1493, 1.442695
        %v1500 = vpow.pop %v1499
        %v1501 = vmul.f32 %v1494, 1.442695
        %v1502 = vpow.pop %v1501
        %v1503 = vsel %vm820, %v1496, 0.0
        %1504 = vadd.xlane.f32.xlu0 %v1503
        %v1505 = vpop.xlane.xlu0 %1504
        %v1506 = vsel %vm820, %v1498, 0.0
        %1507 = vadd.xlane.f32.xlu0 %v1506
        %v1508 = vpop.xlane.xlu0 %1507
        %v1509 = vsel %vm820, %v1500, 0.0
        %1510 = vadd.xlane.f32.xlu0 %v1509
        %v1511 = vpop.xlane.xlu0 %1510
        %v1512 = vsel %vm820, %v1502, 0.0
        %1513 = vadd.xlane.f32.xlu0 %v1512
        %v1514 = vpop.xlane.xlu0 %1513
        %v1515 = vrcp.pop %v1505
        %v1516 = vmul.f32 %v1496, %v1515
        %v1517 = vrcp.pop %v1508
        %v1518 = vmul.f32 %v1498, %v1517
        %v1519 = vrcp.pop %v1511
        %v1520 = vmul.f32 %v1500, %v1519
        %v1521 = vrcp.pop %v1514
        %v1522 = vmul.f32 %v1502, %v1521
        %s1523 = scalar_lea.vmem %s339, 32 [#allocation2]
        %1524 = vst.msk [vmem:[%s1523] sm:$0xff] %vm820, %v1516
        %1525 = vst.msk [vmem:[%s1523 + $0x8] sm:$0xff] %vm820, %v1518
        %1526 = vst.msk [vmem:[%s1523 + $0x10] sm:$0xff] %vm820, %v1520
        %1527 = vst.msk [vmem:[%s1523 + $0x18] sm:$0xff] %vm820, %v1522
        %v1528 = vpack.c.bf16 %v1516, %v1516
        %v1529 = vpack.c.bf16 %v1518, %v1518
        %v1530 = vpack.c.bf16 %v1520, %v1520
        %v1531 = vpack.c.bf16 %v1522, %v1522
        %v1533 = vsel %vm820, %v1528, 0
        %v1536 = vsel %vm876, %v1291, 0
        %1538 = vmatprep.subr.bf16.mxu0 0
        %1539 = vmatpush1.bf16.msra.mxu0 0
        %1540 = vmatprep.subr.bf16.mxu0 0
        %1541 = vmatpush1.bf16.msra.mxu0 0
        %1542 = vmatprep.subr.bf16.mxu0 0
        %1543 = vmatpush1.bf16.msra.mxu0 0
        %1544 = vmatprep.subr.bf16.mxu0 0
        %1545 = vmatpush1.bf16.msra.mxu0 0
        %1546 = vmatprep.subr.bf16.mxu0 0
        %1547 = vmatpush1.bf16.msra.mxu0 0
        %1548 = vmatprep.subr.bf16.mxu0 0
        %1549 = vmatpush1.bf16.msra.mxu0 0
        %1550 = vmatprep.subr.bf16.mxu0 0
        %1551 = vmatpush1.bf16.msra.mxu0 0
        %1552 = vmatprep.subr.bf16.mxu0 0
        %1553 = vmatpush1.bf16.msra.mxu0 %v1536
        %1554 = vmatprep.subr.bf16.mxu0 0
        %1555 = vmatpush2.bf16.msra.mxu0 0
        %1556 = vmatprep.subr.bf16.mxu0 0
        %1557 = vmatpush2.bf16.msra.mxu0 0
        %1558 = vmatprep.subr.bf16.mxu0 0
        %1559 = vmatpush2.bf16.msra.mxu0 0
        %1560 = vmatprep.subr.bf16.mxu0 0
        %1561 = vmatpush2.bf16.msra.mxu0 0
        %1562 = vmatprep.subr.bf16.mxu0 0
        %1563 = vmatpush2.bf16.msra.mxu0 0
        %1564 = vmatprep.subr.bf16.mxu0 0
        %1565 = vmatpush2.bf16.msra.mxu0 0
        %1566 = vmatprep.subr.bf16.mxu0 0
        %1567 = vmatpush2.bf16.msra.mxu0 0
        %1568 = vmatprep.subr.bf16.mxu0 0
        %1569 = vmatpush2.bf16.msra.mxu0 0
        %1570 = vmatprep.mubr.bf16.mxu0 0
        %1571 = vmatmul.mubr.bf16.gmra.mxu0 %v1533
        %v1572 = vpop.f32.mrf.mxu0
        %v1573 = vadd.f32 0.0, %v1572
        %v1574 = vpop.f32.mrf.mxu0
        %v1575 = vpop.f32.mrf.mxu0
        %v1576 = vpop.f32.mrf.mxu0
        %1577 = vdwg.mxu0
        %v1579 = vsel %vm820, %v1529, 0
        %v1582 = vsel %vm876, %v1292, 0
        %1584 = vmatprep.subr.bf16.mxu0 0
        %1585 = vmatpush1.bf16.msra.mxu0 0
        %1586 = vmatprep.subr.bf16.mxu0 0
        %1587 = vmatpush1.bf16.msra.mxu0 0
        %1588 = vmatprep.subr.bf16.mxu0 0
        %1589 = vmatpush1.bf16.msra.mxu0 0
        %1590 = vmatprep.subr.bf16.mxu0 0
        %1591 = vmatpush1.bf16.msra.mxu0 0
        %1592 = vmatprep.subr.bf16.mxu0 0
        %1593 = vmatpush1.bf16.msra.mxu0 0
        %1594 = vmatprep.subr.bf16.mxu0 0
        %1595 = vmatpush1.bf16.msra.mxu0 0
        %1596 = vmatprep.subr.bf16.mxu0 0
        %1597 = vmatpush1.bf16.msra.mxu0 0
        %1598 = vmatprep.subr.bf16.mxu0 0
        %1599 = vmatpush1.bf16.msra.mxu0 %v1582
        %1600 = vmatprep.subr.bf16.mxu0 0
        %1601 = vmatpush2.bf16.msra.mxu0 0
        %1602 = vmatprep.subr.bf16.mxu0 0
        %1603 = vmatpush2.bf16.msra.mxu0 0
        %1604 = vmatprep.subr.bf16.mxu0 0
        %1605 = vmatpush2.bf16.msra.mxu0 0
        %1606 = vmatprep.subr.bf16.mxu0 0
        %1607 = vmatpush2.bf16.msra.mxu0 0
        %1608 = vmatprep.subr.bf16.mxu0 0
        %1609 = vmatpush2.bf16.msra.mxu0 0
        %1610 = vmatprep.subr.bf16.mxu0 0
        %1611 = vmatpush2.bf16.msra.mxu0 0
        %1612 = vmatprep.subr.bf16.mxu0 0
        %1613 = vmatpush2.bf16.msra.mxu0 0
        %1614 = vmatprep.subr.bf16.mxu0 0
        %1615 = vmatpush2.bf16.msra.mxu0 0
        %1616 = vmatprep.mubr.bf16.mxu0 0
        %1617 = vmatmul.mubr.bf16.gmra.mxu0 %v1579
        %v1618 = vpop.f32.mrf.mxu0
        %v1619 = vadd.f32 0.0, %v1618
        %v1620 = vpop.f32.mrf.mxu0
        %v1621 = vpop.f32.mrf.mxu0
        %v1622 = vpop.f32.mrf.mxu0
        %1623 = vdwg.mxu0
        %v1625 = vsel %vm820, %v1530, 0
        %v1628 = vsel %vm876, %v1293, 0
        %1630 = vmatprep.subr.bf16.mxu0 0
        %1631 = vmatpush1.bf16.msra.mxu0 0
        %1632 = vmatprep.subr.bf16.mxu0 0
        %1633 = vmatpush1.bf16.msra.mxu0 0
        %1634 = vmatprep.subr.bf16.mxu0 0
        %1635 = vmatpush1.bf16.msra.mxu0 0
        %1636 = vmatprep.subr.bf16.mxu0 0
        %1637 = vmatpush1.bf16.msra.mxu0 0
        %1638 = vmatprep.subr.bf16.mxu0 0
        %1639 = vmatpush1.bf16.msra.mxu0 0
        %1640 = vmatprep.subr.bf16.mxu0 0
        %1641 = vmatpush1.bf16.msra.mxu0 0
        %1642 = vmatprep.subr.bf16.mxu0 0
        %1643 = vmatpush1.bf16.msra.mxu0 0
        %1644 = vmatprep.subr.bf16.mxu0 0
        %1645 = vmatpush1.bf16.msra.mxu0 %v1628
        %1646 = vmatprep.subr.bf16.mxu0 0
        %1647 = vmatpush2.bf16.msra.mxu0 0
        %1648 = vmatprep.subr.bf16.mxu0 0
        %1649 = vmatpush2.bf16.msra.mxu0 0
        %1650 = vmatprep.subr.bf16.mxu0 0
        %1651 = vmatpush2.bf16.msra.mxu0 0
        %1652 = vmatprep.subr.bf16.mxu0 0
        %1653 = vmatpush2.bf16.msra.mxu0 0
        %1654 = vmatprep.subr.bf16.mxu0 0
        %1655 = vmatpush2.bf16.msra.mxu0 0
        %1656 = vmatprep.subr.bf16.mxu0 0
        %1657 = vmatpush2.bf16.msra.mxu0 0
        %1658 = vmatprep.subr.bf16.mxu0 0
        %1659 = vmatpush2.bf16.msra.mxu0 0
        %1660 = vmatprep.subr.bf16.mxu0 0
        %1661 = vmatpush2.bf16.msra.mxu0 0
        %1662 = vmatprep.mubr.bf16.mxu0 0
        %1663 = vmatmul.mubr.bf16.gmra.mxu0 %v1625
        %v1664 = vpop.f32.mrf.mxu0
        %v1665 = vadd.f32 0.0, %v1664
        %v1666 = vpop.f32.mrf.mxu0
        %v1667 = vpop.f32.mrf.mxu0
        %v1668 = vpop.f32.mrf.mxu0
        %1669 = vdwg.mxu0
        %v1671 = vsel %vm820, %v1531, 0
        %v1674 = vsel %vm876, %v1294, 0
        %1676 = vmatprep.subr.bf16.mxu0 0
        %1677 = vmatpush1.bf16.msra.mxu0 0
        %1678 = vmatprep.subr.bf16.mxu0 0
        %1679 = vmatpush1.bf16.msra.mxu0 0
        %1680 = vmatprep.subr.bf16.mxu0 0
        %1681 = vmatpush1.bf16.msra.mxu0 0
        %1682 = vmatprep.subr.bf16.mxu0 0
        %1683 = vmatpush1.bf16.msra.mxu0 0
        %1684 = vmatprep.subr.bf16.mxu0 0
        %1685 = vmatpush1.bf16.msra.mxu0 0
        %1686 = vmatprep.subr.bf16.mxu0 0
        %1687 = vmatpush1.bf16.msra.mxu0 0
        %1688 = vmatprep.subr.bf16.mxu0 0
        %1689 = vmatpush1.bf16.msra.mxu0 0
        %1690 = vmatprep.subr.bf16.mxu0 0
        %1691 = vmatpush1.bf16.msra.mxu0 %v1674
        %1692 = vmatprep.subr.bf16.mxu0 0
        %1693 = vmatpush2.bf16.msra.mxu0 0
        %1694 = vmatprep.subr.bf16.mxu0 0
        %1695 = vmatpush2.bf16.msra.mxu0 0
        %1696 = vmatprep.subr.bf16.mxu0 0
        %1697 = vmatpush2.bf16.msra.mxu0 0
        %1698 = vmatprep.subr.bf16.mxu0 0
        %1699 = vmatpush2.bf16.msra.mxu0 0
        %1700 = vmatprep.subr.bf16.mxu0 0
        %1701 = vmatpush2.bf16.msra.mxu0 0
        %1702 = vmatprep.subr.bf16.mxu0 0
        %1703 = vmatpush2.bf16.msra.mxu0 0
        %1704 = vmatprep.subr.bf16.mxu0 0
        %1705 = vmatpush2.bf16.msra.mxu0 0
        %1706 = vmatprep.subr.bf16.mxu0 0
        %1707 = vmatpush2.bf16.msra.mxu0 0
        %1708 = vmatprep.mubr.bf16.mxu0 0
        %1709 = vmatmul.mubr.bf16.gmra.mxu0 %v1671
        %v1710 = vpop.f32.mrf.mxu0
        %v1711 = vadd.f32 0.0, %v1710
        %v1712 = vpop.f32.mrf.mxu0
        %v1713 = vpop.f32.mrf.mxu0
        %v1714 = vpop.f32.mrf.mxu0
        %1715 = vdwg.mxu0
        %v1716 = vpack.c.bf16 %v1619, %v1573
        %v1717 = vpack.c.bf16 %v1711, %v1665
        %s1718 = scalar_lea.vmem %s4, 2
        %v1719 = vld [vmem:[%s1718] sm:$0x3]
        %v1721 = vsel %vm635, %v1716, 0
        %v1724 = vsel %vm635, %v1717, 0
        %vm1726 = vcmask 1041408
        %v1728 = vsel %vm1726, %v1719, 0
        %1730 = vmatprep.subr.bf16.mxu0 0
        %1731 = vmatpush1.bf16.msra.mxu0 0
        %1732 = vmatprep.subr.bf16.mxu0 0
        %1733 = vmatpush1.bf16.msra.mxu0 0
        %1734 = vmatprep.subr.bf16.mxu0 0
        %1735 = vmatpush1.bf16.msra.mxu0 0
        %1736 = vmatprep.subr.bf16.mxu0 0
        %1737 = vmatpush1.bf16.msra.mxu0 0
        %1738 = vmatprep.subr.bf16.mxu0 0
        %1739 = vmatpush1.bf16.msra.mxu0 0
        %1740 = vmatprep.subr.bf16.mxu0 0
        %1741 = vmatpush1.bf16.msra.mxu0 0
        %1742 = vmatprep.subr.bf16.mxu0 0
        %1743 = vmatpush1.bf16.msra.mxu0 0
        %1744 = vmatprep.subr.bf16.mxu0 0
        %1745 = vmatpush1.bf16.msra.mxu0 %v1728
        %1746 = vmatprep.subr.bf16.mxu0 0
        %1747 = vmatpush2.bf16.msra.mxu0 0
        %1748 = vmatprep.subr.bf16.mxu0 0
        %1749 = vmatpush2.bf16.msra.mxu0 0
        %1750 = vmatprep.subr.bf16.mxu0 0
        %1751 = vmatpush2.bf16.msra.mxu0 0
        %1752 = vmatprep.subr.bf16.mxu0 0
        %1753 = vmatpush2.bf16.msra.mxu0 0
        %1754 = vmatprep.subr.bf16.mxu0 0
        %1755 = vmatpush2.bf16.msra.mxu0 0
        %1756 = vmatprep.subr.bf16.mxu0 0
        %1757 = vmatpush2.bf16.msra.mxu0 0
        %1758 = vmatprep.subr.bf16.mxu0 0
        %1759 = vmatpush2.bf16.msra.mxu0 0
        %1760 = vmatprep.subr.bf16.mxu0 0
        %1761 = vmatpush2.bf16.msra.mxu0 0
        %1762 = vmatprep.mubr.bf16.mxu0 0
        %1763 = vmatmul.mubr.bf16.gmra.mxu0 %v1721
        %v1764 = vpop.f32.mrf.mxu0
        %v1765 = vadd.f32 0.0, %v1764
        %v1766 = vpop.f32.mrf.mxu0
        %v1767 = vpop.f32.mrf.mxu0
        %v1768 = vadd.f32 0.0, %v1767
        %v1769 = vpop.f32.mrf.mxu0
        %1770 = vmatprep.mubr.bf16.mxu0 0
        %1771 = vmatmul.mubr.bf16.gmra.mxu0 %v1724
        %v1772 = vpop.f32.mrf.mxu0
        %v1773 = vadd.f32 0.0, %v1772
        %v1774 = vpop.f32.mrf.mxu0
        %v1775 = vpop.f32.mrf.mxu0
        %v1776 = vadd.f32 0.0, %v1775
        %v1777 = vpop.f32.mrf.mxu0
        %1778 = vdwg.mxu0
        %v1780 = vsel %vm635, %v1058, 0
        %v1783 = vsel %vm635, %v1059, 0
        %v1786 = vsel %vm1726, %v1060, 0
        %1788 = vmatprep.subr.bf16.mxu0 0
        %1789 = vmatpush1.bf16.msra.mxu0 0
        %1790 = vmatprep.subr.bf16.mxu0 0
        %1791 = vmatpush1.bf16.msra.mxu0 0
        %1792 = vmatprep.subr.bf16.mxu0 0
        %1793 = vmatpush1.bf16.msra.mxu0 0
        %1794 = vmatprep.subr.bf16.mxu0 0
        %1795 = vmatpush1.bf16.msra.mxu0 0
        %1796 = vmatprep.subr.bf16.mxu0 0
        %1797 = vmatpush1.bf16.msra.mxu0 0
        %1798 = vmatprep.subr.bf16.mxu0 0
        %1799 = vmatpush1.bf16.msra.mxu0 0
        %1800 = vmatprep.subr.bf16.mxu0 0
        %1801 = vmatpush1.bf16.msra.mxu0 0
        %1802 = vmatprep.subr.bf16.mxu0 0
        %1803 = vmatpush1.bf16.msra.mxu0 %v1786
        %1804 = vmatprep.subr.bf16.mxu0 0
        %1805 = vmatpush2.bf16.msra.mxu0 0
        %1806 = vmatprep.subr.bf16.mxu0 0
        %1807 = vmatpush2.bf16.msra.mxu0 0
        %1808 = vmatprep.subr.bf16.mxu0 0
        %1809 = vmatpush2.bf16.msra.mxu0 0
        %1810 = vmatprep.subr.bf16.mxu0 0
        %1811 = vmatpush2.bf16.msra.mxu0 0
        %1812 = vmatprep.subr.bf16.mxu0 0
        %1813 = vmatpush2.bf16.msra.mxu0 0
        %1814 = vmatprep.subr.bf16.mxu0 0
        %1815 = vmatpush2.bf16.msra.mxu0 0
        %1816 = vmatprep.subr.bf16.mxu0 0
        %1817 = vmatpush2.bf16.msra.mxu0 0
        %1818 = vmatprep.subr.bf16.mxu0 0
        %1819 = vmatpush2.bf16.msra.mxu0 0
        %1820 = vmatprep.mubr.bf16.mxu0 0
        %1821 = vmatmul.mubr.bf16.gmra.mxu0 %v1780
        %v1822 = vpop.f32.mrf.mxu0
        %v1823 = vadd.f32 %v1765, %v1822
        %v1824 = vpop.f32.mrf.mxu0
        %v1825 = vpop.f32.mrf.mxu0
        %v1826 = vadd.f32 %v1768, %v1825
        %v1827 = vpop.f32.mrf.mxu0
        %1828 = vmatprep.mubr.bf16.mxu0 0
        %1829 = vmatmul.mubr.bf16.gmra.mxu0 %v1783
        %v1830 = vpop.f32.mrf.mxu0
        %v1831 = vadd.f32 %v1773, %v1830
        %v1832 = vpop.f32.mrf.mxu0
        %v1833 = vpop.f32.mrf.mxu0
        %v1834 = vadd.f32 %v1776, %v1833
        %v1835 = vpop.f32.mrf.mxu0
        %1836 = vdwg.mxu0
        %s1837 = scalar_lea.vmem %s3, 32
        %v1838 = vld [vmem:[%s1837] sm:$0xf]
        %v1839 = vld [vmem:[%s1837 + $0x4] sm:$0xf]
        %v1840 = vld [vmem:[%s1837 + $0x8] sm:$0xf]
        %v1841 = vld [vmem:[%s1837 + $0xc] sm:$0xf]
        %s1842 = scalar_lea.vmem %s5, 2
        %v1843 = vld [vmem:[%s1842] sm:$0x1]
        %v1845 = vlaneseq
        %v1846 = vshrl.u32 %v1845, 7
        %v1847 = vsub.s32 0, %v1846
        %v1848 = vrot.slane %v1843, %v1847
        %v1854 = vunpack.c.l.b16 %v1838
        %v1855 = vunpack.c.l.b16 %v1839
        %v1856 = vunpack.c.l.b16 %v1840
        %v1857 = vunpack.c.l.b16 %v1841
        %v1858 = vpack.c.b16 %v1855, %v1854
        %v1859 = vpack.c.b16 %v1857, %v1856
        %1862 = vmatprep.subr.bf16.mxu0 0
        %1863 = vmatpush1.bf16.msra.mxu0 0
        %1864 = vmatprep.subr.bf16.mxu0 0
        %1865 = vmatpush1.bf16.msra.mxu0 0
        %1866 = vmatprep.subr.bf16.mxu0 0
        %1867 = vmatpush1.bf16.msra.mxu0 0
        %1868 = vmatprep.subr.bf16.mxu0 0
        %1869 = vmatpush1.bf16.msra.mxu0 0
        %1870 = vmatprep.subr.bf16.mxu0 0
        %1871 = vmatpush1.bf16.msra.mxu0 0
        %1872 = vmatprep.subr.bf16.mxu0 0
        %1873 = vmatpush1.bf16.msra.mxu0 0
        %1874 = vmatprep.subr.bf16.mxu0 0
        %1875 = vmatpush1.bf16.msra.mxu0 %v1859
        %1876 = vmatprep.subr.bf16.mxu0 0
        %1877 = vmatpush1.bf16.msra.mxu0 %v1858
        %1878 = vmatprep.subr.bf16.mxu0 0
        %1879 = vmatpush2.bf16.msra.mxu0 0
        %1880 = vmatprep.subr.bf16.mxu0 0
        %1881 = vmatpush2.bf16.msra.mxu0 0
        %1882 = vmatprep.subr.bf16.mxu0 0
        %1883 = vmatpush2.bf16.msra.mxu0 0
        %1884 = vmatprep.subr.bf16.mxu0 0
        %1885 = vmatpush2.bf16.msra.mxu0 0
        %1886 = vmatprep.subr.bf16.mxu0 0
        %1887 = vmatpush2.bf16.msra.mxu0 0
        %1888 = vmatprep.subr.bf16.mxu0 0
        %1889 = vmatpush2.bf16.msra.mxu0 0
        %1890 = vmatprep.subr.bf16.mxu0 0
        %1891 = vmatpush2.bf16.msra.mxu0 0
        %1892 = vmatprep.subr.bf16.mxu0 0
        %1893 = vmatpush2.bf16.msra.mxu0 0
        %1894 = vmatprep.mubr.bf16.mxu0 0
        %1895 = vmatmul.mubr.bf16.gmra.mxu0 %v409
        %v1896 = vpop.f32.mrf.mxu0
        %v1897 = vadd.f32 %v1848, %v1896
        %v1898 = vpop.f32.mrf.mxu0
        %v1899 = vpop.f32.mrf.mxu0
        %v1900 = vadd.f32 %v1848, %v1899
        %v1901 = vpop.f32.mrf.mxu0
        %1902 = vmatprep.mubr.bf16.mxu0 0
        %1903 = vmatmul.mubr.bf16.gmra.mxu0 %v412
        %v1904 = vpop.f32.mrf.mxu0
        %v1905 = vadd.f32 %v1848, %v1904
        %v1906 = vpop.f32.mrf.mxu0
        %v1907 = vpop.f32.mrf.mxu0
        %v1908 = vadd.f32 %v1848, %v1907
        %v1909 = vpop.f32.mrf.mxu0
        %1910 = vdwg.mxu0
        %v1911 = vpack.c.bf16 %v1897, %v1897
        %v1912 = vpack.c.bf16 %v1900, %v1900
        %v1913 = vpack.c.bf16 %v1905, %v1905
        %v1914 = vpack.c.bf16 %v1908, %v1908
        %s1915 = scalar_lea.vmem %s3, 160
        %v1916 = vld [vmem:[%s1915] sm:$0xf]
        %v1917 = vld [vmem:[%s1915 + $0x4] sm:$0xf]
        %v1918 = vld [vmem:[%s1915 + $0x8] sm:$0xf]
        %v1919 = vld [vmem:[%s1915 + $0xc] sm:$0xf]
        %s1920 = scalar_lea.vmem %s5, 10
        %v1921 = vld [vmem:[%s1920] sm:$0x1]
        %v1923 = vlaneseq
        %v1924 = vshrl.u32 %v1923, 7
        %v1925 = vsub.s32 0, %v1924
        %v1926 = vrot.slane %v1921, %v1925
        %v1932 = vunpack.c.l.b16 %v1916
        %v1933 = vunpack.c.l.b16 %v1917
        %v1934 = vunpack.c.l.b16 %v1918
        %v1935 = vunpack.c.l.b16 %v1919
        %v1936 = vpack.c.b16 %v1933, %v1932
        %v1937 = vpack.c.b16 %v1935, %v1934
        %1940 = vmatprep.subr.bf16.mxu0 0
        %1941 = vmatpush1.bf16.msra.mxu0 0
        %1942 = vmatprep.subr.bf16.mxu0 0
        %1943 = vmatpush1.bf16.msra.mxu0 0
        %1944 = vmatprep.subr.bf16.mxu0 0
        %1945 = vmatpush1.bf16.msra.mxu0 0
        %1946 = vmatprep.subr.bf16.mxu0 0
        %1947 = vmatpush1.bf16.msra.mxu0 0
        %1948 = vmatprep.subr.bf16.mxu0 0
        %1949 = vmatpush1.bf16.msra.mxu0 0
        %1950 = vmatprep.subr.bf16.mxu0 0
        %1951 = vmatpush1.bf16.msra.mxu0 0
        %1952 = vmatprep.subr.bf16.mxu0 0
        %1953 = vmatpush1.bf16.msra.mxu0 %v1937
        %1954 = vmatprep.subr.bf16.mxu0 0
        %1955 = vmatpush1.bf16.msra.mxu0 %v1936
        %1956 = vmatprep.subr.bf16.mxu0 0
        %1957 = vmatpush2.bf16.msra.mxu0 0
        %1958 = vmatprep.subr.bf16.mxu0 0
        %1959 = vmatpush2.bf16.msra.mxu0 0
        %1960 = vmatprep.subr.bf16.mxu0 0
        %1961 = vmatpush2.bf16.msra.mxu0 0
        %1962 = vmatprep.subr.bf16.mxu0 0
        %1963 = vmatpush2.bf16.msra.mxu0 0
        %1964 = vmatprep.subr.bf16.mxu0 0
        %1965 = vmatpush2.bf16.msra.mxu0 0
        %1966 = vmatprep.subr.bf16.mxu0 0
        %1967 = vmatpush2.bf16.msra.mxu0 0
        %1968 = vmatprep.subr.bf16.mxu0 0
        %1969 = vmatpush2.bf16.msra.mxu0 0
        %1970 = vmatprep.subr.bf16.mxu0 0
        %1971 = vmatpush2.bf16.msra.mxu0 0
        %1972 = vmatprep.mubr.bf16.mxu0 0
        %1973 = vmatmul.mubr.bf16.gmra.mxu0 %v493
        %v1974 = vpop.f32.mrf.mxu0
        %v1975 = vadd.f32 %v1926, %v1974
        %v1976 = vpop.f32.mrf.mxu0
        %v1977 = vpop.f32.mrf.mxu0
        %v1978 = vadd.f32 %v1926, %v1977
        %v1979 = vpop.f32.mrf.mxu0
        %1980 = vmatprep.mubr.bf16.mxu0 0
        %1981 = vmatmul.mubr.bf16.gmra.mxu0 %v496
        %v1982 = vpop.f32.mrf.mxu0
        %v1983 = vadd.f32 %v1926, %v1982
        %v1984 = vpop.f32.mrf.mxu0
        %v1985 = vpop.f32.mrf.mxu0
        %v1986 = vadd.f32 %v1926, %v1985
        %v1987 = vpop.f32.mrf.mxu0
        %1988 = vdwg.mxu0
        %v1989 = vpack.c.bf16 %v1975, %v1975
        %v1990 = vpack.c.bf16 %v1978, %v1978
        %v1991 = vpack.c.bf16 %v1983, %v1983
        %v1992 = vpack.c.bf16 %v1986, %v1986
        %s1993 = scalar_lea.vmem %s3, 288
        %v1994 = vld [vmem:[%s1993] sm:$0xf]
        %v1995 = vld [vmem:[%s1993 + $0x4] sm:$0xf]
        %v1996 = vld [vmem:[%s1993 + $0x8] sm:$0xf]
        %v1997 = vld [vmem:[%s1993 + $0xc] sm:$0xf]
        %s1998 = scalar_lea.vmem %s5, 18
        %v1999 = vld [vmem:[%s1998] sm:$0x1]
        %v2001 = vlaneseq
        %v2002 = vshrl.u32 %v2001, 7
        %v2003 = vsub.s32 0, %v2002
        %v2004 = vrot.slane %v1999, %v2003
        %v2010 = vunpack.c.l.b16 %v1994
        %v2011 = vunpack.c.l.b16 %v1995
        %v2012 = vunpack.c.l.b16 %v1996
        %v2013 = vunpack.c.l.b16 %v1997
        %v2014 = vpack.c.b16 %v2011, %v2010
        %v2015 = vpack.c.b16 %v2013, %v2012
        %2018 = vmatprep.subr.bf16.mxu0 0
        %2019 = vmatpush1.bf16.msra.mxu0 0
        %2020 = vmatprep.subr.bf16.mxu0 0
        %2021 = vmatpush1.bf16.msra.mxu0 0
        %2022 = vmatprep.subr.bf16.mxu0 0
        %2023 = vmatpush1.bf16.msra.mxu0 0
        %2024 = vmatprep.subr.bf16.mxu0 0
        %2025 = vmatpush1.bf16.msra.mxu0 0
        %2026 = vmatprep.subr.bf16.mxu0 0
        %2027 = vmatpush1.bf16.msra.mxu0 0
        %2028 = vmatprep.subr.bf16.mxu0 0
        %2029 = vmatpush1.bf16.msra.mxu0 0
        %2030 = vmatprep.subr.bf16.mxu0 0
        %2031 = vmatpush1.bf16.msra.mxu0 %v2015
        %2032 = vmatprep.subr.bf16.mxu0 0
        %2033 = vmatpush1.bf16.msra.mxu0 %v2014
        %2034 = vmatprep.subr.bf16.mxu0 0
        %2035 = vmatpush2.bf16.msra.mxu0 0
        %2036 = vmatprep.subr.bf16.mxu0 0
        %2037 = vmatpush2.bf16.msra.mxu0 0
        %2038 = vmatprep.subr.bf16.mxu0 0
        %2039 = vmatpush2.bf16.msra.mxu0 0
        %2040 = vmatprep.subr.bf16.mxu0 0
        %2041 = vmatpush2.bf16.msra.mxu0 0
        %2042 = vmatprep.subr.bf16.mxu0 0
        %2043 = vmatpush2.bf16.msra.mxu0 0
        %2044 = vmatprep.subr.bf16.mxu0 0
        %2045 = vmatpush2.bf16.msra.mxu0 0
        %2046 = vmatprep.subr.bf16.mxu0 0
        %2047 = vmatpush2.bf16.msra.mxu0 0
        %2048 = vmatprep.subr.bf16.mxu0 0
        %2049 = vmatpush2.bf16.msra.mxu0 0
        %2050 = vmatprep.mubr.bf16.mxu0 0
        %2051 = vmatmul.mubr.bf16.gmra.mxu0 %v577
        %v2052 = vpop.f32.mrf.mxu0
        %v2053 = vadd.f32 %v2004, %v2052
        %v2054 = vpop.f32.mrf.mxu0
        %v2055 = vpop.f32.mrf.mxu0
        %v2056 = vadd.f32 %v2004, %v2055
        %v2057 = vpop.f32.mrf.mxu0
        %2058 = vmatprep.mubr.bf16.mxu0 0
        %2059 = vmatmul.mubr.bf16.gmra.mxu0 %v580
        %v2060 = vpop.f32.mrf.mxu0
        %v2061 = vadd.f32 %v2004, %v2060
        %v2062 = vpop.f32.mrf.mxu0
        %v2063 = vpop.f32.mrf.mxu0
        %v2064 = vadd.f32 %v2004, %v2063
        %v2065 = vpop.f32.mrf.mxu0
        %2066 = vdwg.mxu0
        %v2067 = vpack.c.bf16 %v2053, %v2053
        %v2068 = vpack.c.bf16 %v2056, %v2056
        %v2069 = vpack.c.bf16 %v2061, %v2061
        %v2070 = vpack.c.bf16 %v2064, %v2064
        %v2072 = vsel %vm635, %v1911, 0
        %v2075 = vsel %vm635, %v1989, 0
        %2077 = vmatprep.subr.bf16.mxu0 0
        %2078 = vmatpush1.bf16.xpose.msra.mxu0 0
        %2079 = vmatprep.subr.bf16.mxu0 0
        %2080 = vmatpush1.bf16.xpose.msra.mxu0 0
        %2081 = vmatprep.subr.bf16.mxu0 0
        %2082 = vmatpush1.bf16.xpose.msra.mxu0 0
        %2083 = vmatprep.subr.bf16.mxu0 0
        %2084 = vmatpush1.bf16.xpose.msra.mxu0 0
        %2085 = vmatprep.subr.bf16.mxu0 0
        %2086 = vmatpush1.bf16.xpose.msra.mxu0 0
        %2087 = vmatprep.subr.bf16.mxu0 0
        %2088 = vmatpush1.bf16.xpose.msra.mxu0 0
        %2089 = vmatprep.subr.bf16.mxu0 0
        %2090 = vmatpush1.bf16.xpose.msra.mxu0 0
        %2091 = vmatprep.subr.bf16.mxu0 0
        %2092 = vmatpush1.bf16.xpose.msra.mxu0 %v2075
        %2093 = vmatprep.subr.bf16.mxu0 0
        %2094 = vmatpush2.bf16.xpose.msra.mxu0 0
        %2095 = vmatprep.subr.bf16.mxu0 0
        %2096 = vmatpush2.bf16.xpose.msra.mxu0 0
        %2097 = vmatprep.subr.bf16.mxu0 0
        %2098 = vmatpush2.bf16.xpose.msra.mxu0 0
        %2099 = vmatprep.subr.bf16.mxu0 0
        %2100 = vmatpush2.bf16.xpose.msra.mxu0 0
        %2101 = vmatprep.subr.bf16.mxu0 0
        %2102 = vmatpush2.bf16.xpose.msra.mxu0 0
        %2103 = vmatprep.subr.bf16.mxu0 0
        %2104 = vmatpush2.bf16.xpose.msra.mxu0 0
        %2105 = vmatprep.subr.bf16.mxu0 0
        %2106 = vmatpush2.bf16.xpose.msra.mxu0 0
        %2107 = vmatprep.subr.bf16.mxu0 0
        %2108 = vmatpush2.bf16.xpose.msra.mxu0 0
        %2109 = vmatprep.mubr.bf16.mxu0 0
        %2110 = vmatmul.mubr.bf16.gmra.mxu0 %v2072
        %v2111 = vpop.f32.mrf.mxu0
        %v2112 = vadd.f32 0.0, %v2111
        %v2113 = vpop.f32.mrf.mxu0
        %v2114 = vpop.f32.mrf.mxu0
        %v2115 = vpop.f32.mrf.mxu0
        %2116 = vdwg.mxu0
        %v2118 = vsel %vm635, %v1912, 0
        %v2121 = vsel %vm635, %v1990, 0
        %2123 = vmatprep.subr.bf16.mxu0 0
        %2124 = vmatpush1.bf16.xpose.msra.mxu0 0
        %2125 = vmatprep.subr.bf16.mxu0 0
        %2126 = vmatpush1.bf16.xpose.msra.mxu0 0
        %2127 = vmatprep.subr.bf16.mxu0 0
        %2128 = vmatpush1.bf16.xpose.msra.mxu0 0
        %2129 = vmatprep.subr.bf16.mxu0 0
        %2130 = vmatpush1.bf16.xpose.msra.mxu0 0
        %2131 = vmatprep.subr.bf16.mxu0 0
        %2132 = vmatpush1.bf16.xpose.msra.mxu0 0
        %2133 = vmatprep.subr.bf16.mxu0 0
        %2134 = vmatpush1.bf16.xpose.msra.mxu0 0
        %2135 = vmatprep.subr.bf16.mxu0 0
        %2136 = vmatpush1.bf16.xpose.msra.mxu0 0
        %2137 = vmatprep.subr.bf16.mxu0 0
        %2138 = vmatpush1.bf16.xpose.msra.mxu0 %v2121
        %2139 = vmatprep.subr.bf16.mxu0 0
        %2140 = vmatpush2.bf16.xpose.msra.mxu0 0
        %2141 = vmatprep.subr.bf16.mxu0 0
        %2142 = vmatpush2.bf16.xpose.msra.mxu0 0
        %2143 = vmatprep.subr.bf16.mxu0 0
        %2144 = vmatpush2.bf16.xpose.msra.mxu0 0
        %2145 = vmatprep.subr.bf16.mxu0 0
        %2146 = vmatpush2.bf16.xpose.msra.mxu0 0
        %2147 = vmatprep.subr.bf16.mxu0 0
        %2148 = vmatpush2.bf16.xpose.msra.mxu0 0
        %2149 = vmatprep.subr.bf16.mxu0 0
        %2150 = vmatpush2.bf16.xpose.msra.mxu0 0
        %2151 = vmatprep.subr.bf16.mxu0 0
        %2152 = vmatpush2.bf16.xpose.msra.mxu0 0
        %2153 = vmatprep.subr.bf16.mxu0 0
        %2154 = vmatpush2.bf16.xpose.msra.mxu0 0
        %2155 = vmatprep.mubr.bf16.mxu0 0
        %2156 = vmatmul.mubr.bf16.gmra.mxu0 %v2118
        %v2157 = vpop.f32.mrf.mxu0
        %v2158 = vadd.f32 0.0, %v2157
        %v2159 = vpop.f32.mrf.mxu0
        %v2160 = vpop.f32.mrf.mxu0
        %v2161 = vpop.f32.mrf.mxu0
        %2162 = vdwg.mxu0
        %v2164 = vsel %vm635, %v1913, 0
        %v2167 = vsel %vm635, %v1991, 0
        %2169 = vmatprep.subr.bf16.mxu0 0
        %2170 = vmatpush1.bf16.xpose.msra.mxu0 0
        %2171 = vmatprep.subr.bf16.mxu0 0
        %2172 = vmatpush1.bf16.xpose.msra.mxu0 0
        %2173 = vmatprep.subr.bf16.mxu0 0
        %2174 = vmatpush1.bf16.xpose.msra.mxu0 0
        %2175 = vmatprep.subr.bf16.mxu0 0
        %2176 = vmatpush1.bf16.xpose.msra.mxu0 0
        %2177 = vmatprep.subr.bf16.mxu0 0
        %2178 = vmatpush1.bf16.xpose.msra.mxu0 0
        %2179 = vmatprep.subr.bf16.mxu0 0
        %2180 = vmatpush1.bf16.xpose.msra.mxu0 0
        %2181 = vmatprep.subr.bf16.mxu0 0
        %2182 = vmatpush1.bf16.xpose.msra.mxu0 0
        %2183 = vmatprep.subr.bf16.mxu0 0
        %2184 = vmatpush1.bf16.xpose.msra.mxu0 %v2167
        %2185 = vmatprep.subr.bf16.mxu0 0
        %2186 = vmatpush2.bf16.xpose.msra.mxu0 0
        %2187 = vmatprep.subr.bf16.mxu0 0
        %2188 = vmatpush2.bf16.xpose.msra.mxu0 0
        %2189 = vmatprep.subr.bf16.mxu0 0
        %2190 = vmatpush2.bf16.xpose.msra.mxu0 0
        %2191 = vmatprep.subr.bf16.mxu0 0
        %2192 = vmatpush2.bf16.xpose.msra.mxu0 0
        %2193 = vmatprep.subr.bf16.mxu0 0
        %2194 = vmatpush2.bf16.xpose.msra.mxu0 0
        %2195 = vmatprep.subr.bf16.mxu0 0
        %2196 = vmatpush2.bf16.xpose.msra.mxu0 0
        %2197 = vmatprep.subr.bf16.mxu0 0
        %2198 = vmatpush2.bf16.xpose.msra.mxu0 0
        %2199 = vmatprep.subr.bf16.mxu0 0
        %2200 = vmatpush2.bf16.xpose.msra.mxu0 0
        %2201 = vmatprep.mubr.bf16.mxu0 0
        %2202 = vmatmul.mubr.bf16.gmra.mxu0 %v2164
        %v2203 = vpop.f32.mrf.mxu0
        %v2204 = vadd.f32 0.0, %v2203
        %v2205 = vpop.f32.mrf.mxu0
        %v2206 = vpop.f32.mrf.mxu0
        %v2207 = vpop.f32.mrf.mxu0
        %2208 = vdwg.mxu0
        %v2210 = vsel %vm635, %v1914, 0
        %v2213 = vsel %vm635, %v1992, 0
        %2215 = vmatprep.subr.bf16.mxu0 0
        %2216 = vmatpush1.bf16.xpose.msra.mxu0 0
        %2217 = vmatprep.subr.bf16.mxu0 0
        %2218 = vmatpush1.bf16.xpose.msra.mxu0 0
        %2219 = vmatprep.subr.bf16.mxu0 0
        %2220 = vmatpush1.bf16.xpose.msra.mxu0 0
        %2221 = vmatprep.subr.bf16.mxu0 0
        %2222 = vmatpush1.bf16.xpose.msra.mxu0 0
        %2223 = vmatprep.subr.bf16.mxu0 0
        %2224 = vmatpush1.bf16.xpose.msra.mxu0 0
        %2225 = vmatprep.subr.bf16.mxu0 0
        %2226 = vmatpush1.bf16.xpose.msra.mxu0 0
        %2227 = vmatprep.subr.bf16.mxu0 0
        %2228 = vmatpush1.bf16.xpose.msra.mxu0 0
        %2229 = vmatprep.subr.bf16.mxu0 0
        %2230 = vmatpush1.bf16.xpose.msra.mxu0 %v2213
        %2231 = vmatprep.subr.bf16.mxu0 0
        %2232 = vmatpush2.bf16.xpose.msra.mxu0 0
        %2233 = vmatprep.subr.bf16.mxu0 0
        %2234 = vmatpush2.bf16.xpose.msra.mxu0 0
        %2235 = vmatprep.subr.bf16.mxu0 0
        %2236 = vmatpush2.bf16.xpose.msra.mxu0 0
        %2237 = vmatprep.subr.bf16.mxu0 0
        %2238 = vmatpush2.bf16.xpose.msra.mxu0 0
        %2239 = vmatprep.subr.bf16.mxu0 0
        %2240 = vmatpush2.bf16.xpose.msra.mxu0 0
        %2241 = vmatprep.subr.bf16.mxu0 0
        %2242 = vmatpush2.bf16.xpose.msra.mxu0 0
        %2243 = vmatprep.subr.bf16.mxu0 0
        %2244 = vmatpush2.bf16.xpose.msra.mxu0 0
        %2245 = vmatprep.subr.bf16.mxu0 0
        %2246 = vmatpush2.bf16.xpose.msra.mxu0 0
        %2247 = vmatprep.mubr.bf16.mxu0 0
        %2248 = vmatmul.mubr.bf16.gmra.mxu0 %v2210
        %v2249 = vpop.f32.mrf.mxu0
        %v2250 = vadd.f32 0.0, %v2249
        %v2251 = vpop.f32.mrf.mxu0
        %v2252 = vpop.f32.mrf.mxu0
        %v2253 = vpop.f32.mrf.mxu0
        %2254 = vdwg.mxu0
        %v2255 = vsel %vm820, %v2112, -inf
        %2256 = vmax.xlane.f32.xlu0 %v2255
        %v2257 = vpop.xlane.xlu0 %2256
        %v2258 = vsel %vm820, %v2158, -inf
        %2259 = vmax.xlane.f32.xlu0 %v2258
        %v2260 = vpop.xlane.xlu0 %2259
        %v2261 = vsel %vm820, %v2204, -inf
        %2262 = vmax.xlane.f32.xlu0 %v2261
        %v2263 = vpop.xlane.xlu0 %2262
        %v2264 = vsel %vm820, %v2250, -inf
        %2265 = vmax.xlane.f32.xlu0 %v2264
        %v2266 = vpop.xlane.xlu0 %2265
        %v2267 = vsub.f32 %v2112, %v2257
        %v2268 = vsub.f32 %v2158, %v2260
        %v2269 = vsub.f32 %v2204, %v2263
        %v2270 = vsub.f32 %v2250, %v2266
        %v2271 = vmul.f32 %v2267, 1.442695
        %v2272 = vpow.pop %v2271
        %v2273 = vmul.f32 %v2268, 1.442695
        %v2274 = vpow.pop %v2273
        %v2275 = vmul.f32 %v2269, 1.442695
        %v2276 = vpow.pop %v2275
        %v2277 = vmul.f32 %v2270, 1.442695
        %v2278 = vpow.pop %v2277
        %v2279 = vsel %vm820, %v2272, 0.0
        %2280 = vadd.xlane.f32.xlu0 %v2279
        %v2281 = vpop.xlane.xlu0 %2280
        %v2282 = vsel %vm820, %v2274, 0.0
        %2283 = vadd.xlane.f32.xlu0 %v2282
        %v2284 = vpop.xlane.xlu0 %2283
        %v2285 = vsel %vm820, %v2276, 0.0
        %2286 = vadd.xlane.f32.xlu0 %v2285
        %v2287 = vpop.xlane.xlu0 %2286
        %v2288 = vsel %vm820, %v2278, 0.0
        %2289 = vadd.xlane.f32.xlu0 %v2288
        %v2290 = vpop.xlane.xlu0 %2289
        %v2291 = vrcp.pop %v2281
        %v2292 = vmul.f32 %v2272, %v2291
        %v2293 = vrcp.pop %v2284
        %v2294 = vmul.f32 %v2274, %v2293
        %v2295 = vrcp.pop %v2287
        %v2296 = vmul.f32 %v2276, %v2295
        %v2297 = vrcp.pop %v2290
        %v2298 = vmul.f32 %v2278, %v2297
        %s2299 = scalar_lea.vmem %s339, 64 [#allocation2]
        %2300 = vst.msk [vmem:[%s2299] sm:$0xff] %vm820, %v2292
        %2301 = vst.msk [vmem:[%s2299 + $0x8] sm:$0xff] %vm820, %v2294
        %2302 = vst.msk [vmem:[%s2299 + $0x10] sm:$0xff] %vm820, %v2296
        %2303 = vst.msk [vmem:[%s2299 + $0x18] sm:$0xff] %vm820, %v2298
        %v2304 = vpack.c.bf16 %v2292, %v2292
        %v2305 = vpack.c.bf16 %v2294, %v2294
        %v2306 = vpack.c.bf16 %v2296, %v2296
        %v2307 = vpack.c.bf16 %v2298, %v2298
        %v2309 = vsel %vm820, %v2304, 0
        %v2312 = vsel %vm876, %v2067, 0
        %2314 = vmatprep.subr.bf16.mxu0 0
        %2315 = vmatpush1.bf16.msra.mxu0 0
        %2316 = vmatprep.subr.bf16.mxu0 0
        %2317 = vmatpush1.bf16.msra.mxu0 0
        %2318 = vmatprep.subr.bf16.mxu0 0
        %2319 = vmatpush1.bf16.msra.mxu0 0
        %2320 = vmatprep.subr.bf16.mxu0 0
        %2321 = vmatpush1.bf16.msra.mxu0 0
        %2322 = vmatprep.subr.bf16.mxu0 0
        %2323 = vmatpush1.bf16.msra.mxu0 0
        %2324 = vmatprep.subr.bf16.mxu0 0
        %2325 = vmatpush1.bf16.msra.mxu0 0
        %2326 = vmatprep.subr.bf16.mxu0 0
        %2327 = vmatpush1.bf16.msra.mxu0 0
        %2328 = vmatprep.subr.bf16.mxu0 0
        %2329 = vmatpush1.bf16.msra.mxu0 %v2312
        %2330 = vmatprep.subr.bf16.mxu0 0
        %2331 = vmatpush2.bf16.msra.mxu0 0
        %2332 = vmatprep.subr.bf16.mxu0 0
        %2333 = vmatpush2.bf16.msra.mxu0 0
        %2334 = vmatprep.subr.bf16.mxu0 0
        %2335 = vmatpush2.bf16.msra.mxu0 0
        %2336 = vmatprep.subr.bf16.mxu0 0
        %2337 = vmatpush2.bf16.msra.mxu0 0
        %2338 = vmatprep.subr.bf16.mxu0 0
        %2339 = vmatpush2.bf16.msra.mxu0 0
        %2340 = vmatprep.subr.bf16.mxu0 0
        %2341 = vmatpush2.bf16.msra.mxu0 0
        %2342 = vmatprep.subr.bf16.mxu0 0
        %2343 = vmatpush2.bf16.msra.mxu0 0
        %2344 = vmatprep.subr.bf16.mxu0 0
        %2345 = vmatpush2.bf16.msra.mxu0 0
        %2346 = vmatprep.mubr.bf16.mxu0 0
        %2347 = vmatmul.mubr.bf16.gmra.mxu0 %v2309
        %v2348 = vpop.f32.mrf.mxu0
        %v2349 = vadd.f32 0.0, %v2348
        %v2350 = vpop.f32.mrf.mxu0
        %v2351 = vpop.f32.mrf.mxu0
        %v2352 = vpop.f32.mrf.mxu0
        %2353 = vdwg.mxu0
        %v2355 = vsel %vm820, %v2305, 0
        %v2358 = vsel %vm876, %v2068, 0
        %2360 = vmatprep.subr.bf16.mxu0 0
        %2361 = vmatpush1.bf16.msra.mxu0 0
        %2362 = vmatprep.subr.bf16.mxu0 0
        %2363 = vmatpush1.bf16.msra.mxu0 0
        %2364 = vmatprep.subr.bf16.mxu0 0
        %2365 = vmatpush1.bf16.msra.mxu0 0
        %2366 = vmatprep.subr.bf16.mxu0 0
        %2367 = vmatpush1.bf16.msra.mxu0 0
        %2368 = vmatprep.subr.bf16.mxu0 0
        %2369 = vmatpush1.bf16.msra.mxu0 0
        %2370 = vmatprep.subr.bf16.mxu0 0
        %2371 = vmatpush1.bf16.msra.mxu0 0
        %2372 = vmatprep.subr.bf16.mxu0 0
        %2373 = vmatpush1.bf16.msra.mxu0 0
        %2374 = vmatprep.subr.bf16.mxu0 0
        %2375 = vmatpush1.bf16.msra.mxu0 %v2358
        %2376 = vmatprep.subr.bf16.mxu0 0
        %2377 = vmatpush2.bf16.msra.mxu0 0
        %2378 = vmatprep.subr.bf16.mxu0 0
        %2379 = vmatpush2.bf16.msra.mxu0 0
        %2380 = vmatprep.subr.bf16.mxu0 0
        %2381 = vmatpush2.bf16.msra.mxu0 0
        %2382 = vmatprep.subr.bf16.mxu0 0
        %2383 = vmatpush2.bf16.msra.mxu0 0
        %2384 = vmatprep.subr.bf16.mxu0 0
        %2385 = vmatpush2.bf16.msra.mxu0 0
        %2386 = vmatprep.subr.bf16.mxu0 0
        %2387 = vmatpush2.bf16.msra.mxu0 0
        %2388 = vmatprep.subr.bf16.mxu0 0
        %2389 = vmatpush2.bf16.msra.mxu0 0
        %2390 = vmatprep.subr.bf16.mxu0 0
        %2391 = vmatpush2.bf16.msra.mxu0 0
        %2392 = vmatprep.mubr.bf16.mxu0 0
        %2393 = vmatmul.mubr.bf16.gmra.mxu0 %v2355
        %v2394 = vpop.f32.mrf.mxu0
        %v2395 = vadd.f32 0.0, %v2394
        %v2396 = vpop.f32.mrf.mxu0
        %v2397 = vpop.f32.mrf.mxu0
        %v2398 = vpop.f32.mrf.mxu0
        %2399 = vdwg.mxu0
        %v2401 = vsel %vm820, %v2306, 0
        %v2404 = vsel %vm876, %v2069, 0
        %2406 = vmatprep.subr.bf16.mxu0 0
        %2407 = vmatpush1.bf16.msra.mxu0 0
        %2408 = vmatprep.subr.bf16.mxu0 0
        %2409 = vmatpush1.bf16.msra.mxu0 0
        %2410 = vmatprep.subr.bf16.mxu0 0
        %2411 = vmatpush1.bf16.msra.mxu0 0
        %2412 = vmatprep.subr.bf16.mxu0 0
        %2413 = vmatpush1.bf16.msra.mxu0 0
        %2414 = vmatprep.subr.bf16.mxu0 0
        %2415 = vmatpush1.bf16.msra.mxu0 0
        %2416 = vmatprep.subr.bf16.mxu0 0
        %2417 = vmatpush1.bf16.msra.mxu0 0
        %2418 = vmatprep.subr.bf16.mxu0 0
        %2419 = vmatpush1.bf16.msra.mxu0 0
        %2420 = vmatprep.subr.bf16.mxu0 0
        %2421 = vmatpush1.bf16.msra.mxu0 %v2404
        %2422 = vmatprep.subr.bf16.mxu0 0
        %2423 = vmatpush2.bf16.msra.mxu0 0
        %2424 = vmatprep.subr.bf16.mxu0 0
        %2425 = vmatpush2.bf16.msra.mxu0 0
        %2426 = vmatprep.subr.bf16.mxu0 0
        %2427 = vmatpush2.bf16.msra.mxu0 0
        %2428 = vmatprep.subr.bf16.mxu0 0
        %2429 = vmatpush2.bf16.msra.mxu0 0
        %2430 = vmatprep.subr.bf16.mxu0 0
        %2431 = vmatpush2.bf16.msra.mxu0 0
        %2432 = vmatprep.subr.bf16.mxu0 0
        %2433 = vmatpush2.bf16.msra.mxu0 0
        %2434 = vmatprep.subr.bf16.mxu0 0
        %2435 = vmatpush2.bf16.msra.mxu0 0
        %2436 = vmatprep.subr.bf16.mxu0 0
        %2437 = vmatpush2.bf16.msra.mxu0 0
        %2438 = vmatprep.mubr.bf16.mxu0 0
        %2439 = vmatmul.mubr.bf16.gmra.mxu0 %v2401
        %v2440 = vpop.f32.mrf.mxu0
        %v2441 = vadd.f32 0.0, %v2440
        %v2442 = vpop.f32.mrf.mxu0
        %v2443 = vpop.f32.mrf.mxu0
        %v2444 = vpop.f32.mrf.mxu0
        %2445 = vdwg.mxu0
        %v2447 = vsel %vm820, %v2307, 0
        %v2450 = vsel %vm876, %v2070, 0
        %2452 = vmatprep.subr.bf16.mxu0 0
        %2453 = vmatpush1.bf16.msra.mxu0 0
        %2454 = vmatprep.subr.bf16.mxu0 0
        %2455 = vmatpush1.bf16.msra.mxu0 0
        %2456 = vmatprep.subr.bf16.mxu0 0
        %2457 = vmatpush1.bf16.msra.mxu0 0
        %2458 = vmatprep.subr.bf16.mxu0 0
        %2459 = vmatpush1.bf16.msra.mxu0 0
        %2460 = vmatprep.subr.bf16.mxu0 0
        %2461 = vmatpush1.bf16.msra.mxu0 0
        %2462 = vmatprep.subr.bf16.mxu0 0
        %2463 = vmatpush1.bf16.msra.mxu0 0
        %2464 = vmatprep.subr.bf16.mxu0 0
        %2465 = vmatpush1.bf16.msra.mxu0 0
        %2466 = vmatprep.subr.bf16.mxu0 0
        %2467 = vmatpush1.bf16.msra.mxu0 %v2450
        %2468 = vmatprep.subr.bf16.mxu0 0
        %2469 = vmatpush2.bf16.msra.mxu0 0
        %2470 = vmatprep.subr.bf16.mxu0 0
        %2471 = vmatpush2.bf16.msra.mxu0 0
        %2472 = vmatprep.subr.bf16.mxu0 0
        %2473 = vmatpush2.bf16.msra.mxu0 0
        %2474 = vmatprep.subr.bf16.mxu0 0
        %2475 = vmatpush2.bf16.msra.mxu0 0
        %2476 = vmatprep.subr.bf16.mxu0 0
        %2477 = vmatpush2.bf16.msra.mxu0 0
        %2478 = vmatprep.subr.bf16.mxu0 0
        %2479 = vmatpush2.bf16.msra.mxu0 0
        %2480 = vmatprep.subr.bf16.mxu0 0
        %2481 = vmatpush2.bf16.msra.mxu0 0
        %2482 = vmatprep.subr.bf16.mxu0 0
        %2483 = vmatpush2.bf16.msra.mxu0 0
        %2484 = vmatprep.mubr.bf16.mxu0 0
        %2485 = vmatmul.mubr.bf16.gmra.mxu0 %v2447
        %v2486 = vpop.f32.mrf.mxu0
        %v2487 = vadd.f32 0.0, %v2486
        %v2488 = vpop.f32.mrf.mxu0
        %v2489 = vpop.f32.mrf.mxu0
        %v2490 = vpop.f32.mrf.mxu0
        %2491 = vdwg.mxu0
        %v2492 = vpack.c.bf16 %v2395, %v2349
        %v2493 = vpack.c.bf16 %v2487, %v2441
        %s2494 = scalar_lea.vmem %s4, 4
        %v2495 = vld [vmem:[%s2494] sm:$0x3]
        %v2497 = vsel %vm635, %v2492, 0
        %v2500 = vsel %vm635, %v2493, 0
        %v2503 = vsel %vm1726, %v2495, 0
        %2505 = vmatprep.subr.bf16.mxu0 0
        %2506 = vmatpush1.bf16.msra.mxu0 0
        %2507 = vmatprep.subr.bf16.mxu0 0
        %2508 = vmatpush1.bf16.msra.mxu0 0
        %2509 = vmatprep.subr.bf16.mxu0 0
        %2510 = vmatpush1.bf16.msra.mxu0 0
        %2511 = vmatprep.subr.bf16.mxu0 0
        %2512 = vmatpush1.bf16.msra.mxu0 0
        %2513 = vmatprep.subr.bf16.mxu0 0
        %2514 = vmatpush1.bf16.msra.mxu0 0
        %2515 = vmatprep.subr.bf16.mxu0 0
        %2516 = vmatpush1.bf16.msra.mxu0 0
        %2517 = vmatprep.subr.bf16.mxu0 0
        %2518 = vmatpush1.bf16.msra.mxu0 0
        %2519 = vmatprep.subr.bf16.mxu0 0
        %2520 = vmatpush1.bf16.msra.mxu0 %v2503
        %2521 = vmatprep.subr.bf16.mxu0 0
        %2522 = vmatpush2.bf16.msra.mxu0 0
        %2523 = vmatprep.subr.bf16.mxu0 0
        %2524 = vmatpush2.bf16.msra.mxu0 0
        %2525 = vmatprep.subr.bf16.mxu0 0
        %2526 = vmatpush2.bf16.msra.mxu0 0
        %2527 = vmatprep.subr.bf16.mxu0 0
        %2528 = vmatpush2.bf16.msra.mxu0 0
        %2529 = vmatprep.subr.bf16.mxu0 0
        %2530 = vmatpush2.bf16.msra.mxu0 0
        %2531 = vmatprep.subr.bf16.mxu0 0
        %2532 = vmatpush2.bf16.msra.mxu0 0
        %2533 = vmatprep.subr.bf16.mxu0 0
        %2534 = vmatpush2.bf16.msra.mxu0 0
        %2535 = vmatprep.subr.bf16.mxu0 0
        %2536 = vmatpush2.bf16.msra.mxu0 0
        %2537 = vmatprep.mubr.bf16.mxu0 0
        %2538 = vmatmul.mubr.bf16.gmra.mxu0 %v2497
        %v2539 = vpop.f32.mrf.mxu0
        %v2540 = vadd.f32 0.0, %v2539
        %v2541 = vpop.f32.mrf.mxu0
        %v2542 = vpop.f32.mrf.mxu0
        %v2543 = vadd.f32 0.0, %v2542
        %v2544 = vpop.f32.mrf.mxu0
        %2545 = vmatprep.mubr.bf16.mxu0 0
        %2546 = vmatmul.mubr.bf16.gmra.mxu0 %v2500
        %v2547 = vpop.f32.mrf.mxu0
        %v2548 = vadd.f32 0.0, %v2547
        %v2549 = vpop.f32.mrf.mxu0
        %v2550 = vpop.f32.mrf.mxu0
        %v2551 = vadd.f32 0.0, %v2550
        %v2552 = vpop.f32.mrf.mxu0
        %2553 = vdwg.mxu0
        %v2554 = vadd.f32 %v1823, %v2540
        %v2555 = vadd.f32 %v1826, %v2543
        %v2556 = vadd.f32 %v1831, %v2548
        %v2557 = vadd.f32 %v1834, %v2551
        %s2558 = scalar_lea.vmem %s3, 48
        %v2559 = vld [vmem:[%s2558] sm:$0xf]
        %v2560 = vld [vmem:[%s2558 + $0x4] sm:$0xf]
        %v2561 = vld [vmem:[%s2558 + $0x8] sm:$0xf]
        %v2562 = vld [vmem:[%s2558 + $0xc] sm:$0xf]
        %s2563 = scalar_lea.vmem %s5, 3
        %v2564 = vld [vmem:[%s2563] sm:$0x1]
        %v2566 = vlaneseq
        %v2567 = vshrl.u32 %v2566, 7
        %v2568 = vsub.s32 0, %v2567
        %v2569 = vrot.slane %v2564, %v2568
        %v2575 = vunpack.c.l.b16 %v2559
        %v2576 = vunpack.c.l.b16 %v2560
        %v2577 = vunpack.c.l.b16 %v2561
        %v2578 = vunpack.c.l.b16 %v2562
        %v2579 = vpack.c.b16 %v2576, %v2575
        %v2580 = vpack.c.b16 %v2578, %v2577
        %2583 = vmatprep.subr.bf16.mxu0 0
        %2584 = vmatpush1.bf16.msra.mxu0 0
        %2585 = vmatprep.subr.bf16.mxu0 0
        %2586 = vmatpush1.bf16.msra.mxu0 0
        %2587 = vmatprep.subr.bf16.mxu0 0
        %2588 = vmatpush1.bf16.msra.mxu0 0
        %2589 = vmatprep.subr.bf16.mxu0 0
        %2590 = vmatpush1.bf16.msra.mxu0 0
        %2591 = vmatprep.subr.bf16.mxu0 0
        %2592 = vmatpush1.bf16.msra.mxu0 0
        %2593 = vmatprep.subr.bf16.mxu0 0
        %2594 = vmatpush1.bf16.msra.mxu0 0
        %2595 = vmatprep.subr.bf16.mxu0 0
        %2596 = vmatpush1.bf16.msra.mxu0 %v2580
        %2597 = vmatprep.subr.bf16.mxu0 0
        %2598 = vmatpush1.bf16.msra.mxu0 %v2579
        %2599 = vmatprep.subr.bf16.mxu0 0
        %2600 = vmatpush2.bf16.msra.mxu0 0
        %2601 = vmatprep.subr.bf16.mxu0 0
        %2602 = vmatpush2.bf16.msra.mxu0 0
        %2603 = vmatprep.subr.bf16.mxu0 0
        %2604 = vmatpush2.bf16.msra.mxu0 0
        %2605 = vmatprep.subr.bf16.mxu0 0
        %2606 = vmatpush2.bf16.msra.mxu0 0
        %2607 = vmatprep.subr.bf16.mxu0 0
        %2608 = vmatpush2.bf16.msra.mxu0 0
        %2609 = vmatprep.subr.bf16.mxu0 0
        %2610 = vmatpush2.bf16.msra.mxu0 0
        %2611 = vmatprep.subr.bf16.mxu0 0
        %2612 = vmatpush2.bf16.msra.mxu0 0
        %2613 = vmatprep.subr.bf16.mxu0 0
        %2614 = vmatpush2.bf16.msra.mxu0 0
        %2615 = vmatprep.mubr.bf16.mxu0 0
        %2616 = vmatmul.mubr.bf16.gmra.mxu0 %v409
        %v2617 = vpop.f32.mrf.mxu0
        %v2618 = vadd.f32 %v2569, %v2617
        %v2619 = vpop.f32.mrf.mxu0
        %v2620 = vpop.f32.mrf.mxu0
        %v2621 = vadd.f32 %v2569, %v2620
        %v2622 = vpop.f32.mrf.mxu0
        %2623 = vmatprep.mubr.bf16.mxu0 0
        %2624 = vmatmul.mubr.bf16.gmra.mxu0 %v412
        %v2625 = vpop.f32.mrf.mxu0
        %v2626 = vadd.f32 %v2569, %v2625
        %v2627 = vpop.f32.mrf.mxu0
        %v2628 = vpop.f32.mrf.mxu0
        %v2629 = vadd.f32 %v2569, %v2628
        %v2630 = vpop.f32.mrf.mxu0
        %2631 = vdwg.mxu0
        %v2632 = vpack.c.bf16 %v2618, %v2618
        %v2633 = vpack.c.bf16 %v2621, %v2621
        %v2634 = vpack.c.bf16 %v2626, %v2626
        %v2635 = vpack.c.bf16 %v2629, %v2629
        %s2636 = scalar_lea.vmem %s3, 176
        %v2637 = vld [vmem:[%s2636] sm:$0xf]
        %v2638 = vld [vmem:[%s2636 + $0x4] sm:$0xf]
        %v2639 = vld [vmem:[%s2636 + $0x8] sm:$0xf]
        %v2640 = vld [vmem:[%s2636 + $0xc] sm:$0xf]
        %s2641 = scalar_lea.vmem %s5, 11
        %v2642 = vld [vmem:[%s2641] sm:$0x1]
        %v2644 = vlaneseq
        %v2645 = vshrl.u32 %v2644, 7
        %v2646 = vsub.s32 0, %v2645
        %v2647 = vrot.slane %v2642, %v2646
        %v2653 = vunpack.c.l.b16 %v2637
        %v2654 = vunpack.c.l.b16 %v2638
        %v2655 = vunpack.c.l.b16 %v2639
        %v2656 = vunpack.c.l.b16 %v2640
        %v2657 = vpack.c.b16 %v2654, %v2653
        %v2658 = vpack.c.b16 %v2656, %v2655
        %2661 = vmatprep.subr.bf16.mxu0 0
        %2662 = vmatpush1.bf16.msra.mxu0 0
        %2663 = vmatprep.subr.bf16.mxu0 0
        %2664 = vmatpush1.bf16.msra.mxu0 0
        %2665 = vmatprep.subr.bf16.mxu0 0
        %2666 = vmatpush1.bf16.msra.mxu0 0
        %2667 = vmatprep.subr.bf16.mxu0 0
        %2668 = vmatpush1.bf16.msra.mxu0 0
        %2669 = vmatprep.subr.bf16.mxu0 0
        %2670 = vmatpush1.bf16.msra.mxu0 0
        %2671 = vmatprep.subr.bf16.mxu0 0
        %2672 = vmatpush1.bf16.msra.mxu0 0
        %2673 = vmatprep.subr.bf16.mxu0 0
        %2674 = vmatpush1.bf16.msra.mxu0 %v2658
        %2675 = vmatprep.subr.bf16.mxu0 0
        %2676 = vmatpush1.bf16.msra.mxu0 %v2657
        %2677 = vmatprep.subr.bf16.mxu0 0
        %2678 = vmatpush2.bf16.msra.mxu0 0
        %2679 = vmatprep.subr.bf16.mxu0 0
        %2680 = vmatpush2.bf16.msra.mxu0 0
        %2681 = vmatprep.subr.bf16.mxu0 0
        %2682 = vmatpush2.bf16.msra.mxu0 0
        %2683 = vmatprep.subr.bf16.mxu0 0
        %2684 = vmatpush2.bf16.msra.mxu0 0
        %2685 = vmatprep.subr.bf16.mxu0 0
        %2686 = vmatpush2.bf16.msra.mxu0 0
        %2687 = vmatprep.subr.bf16.mxu0 0
        %2688 = vmatpush2.bf16.msra.mxu0 0
        %2689 = vmatprep.subr.bf16.mxu0 0
        %2690 = vmatpush2.bf16.msra.mxu0 0
        %2691 = vmatprep.subr.bf16.mxu0 0
        %2692 = vmatpush2.bf16.msra.mxu0 0
        %2693 = vmatprep.mubr.bf16.mxu0 0
        %2694 = vmatmul.mubr.bf16.gmra.mxu0 %v493
        %v2695 = vpop.f32.mrf.mxu0
        %v2696 = vadd.f32 %v2647, %v2695
        %v2697 = vpop.f32.mrf.mxu0
        %v2698 = vpop.f32.mrf.mxu0
        %v2699 = vadd.f32 %v2647, %v2698
        %v2700 = vpop.f32.mrf.mxu0
        %2701 = vmatprep.mubr.bf16.mxu0 0
        %2702 = vmatmul.mubr.bf16.gmra.mxu0 %v496
        %v2703 = vpop.f32.mrf.mxu0
        %v2704 = vadd.f32 %v2647, %v2703
        %v2705 = vpop.f32.mrf.mxu0
        %v2706 = vpop.f32.mrf.mxu0
        %v2707 = vadd.f32 %v2647, %v2706
        %v2708 = vpop.f32.mrf.mxu0
        %2709 = vdwg.mxu0
        %v2710 = vpack.c.bf16 %v2696, %v2696
        %v2711 = vpack.c.bf16 %v2699, %v2699
        %v2712 = vpack.c.bf16 %v2704, %v2704
        %v2713 = vpack.c.bf16 %v2707, %v2707
        %s2714 = scalar_lea.vmem %s3, 304
        %v2715 = vld [vmem:[%s2714] sm:$0xf]
        %v2716 = vld [vmem:[%s2714 + $0x4] sm:$0xf]
        %v2717 = vld [vmem:[%s2714 + $0x8] sm:$0xf]
        %v2718 = vld [vmem:[%s2714 + $0xc] sm:$0xf]
        %s2719 = scalar_lea.vmem %s5, 19
        %v2720 = vld [vmem:[%s2719] sm:$0x1]
        %v2722 = vlaneseq
        %v2723 = vshrl.u32 %v2722, 7
        %v2724 = vsub.s32 0, %v2723
        %v2725 = vrot.slane %v2720, %v2724
        %v2731 = vunpack.c.l.b16 %v2715
        %v2732 = vunpack.c.l.b16 %v2716
        %v2733 = vunpack.c.l.b16 %v2717
        %v2734 = vunpack.c.l.b16 %v2718
        %v2735 = vpack.c.b16 %v2732, %v2731
        %v2736 = vpack.c.b16 %v2734, %v2733
        %2739 = vmatprep.subr.bf16.mxu0 0
        %2740 = vmatpush1.bf16.msra.mxu0 0
        %2741 = vmatprep.subr.bf16.mxu0 0
        %2742 = vmatpush1.bf16.msra.mxu0 0
        %2743 = vmatprep.subr.bf16.mxu0 0
        %2744 = vmatpush1.bf16.msra.mxu0 0
        %2745 = vmatprep.subr.bf16.mxu0 0
        %2746 = vmatpush1.bf16.msra.mxu0 0
        %2747 = vmatprep.subr.bf16.mxu0 0
        %2748 = vmatpush1.bf16.msra.mxu0 0
        %2749 = vmatprep.subr.bf16.mxu0 0
        %2750 = vmatpush1.bf16.msra.mxu0 0
        %2751 = vmatprep.subr.bf16.mxu0 0
        %2752 = vmatpush1.bf16.msra.mxu0 %v2736
        %2753 = vmatprep.subr.bf16.mxu0 0
        %2754 = vmatpush1.bf16.msra.mxu0 %v2735
        %2755 = vmatprep.subr.bf16.mxu0 0
        %2756 = vmatpush2.bf16.msra.mxu0 0
        %2757 = vmatprep.subr.bf16.mxu0 0
        %2758 = vmatpush2.bf16.msra.mxu0 0
        %2759 = vmatprep.subr.bf16.mxu0 0
        %2760 = vmatpush2.bf16.msra.mxu0 0
        %2761 = vmatprep.subr.bf16.mxu0 0
        %2762 = vmatpush2.bf16.msra.mxu0 0
        %2763 = vmatprep.subr.bf16.mxu0 0
        %2764 = vmatpush2.bf16.msra.mxu0 0
        %2765 = vmatprep.subr.bf16.mxu0 0
        %2766 = vmatpush2.bf16.msra.mxu0 0
        %2767 = vmatprep.subr.bf16.mxu0 0
        %2768 = vmatpush2.bf16.msra.mxu0 0
        %2769 = vmatprep.subr.bf16.mxu0 0
        %2770 = vmatpush2.bf16.msra.mxu0 0
        %2771 = vmatprep.mubr.bf16.mxu0 0
        %2772 = vmatmul.mubr.bf16.gmra.mxu0 %v577
        %v2773 = vpop.f32.mrf.mxu0
        %v2774 = vadd.f32 %v2725, %v2773
        %v2775 = vpop.f32.mrf.mxu0
        %v2776 = vpop.f32.mrf.mxu0
        %v2777 = vadd.f32 %v2725, %v2776
        %v2778 = vpop.f32.mrf.mxu0
        %2779 = vmatprep.mubr.bf16.mxu0 0
        %2780 = vmatmul.mubr.bf16.gmra.mxu0 %v580
        %v2781 = vpop.f32.mrf.mxu0
        %v2782 = vadd.f32 %v2725, %v2781
        %v2783 = vpop.f32.mrf.mxu0
        %v2784 = vpop.f32.mrf.mxu0
        %v2785 = vadd.f32 %v2725, %v2784
        %v2786 = vpop.f32.mrf.mxu0
        %2787 = vdwg.mxu0
        %v2788 = vpack.c.bf16 %v2774, %v2774
        %v2789 = vpack.c.bf16 %v2777, %v2777
        %v2790 = vpack.c.bf16 %v2782, %v2782
        %v2791 = vpack.c.bf16 %v2785, %v2785
        %v2793 = vsel %vm635, %v2632, 0
        %v2796 = vsel %vm635, %v2710, 0
        %2798 = vmatprep.subr.bf16.mxu0 0
        %2799 = vmatpush1.bf16.xpose.msra.mxu0 0
        %2800 = vmatprep.subr.bf16.mxu0 0
        %2801 = vmatpush1.bf16.xpose.msra.mxu0 0
        %2802 = vmatprep.subr.bf16.mxu0 0
        %2803 = vmatpush1.bf16.xpose.msra.mxu0 0
        %2804 = vmatprep.subr.bf16.mxu0 0
        %2805 = vmatpush1.bf16.xpose.msra.mxu0 0
        %2806 = vmatprep.subr.bf16.mxu0 0
        %2807 = vmatpush1.bf16.xpose.msra.mxu0 0
        %2808 = vmatprep.subr.bf16.mxu0 0
        %2809 = vmatpush1.bf16.xpose.msra.mxu0 0
        %2810 = vmatprep.subr.bf16.mxu0 0
        %2811 = vmatpush1.bf16.xpose.msra.mxu0 0
        %2812 = vmatprep.subr.bf16.mxu0 0
        %2813 = vmatpush1.bf16.xpose.msra.mxu0 %v2796
        %2814 = vmatprep.subr.bf16.mxu0 0
        %2815 = vmatpush2.bf16.xpose.msra.mxu0 0
        %2816 = vmatprep.subr.bf16.mxu0 0
        %2817 = vmatpush2.bf16.xpose.msra.mxu0 0
        %2818 = vmatprep.subr.bf16.mxu0 0
        %2819 = vmatpush2.bf16.xpose.msra.mxu0 0
        %2820 = vmatprep.subr.bf16.mxu0 0
        %2821 = vmatpush2.bf16.xpose.msra.mxu0 0
        %2822 = vmatprep.subr.bf16.mxu0 0
        %2823 = vmatpush2.bf16.xpose.msra.mxu0 0
        %2824 = vmatprep.subr.bf16.mxu0 0
        %2825 = vmatpush2.bf16.xpose.msra.mxu0 0
        %2826 = vmatprep.subr.bf16.mxu0 0
        %2827 = vmatpush2.bf16.xpose.msra.mxu0 0
        %2828 = vmatprep.subr.bf16.mxu0 0
        %2829 = vmatpush2.bf16.xpose.msra.mxu0 0
        %2830 = vmatprep.mubr.bf16.mxu0 0
        %2831 = vmatmul.mubr.bf16.gmra.mxu0 %v2793
        %v2832 = vpop.f32.mrf.mxu0
        %v2833 = vadd.f32 0.0, %v2832
        %v2834 = vpop.f32.mrf.mxu0
        %v2835 = vpop.f32.mrf.mxu0
        %v2836 = vpop.f32.mrf.mxu0
        %2837 = vdwg.mxu0
        %v2839 = vsel %vm635, %v2633, 0
        %v2842 = vsel %vm635, %v2711, 0
        %2844 = vmatprep.subr.bf16.mxu0 0
        %2845 = vmatpush1.bf16.xpose.msra.mxu0 0
        %2846 = vmatprep.subr.bf16.mxu0 0
        %2847 = vmatpush1.bf16.xpose.msra.mxu0 0
        %2848 = vmatprep.subr.bf16.mxu0 0
        %2849 = vmatpush1.bf16.xpose.msra.mxu0 0
        %2850 = vmatprep.subr.bf16.mxu0 0
        %2851 = vmatpush1.bf16.xpose.msra.mxu0 0
        %2852 = vmatprep.subr.bf16.mxu0 0
        %2853 = vmatpush1.bf16.xpose.msra.mxu0 0
        %2854 = vmatprep.subr.bf16.mxu0 0
        %2855 = vmatpush1.bf16.xpose.msra.mxu0 0
        %2856 = vmatprep.subr.bf16.mxu0 0
        %2857 = vmatpush1.bf16.xpose.msra.mxu0 0
        %2858 = vmatprep.subr.bf16.mxu0 0
        %2859 = vmatpush1.bf16.xpose.msra.mxu0 %v2842
        %2860 = vmatprep.subr.bf16.mxu0 0
        %2861 = vmatpush2.bf16.xpose.msra.mxu0 0
        %2862 = vmatprep.subr.bf16.mxu0 0
        %2863 = vmatpush2.bf16.xpose.msra.mxu0 0
        %2864 = vmatprep.subr.bf16.mxu0 0
        %2865 = vmatpush2.bf16.xpose.msra.mxu0 0
        %2866 = vmatprep.subr.bf16.mxu0 0
        %2867 = vmatpush2.bf16.xpose.msra.mxu0 0
        %2868 = vmatprep.subr.bf16.mxu0 0
        %2869 = vmatpush2.bf16.xpose.msra.mxu0 0
        %2870 = vmatprep.subr.bf16.mxu0 0
        %2871 = vmatpush2.bf16.xpose.msra.mxu0 0
        %2872 = vmatprep.subr.bf16.mxu0 0
        %2873 = vmatpush2.bf16.xpose.msra.mxu0 0
        %2874 = vmatprep.subr.bf16.mxu0 0
        %2875 = vmatpush2.bf16.xpose.msra.mxu0 0
        %2876 = vmatprep.mubr.bf16.mxu0 0
        %2877 = vmatmul.mubr.bf16.gmra.mxu0 %v2839
        %v2878 = vpop.f32.mrf.mxu0
        %v2879 = vadd.f32 0.0, %v2878
        %v2880 = vpop.f32.mrf.mxu0
        %v2881 = vpop.f32.mrf.mxu0
        %v2882 = vpop.f32.mrf.mxu0
        %2883 = vdwg.mxu0
        %v2885 = vsel %vm635, %v2634, 0
        %v2888 = vsel %vm635, %v2712, 0
        %2890 = vmatprep.subr.bf16.mxu0 0
        %2891 = vmatpush1.bf16.xpose.msra.mxu0 0
        %2892 = vmatprep.subr.bf16.mxu0 0
        %2893 = vmatpush1.bf16.xpose.msra.mxu0 0
        %2894 = vmatprep.subr.bf16.mxu0 0
        %2895 = vmatpush1.bf16.xpose.msra.mxu0 0
        %2896 = vmatprep.subr.bf16.mxu0 0
        %2897 = vmatpush1.bf16.xpose.msra.mxu0 0
        %2898 = vmatprep.subr.bf16.mxu0 0
        %2899 = vmatpush1.bf16.xpose.msra.mxu0 0
        %2900 = vmatprep.subr.bf16.mxu0 0
        %2901 = vmatpush1.bf16.xpose.msra.mxu0 0
        %2902 = vmatprep.subr.bf16.mxu0 0
        %2903 = vmatpush1.bf16.xpose.msra.mxu0 0
        %2904 = vmatprep.subr.bf16.mxu0 0
        %2905 = vmatpush1.bf16.xpose.msra.mxu0 %v2888
        %2906 = vmatprep.subr.bf16.mxu0 0
        %2907 = vmatpush2.bf16.xpose.msra.mxu0 0
        %2908 = vmatprep.subr.bf16.mxu0 0
        %2909 = vmatpush2.bf16.xpose.msra.mxu0 0
        %2910 = vmatprep.subr.bf16.mxu0 0
        %2911 = vmatpush2.bf16.xpose.msra.mxu0 0
        %2912 = vmatprep.subr.bf16.mxu0 0
        %2913 = vmatpush2.bf16.xpose.msra.mxu0 0
        %2914 = vmatprep.subr.bf16.mxu0 0
        %2915 = vmatpush2.bf16.xpose.msra.mxu0 0
        %2916 = vmatprep.subr.bf16.mxu0 0
        %2917 = vmatpush2.bf16.xpose.msra.mxu0 0
        %2918 = vmatprep.subr.bf16.mxu0 0
        %2919 = vmatpush2.bf16.xpose.msra.mxu0 0
        %2920 = vmatprep.subr.bf16.mxu0 0
        %2921 = vmatpush2.bf16.xpose.msra.mxu0 0
        %2922 = vmatprep.mubr.bf16.mxu0 0
        %2923 = vmatmul.mubr.bf16.gmra.mxu0 %v2885
        %v2924 = vpop.f32.mrf.mxu0
        %v2925 = vadd.f32 0.0, %v2924
        %v2926 = vpop.f32.mrf.mxu0
        %v2927 = vpop.f32.mrf.mxu0
        %v2928 = vpop.f32.mrf.mxu0
        %2929 = vdwg.mxu0
        %v2931 = vsel %vm635, %v2635, 0
        %v2934 = vsel %vm635, %v2713, 0
        %2936 = vmatprep.subr.bf16.mxu0 0
        %2937 = vmatpush1.bf16.xpose.msra.mxu0 0
        %2938 = vmatprep.subr.bf16.mxu0 0
        %2939 = vmatpush1.bf16.xpose.msra.mxu0 0
        %2940 = vmatprep.subr.bf16.mxu0 0
        %2941 = vmatpush1.bf16.xpose.msra.mxu0 0
        %2942 = vmatprep.subr.bf16.mxu0 0
        %2943 = vmatpush1.bf16.xpose.msra.mxu0 0
        %2944 = vmatprep.subr.bf16.mxu0 0
        %2945 = vmatpush1.bf16.xpose.msra.mxu0 0
        %2946 = vmatprep.subr.bf16.mxu0 0
        %2947 = vmatpush1.bf16.xpose.msra.mxu0 0
        %2948 = vmatprep.subr.bf16.mxu0 0
        %2949 = vmatpush1.bf16.xpose.msra.mxu0 0
        %2950 = vmatprep.subr.bf16.mxu0 0
        %2951 = vmatpush1.bf16.xpose.msra.mxu0 %v2934
        %2952 = vmatprep.subr.bf16.mxu0 0
        %2953 = vmatpush2.bf16.xpose.msra.mxu0 0
        %2954 = vmatprep.subr.bf16.mxu0 0
        %2955 = vmatpush2.bf16.xpose.msra.mxu0 0
        %2956 = vmatprep.subr.bf16.mxu0 0
        %2957 = vmatpush2.bf16.xpose.msra.mxu0 0
        %2958 = vmatprep.subr.bf16.mxu0 0
        %2959 = vmatpush2.bf16.xpose.msra.mxu0 0
        %2960 = vmatprep.subr.bf16.mxu0 0
        %2961 = vmatpush2.bf16.xpose.msra.mxu0 0
        %2962 = vmatprep.subr.bf16.mxu0 0
        %2963 = vmatpush2.bf16.xpose.msra.mxu0 0
        %2964 = vmatprep.subr.bf16.mxu0 0
        %2965 = vmatpush2.bf16.xpose.msra.mxu0 0
        %2966 = vmatprep.subr.bf16.mxu0 0
        %2967 = vmatpush2.bf16.xpose.msra.mxu0 0
        %2968 = vmatprep.mubr.bf16.mxu0 0
        %2969 = vmatmul.mubr.bf16.gmra.mxu0 %v2931
        %v2970 = vpop.f32.mrf.mxu0
        %v2971 = vadd.f32 0.0, %v2970
        %v2972 = vpop.f32.mrf.mxu0
        %v2973 = vpop.f32.mrf.mxu0
        %v2974 = vpop.f32.mrf.mxu0
        %2975 = vdwg.mxu0
        %v2976 = vsel %vm820, %v2833, -inf
        %2977 = vmax.xlane.f32.xlu0 %v2976
        %v2978 = vpop.xlane.xlu0 %2977
        %v2979 = vsel %vm820, %v2879, -inf
        %2980 = vmax.xlane.f32.xlu0 %v2979
        %v2981 = vpop.xlane.xlu0 %2980
        %v2982 = vsel %vm820, %v2925, -inf
        %2983 = vmax.xlane.f32.xlu0 %v2982
        %v2984 = vpop.xlane.xlu0 %2983
        %v2985 = vsel %vm820, %v2971, -inf
        %2986 = vmax.xlane.f32.xlu0 %v2985
        %v2987 = vpop.xlane.xlu0 %2986
        %v2988 = vsub.f32 %v2833, %v2978
        %v2989 = vsub.f32 %v2879, %v2981
        %v2990 = vsub.f32 %v2925, %v2984
        %v2991 = vsub.f32 %v2971, %v2987
        %v2992 = vmul.f32 %v2988, 1.442695
        %v2993 = vpow.pop %v2992
        %v2994 = vmul.f32 %v2989, 1.442695
        %v2995 = vpow.pop %v2994
        %v2996 = vmul.f32 %v2990, 1.442695
        %v2997 = vpow.pop %v2996
        %v2998 = vmul.f32 %v2991, 1.442695
        %v2999 = vpow.pop %v2998
        %v3000 = vsel %vm820, %v2993, 0.0
        %3001 = vadd.xlane.f32.xlu0 %v3000
        %v3002 = vpop.xlane.xlu0 %3001
        %v3003 = vsel %vm820, %v2995, 0.0
        %3004 = vadd.xlane.f32.xlu0 %v3003
        %v3005 = vpop.xlane.xlu0 %3004
        %v3006 = vsel %vm820, %v2997, 0.0
        %3007 = vadd.xlane.f32.xlu0 %v3006
        %v3008 = vpop.xlane.xlu0 %3007
        %v3009 = vsel %vm820, %v2999, 0.0
        %3010 = vadd.xlane.f32.xlu0 %v3009
        %v3011 = vpop.xlane.xlu0 %3010
        %v3012 = vrcp.pop %v3002
        %v3013 = vmul.f32 %v2993, %v3012
        %v3014 = vrcp.pop %v3005
        %v3015 = vmul.f32 %v2995, %v3014
        %v3016 = vrcp.pop %v3008
        %v3017 = vmul.f32 %v2997, %v3016
        %v3018 = vrcp.pop %v3011
        %v3019 = vmul.f32 %v2999, %v3018
        %s3020 = scalar_lea.vmem %s339, 96 [#allocation2]
        %3021 = vst.msk [vmem:[%s3020] sm:$0xff] %vm820, %v3013
        %3022 = vst.msk [vmem:[%s3020 + $0x8] sm:$0xff] %vm820, %v3015
        %3023 = vst.msk [vmem:[%s3020 + $0x10] sm:$0xff] %vm820, %v3017
        %3024 = vst.msk [vmem:[%s3020 + $0x18] sm:$0xff] %vm820, %v3019
        %v3025 = vpack.c.bf16 %v3013, %v3013
        %v3026 = vpack.c.bf16 %v3015, %v3015
        %v3027 = vpack.c.bf16 %v3017, %v3017
        %v3028 = vpack.c.bf16 %v3019, %v3019
        %v3030 = vsel %vm820, %v3025, 0
        %v3033 = vsel %vm876, %v2788, 0
        %3035 = vmatprep.subr.bf16.mxu0 0
        %3036 = vmatpush1.bf16.msra.mxu0 0
        %3037 = vmatprep.subr.bf16.mxu0 0
        %3038 = vmatpush1.bf16.msra.mxu0 0
        %3039 = vmatprep.subr.bf16.mxu0 0
        %3040 = vmatpush1.bf16.msra.mxu0 0
        %3041 = vmatprep.subr.bf16.mxu0 0
        %3042 = vmatpush1.bf16.msra.mxu0 0
        %3043 = vmatprep.subr.bf16.mxu0 0
        %3044 = vmatpush1.bf16.msra.mxu0 0
        %3045 = vmatprep.subr.bf16.mxu0 0
        %3046 = vmatpush1.bf16.msra.mxu0 0
        %3047 = vmatprep.subr.bf16.mxu0 0
        %3048 = vmatpush1.bf16.msra.mxu0 0
        %3049 = vmatprep.subr.bf16.mxu0 0
        %3050 = vmatpush1.bf16.msra.mxu0 %v3033
        %3051 = vmatprep.subr.bf16.mxu0 0
        %3052 = vmatpush2.bf16.msra.mxu0 0
        %3053 = vmatprep.subr.bf16.mxu0 0
        %3054 = vmatpush2.bf16.msra.mxu0 0
        %3055 = vmatprep.subr.bf16.mxu0 0
        %3056 = vmatpush2.bf16.msra.mxu0 0
        %3057 = vmatprep.subr.bf16.mxu0 0
        %3058 = vmatpush2.bf16.msra.mxu0 0
        %3059 = vmatprep.subr.bf16.mxu0 0
        %3060 = vmatpush2.bf16.msra.mxu0 0
        %3061 = vmatprep.subr.bf16.mxu0 0
        %3062 = vmatpush2.bf16.msra.mxu0 0
        %3063 = vmatprep.subr.bf16.mxu0 0
        %3064 = vmatpush2.bf16.msra.mxu0 0
        %3065 = vmatprep.subr.bf16.mxu0 0
        %3066 = vmatpush2.bf16.msra.mxu0 0
        %3067 = vmatprep.mubr.bf16.mxu0 0
        %3068 = vmatmul.mubr.bf16.gmra.mxu0 %v3030
        %v3069 = vpop.f32.mrf.mxu0
        %v3070 = vadd.f32 0.0, %v3069
        %v3071 = vpop.f32.mrf.mxu0
        %v3072 = vpop.f32.mrf.mxu0
        %v3073 = vpop.f32.mrf.mxu0
        %3074 = vdwg.mxu0
        %v3076 = vsel %vm820, %v3026, 0
        %v3079 = vsel %vm876, %v2789, 0
        %3081 = vmatprep.subr.bf16.mxu0 0
        %3082 = vmatpush1.bf16.msra.mxu0 0
        %3083 = vmatprep.subr.bf16.mxu0 0
        %3084 = vmatpush1.bf16.msra.mxu0 0
        %3085 = vmatprep.subr.bf16.mxu0 0
        %3086 = vmatpush1.bf16.msra.mxu0 0
        %3087 = vmatprep.subr.bf16.mxu0 0
        %3088 = vmatpush1.bf16.msra.mxu0 0
        %3089 = vmatprep.subr.bf16.mxu0 0
        %3090 = vmatpush1.bf16.msra.mxu0 0
        %3091 = vmatprep.subr.bf16.mxu0 0
        %3092 = vmatpush1.bf16.msra.mxu0 0
        %3093 = vmatprep.subr.bf16.mxu0 0
        %3094 = vmatpush1.bf16.msra.mxu0 0
        %3095 = vmatprep.subr.bf16.mxu0 0
        %3096 = vmatpush1.bf16.msra.mxu0 %v3079
        %3097 = vmatprep.subr.bf16.mxu0 0
        %3098 = vmatpush2.bf16.msra.mxu0 0
        %3099 = vmatprep.subr.bf16.mxu0 0
        %3100 = vmatpush2.bf16.msra.mxu0 0
        %3101 = vmatprep.subr.bf16.mxu0 0
        %3102 = vmatpush2.bf16.msra.mxu0 0
        %3103 = vmatprep.subr.bf16.mxu0 0
        %3104 = vmatpush2.bf16.msra.mxu0 0
        %3105 = vmatprep.subr.bf16.mxu0 0
        %3106 = vmatpush2.bf16.msra.mxu0 0
        %3107 = vmatprep.subr.bf16.mxu0 0
        %3108 = vmatpush2.bf16.msra.mxu0 0
        %3109 = vmatprep.subr.bf16.mxu0 0
        %3110 = vmatpush2.bf16.msra.mxu0 0
        %3111 = vmatprep.subr.bf16.mxu0 0
        %3112 = vmatpush2.bf16.msra.mxu0 0
        %3113 = vmatprep.mubr.bf16.mxu0 0
        %3114 = vmatmul.mubr.bf16.gmra.mxu0 %v3076
        %v3115 = vpop.f32.mrf.mxu0
        %v3116 = vadd.f32 0.0, %v3115
        %v3117 = vpop.f32.mrf.mxu0
        %v3118 = vpop.f32.mrf.mxu0
        %v3119 = vpop.f32.mrf.mxu0
        %3120 = vdwg.mxu0
        %v3122 = vsel %vm820, %v3027, 0
        %v3125 = vsel %vm876, %v2790, 0
        %3127 = vmatprep.subr.bf16.mxu0 0
        %3128 = vmatpush1.bf16.msra.mxu0 0
        %3129 = vmatprep.subr.bf16.mxu0 0
        %3130 = vmatpush1.bf16.msra.mxu0 0
        %3131 = vmatprep.subr.bf16.mxu0 0
        %3132 = vmatpush1.bf16.msra.mxu0 0
        %3133 = vmatprep.subr.bf16.mxu0 0
        %3134 = vmatpush1.bf16.msra.mxu0 0
        %3135 = vmatprep.subr.bf16.mxu0 0
        %3136 = vmatpush1.bf16.msra.mxu0 0
        %3137 = vmatprep.subr.bf16.mxu0 0
        %3138 = vmatpush1.bf16.msra.mxu0 0
        %3139 = vmatprep.subr.bf16.mxu0 0
        %3140 = vmatpush1.bf16.msra.mxu0 0
        %3141 = vmatprep.subr.bf16.mxu0 0
        %3142 = vmatpush1.bf16.msra.mxu0 %v3125
        %3143 = vmatprep.subr.bf16.mxu0 0
        %3144 = vmatpush2.bf16.msra.mxu0 0
        %3145 = vmatprep.subr.bf16.mxu0 0
        %3146 = vmatpush2.bf16.msra.mxu0 0
        %3147 = vmatprep.subr.bf16.mxu0 0
        %3148 = vmatpush2.bf16.msra.mxu0 0
        %3149 = vmatprep.subr.bf16.mxu0 0
        %3150 = vmatpush2.bf16.msra.mxu0 0
        %3151 = vmatprep.subr.bf16.mxu0 0
        %3152 = vmatpush2.bf16.msra.mxu0 0
        %3153 = vmatprep.subr.bf16.mxu0 0
        %3154 = vmatpush2.bf16.msra.mxu0 0
        %3155 = vmatprep.subr.bf16.mxu0 0
        %3156 = vmatpush2.bf16.msra.mxu0 0
        %3157 = vmatprep.subr.bf16.mxu0 0
        %3158 = vmatpush2.bf16.msra.mxu0 0
        %3159 = vmatprep.mubr.bf16.mxu0 0
        %3160 = vmatmul.mubr.bf16.gmra.mxu0 %v3122
        %v3161 = vpop.f32.mrf.mxu0
        %v3162 = vadd.f32 0.0, %v3161
        %v3163 = vpop.f32.mrf.mxu0
        %v3164 = vpop.f32.mrf.mxu0
        %v3165 = vpop.f32.mrf.mxu0
        %3166 = vdwg.mxu0
        %v3168 = vsel %vm820, %v3028, 0
        %v3171 = vsel %vm876, %v2791, 0
        %3173 = vmatprep.subr.bf16.mxu0 0
        %3174 = vmatpush1.bf16.msra.mxu0 0
        %3175 = vmatprep.subr.bf16.mxu0 0
        %3176 = vmatpush1.bf16.msra.mxu0 0
        %3177 = vmatprep.subr.bf16.mxu0 0
        %3178 = vmatpush1.bf16.msra.mxu0 0
        %3179 = vmatprep.subr.bf16.mxu0 0
        %3180 = vmatpush1.bf16.msra.mxu0 0
        %3181 = vmatprep.subr.bf16.mxu0 0
        %3182 = vmatpush1.bf16.msra.mxu0 0
        %3183 = vmatprep.subr.bf16.mxu0 0
        %3184 = vmatpush1.bf16.msra.mxu0 0
        %3185 = vmatprep.subr.bf16.mxu0 0
        %3186 = vmatpush1.bf16.msra.mxu0 0
        %3187 = vmatprep.subr.bf16.mxu0 0
        %3188 = vmatpush1.bf16.msra.mxu0 %v3171
        %3189 = vmatprep.subr.bf16.mxu0 0
        %3190 = vmatpush2.bf16.msra.mxu0 0
        %3191 = vmatprep.subr.bf16.mxu0 0
        %3192 = vmatpush2.bf16.msra.mxu0 0
        %3193 = vmatprep.subr.bf16.mxu0 0
        %3194 = vmatpush2.bf16.msra.mxu0 0
        %3195 = vmatprep.subr.bf16.mxu0 0
        %3196 = vmatpush2.bf16.msra.mxu0 0
        %3197 = vmatprep.subr.bf16.mxu0 0
        %3198 = vmatpush2.bf16.msra.mxu0 0
        %3199 = vmatprep.subr.bf16.mxu0 0
        %3200 = vmatpush2.bf16.msra.mxu0 0
        %3201 = vmatprep.subr.bf16.mxu0 0
        %3202 = vmatpush2.bf16.msra.mxu0 0
        %3203 = vmatprep.subr.bf16.mxu0 0
        %3204 = vmatpush2.bf16.msra.mxu0 0
        %3205 = vmatprep.mubr.bf16.mxu0 0
        %3206 = vmatmul.mubr.bf16.gmra.mxu0 %v3168
        %v3207 = vpop.f32.mrf.mxu0
        %v3208 = vadd.f32 0.0, %v3207
        %v3209 = vpop.f32.mrf.mxu0
        %v3210 = vpop.f32.mrf.mxu0
        %v3211 = vpop.f32.mrf.mxu0
        %3212 = vdwg.mxu0
        %v3213 = vpack.c.bf16 %v3116, %v3070
        %v3214 = vpack.c.bf16 %v3208, %v3162
        %s3215 = scalar_lea.vmem %s4, 6
        %v3216 = vld [vmem:[%s3215] sm:$0x3]
        %v3218 = vsel %vm635, %v3213, 0
        %v3221 = vsel %vm635, %v3214, 0
        %v3224 = vsel %vm1726, %v3216, 0
        %3226 = vmatprep.subr.bf16.mxu0 0
        %3227 = vmatpush1.bf16.msra.mxu0 0
        %3228 = vmatprep.subr.bf16.mxu0 0
        %3229 = vmatpush1.bf16.msra.mxu0 0
        %3230 = vmatprep.subr.bf16.mxu0 0
        %3231 = vmatpush1.bf16.msra.mxu0 0
        %3232 = vmatprep.subr.bf16.mxu0 0
        %3233 = vmatpush1.bf16.msra.mxu0 0
        %3234 = vmatprep.subr.bf16.mxu0 0
        %3235 = vmatpush1.bf16.msra.mxu0 0
        %3236 = vmatprep.subr.bf16.mxu0 0
        %3237 = vmatpush1.bf16.msra.mxu0 0
        %3238 = vmatprep.subr.bf16.mxu0 0
        %3239 = vmatpush1.bf16.msra.mxu0 0
        %3240 = vmatprep.subr.bf16.mxu0 0
        %3241 = vmatpush1.bf16.msra.mxu0 %v3224
        %3242 = vmatprep.subr.bf16.mxu0 0
        %3243 = vmatpush2.bf16.msra.mxu0 0
        %3244 = vmatprep.subr.bf16.mxu0 0
        %3245 = vmatpush2.bf16.msra.mxu0 0
        %3246 = vmatprep.subr.bf16.mxu0 0
        %3247 = vmatpush2.bf16.msra.mxu0 0
        %3248 = vmatprep.subr.bf16.mxu0 0
        %3249 = vmatpush2.bf16.msra.mxu0 0
        %3250 = vmatprep.subr.bf16.mxu0 0
        %3251 = vmatpush2.bf16.msra.mxu0 0
        %3252 = vmatprep.subr.bf16.mxu0 0
        %3253 = vmatpush2.bf16.msra.mxu0 0
        %3254 = vmatprep.subr.bf16.mxu0 0
        %3255 = vmatpush2.bf16.msra.mxu0 0
        %3256 = vmatprep.subr.bf16.mxu0 0
        %3257 = vmatpush2.bf16.msra.mxu0 0
        %3258 = vmatprep.mubr.bf16.mxu0 0
        %3259 = vmatmul.mubr.bf16.gmra.mxu0 %v3218
        %v3260 = vpop.f32.mrf.mxu0
        %v3261 = vadd.f32 0.0, %v3260
        %v3262 = vpop.f32.mrf.mxu0
        %v3263 = vpop.f32.mrf.mxu0
        %v3264 = vadd.f32 0.0, %v3263
        %v3265 = vpop.f32.mrf.mxu0
        %3266 = vmatprep.mubr.bf16.mxu0 0
        %3267 = vmatmul.mubr.bf16.gmra.mxu0 %v3221
        %v3268 = vpop.f32.mrf.mxu0
        %v3269 = vadd.f32 0.0, %v3268
        %v3270 = vpop.f32.mrf.mxu0
        %v3271 = vpop.f32.mrf.mxu0
        %v3272 = vadd.f32 0.0, %v3271
        %v3273 = vpop.f32.mrf.mxu0
        %3274 = vdwg.mxu0
        %v3275 = vadd.f32 %v2554, %v3261
        %v3276 = vadd.f32 %v2555, %v3264
        %v3277 = vadd.f32 %v2556, %v3269
        %v3278 = vadd.f32 %v2557, %v3272
        %s3279 = scalar_lea.vmem %s3, 64
        %v3280 = vld [vmem:[%s3279] sm:$0xf]
        %v3281 = vld [vmem:[%s3279 + $0x4] sm:$0xf]
        %v3282 = vld [vmem:[%s3279 + $0x8] sm:$0xf]
        %v3283 = vld [vmem:[%s3279 + $0xc] sm:$0xf]
        %s3284 = scalar_lea.vmem %s5, 4
        %v3285 = vld [vmem:[%s3284] sm:$0x1]
        %v3287 = vlaneseq
        %v3288 = vshrl.u32 %v3287, 7
        %v3289 = vsub.s32 0, %v3288
        %v3290 = vrot.slane %v3285, %v3289
        %v3296 = vunpack.c.l.b16 %v3280
        %v3297 = vunpack.c.l.b16 %v3281
        %v3298 = vunpack.c.l.b16 %v3282
        %v3299 = vunpack.c.l.b16 %v3283
        %v3300 = vpack.c.b16 %v3297, %v3296
        %v3301 = vpack.c.b16 %v3299, %v3298
        %3304 = vmatprep.subr.bf16.mxu0 0
        %3305 = vmatpush1.bf16.msra.mxu0 0
        %3306 = vmatprep.subr.bf16.mxu0 0
        %3307 = vmatpush1.bf16.msra.mxu0 0
        %3308 = vmatprep.subr.bf16.mxu0 0
        %3309 = vmatpush1.bf16.msra.mxu0 0
        %3310 = vmatprep.subr.bf16.mxu0 0
        %3311 = vmatpush1.bf16.msra.mxu0 0
        %3312 = vmatprep.subr.bf16.mxu0 0
        %3313 = vmatpush1.bf16.msra.mxu0 0
        %3314 = vmatprep.subr.bf16.mxu0 0
        %3315 = vmatpush1.bf16.msra.mxu0 0
        %3316 = vmatprep.subr.bf16.mxu0 0
        %3317 = vmatpush1.bf16.msra.mxu0 %v3301
        %3318 = vmatprep.subr.bf16.mxu0 0
        %3319 = vmatpush1.bf16.msra.mxu0 %v3300
        %3320 = vmatprep.subr.bf16.mxu0 0
        %3321 = vmatpush2.bf16.msra.mxu0 0
        %3322 = vmatprep.subr.bf16.mxu0 0
        %3323 = vmatpush2.bf16.msra.mxu0 0
        %3324 = vmatprep.subr.bf16.mxu0 0
        %3325 = vmatpush2.bf16.msra.mxu0 0
        %3326 = vmatprep.subr.bf16.mxu0 0
        %3327 = vmatpush2.bf16.msra.mxu0 0
        %3328 = vmatprep.subr.bf16.mxu0 0
        %3329 = vmatpush2.bf16.msra.mxu0 0
        %3330 = vmatprep.subr.bf16.mxu0 0
        %3331 = vmatpush2.bf16.msra.mxu0 0
        %3332 = vmatprep.subr.bf16.mxu0 0
        %3333 = vmatpush2.bf16.msra.mxu0 0
        %3334 = vmatprep.subr.bf16.mxu0 0
        %3335 = vmatpush2.bf16.msra.mxu0 0
        %3336 = vmatprep.mubr.bf16.mxu0 0
        %3337 = vmatmul.mubr.bf16.gmra.mxu0 %v409
        %v3338 = vpop.f32.mrf.mxu0
        %v3339 = vadd.f32 %v3290, %v3338
        %v3340 = vpop.f32.mrf.mxu0
        %v3341 = vpop.f32.mrf.mxu0
        %v3342 = vadd.f32 %v3290, %v3341
        %v3343 = vpop.f32.mrf.mxu0
        %3344 = vmatprep.mubr.bf16.mxu0 0
        %3345 = vmatmul.mubr.bf16.gmra.mxu0 %v412
        %v3346 = vpop.f32.mrf.mxu0
        %v3347 = vadd.f32 %v3290, %v3346
        %v3348 = vpop.f32.mrf.mxu0
        %v3349 = vpop.f32.mrf.mxu0
        %v3350 = vadd.f32 %v3290, %v3349
        %v3351 = vpop.f32.mrf.mxu0
        %3352 = vdwg.mxu0
        %v3353 = vpack.c.bf16 %v3339, %v3339
        %v3354 = vpack.c.bf16 %v3342, %v3342
        %v3355 = vpack.c.bf16 %v3347, %v3347
        %v3356 = vpack.c.bf16 %v3350, %v3350
        %s3357 = scalar_lea.vmem %s3, 192
        %v3358 = vld [vmem:[%s3357] sm:$0xf]
        %v3359 = vld [vmem:[%s3357 + $0x4] sm:$0xf]
        %v3360 = vld [vmem:[%s3357 + $0x8] sm:$0xf]
        %v3361 = vld [vmem:[%s3357 + $0xc] sm:$0xf]
        %s3362 = scalar_lea.vmem %s5, 12
        %v3363 = vld [vmem:[%s3362] sm:$0x1]
        %v3365 = vlaneseq
        %v3366 = vshrl.u32 %v3365, 7
        %v3367 = vsub.s32 0, %v3366
        %v3368 = vrot.slane %v3363, %v3367
        %v3374 = vunpack.c.l.b16 %v3358
        %v3375 = vunpack.c.l.b16 %v3359
        %v3376 = vunpack.c.l.b16 %v3360
        %v3377 = vunpack.c.l.b16 %v3361
        %v3378 = vpack.c.b16 %v3375, %v3374
        %v3379 = vpack.c.b16 %v3377, %v3376
        %3382 = vmatprep.subr.bf16.mxu0 0
        %3383 = vmatpush1.bf16.msra.mxu0 0
        %3384 = vmatprep.subr.bf16.mxu0 0
        %3385 = vmatpush1.bf16.msra.mxu0 0
        %3386 = vmatprep.subr.bf16.mxu0 0
        %3387 = vmatpush1.bf16.msra.mxu0 0
        %3388 = vmatprep.subr.bf16.mxu0 0
        %3389 = vmatpush1.bf16.msra.mxu0 0
        %3390 = vmatprep.subr.bf16.mxu0 0
        %3391 = vmatpush1.bf16.msra.mxu0 0
        %3392 = vmatprep.subr.bf16.mxu0 0
        %3393 = vmatpush1.bf16.msra.mxu0 0
        %3394 = vmatprep.subr.bf16.mxu0 0
        %3395 = vmatpush1.bf16.msra.mxu0 %v3379
        %3396 = vmatprep.subr.bf16.mxu0 0
        %3397 = vmatpush1.bf16.msra.mxu0 %v3378
        %3398 = vmatprep.subr.bf16.mxu0 0
        %3399 = vmatpush2.bf16.msra.mxu0 0
        %3400 = vmatprep.subr.bf16.mxu0 0
        %3401 = vmatpush2.bf16.msra.mxu0 0
        %3402 = vmatprep.subr.bf16.mxu0 0
        %3403 = vmatpush2.bf16.msra.mxu0 0
        %3404 = vmatprep.subr.bf16.mxu0 0
        %3405 = vmatpush2.bf16.msra.mxu0 0
        %3406 = vmatprep.subr.bf16.mxu0 0
        %3407 = vmatpush2.bf16.msra.mxu0 0
        %3408 = vmatprep.subr.bf16.mxu0 0
        %3409 = vmatpush2.bf16.msra.mxu0 0
        %3410 = vmatprep.subr.bf16.mxu0 0
        %3411 = vmatpush2.bf16.msra.mxu0 0
        %3412 = vmatprep.subr.bf16.mxu0 0
        %3413 = vmatpush2.bf16.msra.mxu0 0
        %3414 = vmatprep.mubr.bf16.mxu0 0
        %3415 = vmatmul.mubr.bf16.gmra.mxu0 %v493
        %v3416 = vpop.f32.mrf.mxu0
        %v3417 = vadd.f32 %v3368, %v3416
        %v3418 = vpop.f32.mrf.mxu0
        %v3419 = vpop.f32.mrf.mxu0
        %v3420 = vadd.f32 %v3368, %v3419
        %v3421 = vpop.f32.mrf.mxu0
        %3422 = vmatprep.mubr.bf16.mxu0 0
        %3423 = vmatmul.mubr.bf16.gmra.mxu0 %v496
        %v3424 = vpop.f32.mrf.mxu0
        %v3425 = vadd.f32 %v3368, %v3424
        %v3426 = vpop.f32.mrf.mxu0
        %v3427 = vpop.f32.mrf.mxu0
        %v3428 = vadd.f32 %v3368, %v3427
        %v3429 = vpop.f32.mrf.mxu0
        %3430 = vdwg.mxu0
        %v3431 = vpack.c.bf16 %v3417, %v3417
        %v3432 = vpack.c.bf16 %v3420, %v3420
        %v3433 = vpack.c.bf16 %v3425, %v3425
        %v3434 = vpack.c.bf16 %v3428, %v3428
        %s3435 = scalar_lea.vmem %s3, 320
        %v3436 = vld [vmem:[%s3435] sm:$0xf]
        %v3437 = vld [vmem:[%s3435 + $0x4] sm:$0xf]
        %v3438 = vld [vmem:[%s3435 + $0x8] sm:$0xf]
        %v3439 = vld [vmem:[%s3435 + $0xc] sm:$0xf]
        %s3440 = scalar_lea.vmem %s5, 20
        %v3441 = vld [vmem:[%s3440] sm:$0x1]
        %v3443 = vlaneseq
        %v3444 = vshrl.u32 %v3443, 7
        %v3445 = vsub.s32 0, %v3444
        %v3446 = vrot.slane %v3441, %v3445
        %v3452 = vunpack.c.l.b16 %v3436
        %v3453 = vunpack.c.l.b16 %v3437
        %v3454 = vunpack.c.l.b16 %v3438
        %v3455 = vunpack.c.l.b16 %v3439
        %v3456 = vpack.c.b16 %v3453, %v3452
        %v3457 = vpack.c.b16 %v3455, %v3454
        %3460 = vmatprep.subr.bf16.mxu0 0
        %3461 = vmatpush1.bf16.msra.mxu0 0
        %3462 = vmatprep.subr.bf16.mxu0 0
        %3463 = vmatpush1.bf16.msra.mxu0 0
        %3464 = vmatprep.subr.bf16.mxu0 0
        %3465 = vmatpush1.bf16.msra.mxu0 0
        %3466 = vmatprep.subr.bf16.mxu0 0
        %3467 = vmatpush1.bf16.msra.mxu0 0
        %3468 = vmatprep.subr.bf16.mxu0 0
        %3469 = vmatpush1.bf16.msra.mxu0 0
        %3470 = vmatprep.subr.bf16.mxu0 0
        %3471 = vmatpush1.bf16.msra.mxu0 0
        %3472 = vmatprep.subr.bf16.mxu0 0
        %3473 = vmatpush1.bf16.msra.mxu0 %v3457
        %3474 = vmatprep.subr.bf16.mxu0 0
        %3475 = vmatpush1.bf16.msra.mxu0 %v3456
        %3476 = vmatprep.subr.bf16.mxu0 0
        %3477 = vmatpush2.bf16.msra.mxu0 0
        %3478 = vmatprep.subr.bf16.mxu0 0
        %3479 = vmatpush2.bf16.msra.mxu0 0
        %3480 = vmatprep.subr.bf16.mxu0 0
        %3481 = vmatpush2.bf16.msra.mxu0 0
        %3482 = vmatprep.subr.bf16.mxu0 0
        %3483 = vmatpush2.bf16.msra.mxu0 0
        %3484 = vmatprep.subr.bf16.mxu0 0
        %3485 = vmatpush2.bf16.msra.mxu0 0
        %3486 = vmatprep.subr.bf16.mxu0 0
        %3487 = vmatpush2.bf16.msra.mxu0 0
        %3488 = vmatprep.subr.bf16.mxu0 0
        %3489 = vmatpush2.bf16.msra.mxu0 0
        %3490 = vmatprep.subr.bf16.mxu0 0
        %3491 = vmatpush2.bf16.msra.mxu0 0
        %3492 = vmatprep.mubr.bf16.mxu0 0
        %3493 = vmatmul.mubr.bf16.gmra.mxu0 %v577
        %v3494 = vpop.f32.mrf.mxu0
        %v3495 = vadd.f32 %v3446, %v3494
        %v3496 = vpop.f32.mrf.mxu0
        %v3497 = vpop.f32.mrf.mxu0
        %v3498 = vadd.f32 %v3446, %v3497
        %v3499 = vpop.f32.mrf.mxu0
        %3500 = vmatprep.mubr.bf16.mxu0 0
        %3501 = vmatmul.mubr.bf16.gmra.mxu0 %v580
        %v3502 = vpop.f32.mrf.mxu0
        %v3503 = vadd.f32 %v3446, %v3502
        %v3504 = vpop.f32.mrf.mxu0
        %v3505 = vpop.f32.mrf.mxu0
        %v3506 = vadd.f32 %v3446, %v3505
        %v3507 = vpop.f32.mrf.mxu0
        %3508 = vdwg.mxu0
        %v3509 = vpack.c.bf16 %v3495, %v3495
        %v3510 = vpack.c.bf16 %v3498, %v3498
        %v3511 = vpack.c.bf16 %v3503, %v3503
        %v3512 = vpack.c.bf16 %v3506, %v3506
        %v3514 = vsel %vm635, %v3353, 0
        %v3517 = vsel %vm635, %v3431, 0
        %3519 = vmatprep.subr.bf16.mxu0 0
        %3520 = vmatpush1.bf16.xpose.msra.mxu0 0
        %3521 = vmatprep.subr.bf16.mxu0 0
        %3522 = vmatpush1.bf16.xpose.msra.mxu0 0
        %3523 = vmatprep.subr.bf16.mxu0 0
        %3524 = vmatpush1.bf16.xpose.msra.mxu0 0
        %3525 = vmatprep.subr.bf16.mxu0 0
        %3526 = vmatpush1.bf16.xpose.msra.mxu0 0
        %3527 = vmatprep.subr.bf16.mxu0 0
        %3528 = vmatpush1.bf16.xpose.msra.mxu0 0
        %3529 = vmatprep.subr.bf16.mxu0 0
        %3530 = vmatpush1.bf16.xpose.msra.mxu0 0
        %3531 = vmatprep.subr.bf16.mxu0 0
        %3532 = vmatpush1.bf16.xpose.msra.mxu0 0
        %3533 = vmatprep.subr.bf16.mxu0 0
        %3534 = vmatpush1.bf16.xpose.msra.mxu0 %v3517
        %3535 = vmatprep.subr.bf16.mxu0 0
        %3536 = vmatpush2.bf16.xpose.msra.mxu0 0
        %3537 = vmatprep.subr.bf16.mxu0 0
        %3538 = vmatpush2.bf16.xpose.msra.mxu0 0
        %3539 = vmatprep.subr.bf16.mxu0 0
        %3540 = vmatpush2.bf16.xpose.msra.mxu0 0
        %3541 = vmatprep.subr.bf16.mxu0 0
        %3542 = vmatpush2.bf16.xpose.msra.mxu0 0
        %3543 = vmatprep.subr.bf16.mxu0 0
        %3544 = vmatpush2.bf16.xpose.msra.mxu0 0
        %3545 = vmatprep.subr.bf16.mxu0 0
        %3546 = vmatpush2.bf16.xpose.msra.mxu0 0
        %3547 = vmatprep.subr.bf16.mxu0 0
        %3548 = vmatpush2.bf16.xpose.msra.mxu0 0
        %3549 = vmatprep.subr.bf16.mxu0 0
        %3550 = vmatpush2.bf16.xpose.msra.mxu0 0
        %3551 = vmatprep.mubr.bf16.mxu0 0
        %3552 = vmatmul.mubr.bf16.gmra.mxu0 %v3514
        %v3553 = vpop.f32.mrf.mxu0
        %v3554 = vadd.f32 0.0, %v3553
        %v3555 = vpop.f32.mrf.mxu0
        %v3556 = vpop.f32.mrf.mxu0
        %v3557 = vpop.f32.mrf.mxu0
        %3558 = vdwg.mxu0
        %v3560 = vsel %vm635, %v3354, 0
        %v3563 = vsel %vm635, %v3432, 0
        %3565 = vmatprep.subr.bf16.mxu0 0
        %3566 = vmatpush1.bf16.xpose.msra.mxu0 0
        %3567 = vmatprep.subr.bf16.mxu0 0
        %3568 = vmatpush1.bf16.xpose.msra.mxu0 0
        %3569 = vmatprep.subr.bf16.mxu0 0
        %3570 = vmatpush1.bf16.xpose.msra.mxu0 0
        %3571 = vmatprep.subr.bf16.mxu0 0
        %3572 = vmatpush1.bf16.xpose.msra.mxu0 0
        %3573 = vmatprep.subr.bf16.mxu0 0
        %3574 = vmatpush1.bf16.xpose.msra.mxu0 0
        %3575 = vmatprep.subr.bf16.mxu0 0
        %3576 = vmatpush1.bf16.xpose.msra.mxu0 0
        %3577 = vmatprep.subr.bf16.mxu0 0
        %3578 = vmatpush1.bf16.xpose.msra.mxu0 0
        %3579 = vmatprep.subr.bf16.mxu0 0
        %3580 = vmatpush1.bf16.xpose.msra.mxu0 %v3563
        %3581 = vmatprep.subr.bf16.mxu0 0
        %3582 = vmatpush2.bf16.xpose.msra.mxu0 0
        %3583 = vmatprep.subr.bf16.mxu0 0
        %3584 = vmatpush2.bf16.xpose.msra.mxu0 0
        %3585 = vmatprep.subr.bf16.mxu0 0
        %3586 = vmatpush2.bf16.xpose.msra.mxu0 0
        %3587 = vmatprep.subr.bf16.mxu0 0
        %3588 = vmatpush2.bf16.xpose.msra.mxu0 0
        %3589 = vmatprep.subr.bf16.mxu0 0
        %3590 = vmatpush2.bf16.xpose.msra.mxu0 0
        %3591 = vmatprep.subr.bf16.mxu0 0
        %3592 = vmatpush2.bf16.xpose.msra.mxu0 0
        %3593 = vmatprep.subr.bf16.mxu0 0
        %3594 = vmatpush2.bf16.xpose.msra.mxu0 0
        %3595 = vmatprep.subr.bf16.mxu0 0
        %3596 = vmatpush2.bf16.xpose.msra.mxu0 0
        %3597 = vmatprep.mubr.bf16.mxu0 0
        %3598 = vmatmul.mubr.bf16.gmra.mxu0 %v3560
        %v3599 = vpop.f32.mrf.mxu0
        %v3600 = vadd.f32 0.0, %v3599
        %v3601 = vpop.f32.mrf.mxu0
        %v3602 = vpop.f32.mrf.mxu0
        %v3603 = vpop.f32.mrf.mxu0
        %3604 = vdwg.mxu0
        %v3606 = vsel %vm635, %v3355, 0
        %v3609 = vsel %vm635, %v3433, 0
        %3611 = vmatprep.subr.bf16.mxu0 0
        %3612 = vmatpush1.bf16.xpose.msra.mxu0 0
        %3613 = vmatprep.subr.bf16.mxu0 0
        %3614 = vmatpush1.bf16.xpose.msra.mxu0 0
        %3615 = vmatprep.subr.bf16.mxu0 0
        %3616 = vmatpush1.bf16.xpose.msra.mxu0 0
        %3617 = vmatprep.subr.bf16.mxu0 0
        %3618 = vmatpush1.bf16.xpose.msra.mxu0 0
        %3619 = vmatprep.subr.bf16.mxu0 0
        %3620 = vmatpush1.bf16.xpose.msra.mxu0 0
        %3621 = vmatprep.subr.bf16.mxu0 0
        %3622 = vmatpush1.bf16.xpose.msra.mxu0 0
        %3623 = vmatprep.subr.bf16.mxu0 0
        %3624 = vmatpush1.bf16.xpose.msra.mxu0 0
        %3625 = vmatprep.subr.bf16.mxu0 0
        %3626 = vmatpush1.bf16.xpose.msra.mxu0 %v3609
        %3627 = vmatprep.subr.bf16.mxu0 0
        %3628 = vmatpush2.bf16.xpose.msra.mxu0 0
        %3629 = vmatprep.subr.bf16.mxu0 0
        %3630 = vmatpush2.bf16.xpose.msra.mxu0 0
        %3631 = vmatprep.subr.bf16.mxu0 0
        %3632 = vmatpush2.bf16.xpose.msra.mxu0 0
        %3633 = vmatprep.subr.bf16.mxu0 0
        %3634 = vmatpush2.bf16.xpose.msra.mxu0 0
        %3635 = vmatprep.subr.bf16.mxu0 0
        %3636 = vmatpush2.bf16.xpose.msra.mxu0 0
        %3637 = vmatprep.subr.bf16.mxu0 0
        %3638 = vmatpush2.bf16.xpose.msra.mxu0 0
        %3639 = vmatprep.subr.bf16.mxu0 0
        %3640 = vmatpush2.bf16.xpose.msra.mxu0 0
        %3641 = vmatprep.subr.bf16.mxu0 0
        %3642 = vmatpush2.bf16.xpose.msra.mxu0 0
        %3643 = vmatprep.mubr.bf16.mxu0 0
        %3644 = vmatmul.mubr.bf16.gmra.mxu0 %v3606
        %v3645 = vpop.f32.mrf.mxu0
        %v3646 = vadd.f32 0.0, %v3645
        %v3647 = vpop.f32.mrf.mxu0
        %v3648 = vpop.f32.mrf.mxu0
        %v3649 = vpop.f32.mrf.mxu0
        %3650 = vdwg.mxu0
        %v3652 = vsel %vm635, %v3356, 0
        %v3655 = vsel %vm635, %v3434, 0
        %3657 = vmatprep.subr.bf16.mxu0 0
        %3658 = vmatpush1.bf16.xpose.msra.mxu0 0
        %3659 = vmatprep.subr.bf16.mxu0 0
        %3660 = vmatpush1.bf16.xpose.msra.mxu0 0
        %3661 = vmatprep.subr.bf16.mxu0 0
        %3662 = vmatpush1.bf16.xpose.msra.mxu0 0
        %3663 = vmatprep.subr.bf16.mxu0 0
        %3664 = vmatpush1.bf16.xpose.msra.mxu0 0
        %3665 = vmatprep.subr.bf16.mxu0 0
        %3666 = vmatpush1.bf16.xpose.msra.mxu0 0
        %3667 = vmatprep.subr.bf16.mxu0 0
        %3668 = vmatpush1.bf16.xpose.msra.mxu0 0
        %3669 = vmatprep.subr.bf16.mxu0 0
        %3670 = vmatpush1.bf16.xpose.msra.mxu0 0
        %3671 = vmatprep.subr.bf16.mxu0 0
        %3672 = vmatpush1.bf16.xpose.msra.mxu0 %v3655
        %3673 = vmatprep.subr.bf16.mxu0 0
        %3674 = vmatpush2.bf16.xpose.msra.mxu0 0
        %3675 = vmatprep.subr.bf16.mxu0 0
        %3676 = vmatpush2.bf16.xpose.msra.mxu0 0
        %3677 = vmatprep.subr.bf16.mxu0 0
        %3678 = vmatpush2.bf16.xpose.msra.mxu0 0
        %3679 = vmatprep.subr.bf16.mxu0 0
        %3680 = vmatpush2.bf16.xpose.msra.mxu0 0
        %3681 = vmatprep.subr.bf16.mxu0 0
        %3682 = vmatpush2.bf16.xpose.msra.mxu0 0
        %3683 = vmatprep.subr.bf16.mxu0 0
        %3684 = vmatpush2.bf16.xpose.msra.mxu0 0
        %3685 = vmatprep.subr.bf16.mxu0 0
        %3686 = vmatpush2.bf16.xpose.msra.mxu0 0
        %3687 = vmatprep.subr.bf16.mxu0 0
        %3688 = vmatpush2.bf16.xpose.msra.mxu0 0
        %3689 = vmatprep.mubr.bf16.mxu0 0
        %3690 = vmatmul.mubr.bf16.gmra.mxu0 %v3652
        %v3691 = vpop.f32.mrf.mxu0
        %v3692 = vadd.f32 0.0, %v3691
        %v3693 = vpop.f32.mrf.mxu0
        %v3694 = vpop.f32.mrf.mxu0
        %v3695 = vpop.f32.mrf.mxu0
        %3696 = vdwg.mxu0
        %v3697 = vsel %vm820, %v3554, -inf
        %3698 = vmax.xlane.f32.xlu0 %v3697
        %v3699 = vpop.xlane.xlu0 %3698
        %v3700 = vsel %vm820, %v3600, -inf
        %3701 = vmax.xlane.f32.xlu0 %v3700
        %v3702 = vpop.xlane.xlu0 %3701
        %v3703 = vsel %vm820, %v3646, -inf
        %3704 = vmax.xlane.f32.xlu0 %v3703
        %v3705 = vpop.xlane.xlu0 %3704
        %v3706 = vsel %vm820, %v3692, -inf
        %3707 = vmax.xlane.f32.xlu0 %v3706
        %v3708 = vpop.xlane.xlu0 %3707
        %v3709 = vsub.f32 %v3554, %v3699
        %v3710 = vsub.f32 %v3600, %v3702
        %v3711 = vsub.f32 %v3646, %v3705
        %v3712 = vsub.f32 %v3692, %v3708
        %v3713 = vmul.f32 %v3709, 1.442695
        %v3714 = vpow.pop %v3713
        %v3715 = vmul.f32 %v3710, 1.442695
        %v3716 = vpow.pop %v3715
        %v3717 = vmul.f32 %v3711, 1.442695
        %v3718 = vpow.pop %v3717
        %v3719 = vmul.f32 %v3712, 1.442695
        %v3720 = vpow.pop %v3719
        %v3721 = vsel %vm820, %v3714, 0.0
        %3722 = vadd.xlane.f32.xlu0 %v3721
        %v3723 = vpop.xlane.xlu0 %3722
        %v3724 = vsel %vm820, %v3716, 0.0
        %3725 = vadd.xlane.f32.xlu0 %v3724
        %v3726 = vpop.xlane.xlu0 %3725
        %v3727 = vsel %vm820, %v3718, 0.0
        %3728 = vadd.xlane.f32.xlu0 %v3727
        %v3729 = vpop.xlane.xlu0 %3728
        %v3730 = vsel %vm820, %v3720, 0.0
        %3731 = vadd.xlane.f32.xlu0 %v3730
        %v3732 = vpop.xlane.xlu0 %3731
        %v3733 = vrcp.pop %v3723
        %v3734 = vmul.f32 %v3714, %v3733
        %v3735 = vrcp.pop %v3726
        %v3736 = vmul.f32 %v3716, %v3735
        %v3737 = vrcp.pop %v3729
        %v3738 = vmul.f32 %v3718, %v3737
        %v3739 = vrcp.pop %v3732
        %v3740 = vmul.f32 %v3720, %v3739
        %s3741 = scalar_lea.vmem %s339, 128 [#allocation2]
        %3742 = vst.msk [vmem:[%s3741] sm:$0xff] %vm820, %v3734
        %3743 = vst.msk [vmem:[%s3741 + $0x8] sm:$0xff] %vm820, %v3736
        %3744 = vst.msk [vmem:[%s3741 + $0x10] sm:$0xff] %vm820, %v3738
        %3745 = vst.msk [vmem:[%s3741 + $0x18] sm:$0xff] %vm820, %v3740
        %v3746 = vpack.c.bf16 %v3734, %v3734
        %v3747 = vpack.c.bf16 %v3736, %v3736
        %v3748 = vpack.c.bf16 %v3738, %v3738
        %v3749 = vpack.c.bf16 %v3740, %v3740
        %v3751 = vsel %vm820, %v3746, 0
        %v3754 = vsel %vm876, %v3509, 0
        %3756 = vmatprep.subr.bf16.mxu0 0
        %3757 = vmatpush1.bf16.msra.mxu0 0
        %3758 = vmatprep.subr.bf16.mxu0 0
        %3759 = vmatpush1.bf16.msra.mxu0 0
        %3760 = vmatprep.subr.bf16.mxu0 0
        %3761 = vmatpush1.bf16.msra.mxu0 0
        %3762 = vmatprep.subr.bf16.mxu0 0
        %3763 = vmatpush1.bf16.msra.mxu0 0
        %3764 = vmatprep.subr.bf16.mxu0 0
        %3765 = vmatpush1.bf16.msra.mxu0 0
        %3766 = vmatprep.subr.bf16.mxu0 0
        %3767 = vmatpush1.bf16.msra.mxu0 0
        %3768 = vmatprep.subr.bf16.mxu0 0
        %3769 = vmatpush1.bf16.msra.mxu0 0
        %3770 = vmatprep.subr.bf16.mxu0 0
        %3771 = vmatpush1.bf16.msra.mxu0 %v3754
        %3772 = vmatprep.subr.bf16.mxu0 0
        %3773 = vmatpush2.bf16.msra.mxu0 0
        %3774 = vmatprep.subr.bf16.mxu0 0
        %3775 = vmatpush2.bf16.msra.mxu0 0
        %3776 = vmatprep.subr.bf16.mxu0 0
        %3777 = vmatpush2.bf16.msra.mxu0 0
        %3778 = vmatprep.subr.bf16.mxu0 0
        %3779 = vmatpush2.bf16.msra.mxu0 0
        %3780 = vmatprep.subr.bf16.mxu0 0
        %3781 = vmatpush2.bf16.msra.mxu0 0
        %3782 = vmatprep.subr.bf16.mxu0 0
        %3783 = vmatpush2.bf16.msra.mxu0 0
        %3784 = vmatprep.subr.bf16.mxu0 0
        %3785 = vmatpush2.bf16.msra.mxu0 0
        %3786 = vmatprep.subr.bf16.mxu0 0
        %3787 = vmatpush2.bf16.msra.mxu0 0
        %3788 = vmatprep.mubr.bf16.mxu0 0
        %3789 = vmatmul.mubr.bf16.gmra.mxu0 %v3751
        %v3790 = vpop.f32.mrf.mxu0
        %v3791 = vadd.f32 0.0, %v3790
        %v3792 = vpop.f32.mrf.mxu0
        %v3793 = vpop.f32.mrf.mxu0
        %v3794 = vpop.f32.mrf.mxu0
        %3795 = vdwg.mxu0
        %v3797 = vsel %vm820, %v3747, 0
        %v3800 = vsel %vm876, %v3510, 0
        %3802 = vmatprep.subr.bf16.mxu0 0
        %3803 = vmatpush1.bf16.msra.mxu0 0
        %3804 = vmatprep.subr.bf16.mxu0 0
        %3805 = vmatpush1.bf16.msra.mxu0 0
        %3806 = vmatprep.subr.bf16.mxu0 0
        %3807 = vmatpush1.bf16.msra.mxu0 0
        %3808 = vmatprep.subr.bf16.mxu0 0
        %3809 = vmatpush1.bf16.msra.mxu0 0
        %3810 = vmatprep.subr.bf16.mxu0 0
        %3811 = vmatpush1.bf16.msra.mxu0 0
        %3812 = vmatprep.subr.bf16.mxu0 0
        %3813 = vmatpush1.bf16.msra.mxu0 0
        %3814 = vmatprep.subr.bf16.mxu0 0
        %3815 = vmatpush1.bf16.msra.mxu0 0
        %3816 = vmatprep.subr.bf16.mxu0 0
        %3817 = vmatpush1.bf16.msra.mxu0 %v3800
        %3818 = vmatprep.subr.bf16.mxu0 0
        %3819 = vmatpush2.bf16.msra.mxu0 0
        %3820 = vmatprep.subr.bf16.mxu0 0
        %3821 = vmatpush2.bf16.msra.mxu0 0
        %3822 = vmatprep.subr.bf16.mxu0 0
        %3823 = vmatpush2.bf16.msra.mxu0 0
        %3824 = vmatprep.subr.bf16.mxu0 0
        %3825 = vmatpush2.bf16.msra.mxu0 0
        %3826 = vmatprep.subr.bf16.mxu0 0
        %3827 = vmatpush2.bf16.msra.mxu0 0
        %3828 = vmatprep.subr.bf16.mxu0 0
        %3829 = vmatpush2.bf16.msra.mxu0 0
        %3830 = vmatprep.subr.bf16.mxu0 0
        %3831 = vmatpush2.bf16.msra.mxu0 0
        %3832 = vmatprep.subr.bf16.mxu0 0
        %3833 = vmatpush2.bf16.msra.mxu0 0
        %3834 = vmatprep.mubr.bf16.mxu0 0
        %3835 = vmatmul.mubr.bf16.gmra.mxu0 %v3797
        %v3836 = vpop.f32.mrf.mxu0
        %v3837 = vadd.f32 0.0, %v3836
        %v3838 = vpop.f32.mrf.mxu0
        %v3839 = vpop.f32.mrf.mxu0
        %v3840 = vpop.f32.mrf.mxu0
        %3841 = vdwg.mxu0
        %v3843 = vsel %vm820, %v3748, 0
        %v3846 = vsel %vm876, %v3511, 0
        %3848 = vmatprep.subr.bf16.mxu0 0
        %3849 = vmatpush1.bf16.msra.mxu0 0
        %3850 = vmatprep.subr.bf16.mxu0 0
        %3851 = vmatpush1.bf16.msra.mxu0 0
        %3852 = vmatprep.subr.bf16.mxu0 0
        %3853 = vmatpush1.bf16.msra.mxu0 0
        %3854 = vmatprep.subr.bf16.mxu0 0
        %3855 = vmatpush1.bf16.msra.mxu0 0
        %3856 = vmatprep.subr.bf16.mxu0 0
        %3857 = vmatpush1.bf16.msra.mxu0 0
        %3858 = vmatprep.subr.bf16.mxu0 0
        %3859 = vmatpush1.bf16.msra.mxu0 0
        %3860 = vmatprep.subr.bf16.mxu0 0
        %3861 = vmatpush1.bf16.msra.mxu0 0
        %3862 = vmatprep.subr.bf16.mxu0 0
        %3863 = vmatpush1.bf16.msra.mxu0 %v3846
        %3864 = vmatprep.subr.bf16.mxu0 0
        %3865 = vmatpush2.bf16.msra.mxu0 0
        %3866 = vmatprep.subr.bf16.mxu0 0
        %3867 = vmatpush2.bf16.msra.mxu0 0
        %3868 = vmatprep.subr.bf16.mxu0 0
        %3869 = vmatpush2.bf16.msra.mxu0 0
        %3870 = vmatprep.subr.bf16.mxu0 0
        %3871 = vmatpush2.bf16.msra.mxu0 0
        %3872 = vmatprep.subr.bf16.mxu0 0
        %3873 = vmatpush2.bf16.msra.mxu0 0
        %3874 = vmatprep.subr.bf16.mxu0 0
        %3875 = vmatpush2.bf16.msra.mxu0 0
        %3876 = vmatprep.subr.bf16.mxu0 0
        %3877 = vmatpush2.bf16.msra.mxu0 0
        %3878 = vmatprep.subr.bf16.mxu0 0
        %3879 = vmatpush2.bf16.msra.mxu0 0
        %3880 = vmatprep.mubr.bf16.mxu0 0
        %3881 = vmatmul.mubr.bf16.gmra.mxu0 %v3843
        %v3882 = vpop.f32.mrf.mxu0
        %v3883 = vadd.f32 0.0, %v3882
        %v3884 = vpop.f32.mrf.mxu0
        %v3885 = vpop.f32.mrf.mxu0
        %v3886 = vpop.f32.mrf.mxu0
        %3887 = vdwg.mxu0
        %v3889 = vsel %vm820, %v3749, 0
        %v3892 = vsel %vm876, %v3512, 0
        %3894 = vmatprep.subr.bf16.mxu0 0
        %3895 = vmatpush1.bf16.msra.mxu0 0
        %3896 = vmatprep.subr.bf16.mxu0 0
        %3897 = vmatpush1.bf16.msra.mxu0 0
        %3898 = vmatprep.subr.bf16.mxu0 0
        %3899 = vmatpush1.bf16.msra.mxu0 0
        %3900 = vmatprep.subr.bf16.mxu0 0
        %3901 = vmatpush1.bf16.msra.mxu0 0
        %3902 = vmatprep.subr.bf16.mxu0 0
        %3903 = vmatpush1.bf16.msra.mxu0 0
        %3904 = vmatprep.subr.bf16.mxu0 0
        %3905 = vmatpush1.bf16.msra.mxu0 0
        %3906 = vmatprep.subr.bf16.mxu0 0
        %3907 = vmatpush1.bf16.msra.mxu0 0
        %3908 = vmatprep.subr.bf16.mxu0 0
        %3909 = vmatpush1.bf16.msra.mxu0 %v3892
        %3910 = vmatprep.subr.bf16.mxu0 0
        %3911 = vmatpush2.bf16.msra.mxu0 0
        %3912 = vmatprep.subr.bf16.mxu0 0
        %3913 = vmatpush2.bf16.msra.mxu0 0
        %3914 = vmatprep.subr.bf16.mxu0 0
        %3915 = vmatpush2.bf16.msra.mxu0 0
        %3916 = vmatprep.subr.bf16.mxu0 0
        %3917 = vmatpush2.bf16.msra.mxu0 0
        %3918 = vmatprep.subr.bf16.mxu0 0
        %3919 = vmatpush2.bf16.msra.mxu0 0
        %3920 = vmatprep.subr.bf16.mxu0 0
        %3921 = vmatpush2.bf16.msra.mxu0 0
        %3922 = vmatprep.subr.bf16.mxu0 0
        %3923 = vmatpush2.bf16.msra.mxu0 0
        %3924 = vmatprep.subr.bf16.mxu0 0
        %3925 = vmatpush2.bf16.msra.mxu0 0
        %3926 = vmatprep.mubr.bf16.mxu0 0
        %3927 = vmatmul.mubr.bf16.gmra.mxu0 %v3889
        %v3928 = vpop.f32.mrf.mxu0
        %v3929 = vadd.f32 0.0, %v3928
        %v3930 = vpop.f32.mrf.mxu0
        %v3931 = vpop.f32.mrf.mxu0
        %v3932 = vpop.f32.mrf.mxu0
        %3933 = vdwg.mxu0
        %v3934 = vpack.c.bf16 %v3837, %v3791
        %v3935 = vpack.c.bf16 %v3929, %v3883
        %s3936 = scalar_lea.vmem %s4, 8
        %v3937 = vld [vmem:[%s3936] sm:$0x3]
        %v3939 = vsel %vm635, %v3934, 0
        %v3942 = vsel %vm635, %v3935, 0
        %v3945 = vsel %vm1726, %v3937, 0
        %3947 = vmatprep.subr.bf16.mxu0 0
        %3948 = vmatpush1.bf16.msra.mxu0 0
        %3949 = vmatprep.subr.bf16.mxu0 0
        %3950 = vmatpush1.bf16.msra.mxu0 0
        %3951 = vmatprep.subr.bf16.mxu0 0
        %3952 = vmatpush1.bf16.msra.mxu0 0
        %3953 = vmatprep.subr.bf16.mxu0 0
        %3954 = vmatpush1.bf16.msra.mxu0 0
        %3955 = vmatprep.subr.bf16.mxu0 0
        %3956 = vmatpush1.bf16.msra.mxu0 0
        %3957 = vmatprep.subr.bf16.mxu0 0
        %3958 = vmatpush1.bf16.msra.mxu0 0
        %3959 = vmatprep.subr.bf16.mxu0 0
        %3960 = vmatpush1.bf16.msra.mxu0 0
        %3961 = vmatprep.subr.bf16.mxu0 0
        %3962 = vmatpush1.bf16.msra.mxu0 %v3945
        %3963 = vmatprep.subr.bf16.mxu0 0
        %3964 = vmatpush2.bf16.msra.mxu0 0
        %3965 = vmatprep.subr.bf16.mxu0 0
        %3966 = vmatpush2.bf16.msra.mxu0 0
        %3967 = vmatprep.subr.bf16.mxu0 0
        %3968 = vmatpush2.bf16.msra.mxu0 0
        %3969 = vmatprep.subr.bf16.mxu0 0
        %3970 = vmatpush2.bf16.msra.mxu0 0
        %3971 = vmatprep.subr.bf16.mxu0 0
        %3972 = vmatpush2.bf16.msra.mxu0 0
        %3973 = vmatprep.subr.bf16.mxu0 0
        %3974 = vmatpush2.bf16.msra.mxu0 0
        %3975 = vmatprep.subr.bf16.mxu0 0
        %3976 = vmatpush2.bf16.msra.mxu0 0
        %3977 = vmatprep.subr.bf16.mxu0 0
        %3978 = vmatpush2.bf16.msra.mxu0 0
        %3979 = vmatprep.mubr.bf16.mxu0 0
        %3980 = vmatmul.mubr.bf16.gmra.mxu0 %v3939
        %v3981 = vpop.f32.mrf.mxu0
        %v3982 = vadd.f32 0.0, %v3981
        %v3983 = vpop.f32.mrf.mxu0
        %v3984 = vpop.f32.mrf.mxu0
        %v3985 = vadd.f32 0.0, %v3984
        %v3986 = vpop.f32.mrf.mxu0
        %3987 = vmatprep.mubr.bf16.mxu0 0
        %3988 = vmatmul.mubr.bf16.gmra.mxu0 %v3942
        %v3989 = vpop.f32.mrf.mxu0
        %v3990 = vadd.f32 0.0, %v3989
        %v3991 = vpop.f32.mrf.mxu0
        %v3992 = vpop.f32.mrf.mxu0
        %v3993 = vadd.f32 0.0, %v3992
        %v3994 = vpop.f32.mrf.mxu0
        %3995 = vdwg.mxu0
        %v3996 = vadd.f32 %v3275, %v3982
        %v3997 = vadd.f32 %v3276, %v3985
        %v3998 = vadd.f32 %v3277, %v3990
        %v3999 = vadd.f32 %v3278, %v3993
        %s4000 = scalar_lea.vmem %s3, 80
        %v4001 = vld [vmem:[%s4000] sm:$0xf]
        %v4002 = vld [vmem:[%s4000 + $0x4] sm:$0xf]
        %v4003 = vld [vmem:[%s4000 + $0x8] sm:$0xf]
        %v4004 = vld [vmem:[%s4000 + $0xc] sm:$0xf]
        %s4005 = scalar_lea.vmem %s5, 5
        %v4006 = vld [vmem:[%s4005] sm:$0x1]
        %v4008 = vlaneseq
        %v4009 = vshrl.u32 %v4008, 7
        %v4010 = vsub.s32 0, %v4009
        %v4011 = vrot.slane %v4006, %v4010
        %v4017 = vunpack.c.l.b16 %v4001
        %v4018 = vunpack.c.l.b16 %v4002
        %v4019 = vunpack.c.l.b16 %v4003
        %v4020 = vunpack.c.l.b16 %v4004
        %v4021 = vpack.c.b16 %v4018, %v4017
        %v4022 = vpack.c.b16 %v4020, %v4019
        %4025 = vmatprep.subr.bf16.mxu0 0
        %4026 = vmatpush1.bf16.msra.mxu0 0
        %4027 = vmatprep.subr.bf16.mxu0 0
        %4028 = vmatpush1.bf16.msra.mxu0 0
        %4029 = vmatprep.subr.bf16.mxu0 0
        %4030 = vmatpush1.bf16.msra.mxu0 0
        %4031 = vmatprep.subr.bf16.mxu0 0
        %4032 = vmatpush1.bf16.msra.mxu0 0
        %4033 = vmatprep.subr.bf16.mxu0 0
        %4034 = vmatpush1.bf16.msra.mxu0 0
        %4035 = vmatprep.subr.bf16.mxu0 0
        %4036 = vmatpush1.bf16.msra.mxu0 0
        %4037 = vmatprep.subr.bf16.mxu0 0
        %4038 = vmatpush1.bf16.msra.mxu0 %v4022
        %4039 = vmatprep.subr.bf16.mxu0 0
        %4040 = vmatpush1.bf16.msra.mxu0 %v4021
        %4041 = vmatprep.subr.bf16.mxu0 0
        %4042 = vmatpush2.bf16.msra.mxu0 0
        %4043 = vmatprep.subr.bf16.mxu0 0
        %4044 = vmatpush2.bf16.msra.mxu0 0
        %4045 = vmatprep.subr.bf16.mxu0 0
        %4046 = vmatpush2.bf16.msra.mxu0 0
        %4047 = vmatprep.subr.bf16.mxu0 0
        %4048 = vmatpush2.bf16.msra.mxu0 0
        %4049 = vmatprep.subr.bf16.mxu0 0
        %4050 = vmatpush2.bf16.msra.mxu0 0
        %4051 = vmatprep.subr.bf16.mxu0 0
        %4052 = vmatpush2.bf16.msra.mxu0 0
        %4053 = vmatprep.subr.bf16.mxu0 0
        %4054 = vmatpush2.bf16.msra.mxu0 0
        %4055 = vmatprep.subr.bf16.mxu0 0
        %4056 = vmatpush2.bf16.msra.mxu0 0
        %4057 = vmatprep.mubr.bf16.mxu0 0
        %4058 = vmatmul.mubr.bf16.gmra.mxu0 %v409
        %v4059 = vpop.f32.mrf.mxu0
        %v4060 = vadd.f32 %v4011, %v4059
        %v4061 = vpop.f32.mrf.mxu0
        %v4062 = vpop.f32.mrf.mxu0
        %v4063 = vadd.f32 %v4011, %v4062
        %v4064 = vpop.f32.mrf.mxu0
        %4065 = vmatprep.mubr.bf16.mxu0 0
        %4066 = vmatmul.mubr.bf16.gmra.mxu0 %v412
        %v4067 = vpop.f32.mrf.mxu0
        %v4068 = vadd.f32 %v4011, %v4067
        %v4069 = vpop.f32.mrf.mxu0
        %v4070 = vpop.f32.mrf.mxu0
        %v4071 = vadd.f32 %v4011, %v4070
        %v4072 = vpop.f32.mrf.mxu0
        %4073 = vdwg.mxu0
        %v4074 = vpack.c.bf16 %v4060, %v4060
        %v4075 = vpack.c.bf16 %v4063, %v4063
        %v4076 = vpack.c.bf16 %v4068, %v4068
        %v4077 = vpack.c.bf16 %v4071, %v4071
        %s4078 = scalar_lea.vmem %s3, 208
        %v4079 = vld [vmem:[%s4078] sm:$0xf]
        %v4080 = vld [vmem:[%s4078 + $0x4] sm:$0xf]
        %v4081 = vld [vmem:[%s4078 + $0x8] sm:$0xf]
        %v4082 = vld [vmem:[%s4078 + $0xc] sm:$0xf]
        %s4083 = scalar_lea.vmem %s5, 13
        %v4084 = vld [vmem:[%s4083] sm:$0x1]
        %v4086 = vlaneseq
        %v4087 = vshrl.u32 %v4086, 7
        %v4088 = vsub.s32 0, %v4087
        %v4089 = vrot.slane %v4084, %v4088
        %v4095 = vunpack.c.l.b16 %v4079
        %v4096 = vunpack.c.l.b16 %v4080
        %v4097 = vunpack.c.l.b16 %v4081
        %v4098 = vunpack.c.l.b16 %v4082
        %v4099 = vpack.c.b16 %v4096, %v4095
        %v4100 = vpack.c.b16 %v4098, %v4097
        %4103 = vmatprep.subr.bf16.mxu0 0
        %4104 = vmatpush1.bf16.msra.mxu0 0
        %4105 = vmatprep.subr.bf16.mxu0 0
        %4106 = vmatpush1.bf16.msra.mxu0 0
        %4107 = vmatprep.subr.bf16.mxu0 0
        %4108 = vmatpush1.bf16.msra.mxu0 0
        %4109 = vmatprep.subr.bf16.mxu0 0
        %4110 = vmatpush1.bf16.msra.mxu0 0
        %4111 = vmatprep.subr.bf16.mxu0 0
        %4112 = vmatpush1.bf16.msra.mxu0 0
        %4113 = vmatprep.subr.bf16.mxu0 0
        %4114 = vmatpush1.bf16.msra.mxu0 0
        %4115 = vmatprep.subr.bf16.mxu0 0
        %4116 = vmatpush1.bf16.msra.mxu0 %v4100
        %4117 = vmatprep.subr.bf16.mxu0 0
        %4118 = vmatpush1.bf16.msra.mxu0 %v4099
        %4119 = vmatprep.subr.bf16.mxu0 0
        %4120 = vmatpush2.bf16.msra.mxu0 0
        %4121 = vmatprep.subr.bf16.mxu0 0
        %4122 = vmatpush2.bf16.msra.mxu0 0
        %4123 = vmatprep.subr.bf16.mxu0 0
        %4124 = vmatpush2.bf16.msra.mxu0 0
        %4125 = vmatprep.subr.bf16.mxu0 0
        %4126 = vmatpush2.bf16.msra.mxu0 0
        %4127 = vmatprep.subr.bf16.mxu0 0
        %4128 = vmatpush2.bf16.msra.mxu0 0
        %4129 = vmatprep.subr.bf16.mxu0 0
        %4130 = vmatpush2.bf16.msra.mxu0 0
        %4131 = vmatprep.subr.bf16.mxu0 0
        %4132 = vmatpush2.bf16.msra.mxu0 0
        %4133 = vmatprep.subr.bf16.mxu0 0
        %4134 = vmatpush2.bf16.msra.mxu0 0
        %4135 = vmatprep.mubr.bf16.mxu0 0
        %4136 = vmatmul.mubr.bf16.gmra.mxu0 %v493
        %v4137 = vpop.f32.mrf.mxu0
        %v4138 = vadd.f32 %v4089, %v4137
        %v4139 = vpop.f32.mrf.mxu0
        %v4140 = vpop.f32.mrf.mxu0
        %v4141 = vadd.f32 %v4089, %v4140
        %v4142 = vpop.f32.mrf.mxu0
        %4143 = vmatprep.mubr.bf16.mxu0 0
        %4144 = vmatmul.mubr.bf16.gmra.mxu0 %v496
        %v4145 = vpop.f32.mrf.mxu0
        %v4146 = vadd.f32 %v4089, %v4145
        %v4147 = vpop.f32.mrf.mxu0
        %v4148 = vpop.f32.mrf.mxu0
        %v4149 = vadd.f32 %v4089, %v4148
        %v4150 = vpop.f32.mrf.mxu0
        %4151 = vdwg.mxu0
        %v4152 = vpack.c.bf16 %v4138, %v4138
        %v4153 = vpack.c.bf16 %v4141, %v4141
        %v4154 = vpack.c.bf16 %v4146, %v4146
        %v4155 = vpack.c.bf16 %v4149, %v4149
        %s4156 = scalar_lea.vmem %s3, 336
        %v4157 = vld [vmem:[%s4156] sm:$0xf]
        %v4158 = vld [vmem:[%s4156 + $0x4] sm:$0xf]
        %v4159 = vld [vmem:[%s4156 + $0x8] sm:$0xf]
        %v4160 = vld [vmem:[%s4156 + $0xc] sm:$0xf]
        %s4161 = scalar_lea.vmem %s5, 21
        %v4162 = vld [vmem:[%s4161] sm:$0x1]
        %v4164 = vlaneseq
        %v4165 = vshrl.u32 %v4164, 7
        %v4166 = vsub.s32 0, %v4165
        %v4167 = vrot.slane %v4162, %v4166
        %v4173 = vunpack.c.l.b16 %v4157
        %v4174 = vunpack.c.l.b16 %v4158
        %v4175 = vunpack.c.l.b16 %v4159
        %v4176 = vunpack.c.l.b16 %v4160
        %v4177 = vpack.c.b16 %v4174, %v4173
        %v4178 = vpack.c.b16 %v4176, %v4175
        %4181 = vmatprep.subr.bf16.mxu0 0
        %4182 = vmatpush1.bf16.msra.mxu0 0
        %4183 = vmatprep.subr.bf16.mxu0 0
        %4184 = vmatpush1.bf16.msra.mxu0 0
        %4185 = vmatprep.subr.bf16.mxu0 0
        %4186 = vmatpush1.bf16.msra.mxu0 0
        %4187 = vmatprep.subr.bf16.mxu0 0
        %4188 = vmatpush1.bf16.msra.mxu0 0
        %4189 = vmatprep.subr.bf16.mxu0 0
        %4190 = vmatpush1.bf16.msra.mxu0 0
        %4191 = vmatprep.subr.bf16.mxu0 0
        %4192 = vmatpush1.bf16.msra.mxu0 0
        %4193 = vmatprep.subr.bf16.mxu0 0
        %4194 = vmatpush1.bf16.msra.mxu0 %v4178
        %4195 = vmatprep.subr.bf16.mxu0 0
        %4196 = vmatpush1.bf16.msra.mxu0 %v4177
        %4197 = vmatprep.subr.bf16.mxu0 0
        %4198 = vmatpush2.bf16.msra.mxu0 0
        %4199 = vmatprep.subr.bf16.mxu0 0
        %4200 = vmatpush2.bf16.msra.mxu0 0
        %4201 = vmatprep.subr.bf16.mxu0 0
        %4202 = vmatpush2.bf16.msra.mxu0 0
        %4203 = vmatprep.subr.bf16.mxu0 0
        %4204 = vmatpush2.bf16.msra.mxu0 0
        %4205 = vmatprep.subr.bf16.mxu0 0
        %4206 = vmatpush2.bf16.msra.mxu0 0
        %4207 = vmatprep.subr.bf16.mxu0 0
        %4208 = vmatpush2.bf16.msra.mxu0 0
        %4209 = vmatprep.subr.bf16.mxu0 0
        %4210 = vmatpush2.bf16.msra.mxu0 0
        %4211 = vmatprep.subr.bf16.mxu0 0
        %4212 = vmatpush2.bf16.msra.mxu0 0
        %4213 = vmatprep.mubr.bf16.mxu0 0
        %4214 = vmatmul.mubr.bf16.gmra.mxu0 %v577
        %v4215 = vpop.f32.mrf.mxu0
        %v4216 = vadd.f32 %v4167, %v4215
        %v4217 = vpop.f32.mrf.mxu0
        %v4218 = vpop.f32.mrf.mxu0
        %v4219 = vadd.f32 %v4167, %v4218
        %v4220 = vpop.f32.mrf.mxu0
        %4221 = vmatprep.mubr.bf16.mxu0 0
        %4222 = vmatmul.mubr.bf16.gmra.mxu0 %v580
        %v4223 = vpop.f32.mrf.mxu0
        %v4224 = vadd.f32 %v4167, %v4223
        %v4225 = vpop.f32.mrf.mxu0
        %v4226 = vpop.f32.mrf.mxu0
        %v4227 = vadd.f32 %v4167, %v4226
        %v4228 = vpop.f32.mrf.mxu0
        %4229 = vdwg.mxu0
        %v4230 = vpack.c.bf16 %v4216, %v4216
        %v4231 = vpack.c.bf16 %v4219, %v4219
        %v4232 = vpack.c.bf16 %v4224, %v4224
        %v4233 = vpack.c.bf16 %v4227, %v4227
        %v4235 = vsel %vm635, %v4074, 0
        %v4238 = vsel %vm635, %v4152, 0
        %4240 = vmatprep.subr.bf16.mxu0 0
        %4241 = vmatpush1.bf16.xpose.msra.mxu0 0
        %4242 = vmatprep.subr.bf16.mxu0 0
        %4243 = vmatpush1.bf16.xpose.msra.mxu0 0
        %4244 = vmatprep.subr.bf16.mxu0 0
        %4245 = vmatpush1.bf16.xpose.msra.mxu0 0
        %4246 = vmatprep.subr.bf16.mxu0 0
        %4247 = vmatpush1.bf16.xpose.msra.mxu0 0
        %4248 = vmatprep.subr.bf16.mxu0 0
        %4249 = vmatpush1.bf16.xpose.msra.mxu0 0
        %4250 = vmatprep.subr.bf16.mxu0 0
        %4251 = vmatpush1.bf16.xpose.msra.mxu0 0
        %4252 = vmatprep.subr.bf16.mxu0 0
        %4253 = vmatpush1.bf16.xpose.msra.mxu0 0
        %4254 = vmatprep.subr.bf16.mxu0 0
        %4255 = vmatpush1.bf16.xpose.msra.mxu0 %v4238
        %4256 = vmatprep.subr.bf16.mxu0 0
        %4257 = vmatpush2.bf16.xpose.msra.mxu0 0
        %4258 = vmatprep.subr.bf16.mxu0 0
        %4259 = vmatpush2.bf16.xpose.msra.mxu0 0
        %4260 = vmatprep.subr.bf16.mxu0 0
        %4261 = vmatpush2.bf16.xpose.msra.mxu0 0
        %4262 = vmatprep.subr.bf16.mxu0 0
        %4263 = vmatpush2.bf16.xpose.msra.mxu0 0
        %4264 = vmatprep.subr.bf16.mxu0 0
        %4265 = vmatpush2.bf16.xpose.msra.mxu0 0
        %4266 = vmatprep.subr.bf16.mxu0 0
        %4267 = vmatpush2.bf16.xpose.msra.mxu0 0
        %4268 = vmatprep.subr.bf16.mxu0 0
        %4269 = vmatpush2.bf16.xpose.msra.mxu0 0
        %4270 = vmatprep.subr.bf16.mxu0 0
        %4271 = vmatpush2.bf16.xpose.msra.mxu0 0
        %4272 = vmatprep.mubr.bf16.mxu0 0
        %4273 = vmatmul.mubr.bf16.gmra.mxu0 %v4235
        %v4274 = vpop.f32.mrf.mxu0
        %v4275 = vadd.f32 0.0, %v4274
        %v4276 = vpop.f32.mrf.mxu0
        %v4277 = vpop.f32.mrf.mxu0
        %v4278 = vpop.f32.mrf.mxu0
        %4279 = vdwg.mxu0
        %v4281 = vsel %vm635, %v4075, 0
        %v4284 = vsel %vm635, %v4153, 0
        %4286 = vmatprep.subr.bf16.mxu0 0
        %4287 = vmatpush1.bf16.xpose.msra.mxu0 0
        %4288 = vmatprep.subr.bf16.mxu0 0
        %4289 = vmatpush1.bf16.xpose.msra.mxu0 0
        %4290 = vmatprep.subr.bf16.mxu0 0
        %4291 = vmatpush1.bf16.xpose.msra.mxu0 0
        %4292 = vmatprep.subr.bf16.mxu0 0
        %4293 = vmatpush1.bf16.xpose.msra.mxu0 0
        %4294 = vmatprep.subr.bf16.mxu0 0
        %4295 = vmatpush1.bf16.xpose.msra.mxu0 0
        %4296 = vmatprep.subr.bf16.mxu0 0
        %4297 = vmatpush1.bf16.xpose.msra.mxu0 0
        %4298 = vmatprep.subr.bf16.mxu0 0
        %4299 = vmatpush1.bf16.xpose.msra.mxu0 0
        %4300 = vmatprep.subr.bf16.mxu0 0
        %4301 = vmatpush1.bf16.xpose.msra.mxu0 %v4284
        %4302 = vmatprep.subr.bf16.mxu0 0
        %4303 = vmatpush2.bf16.xpose.msra.mxu0 0
        %4304 = vmatprep.subr.bf16.mxu0 0
        %4305 = vmatpush2.bf16.xpose.msra.mxu0 0
        %4306 = vmatprep.subr.bf16.mxu0 0
        %4307 = vmatpush2.bf16.xpose.msra.mxu0 0
        %4308 = vmatprep.subr.bf16.mxu0 0
        %4309 = vmatpush2.bf16.xpose.msra.mxu0 0
        %4310 = vmatprep.subr.bf16.mxu0 0
        %4311 = vmatpush2.bf16.xpose.msra.mxu0 0
        %4312 = vmatprep.subr.bf16.mxu0 0
        %4313 = vmatpush2.bf16.xpose.msra.mxu0 0
        %4314 = vmatprep.subr.bf16.mxu0 0
        %4315 = vmatpush2.bf16.xpose.msra.mxu0 0
        %4316 = vmatprep.subr.bf16.mxu0 0
        %4317 = vmatpush2.bf16.xpose.msra.mxu0 0
        %4318 = vmatprep.mubr.bf16.mxu0 0
        %4319 = vmatmul.mubr.bf16.gmra.mxu0 %v4281
        %v4320 = vpop.f32.mrf.mxu0
        %v4321 = vadd.f32 0.0, %v4320
        %v4322 = vpop.f32.mrf.mxu0
        %v4323 = vpop.f32.mrf.mxu0
        %v4324 = vpop.f32.mrf.mxu0
        %4325 = vdwg.mxu0
        %v4327 = vsel %vm635, %v4076, 0
        %v4330 = vsel %vm635, %v4154, 0
        %4332 = vmatprep.subr.bf16.mxu0 0
        %4333 = vmatpush1.bf16.xpose.msra.mxu0 0
        %4334 = vmatprep.subr.bf16.mxu0 0
        %4335 = vmatpush1.bf16.xpose.msra.mxu0 0
        %4336 = vmatprep.subr.bf16.mxu0 0
        %4337 = vmatpush1.bf16.xpose.msra.mxu0 0
        %4338 = vmatprep.subr.bf16.mxu0 0
        %4339 = vmatpush1.bf16.xpose.msra.mxu0 0
        %4340 = vmatprep.subr.bf16.mxu0 0
        %4341 = vmatpush1.bf16.xpose.msra.mxu0 0
        %4342 = vmatprep.subr.bf16.mxu0 0
        %4343 = vmatpush1.bf16.xpose.msra.mxu0 0
        %4344 = vmatprep.subr.bf16.mxu0 0
        %4345 = vmatpush1.bf16.xpose.msra.mxu0 0
        %4346 = vmatprep.subr.bf16.mxu0 0
        %4347 = vmatpush1.bf16.xpose.msra.mxu0 %v4330
        %4348 = vmatprep.subr.bf16.mxu0 0
        %4349 = vmatpush2.bf16.xpose.msra.mxu0 0
        %4350 = vmatprep.subr.bf16.mxu0 0
        %4351 = vmatpush2.bf16.xpose.msra.mxu0 0
        %4352 = vmatprep.subr.bf16.mxu0 0
        %4353 = vmatpush2.bf16.xpose.msra.mxu0 0
        %4354 = vmatprep.subr.bf16.mxu0 0
        %4355 = vmatpush2.bf16.xpose.msra.mxu0 0
        %4356 = vmatprep.subr.bf16.mxu0 0
        %4357 = vmatpush2.bf16.xpose.msra.mxu0 0
        %4358 = vmatprep.subr.bf16.mxu0 0
        %4359 = vmatpush2.bf16.xpose.msra.mxu0 0
        %4360 = vmatprep.subr.bf16.mxu0 0
        %4361 = vmatpush2.bf16.xpose.msra.mxu0 0
        %4362 = vmatprep.subr.bf16.mxu0 0
        %4363 = vmatpush2.bf16.xpose.msra.mxu0 0
        %4364 = vmatprep.mubr.bf16.mxu0 0
        %4365 = vmatmul.mubr.bf16.gmra.mxu0 %v4327
        %v4366 = vpop.f32.mrf.mxu0
        %v4367 = vadd.f32 0.0, %v4366
        %v4368 = vpop.f32.mrf.mxu0
        %v4369 = vpop.f32.mrf.mxu0
        %v4370 = vpop.f32.mrf.mxu0
        %4371 = vdwg.mxu0
        %v4373 = vsel %vm635, %v4077, 0
        %v4376 = vsel %vm635, %v4155, 0
        %4378 = vmatprep.subr.bf16.mxu0 0
        %4379 = vmatpush1.bf16.xpose.msra.mxu0 0
        %4380 = vmatprep.subr.bf16.mxu0 0
        %4381 = vmatpush1.bf16.xpose.msra.mxu0 0
        %4382 = vmatprep.subr.bf16.mxu0 0
        %4383 = vmatpush1.bf16.xpose.msra.mxu0 0
        %4384 = vmatprep.subr.bf16.mxu0 0
        %4385 = vmatpush1.bf16.xpose.msra.mxu0 0
        %4386 = vmatprep.subr.bf16.mxu0 0
        %4387 = vmatpush1.bf16.xpose.msra.mxu0 0
        %4388 = vmatprep.subr.bf16.mxu0 0
        %4389 = vmatpush1.bf16.xpose.msra.mxu0 0
        %4390 = vmatprep.subr.bf16.mxu0 0
        %4391 = vmatpush1.bf16.xpose.msra.mxu0 0
        %4392 = vmatprep.subr.bf16.mxu0 0
        %4393 = vmatpush1.bf16.xpose.msra.mxu0 %v4376
        %4394 = vmatprep.subr.bf16.mxu0 0
        %4395 = vmatpush2.bf16.xpose.msra.mxu0 0
        %4396 = vmatprep.subr.bf16.mxu0 0
        %4397 = vmatpush2.bf16.xpose.msra.mxu0 0
        %4398 = vmatprep.subr.bf16.mxu0 0
        %4399 = vmatpush2.bf16.xpose.msra.mxu0 0
        %4400 = vmatprep.subr.bf16.mxu0 0
        %4401 = vmatpush2.bf16.xpose.msra.mxu0 0
        %4402 = vmatprep.subr.bf16.mxu0 0
        %4403 = vmatpush2.bf16.xpose.msra.mxu0 0
        %4404 = vmatprep.subr.bf16.mxu0 0
        %4405 = vmatpush2.bf16.xpose.msra.mxu0 0
        %4406 = vmatprep.subr.bf16.mxu0 0
        %4407 = vmatpush2.bf16.xpose.msra.mxu0 0
        %4408 = vmatprep.subr.bf16.mxu0 0
        %4409 = vmatpush2.bf16.xpose.msra.mxu0 0
        %4410 = vmatprep.mubr.bf16.mxu0 0
        %4411 = vmatmul.mubr.bf16.gmra.mxu0 %v4373
        %v4412 = vpop.f32.mrf.mxu0
        %v4413 = vadd.f32 0.0, %v4412
        %v4414 = vpop.f32.mrf.mxu0
        %v4415 = vpop.f32.mrf.mxu0
        %v4416 = vpop.f32.mrf.mxu0
        %4417 = vdwg.mxu0
        %v4418 = vsel %vm820, %v4275, -inf
        %4419 = vmax.xlane.f32.xlu0 %v4418
        %v4420 = vpop.xlane.xlu0 %4419
        %v4421 = vsel %vm820, %v4321, -inf
        %4422 = vmax.xlane.f32.xlu0 %v4421
        %v4423 = vpop.xlane.xlu0 %4422
        %v4424 = vsel %vm820, %v4367, -inf
        %4425 = vmax.xlane.f32.xlu0 %v4424
        %v4426 = vpop.xlane.xlu0 %4425
        %v4427 = vsel %vm820, %v4413, -inf
        %4428 = vmax.xlane.f32.xlu0 %v4427
        %v4429 = vpop.xlane.xlu0 %4428
        %v4430 = vsub.f32 %v4275, %v4420
        %v4431 = vsub.f32 %v4321, %v4423
        %v4432 = vsub.f32 %v4367, %v4426
        %v4433 = vsub.f32 %v4413, %v4429
        %v4434 = vmul.f32 %v4430, 1.442695
        %v4435 = vpow.pop %v4434
        %v4436 = vmul.f32 %v4431, 1.442695
        %v4437 = vpow.pop %v4436
        %v4438 = vmul.f32 %v4432, 1.442695
        %v4439 = vpow.pop %v4438
        %v4440 = vmul.f32 %v4433, 1.442695
        %v4441 = vpow.pop %v4440
        %v4442 = vsel %vm820, %v4435, 0.0
        %4443 = vadd.xlane.f32.xlu0 %v4442
        %v4444 = vpop.xlane.xlu0 %4443
        %v4445 = vsel %vm820, %v4437, 0.0
        %4446 = vadd.xlane.f32.xlu0 %v4445
        %v4447 = vpop.xlane.xlu0 %4446
        %v4448 = vsel %vm820, %v4439, 0.0
        %4449 = vadd.xlane.f32.xlu0 %v4448
        %v4450 = vpop.xlane.xlu0 %4449
        %v4451 = vsel %vm820, %v4441, 0.0
        %4452 = vadd.xlane.f32.xlu0 %v4451
        %v4453 = vpop.xlane.xlu0 %4452
        %v4454 = vrcp.pop %v4444
        %v4455 = vmul.f32 %v4435, %v4454
        %v4456 = vrcp.pop %v4447
        %v4457 = vmul.f32 %v4437, %v4456
        %v4458 = vrcp.pop %v4450
        %v4459 = vmul.f32 %v4439, %v4458
        %v4460 = vrcp.pop %v4453
        %v4461 = vmul.f32 %v4441, %v4460
        %s4462 = scalar_lea.vmem %s339, 160 [#allocation2]
        %4463 = vst.msk [vmem:[%s4462] sm:$0xff] %vm820, %v4455
        %4464 = vst.msk [vmem:[%s4462 + $0x8] sm:$0xff] %vm820, %v4457
        %4465 = vst.msk [vmem:[%s4462 + $0x10] sm:$0xff] %vm820, %v4459
        %4466 = vst.msk [vmem:[%s4462 + $0x18] sm:$0xff] %vm820, %v4461
        %v4467 = vpack.c.bf16 %v4455, %v4455
        %v4468 = vpack.c.bf16 %v4457, %v4457
        %v4469 = vpack.c.bf16 %v4459, %v4459
        %v4470 = vpack.c.bf16 %v4461, %v4461
        %v4472 = vsel %vm820, %v4467, 0
        %v4475 = vsel %vm876, %v4230, 0
        %4477 = vmatprep.subr.bf16.mxu0 0
        %4478 = vmatpush1.bf16.msra.mxu0 0
        %4479 = vmatprep.subr.bf16.mxu0 0
        %4480 = vmatpush1.bf16.msra.mxu0 0
        %4481 = vmatprep.subr.bf16.mxu0 0
        %4482 = vmatpush1.bf16.msra.mxu0 0
        %4483 = vmatprep.subr.bf16.mxu0 0
        %4484 = vmatpush1.bf16.msra.mxu0 0
        %4485 = vmatprep.subr.bf16.mxu0 0
        %4486 = vmatpush1.bf16.msra.mxu0 0
        %4487 = vmatprep.subr.bf16.mxu0 0
        %4488 = vmatpush1.bf16.msra.mxu0 0
        %4489 = vmatprep.subr.bf16.mxu0 0
        %4490 = vmatpush1.bf16.msra.mxu0 0
        %4491 = vmatprep.subr.bf16.mxu0 0
        %4492 = vmatpush1.bf16.msra.mxu0 %v4475
        %4493 = vmatprep.subr.bf16.mxu0 0
        %4494 = vmatpush2.bf16.msra.mxu0 0
        %4495 = vmatprep.subr.bf16.mxu0 0
        %4496 = vmatpush2.bf16.msra.mxu0 0
        %4497 = vmatprep.subr.bf16.mxu0 0
        %4498 = vmatpush2.bf16.msra.mxu0 0
        %4499 = vmatprep.subr.bf16.mxu0 0
        %4500 = vmatpush2.bf16.msra.mxu0 0
        %4501 = vmatprep.subr.bf16.mxu0 0
        %4502 = vmatpush2.bf16.msra.mxu0 0
        %4503 = vmatprep.subr.bf16.mxu0 0
        %4504 = vmatpush2.bf16.msra.mxu0 0
        %4505 = vmatprep.subr.bf16.mxu0 0
        %4506 = vmatpush2.bf16.msra.mxu0 0
        %4507 = vmatprep.subr.bf16.mxu0 0
        %4508 = vmatpush2.bf16.msra.mxu0 0
        %4509 = vmatprep.mubr.bf16.mxu0 0
        %4510 = vmatmul.mubr.bf16.gmra.mxu0 %v4472
        %v4511 = vpop.f32.mrf.mxu0
        %v4512 = vadd.f32 0.0, %v4511
        %v4513 = vpop.f32.mrf.mxu0
        %v4514 = vpop.f32.mrf.mxu0
        %v4515 = vpop.f32.mrf.mxu0
        %4516 = vdwg.mxu0
        %v4518 = vsel %vm820, %v4468, 0
        %v4521 = vsel %vm876, %v4231, 0
        %4523 = vmatprep.subr.bf16.mxu0 0
        %4524 = vmatpush1.bf16.msra.mxu0 0
        %4525 = vmatprep.subr.bf16.mxu0 0
        %4526 = vmatpush1.bf16.msra.mxu0 0
        %4527 = vmatprep.subr.bf16.mxu0 0
        %4528 = vmatpush1.bf16.msra.mxu0 0
        %4529 = vmatprep.subr.bf16.mxu0 0
        %4530 = vmatpush1.bf16.msra.mxu0 0
        %4531 = vmatprep.subr.bf16.mxu0 0
        %4532 = vmatpush1.bf16.msra.mxu0 0
        %4533 = vmatprep.subr.bf16.mxu0 0
        %4534 = vmatpush1.bf16.msra.mxu0 0
        %4535 = vmatprep.subr.bf16.mxu0 0
        %4536 = vmatpush1.bf16.msra.mxu0 0
        %4537 = vmatprep.subr.bf16.mxu0 0
        %4538 = vmatpush1.bf16.msra.mxu0 %v4521
        %4539 = vmatprep.subr.bf16.mxu0 0
        %4540 = vmatpush2.bf16.msra.mxu0 0
        %4541 = vmatprep.subr.bf16.mxu0 0
        %4542 = vmatpush2.bf16.msra.mxu0 0
        %4543 = vmatprep.subr.bf16.mxu0 0
        %4544 = vmatpush2.bf16.msra.mxu0 0
        %4545 = vmatprep.subr.bf16.mxu0 0
        %4546 = vmatpush2.bf16.msra.mxu0 0
        %4547 = vmatprep.subr.bf16.mxu0 0
        %4548 = vmatpush2.bf16.msra.mxu0 0
        %4549 = vmatprep.subr.bf16.mxu0 0
        %4550 = vmatpush2.bf16.msra.mxu0 0
        %4551 = vmatprep.subr.bf16.mxu0 0
        %4552 = vmatpush2.bf16.msra.mxu0 0
        %4553 = vmatprep.subr.bf16.mxu0 0
        %4554 = vmatpush2.bf16.msra.mxu0 0
        %4555 = vmatprep.mubr.bf16.mxu0 0
        %4556 = vmatmul.mubr.bf16.gmra.mxu0 %v4518
        %v4557 = vpop.f32.mrf.mxu0
        %v4558 = vadd.f32 0.0, %v4557
        %v4559 = vpop.f32.mrf.mxu0
        %v4560 = vpop.f32.mrf.mxu0
        %v4561 = vpop.f32.mrf.mxu0
        %4562 = vdwg.mxu0
        %v4564 = vsel %vm820, %v4469, 0
        %v4567 = vsel %vm876, %v4232, 0
        %4569 = vmatprep.subr.bf16.mxu0 0
        %4570 = vmatpush1.bf16.msra.mxu0 0
        %4571 = vmatprep.subr.bf16.mxu0 0
        %4572 = vmatpush1.bf16.msra.mxu0 0
        %4573 = vmatprep.subr.bf16.mxu0 0
        %4574 = vmatpush1.bf16.msra.mxu0 0
        %4575 = vmatprep.subr.bf16.mxu0 0
        %4576 = vmatpush1.bf16.msra.mxu0 0
        %4577 = vmatprep.subr.bf16.mxu0 0
        %4578 = vmatpush1.bf16.msra.mxu0 0
        %4579 = vmatprep.subr.bf16.mxu0 0
        %4580 = vmatpush1.bf16.msra.mxu0 0
        %4581 = vmatprep.subr.bf16.mxu0 0
        %4582 = vmatpush1.bf16.msra.mxu0 0
        %4583 = vmatprep.subr.bf16.mxu0 0
        %4584 = vmatpush1.bf16.msra.mxu0 %v4567
        %4585 = vmatprep.subr.bf16.mxu0 0
        %4586 = vmatpush2.bf16.msra.mxu0 0
        %4587 = vmatprep.subr.bf16.mxu0 0
        %4588 = vmatpush2.bf16.msra.mxu0 0
        %4589 = vmatprep.subr.bf16.mxu0 0
        %4590 = vmatpush2.bf16.msra.mxu0 0
        %4591 = vmatprep.subr.bf16.mxu0 0
        %4592 = vmatpush2.bf16.msra.mxu0 0
        %4593 = vmatprep.subr.bf16.mxu0 0
        %4594 = vmatpush2.bf16.msra.mxu0 0
        %4595 = vmatprep.subr.bf16.mxu0 0
        %4596 = vmatpush2.bf16.msra.mxu0 0
        %4597 = vmatprep.subr.bf16.mxu0 0
        %4598 = vmatpush2.bf16.msra.mxu0 0
        %4599 = vmatprep.subr.bf16.mxu0 0
        %4600 = vmatpush2.bf16.msra.mxu0 0
        %4601 = vmatprep.mubr.bf16.mxu0 0
        %4602 = vmatmul.mubr.bf16.gmra.mxu0 %v4564
        %v4603 = vpop.f32.mrf.mxu0
        %v4604 = vadd.f32 0.0, %v4603
        %v4605 = vpop.f32.mrf.mxu0
        %v4606 = vpop.f32.mrf.mxu0
        %v4607 = vpop.f32.mrf.mxu0
        %4608 = vdwg.mxu0
        %v4610 = vsel %vm820, %v4470, 0
        %v4613 = vsel %vm876, %v4233, 0
        %4615 = vmatprep.subr.bf16.mxu0 0
        %4616 = vmatpush1.bf16.msra.mxu0 0
        %4617 = vmatprep.subr.bf16.mxu0 0
        %4618 = vmatpush1.bf16.msra.mxu0 0
        %4619 = vmatprep.subr.bf16.mxu0 0
        %4620 = vmatpush1.bf16.msra.mxu0 0
        %4621 = vmatprep.subr.bf16.mxu0 0
        %4622 = vmatpush1.bf16.msra.mxu0 0
        %4623 = vmatprep.subr.bf16.mxu0 0
        %4624 = vmatpush1.bf16.msra.mxu0 0
        %4625 = vmatprep.subr.bf16.mxu0 0
        %4626 = vmatpush1.bf16.msra.mxu0 0
        %4627 = vmatprep.subr.bf16.mxu0 0
        %4628 = vmatpush1.bf16.msra.mxu0 0
        %4629 = vmatprep.subr.bf16.mxu0 0
        %4630 = vmatpush1.bf16.msra.mxu0 %v4613
        %4631 = vmatprep.subr.bf16.mxu0 0
        %4632 = vmatpush2.bf16.msra.mxu0 0
        %4633 = vmatprep.subr.bf16.mxu0 0
        %4634 = vmatpush2.bf16.msra.mxu0 0
        %4635 = vmatprep.subr.bf16.mxu0 0
        %4636 = vmatpush2.bf16.msra.mxu0 0
        %4637 = vmatprep.subr.bf16.mxu0 0
        %4638 = vmatpush2.bf16.msra.mxu0 0
        %4639 = vmatprep.subr.bf16.mxu0 0
        %4640 = vmatpush2.bf16.msra.mxu0 0
        %4641 = vmatprep.subr.bf16.mxu0 0
        %4642 = vmatpush2.bf16.msra.mxu0 0
        %4643 = vmatprep.subr.bf16.mxu0 0
        %4644 = vmatpush2.bf16.msra.mxu0 0
        %4645 = vmatprep.subr.bf16.mxu0 0
        %4646 = vmatpush2.bf16.msra.mxu0 0
        %4647 = vmatprep.mubr.bf16.mxu0 0
        %4648 = vmatmul.mubr.bf16.gmra.mxu0 %v4610
        %v4649 = vpop.f32.mrf.mxu0
        %v4650 = vadd.f32 0.0, %v4649
        %v4651 = vpop.f32.mrf.mxu0
        %v4652 = vpop.f32.mrf.mxu0
        %v4653 = vpop.f32.mrf.mxu0
        %4654 = vdwg.mxu0
        %v4655 = vpack.c.bf16 %v4558, %v4512
        %v4656 = vpack.c.bf16 %v4650, %v4604
        %s4657 = scalar_lea.vmem %s4, 10
        %v4658 = vld [vmem:[%s4657] sm:$0x3]
        %v4660 = vsel %vm635, %v4655, 0
        %v4663 = vsel %vm635, %v4656, 0
        %v4666 = vsel %vm1726, %v4658, 0
        %4668 = vmatprep.subr.bf16.mxu0 0
        %4669 = vmatpush1.bf16.msra.mxu0 0
        %4670 = vmatprep.subr.bf16.mxu0 0
        %4671 = vmatpush1.bf16.msra.mxu0 0
        %4672 = vmatprep.subr.bf16.mxu0 0
        %4673 = vmatpush1.bf16.msra.mxu0 0
        %4674 = vmatprep.subr.bf16.mxu0 0
        %4675 = vmatpush1.bf16.msra.mxu0 0
        %4676 = vmatprep.subr.bf16.mxu0 0
        %4677 = vmatpush1.bf16.msra.mxu0 0
        %4678 = vmatprep.subr.bf16.mxu0 0
        %4679 = vmatpush1.bf16.msra.mxu0 0
        %4680 = vmatprep.subr.bf16.mxu0 0
        %4681 = vmatpush1.bf16.msra.mxu0 0
        %4682 = vmatprep.subr.bf16.mxu0 0
        %4683 = vmatpush1.bf16.msra.mxu0 %v4666
        %4684 = vmatprep.subr.bf16.mxu0 0
        %4685 = vmatpush2.bf16.msra.mxu0 0
        %4686 = vmatprep.subr.bf16.mxu0 0
        %4687 = vmatpush2.bf16.msra.mxu0 0
        %4688 = vmatprep.subr.bf16.mxu0 0
        %4689 = vmatpush2.bf16.msra.mxu0 0
        %4690 = vmatprep.subr.bf16.mxu0 0
        %4691 = vmatpush2.bf16.msra.mxu0 0
        %4692 = vmatprep.subr.bf16.mxu0 0
        %4693 = vmatpush2.bf16.msra.mxu0 0
        %4694 = vmatprep.subr.bf16.mxu0 0
        %4695 = vmatpush2.bf16.msra.mxu0 0
        %4696 = vmatprep.subr.bf16.mxu0 0
        %4697 = vmatpush2.bf16.msra.mxu0 0
        %4698 = vmatprep.subr.bf16.mxu0 0
        %4699 = vmatpush2.bf16.msra.mxu0 0
        %4700 = vmatprep.mubr.bf16.mxu0 0
        %4701 = vmatmul.mubr.bf16.gmra.mxu0 %v4660
        %v4702 = vpop.f32.mrf.mxu0
        %v4703 = vadd.f32 0.0, %v4702
        %v4704 = vpop.f32.mrf.mxu0
        %v4705 = vpop.f32.mrf.mxu0
        %v4706 = vadd.f32 0.0, %v4705
        %v4707 = vpop.f32.mrf.mxu0
        %4708 = vmatprep.mubr.bf16.mxu0 0
        %4709 = vmatmul.mubr.bf16.gmra.mxu0 %v4663
        %v4710 = vpop.f32.mrf.mxu0
        %v4711 = vadd.f32 0.0, %v4710
        %v4712 = vpop.f32.mrf.mxu0
        %v4713 = vpop.f32.mrf.mxu0
        %v4714 = vadd.f32 0.0, %v4713
        %v4715 = vpop.f32.mrf.mxu0
        %4716 = vdwg.mxu0
        %v4717 = vadd.f32 %v3996, %v4703
        %v4718 = vadd.f32 %v3997, %v4706
        %v4719 = vadd.f32 %v3998, %v4711
        %v4720 = vadd.f32 %v3999, %v4714
        %s4721 = scalar_lea.vmem %s3, 96
        %v4722 = vld [vmem:[%s4721] sm:$0xf]
        %v4723 = vld [vmem:[%s4721 + $0x4] sm:$0xf]
        %v4724 = vld [vmem:[%s4721 + $0x8] sm:$0xf]
        %v4725 = vld [vmem:[%s4721 + $0xc] sm:$0xf]
        %s4726 = scalar_lea.vmem %s5, 6
        %v4727 = vld [vmem:[%s4726] sm:$0x1]
        %v4729 = vlaneseq
        %v4730 = vshrl.u32 %v4729, 7
        %v4731 = vsub.s32 0, %v4730
        %v4732 = vrot.slane %v4727, %v4731
        %v4738 = vunpack.c.l.b16 %v4722
        %v4739 = vunpack.c.l.b16 %v4723
        %v4740 = vunpack.c.l.b16 %v4724
        %v4741 = vunpack.c.l.b16 %v4725
        %v4742 = vpack.c.b16 %v4739, %v4738
        %v4743 = vpack.c.b16 %v4741, %v4740
        %4746 = vmatprep.subr.bf16.mxu0 0
        %4747 = vmatpush1.bf16.msra.mxu0 0
        %4748 = vmatprep.subr.bf16.mxu0 0
        %4749 = vmatpush1.bf16.msra.mxu0 0
        %4750 = vmatprep.subr.bf16.mxu0 0
        %4751 = vmatpush1.bf16.msra.mxu0 0
        %4752 = vmatprep.subr.bf16.mxu0 0
        %4753 = vmatpush1.bf16.msra.mxu0 0
        %4754 = vmatprep.subr.bf16.mxu0 0
        %4755 = vmatpush1.bf16.msra.mxu0 0
        %4756 = vmatprep.subr.bf16.mxu0 0
        %4757 = vmatpush1.bf16.msra.mxu0 0
        %4758 = vmatprep.subr.bf16.mxu0 0
        %4759 = vmatpush1.bf16.msra.mxu0 %v4743
        %4760 = vmatprep.subr.bf16.mxu0 0
        %4761 = vmatpush1.bf16.msra.mxu0 %v4742
        %4762 = vmatprep.subr.bf16.mxu0 0
        %4763 = vmatpush2.bf16.msra.mxu0 0
        %4764 = vmatprep.subr.bf16.mxu0 0
        %4765 = vmatpush2.bf16.msra.mxu0 0
        %4766 = vmatprep.subr.bf16.mxu0 0
        %4767 = vmatpush2.bf16.msra.mxu0 0
        %4768 = vmatprep.subr.bf16.mxu0 0
        %4769 = vmatpush2.bf16.msra.mxu0 0
        %4770 = vmatprep.subr.bf16.mxu0 0
        %4771 = vmatpush2.bf16.msra.mxu0 0
        %4772 = vmatprep.subr.bf16.mxu0 0
        %4773 = vmatpush2.bf16.msra.mxu0 0
        %4774 = vmatprep.subr.bf16.mxu0 0
        %4775 = vmatpush2.bf16.msra.mxu0 0
        %4776 = vmatprep.subr.bf16.mxu0 0
        %4777 = vmatpush2.bf16.msra.mxu0 0
        %4778 = vmatprep.mubr.bf16.mxu0 0
        %4779 = vmatmul.mubr.bf16.gmra.mxu0 %v409
        %v4780 = vpop.f32.mrf.mxu0
        %v4781 = vadd.f32 %v4732, %v4780
        %v4782 = vpop.f32.mrf.mxu0
        %v4783 = vpop.f32.mrf.mxu0
        %v4784 = vadd.f32 %v4732, %v4783
        %v4785 = vpop.f32.mrf.mxu0
        %4786 = vmatprep.mubr.bf16.mxu0 0
        %4787 = vmatmul.mubr.bf16.gmra.mxu0 %v412
        %v4788 = vpop.f32.mrf.mxu0
        %v4789 = vadd.f32 %v4732, %v4788
        %v4790 = vpop.f32.mrf.mxu0
        %v4791 = vpop.f32.mrf.mxu0
        %v4792 = vadd.f32 %v4732, %v4791
        %v4793 = vpop.f32.mrf.mxu0
        %4794 = vdwg.mxu0
        %v4795 = vpack.c.bf16 %v4781, %v4781
        %v4796 = vpack.c.bf16 %v4784, %v4784
        %v4797 = vpack.c.bf16 %v4789, %v4789
        %v4798 = vpack.c.bf16 %v4792, %v4792
        %s4799 = scalar_lea.vmem %s3, 224
        %v4800 = vld [vmem:[%s4799] sm:$0xf]
        %v4801 = vld [vmem:[%s4799 + $0x4] sm:$0xf]
        %v4802 = vld [vmem:[%s4799 + $0x8] sm:$0xf]
        %v4803 = vld [vmem:[%s4799 + $0xc] sm:$0xf]
        %s4804 = scalar_lea.vmem %s5, 14
        %v4805 = vld [vmem:[%s4804] sm:$0x1]
        %v4807 = vlaneseq
        %v4808 = vshrl.u32 %v4807, 7
        %v4809 = vsub.s32 0, %v4808
        %v4810 = vrot.slane %v4805, %v4809
        %v4816 = vunpack.c.l.b16 %v4800
        %v4817 = vunpack.c.l.b16 %v4801
        %v4818 = vunpack.c.l.b16 %v4802
        %v4819 = vunpack.c.l.b16 %v4803
        %v4820 = vpack.c.b16 %v4817, %v4816
        %v4821 = vpack.c.b16 %v4819, %v4818
        %4824 = vmatprep.subr.bf16.mxu0 0
        %4825 = vmatpush1.bf16.msra.mxu0 0
        %4826 = vmatprep.subr.bf16.mxu0 0
        %4827 = vmatpush1.bf16.msra.mxu0 0
        %4828 = vmatprep.subr.bf16.mxu0 0
        %4829 = vmatpush1.bf16.msra.mxu0 0
        %4830 = vmatprep.subr.bf16.mxu0 0
        %4831 = vmatpush1.bf16.msra.mxu0 0
        %4832 = vmatprep.subr.bf16.mxu0 0
        %4833 = vmatpush1.bf16.msra.mxu0 0
        %4834 = vmatprep.subr.bf16.mxu0 0
        %4835 = vmatpush1.bf16.msra.mxu0 0
        %4836 = vmatprep.subr.bf16.mxu0 0
        %4837 = vmatpush1.bf16.msra.mxu0 %v4821
        %4838 = vmatprep.subr.bf16.mxu0 0
        %4839 = vmatpush1.bf16.msra.mxu0 %v4820
        %4840 = vmatprep.subr.bf16.mxu0 0
        %4841 = vmatpush2.bf16.msra.mxu0 0
        %4842 = vmatprep.subr.bf16.mxu0 0
        %4843 = vmatpush2.bf16.msra.mxu0 0
        %4844 = vmatprep.subr.bf16.mxu0 0
        %4845 = vmatpush2.bf16.msra.mxu0 0
        %4846 = vmatprep.subr.bf16.mxu0 0
        %4847 = vmatpush2.bf16.msra.mxu0 0
        %4848 = vmatprep.subr.bf16.mxu0 0
        %4849 = vmatpush2.bf16.msra.mxu0 0
        %4850 = vmatprep.subr.bf16.mxu0 0
        %4851 = vmatpush2.bf16.msra.mxu0 0
        %4852 = vmatprep.subr.bf16.mxu0 0
        %4853 = vmatpush2.bf16.msra.mxu0 0
        %4854 = vmatprep.subr.bf16.mxu0 0
        %4855 = vmatpush2.bf16.msra.mxu0 0
        %4856 = vmatprep.mubr.bf16.mxu0 0
        %4857 = vmatmul.mubr.bf16.gmra.mxu0 %v493
        %v4858 = vpop.f32.mrf.mxu0
        %v4859 = vadd.f32 %v4810, %v4858
        %v4860 = vpop.f32.mrf.mxu0
        %v4861 = vpop.f32.mrf.mxu0
        %v4862 = vadd.f32 %v4810, %v4861
        %v4863 = vpop.f32.mrf.mxu0
        %4864 = vmatprep.mubr.bf16.mxu0 0
        %4865 = vmatmul.mubr.bf16.gmra.mxu0 %v496
        %v4866 = vpop.f32.mrf.mxu0
        %v4867 = vadd.f32 %v4810, %v4866
        %v4868 = vpop.f32.mrf.mxu0
        %v4869 = vpop.f32.mrf.mxu0
        %v4870 = vadd.f32 %v4810, %v4869
        %v4871 = vpop.f32.mrf.mxu0
        %4872 = vdwg.mxu0
        %v4873 = vpack.c.bf16 %v4859, %v4859
        %v4874 = vpack.c.bf16 %v4862, %v4862
        %v4875 = vpack.c.bf16 %v4867, %v4867
        %v4876 = vpack.c.bf16 %v4870, %v4870
        %s4877 = scalar_lea.vmem %s3, 352
        %v4878 = vld [vmem:[%s4877] sm:$0xf]
        %v4879 = vld [vmem:[%s4877 + $0x4] sm:$0xf]
        %v4880 = vld [vmem:[%s4877 + $0x8] sm:$0xf]
        %v4881 = vld [vmem:[%s4877 + $0xc] sm:$0xf]
        %s4882 = scalar_lea.vmem %s5, 22
        %v4883 = vld [vmem:[%s4882] sm:$0x1]
        %v4885 = vlaneseq
        %v4886 = vshrl.u32 %v4885, 7
        %v4887 = vsub.s32 0, %v4886
        %v4888 = vrot.slane %v4883, %v4887
        %v4894 = vunpack.c.l.b16 %v4878
        %v4895 = vunpack.c.l.b16 %v4879
        %v4896 = vunpack.c.l.b16 %v4880
        %v4897 = vunpack.c.l.b16 %v4881
        %v4898 = vpack.c.b16 %v4895, %v4894
        %v4899 = vpack.c.b16 %v4897, %v4896
        %4902 = vmatprep.subr.bf16.mxu0 0
        %4903 = vmatpush1.bf16.msra.mxu0 0
        %4904 = vmatprep.subr.bf16.mxu0 0
        %4905 = vmatpush1.bf16.msra.mxu0 0
        %4906 = vmatprep.subr.bf16.mxu0 0
        %4907 = vmatpush1.bf16.msra.mxu0 0
        %4908 = vmatprep.subr.bf16.mxu0 0
        %4909 = vmatpush1.bf16.msra.mxu0 0
        %4910 = vmatprep.subr.bf16.mxu0 0
        %4911 = vmatpush1.bf16.msra.mxu0 0
        %4912 = vmatprep.subr.bf16.mxu0 0
        %4913 = vmatpush1.bf16.msra.mxu0 0
        %4914 = vmatprep.subr.bf16.mxu0 0
        %4915 = vmatpush1.bf16.msra.mxu0 %v4899
        %4916 = vmatprep.subr.bf16.mxu0 0
        %4917 = vmatpush1.bf16.msra.mxu0 %v4898
        %4918 = vmatprep.subr.bf16.mxu0 0
        %4919 = vmatpush2.bf16.msra.mxu0 0
        %4920 = vmatprep.subr.bf16.mxu0 0
        %4921 = vmatpush2.bf16.msra.mxu0 0
        %4922 = vmatprep.subr.bf16.mxu0 0
        %4923 = vmatpush2.bf16.msra.mxu0 0
        %4924 = vmatprep.subr.bf16.mxu0 0
        %4925 = vmatpush2.bf16.msra.mxu0 0
        %4926 = vmatprep.subr.bf16.mxu0 0
        %4927 = vmatpush2.bf16.msra.mxu0 0
        %4928 = vmatprep.subr.bf16.mxu0 0
        %4929 = vmatpush2.bf16.msra.mxu0 0
        %4930 = vmatprep.subr.bf16.mxu0 0
        %4931 = vmatpush2.bf16.msra.mxu0 0
        %4932 = vmatprep.subr.bf16.mxu0 0
        %4933 = vmatpush2.bf16.msra.mxu0 0
        %4934 = vmatprep.mubr.bf16.mxu0 0
        %4935 = vmatmul.mubr.bf16.gmra.mxu0 %v577
        %v4936 = vpop.f32.mrf.mxu0
        %v4937 = vadd.f32 %v4888, %v4936
        %v4938 = vpop.f32.mrf.mxu0
        %v4939 = vpop.f32.mrf.mxu0
        %v4940 = vadd.f32 %v4888, %v4939
        %v4941 = vpop.f32.mrf.mxu0
        %4942 = vmatprep.mubr.bf16.mxu0 0
        %4943 = vmatmul.mubr.bf16.gmra.mxu0 %v580
        %v4944 = vpop.f32.mrf.mxu0
        %v4945 = vadd.f32 %v4888, %v4944
        %v4946 = vpop.f32.mrf.mxu0
        %v4947 = vpop.f32.mrf.mxu0
        %v4948 = vadd.f32 %v4888, %v4947
        %v4949 = vpop.f32.mrf.mxu0
        %4950 = vdwg.mxu0
        %v4951 = vpack.c.bf16 %v4937, %v4937
        %v4952 = vpack.c.bf16 %v4940, %v4940
        %v4953 = vpack.c.bf16 %v4945, %v4945
        %v4954 = vpack.c.bf16 %v4948, %v4948
        %v4956 = vsel %vm635, %v4795, 0
        %v4959 = vsel %vm635, %v4873, 0
        %4961 = vmatprep.subr.bf16.mxu0 0
        %4962 = vmatpush1.bf16.xpose.msra.mxu0 0
        %4963 = vmatprep.subr.bf16.mxu0 0
        %4964 = vmatpush1.bf16.xpose.msra.mxu0 0
        %4965 = vmatprep.subr.bf16.mxu0 0
        %4966 = vmatpush1.bf16.xpose.msra.mxu0 0
        %4967 = vmatprep.subr.bf16.mxu0 0
        %4968 = vmatpush1.bf16.xpose.msra.mxu0 0
        %4969 = vmatprep.subr.bf16.mxu0 0
        %4970 = vmatpush1.bf16.xpose.msra.mxu0 0
        %4971 = vmatprep.subr.bf16.mxu0 0
        %4972 = vmatpush1.bf16.xpose.msra.mxu0 0
        %4973 = vmatprep.subr.bf16.mxu0 0
        %4974 = vmatpush1.bf16.xpose.msra.mxu0 0
        %4975 = vmatprep.subr.bf16.mxu0 0
        %4976 = vmatpush1.bf16.xpose.msra.mxu0 %v4959
        %4977 = vmatprep.subr.bf16.mxu0 0
        %4978 = vmatpush2.bf16.xpose.msra.mxu0 0
        %4979 = vmatprep.subr.bf16.mxu0 0
        %4980 = vmatpush2.bf16.xpose.msra.mxu0 0
        %4981 = vmatprep.subr.bf16.mxu0 0
        %4982 = vmatpush2.bf16.xpose.msra.mxu0 0
        %4983 = vmatprep.subr.bf16.mxu0 0
        %4984 = vmatpush2.bf16.xpose.msra.mxu0 0
        %4985 = vmatprep.subr.bf16.mxu0 0
        %4986 = vmatpush2.bf16.xpose.msra.mxu0 0
        %4987 = vmatprep.subr.bf16.mxu0 0
        %4988 = vmatpush2.bf16.xpose.msra.mxu0 0
        %4989 = vmatprep.subr.bf16.mxu0 0
        %4990 = vmatpush2.bf16.xpose.msra.mxu0 0
        %4991 = vmatprep.subr.bf16.mxu0 0
        %4992 = vmatpush2.bf16.xpose.msra.mxu0 0
        %4993 = vmatprep.mubr.bf16.mxu0 0
        %4994 = vmatmul.mubr.bf16.gmra.mxu0 %v4956
        %v4995 = vpop.f32.mrf.mxu0
        %v4996 = vadd.f32 0.0, %v4995
        %v4997 = vpop.f32.mrf.mxu0
        %v4998 = vpop.f32.mrf.mxu0
        %v4999 = vpop.f32.mrf.mxu0
        %5000 = vdwg.mxu0
        %v5002 = vsel %vm635, %v4796, 0
        %v5005 = vsel %vm635, %v4874, 0
        %5007 = vmatprep.subr.bf16.mxu0 0
        %5008 = vmatpush1.bf16.xpose.msra.mxu0 0
        %5009 = vmatprep.subr.bf16.mxu0 0
        %5010 = vmatpush1.bf16.xpose.msra.mxu0 0
        %5011 = vmatprep.subr.bf16.mxu0 0
        %5012 = vmatpush1.bf16.xpose.msra.mxu0 0
        %5013 = vmatprep.subr.bf16.mxu0 0
        %5014 = vmatpush1.bf16.xpose.msra.mxu0 0
        %5015 = vmatprep.subr.bf16.mxu0 0
        %5016 = vmatpush1.bf16.xpose.msra.mxu0 0
        %5017 = vmatprep.subr.bf16.mxu0 0
        %5018 = vmatpush1.bf16.xpose.msra.mxu0 0
        %5019 = vmatprep.subr.bf16.mxu0 0
        %5020 = vmatpush1.bf16.xpose.msra.mxu0 0
        %5021 = vmatprep.subr.bf16.mxu0 0
        %5022 = vmatpush1.bf16.xpose.msra.mxu0 %v5005
        %5023 = vmatprep.subr.bf16.mxu0 0
        %5024 = vmatpush2.bf16.xpose.msra.mxu0 0
        %5025 = vmatprep.subr.bf16.mxu0 0
        %5026 = vmatpush2.bf16.xpose.msra.mxu0 0
        %5027 = vmatprep.subr.bf16.mxu0 0
        %5028 = vmatpush2.bf16.xpose.msra.mxu0 0
        %5029 = vmatprep.subr.bf16.mxu0 0
        %5030 = vmatpush2.bf16.xpose.msra.mxu0 0
        %5031 = vmatprep.subr.bf16.mxu0 0
        %5032 = vmatpush2.bf16.xpose.msra.mxu0 0
        %5033 = vmatprep.subr.bf16.mxu0 0
        %5034 = vmatpush2.bf16.xpose.msra.mxu0 0
        %5035 = vmatprep.subr.bf16.mxu0 0
        %5036 = vmatpush2.bf16.xpose.msra.mxu0 0
        %5037 = vmatprep.subr.bf16.mxu0 0
        %5038 = vmatpush2.bf16.xpose.msra.mxu0 0
        %5039 = vmatprep.mubr.bf16.mxu0 0
        %5040 = vmatmul.mubr.bf16.gmra.mxu0 %v5002
        %v5041 = vpop.f32.mrf.mxu0
        %v5042 = vadd.f32 0.0, %v5041
        %v5043 = vpop.f32.mrf.mxu0
        %v5044 = vpop.f32.mrf.mxu0
        %v5045 = vpop.f32.mrf.mxu0
        %5046 = vdwg.mxu0
        %v5048 = vsel %vm635, %v4797, 0
        %v5051 = vsel %vm635, %v4875, 0
        %5053 = vmatprep.subr.bf16.mxu0 0
        %5054 = vmatpush1.bf16.xpose.msra.mxu0 0
        %5055 = vmatprep.subr.bf16.mxu0 0
        %5056 = vmatpush1.bf16.xpose.msra.mxu0 0
        %5057 = vmatprep.subr.bf16.mxu0 0
        %5058 = vmatpush1.bf16.xpose.msra.mxu0 0
        %5059 = vmatprep.subr.bf16.mxu0 0
        %5060 = vmatpush1.bf16.xpose.msra.mxu0 0
        %5061 = vmatprep.subr.bf16.mxu0 0
        %5062 = vmatpush1.bf16.xpose.msra.mxu0 0
        %5063 = vmatprep.subr.bf16.mxu0 0
        %5064 = vmatpush1.bf16.xpose.msra.mxu0 0
        %5065 = vmatprep.subr.bf16.mxu0 0
        %5066 = vmatpush1.bf16.xpose.msra.mxu0 0
        %5067 = vmatprep.subr.bf16.mxu0 0
        %5068 = vmatpush1.bf16.xpose.msra.mxu0 %v5051
        %5069 = vmatprep.subr.bf16.mxu0 0
        %5070 = vmatpush2.bf16.xpose.msra.mxu0 0
        %5071 = vmatprep.subr.bf16.mxu0 0
        %5072 = vmatpush2.bf16.xpose.msra.mxu0 0
        %5073 = vmatprep.subr.bf16.mxu0 0
        %5074 = vmatpush2.bf16.xpose.msra.mxu0 0
        %5075 = vmatprep.subr.bf16.mxu0 0
        %5076 = vmatpush2.bf16.xpose.msra.mxu0 0
        %5077 = vmatprep.subr.bf16.mxu0 0
        %5078 = vmatpush2.bf16.xpose.msra.mxu0 0
        %5079 = vmatprep.subr.bf16.mxu0 0
        %5080 = vmatpush2.bf16.xpose.msra.mxu0 0
        %5081 = vmatprep.subr.bf16.mxu0 0
        %5082 = vmatpush2.bf16.xpose.msra.mxu0 0
        %5083 = vmatprep.subr.bf16.mxu0 0
        %5084 = vmatpush2.bf16.xpose.msra.mxu0 0
        %5085 = vmatprep.mubr.bf16.mxu0 0
        %5086 = vmatmul.mubr.bf16.gmra.mxu0 %v5048
        %v5087 = vpop.f32.mrf.mxu0
        %v5088 = vadd.f32 0.0, %v5087
        %v5089 = vpop.f32.mrf.mxu0
        %v5090 = vpop.f32.mrf.mxu0
        %v5091 = vpop.f32.mrf.mxu0
        %5092 = vdwg.mxu0
        %v5094 = vsel %vm635, %v4798, 0
        %v5097 = vsel %vm635, %v4876, 0
        %5099 = vmatprep.subr.bf16.mxu0 0
        %5100 = vmatpush1.bf16.xpose.msra.mxu0 0
        %5101 = vmatprep.subr.bf16.mxu0 0
        %5102 = vmatpush1.bf16.xpose.msra.mxu0 0
        %5103 = vmatprep.subr.bf16.mxu0 0
        %5104 = vmatpush1.bf16.xpose.msra.mxu0 0
        %5105 = vmatprep.subr.bf16.mxu0 0
        %5106 = vmatpush1.bf16.xpose.msra.mxu0 0
        %5107 = vmatprep.subr.bf16.mxu0 0
        %5108 = vmatpush1.bf16.xpose.msra.mxu0 0
        %5109 = vmatprep.subr.bf16.mxu0 0
        %5110 = vmatpush1.bf16.xpose.msra.mxu0 0
        %5111 = vmatprep.subr.bf16.mxu0 0
        %5112 = vmatpush1.bf16.xpose.msra.mxu0 0
        %5113 = vmatprep.subr.bf16.mxu0 0
        %5114 = vmatpush1.bf16.xpose.msra.mxu0 %v5097
        %5115 = vmatprep.subr.bf16.mxu0 0
        %5116 = vmatpush2.bf16.xpose.msra.mxu0 0
        %5117 = vmatprep.subr.bf16.mxu0 0
        %5118 = vmatpush2.bf16.xpose.msra.mxu0 0
        %5119 = vmatprep.subr.bf16.mxu0 0
        %5120 = vmatpush2.bf16.xpose.msra.mxu0 0
        %5121 = vmatprep.subr.bf16.mxu0 0
        %5122 = vmatpush2.bf16.xpose.msra.mxu0 0
        %5123 = vmatprep.subr.bf16.mxu0 0
        %5124 = vmatpush2.bf16.xpose.msra.mxu0 0
        %5125 = vmatprep.subr.bf16.mxu0 0
        %5126 = vmatpush2.bf16.xpose.msra.mxu0 0
        %5127 = vmatprep.subr.bf16.mxu0 0
        %5128 = vmatpush2.bf16.xpose.msra.mxu0 0
        %5129 = vmatprep.subr.bf16.mxu0 0
        %5130 = vmatpush2.bf16.xpose.msra.mxu0 0
        %5131 = vmatprep.mubr.bf16.mxu0 0
        %5132 = vmatmul.mubr.bf16.gmra.mxu0 %v5094
        %v5133 = vpop.f32.mrf.mxu0
        %v5134 = vadd.f32 0.0, %v5133
        %v5135 = vpop.f32.mrf.mxu0
        %v5136 = vpop.f32.mrf.mxu0
        %v5137 = vpop.f32.mrf.mxu0
        %5138 = vdwg.mxu0
        %v5139 = vsel %vm820, %v4996, -inf
        %5140 = vmax.xlane.f32.xlu0 %v5139
        %v5141 = vpop.xlane.xlu0 %5140
        %v5142 = vsel %vm820, %v5042, -inf
        %5143 = vmax.xlane.f32.xlu0 %v5142
        %v5144 = vpop.xlane.xlu0 %5143
        %v5145 = vsel %vm820, %v5088, -inf
        %5146 = vmax.xlane.f32.xlu0 %v5145
        %v5147 = vpop.xlane.xlu0 %5146
        %v5148 = vsel %vm820, %v5134, -inf
        %5149 = vmax.xlane.f32.xlu0 %v5148
        %v5150 = vpop.xlane.xlu0 %5149
        %v5151 = vsub.f32 %v4996, %v5141
        %v5152 = vsub.f32 %v5042, %v5144
        %v5153 = vsub.f32 %v5088, %v5147
        %v5154 = vsub.f32 %v5134, %v5150
        %v5155 = vmul.f32 %v5151, 1.442695
        %v5156 = vpow.pop %v5155
        %v5157 = vmul.f32 %v5152, 1.442695
        %v5158 = vpow.pop %v5157
        %v5159 = vmul.f32 %v5153, 1.442695
        %v5160 = vpow.pop %v5159
        %v5161 = vmul.f32 %v5154, 1.442695
        %v5162 = vpow.pop %v5161
        %v5163 = vsel %vm820, %v5156, 0.0
        %5164 = vadd.xlane.f32.xlu0 %v5163
        %v5165 = vpop.xlane.xlu0 %5164
        %v5166 = vsel %vm820, %v5158, 0.0
        %5167 = vadd.xlane.f32.xlu0 %v5166
        %v5168 = vpop.xlane.xlu0 %5167
        %v5169 = vsel %vm820, %v5160, 0.0
        %5170 = vadd.xlane.f32.xlu0 %v5169
        %v5171 = vpop.xlane.xlu0 %5170
        %v5172 = vsel %vm820, %v5162, 0.0
        %5173 = vadd.xlane.f32.xlu0 %v5172
        %v5174 = vpop.xlane.xlu0 %5173
        %v5175 = vrcp.pop %v5165
        %v5176 = vmul.f32 %v5156, %v5175
        %v5177 = vrcp.pop %v5168
        %v5178 = vmul.f32 %v5158, %v5177
        %v5179 = vrcp.pop %v5171
        %v5180 = vmul.f32 %v5160, %v5179
        %v5181 = vrcp.pop %v5174
        %v5182 = vmul.f32 %v5162, %v5181
        %s5183 = scalar_lea.vmem %s339, 192 [#allocation2]
        %5184 = vst.msk [vmem:[%s5183] sm:$0xff] %vm820, %v5176
        %5185 = vst.msk [vmem:[%s5183 + $0x8] sm:$0xff] %vm820, %v5178
        %5186 = vst.msk [vmem:[%s5183 + $0x10] sm:$0xff] %vm820, %v5180
        %5187 = vst.msk [vmem:[%s5183 + $0x18] sm:$0xff] %vm820, %v5182
        %v5188 = vpack.c.bf16 %v5176, %v5176
        %v5189 = vpack.c.bf16 %v5178, %v5178
        %v5190 = vpack.c.bf16 %v5180, %v5180
        %v5191 = vpack.c.bf16 %v5182, %v5182
        %v5193 = vsel %vm820, %v5188, 0
        %v5196 = vsel %vm876, %v4951, 0
        %5198 = vmatprep.subr.bf16.mxu0 0
        %5199 = vmatpush1.bf16.msra.mxu0 0
        %5200 = vmatprep.subr.bf16.mxu0 0
        %5201 = vmatpush1.bf16.msra.mxu0 0
        %5202 = vmatprep.subr.bf16.mxu0 0
        %5203 = vmatpush1.bf16.msra.mxu0 0
        %5204 = vmatprep.subr.bf16.mxu0 0
        %5205 = vmatpush1.bf16.msra.mxu0 0
        %5206 = vmatprep.subr.bf16.mxu0 0
        %5207 = vmatpush1.bf16.msra.mxu0 0
        %5208 = vmatprep.subr.bf16.mxu0 0
        %5209 = vmatpush1.bf16.msra.mxu0 0
        %5210 = vmatprep.subr.bf16.mxu0 0
        %5211 = vmatpush1.bf16.msra.mxu0 0
        %5212 = vmatprep.subr.bf16.mxu0 0
        %5213 = vmatpush1.bf16.msra.mxu0 %v5196
        %5214 = vmatprep.subr.bf16.mxu0 0
        %5215 = vmatpush2.bf16.msra.mxu0 0
        %5216 = vmatprep.subr.bf16.mxu0 0
        %5217 = vmatpush2.bf16.msra.mxu0 0
        %5218 = vmatprep.subr.bf16.mxu0 0
        %5219 = vmatpush2.bf16.msra.mxu0 0
        %5220 = vmatprep.subr.bf16.mxu0 0
        %5221 = vmatpush2.bf16.msra.mxu0 0
        %5222 = vmatprep.subr.bf16.mxu0 0
        %5223 = vmatpush2.bf16.msra.mxu0 0
        %5224 = vmatprep.subr.bf16.mxu0 0
        %5225 = vmatpush2.bf16.msra.mxu0 0
        %5226 = vmatprep.subr.bf16.mxu0 0
        %5227 = vmatpush2.bf16.msra.mxu0 0
        %5228 = vmatprep.subr.bf16.mxu0 0
        %5229 = vmatpush2.bf16.msra.mxu0 0
        %5230 = vmatprep.mubr.bf16.mxu0 0
        %5231 = vmatmul.mubr.bf16.gmra.mxu0 %v5193
        %v5232 = vpop.f32.mrf.mxu0
        %v5233 = vadd.f32 0.0, %v5232
        %v5234 = vpop.f32.mrf.mxu0
        %v5235 = vpop.f32.mrf.mxu0
        %v5236 = vpop.f32.mrf.mxu0
        %5237 = vdwg.mxu0
        %v5239 = vsel %vm820, %v5189, 0
        %v5242 = vsel %vm876, %v4952, 0
        %5244 = vmatprep.subr.bf16.mxu0 0
        %5245 = vmatpush1.bf16.msra.mxu0 0
        %5246 = vmatprep.subr.bf16.mxu0 0
        %5247 = vmatpush1.bf16.msra.mxu0 0
        %5248 = vmatprep.subr.bf16.mxu0 0
        %5249 = vmatpush1.bf16.msra.mxu0 0
        %5250 = vmatprep.subr.bf16.mxu0 0
        %5251 = vmatpush1.bf16.msra.mxu0 0
        %5252 = vmatprep.subr.bf16.mxu0 0
        %5253 = vmatpush1.bf16.msra.mxu0 0
        %5254 = vmatprep.subr.bf16.mxu0 0
        %5255 = vmatpush1.bf16.msra.mxu0 0
        %5256 = vmatprep.subr.bf16.mxu0 0
        %5257 = vmatpush1.bf16.msra.mxu0 0
        %5258 = vmatprep.subr.bf16.mxu0 0
        %5259 = vmatpush1.bf16.msra.mxu0 %v5242
        %5260 = vmatprep.subr.bf16.mxu0 0
        %5261 = vmatpush2.bf16.msra.mxu0 0
        %5262 = vmatprep.subr.bf16.mxu0 0
        %5263 = vmatpush2.bf16.msra.mxu0 0
        %5264 = vmatprep.subr.bf16.mxu0 0
        %5265 = vmatpush2.bf16.msra.mxu0 0
        %5266 = vmatprep.subr.bf16.mxu0 0
        %5267 = vmatpush2.bf16.msra.mxu0 0
        %5268 = vmatprep.subr.bf16.mxu0 0
        %5269 = vmatpush2.bf16.msra.mxu0 0
        %5270 = vmatprep.subr.bf16.mxu0 0
        %5271 = vmatpush2.bf16.msra.mxu0 0
        %5272 = vmatprep.subr.bf16.mxu0 0
        %5273 = vmatpush2.bf16.msra.mxu0 0
        %5274 = vmatprep.subr.bf16.mxu0 0
        %5275 = vmatpush2.bf16.msra.mxu0 0
        %5276 = vmatprep.mubr.bf16.mxu0 0
        %5277 = vmatmul.mubr.bf16.gmra.mxu0 %v5239
        %v5278 = vpop.f32.mrf.mxu0
        %v5279 = vadd.f32 0.0, %v5278
        %v5280 = vpop.f32.mrf.mxu0
        %v5281 = vpop.f32.mrf.mxu0
        %v5282 = vpop.f32.mrf.mxu0
        %5283 = vdwg.mxu0
        %v5285 = vsel %vm820, %v5190, 0
        %v5288 = vsel %vm876, %v4953, 0
        %5290 = vmatprep.subr.bf16.mxu0 0
        %5291 = vmatpush1.bf16.msra.mxu0 0
        %5292 = vmatprep.subr.bf16.mxu0 0
        %5293 = vmatpush1.bf16.msra.mxu0 0
        %5294 = vmatprep.subr.bf16.mxu0 0
        %5295 = vmatpush1.bf16.msra.mxu0 0
        %5296 = vmatprep.subr.bf16.mxu0 0
        %5297 = vmatpush1.bf16.msra.mxu0 0
        %5298 = vmatprep.subr.bf16.mxu0 0
        %5299 = vmatpush1.bf16.msra.mxu0 0
        %5300 = vmatprep.subr.bf16.mxu0 0
        %5301 = vmatpush1.bf16.msra.mxu0 0
        %5302 = vmatprep.subr.bf16.mxu0 0
        %5303 = vmatpush1.bf16.msra.mxu0 0
        %5304 = vmatprep.subr.bf16.mxu0 0
        %5305 = vmatpush1.bf16.msra.mxu0 %v5288
        %5306 = vmatprep.subr.bf16.mxu0 0
        %5307 = vmatpush2.bf16.msra.mxu0 0
        %5308 = vmatprep.subr.bf16.mxu0 0
        %5309 = vmatpush2.bf16.msra.mxu0 0
        %5310 = vmatprep.subr.bf16.mxu0 0
        %5311 = vmatpush2.bf16.msra.mxu0 0
        %5312 = vmatprep.subr.bf16.mxu0 0
        %5313 = vmatpush2.bf16.msra.mxu0 0
        %5314 = vmatprep.subr.bf16.mxu0 0
        %5315 = vmatpush2.bf16.msra.mxu0 0
        %5316 = vmatprep.subr.bf16.mxu0 0
        %5317 = vmatpush2.bf16.msra.mxu0 0
        %5318 = vmatprep.subr.bf16.mxu0 0
        %5319 = vmatpush2.bf16.msra.mxu0 0
        %5320 = vmatprep.subr.bf16.mxu0 0
        %5321 = vmatpush2.bf16.msra.mxu0 0
        %5322 = vmatprep.mubr.bf16.mxu0 0
        %5323 = vmatmul.mubr.bf16.gmra.mxu0 %v5285
        %v5324 = vpop.f32.mrf.mxu0
        %v5325 = vadd.f32 0.0, %v5324
        %v5326 = vpop.f32.mrf.mxu0
        %v5327 = vpop.f32.mrf.mxu0
        %v5328 = vpop.f32.mrf.mxu0
        %5329 = vdwg.mxu0
        %v5331 = vsel %vm820, %v5191, 0
        %v5334 = vsel %vm876, %v4954, 0
        %5336 = vmatprep.subr.bf16.mxu0 0
        %5337 = vmatpush1.bf16.msra.mxu0 0
        %5338 = vmatprep.subr.bf16.mxu0 0
        %5339 = vmatpush1.bf16.msra.mxu0 0
        %5340 = vmatprep.subr.bf16.mxu0 0
        %5341 = vmatpush1.bf16.msra.mxu0 0
        %5342 = vmatprep.subr.bf16.mxu0 0
        %5343 = vmatpush1.bf16.msra.mxu0 0
        %5344 = vmatprep.subr.bf16.mxu0 0
        %5345 = vmatpush1.bf16.msra.mxu0 0
        %5346 = vmatprep.subr.bf16.mxu0 0
        %5347 = vmatpush1.bf16.msra.mxu0 0
        %5348 = vmatprep.subr.bf16.mxu0 0
        %5349 = vmatpush1.bf16.msra.mxu0 0
        %5350 = vmatprep.subr.bf16.mxu0 0
        %5351 = vmatpush1.bf16.msra.mxu0 %v5334
        %5352 = vmatprep.subr.bf16.mxu0 0
        %5353 = vmatpush2.bf16.msra.mxu0 0
        %5354 = vmatprep.subr.bf16.mxu0 0
        %5355 = vmatpush2.bf16.msra.mxu0 0
        %5356 = vmatprep.subr.bf16.mxu0 0
        %5357 = vmatpush2.bf16.msra.mxu0 0
        %5358 = vmatprep.subr.bf16.mxu0 0
        %5359 = vmatpush2.bf16.msra.mxu0 0
        %5360 = vmatprep.subr.bf16.mxu0 0
        %5361 = vmatpush2.bf16.msra.mxu0 0
        %5362 = vmatprep.subr.bf16.mxu0 0
        %5363 = vmatpush2.bf16.msra.mxu0 0
        %5364 = vmatprep.subr.bf16.mxu0 0
        %5365 = vmatpush2.bf16.msra.mxu0 0
        %5366 = vmatprep.subr.bf16.mxu0 0
        %5367 = vmatpush2.bf16.msra.mxu0 0
        %5368 = vmatprep.mubr.bf16.mxu0 0
        %5369 = vmatmul.mubr.bf16.gmra.mxu0 %v5331
        %v5370 = vpop.f32.mrf.mxu0
        %v5371 = vadd.f32 0.0, %v5370
        %v5372 = vpop.f32.mrf.mxu0
        %v5373 = vpop.f32.mrf.mxu0
        %v5374 = vpop.f32.mrf.mxu0
        %5375 = vdwg.mxu0
        %v5376 = vpack.c.bf16 %v5279, %v5233
        %v5377 = vpack.c.bf16 %v5371, %v5325
        %s5378 = scalar_lea.vmem %s4, 12
        %v5379 = vld [vmem:[%s5378] sm:$0x3]
        %v5381 = vsel %vm635, %v5376, 0
        %v5384 = vsel %vm635, %v5377, 0
        %v5387 = vsel %vm1726, %v5379, 0
        %5389 = vmatprep.subr.bf16.mxu0 0
        %5390 = vmatpush1.bf16.msra.mxu0 0
        %5391 = vmatprep.subr.bf16.mxu0 0
        %5392 = vmatpush1.bf16.msra.mxu0 0
        %5393 = vmatprep.subr.bf16.mxu0 0
        %5394 = vmatpush1.bf16.msra.mxu0 0
        %5395 = vmatprep.subr.bf16.mxu0 0
        %5396 = vmatpush1.bf16.msra.mxu0 0
        %5397 = vmatprep.subr.bf16.mxu0 0
        %5398 = vmatpush1.bf16.msra.mxu0 0
        %5399 = vmatprep.subr.bf16.mxu0 0
        %5400 = vmatpush1.bf16.msra.mxu0 0
        %5401 = vmatprep.subr.bf16.mxu0 0
        %5402 = vmatpush1.bf16.msra.mxu0 0
        %5403 = vmatprep.subr.bf16.mxu0 0
        %5404 = vmatpush1.bf16.msra.mxu0 %v5387
        %5405 = vmatprep.subr.bf16.mxu0 0
        %5406 = vmatpush2.bf16.msra.mxu0 0
        %5407 = vmatprep.subr.bf16.mxu0 0
        %5408 = vmatpush2.bf16.msra.mxu0 0
        %5409 = vmatprep.subr.bf16.mxu0 0
        %5410 = vmatpush2.bf16.msra.mxu0 0
        %5411 = vmatprep.subr.bf16.mxu0 0
        %5412 = vmatpush2.bf16.msra.mxu0 0
        %5413 = vmatprep.subr.bf16.mxu0 0
        %5414 = vmatpush2.bf16.msra.mxu0 0
        %5415 = vmatprep.subr.bf16.mxu0 0
        %5416 = vmatpush2.bf16.msra.mxu0 0
        %5417 = vmatprep.subr.bf16.mxu0 0
        %5418 = vmatpush2.bf16.msra.mxu0 0
        %5419 = vmatprep.subr.bf16.mxu0 0
        %5420 = vmatpush2.bf16.msra.mxu0 0
        %5421 = vmatprep.mubr.bf16.mxu0 0
        %5422 = vmatmul.mubr.bf16.gmra.mxu0 %v5381
        %v5423 = vpop.f32.mrf.mxu0
        %v5424 = vadd.f32 0.0, %v5423
        %v5425 = vpop.f32.mrf.mxu0
        %v5426 = vpop.f32.mrf.mxu0
        %v5427 = vadd.f32 0.0, %v5426
        %v5428 = vpop.f32.mrf.mxu0
        %5429 = vmatprep.mubr.bf16.mxu0 0
        %5430 = vmatmul.mubr.bf16.gmra.mxu0 %v5384
        %v5431 = vpop.f32.mrf.mxu0
        %v5432 = vadd.f32 0.0, %v5431
        %v5433 = vpop.f32.mrf.mxu0
        %v5434 = vpop.f32.mrf.mxu0
        %v5435 = vadd.f32 0.0, %v5434
        %v5436 = vpop.f32.mrf.mxu0
        %5437 = vdwg.mxu0
        %v5438 = vadd.f32 %v4717, %v5424
        %v5439 = vadd.f32 %v4718, %v5427
        %v5440 = vadd.f32 %v4719, %v5432
        %v5441 = vadd.f32 %v4720, %v5435
        %s5442 = scalar_lea.vmem %s3, 112
        %v5443 = vld [vmem:[%s5442] sm:$0xf]
        %v5444 = vld [vmem:[%s5442 + $0x4] sm:$0xf]
        %v5445 = vld [vmem:[%s5442 + $0x8] sm:$0xf]
        %v5446 = vld [vmem:[%s5442 + $0xc] sm:$0xf]
        %s5447 = scalar_lea.vmem %s5, 7
        %v5448 = vld [vmem:[%s5447] sm:$0x1]
        %v5450 = vlaneseq
        %v5451 = vshrl.u32 %v5450, 7
        %v5452 = vsub.s32 0, %v5451
        %v5453 = vrot.slane %v5448, %v5452
        %v5459 = vunpack.c.l.b16 %v5443
        %v5460 = vunpack.c.l.b16 %v5444
        %v5461 = vunpack.c.l.b16 %v5445
        %v5462 = vunpack.c.l.b16 %v5446
        %v5463 = vpack.c.b16 %v5460, %v5459
        %v5464 = vpack.c.b16 %v5462, %v5461
        %5467 = vmatprep.subr.bf16.mxu0 0
        %5468 = vmatpush1.bf16.msra.mxu0 0
        %5469 = vmatprep.subr.bf16.mxu0 0
        %5470 = vmatpush1.bf16.msra.mxu0 0
        %5471 = vmatprep.subr.bf16.mxu0 0
        %5472 = vmatpush1.bf16.msra.mxu0 0
        %5473 = vmatprep.subr.bf16.mxu0 0
        %5474 = vmatpush1.bf16.msra.mxu0 0
        %5475 = vmatprep.subr.bf16.mxu0 0
        %5476 = vmatpush1.bf16.msra.mxu0 0
        %5477 = vmatprep.subr.bf16.mxu0 0
        %5478 = vmatpush1.bf16.msra.mxu0 0
        %5479 = vmatprep.subr.bf16.mxu0 0
        %5480 = vmatpush1.bf16.msra.mxu0 %v5464
        %5481 = vmatprep.subr.bf16.mxu0 0
        %5482 = vmatpush1.bf16.msra.mxu0 %v5463
        %5483 = vmatprep.subr.bf16.mxu0 0
        %5484 = vmatpush2.bf16.msra.mxu0 0
        %5485 = vmatprep.subr.bf16.mxu0 0
        %5486 = vmatpush2.bf16.msra.mxu0 0
        %5487 = vmatprep.subr.bf16.mxu0 0
        %5488 = vmatpush2.bf16.msra.mxu0 0
        %5489 = vmatprep.subr.bf16.mxu0 0
        %5490 = vmatpush2.bf16.msra.mxu0 0
        %5491 = vmatprep.subr.bf16.mxu0 0
        %5492 = vmatpush2.bf16.msra.mxu0 0
        %5493 = vmatprep.subr.bf16.mxu0 0
        %5494 = vmatpush2.bf16.msra.mxu0 0
        %5495 = vmatprep.subr.bf16.mxu0 0
        %5496 = vmatpush2.bf16.msra.mxu0 0
        %5497 = vmatprep.subr.bf16.mxu0 0
        %5498 = vmatpush2.bf16.msra.mxu0 0
        %5499 = vmatprep.mubr.bf16.mxu0 0
        %5500 = vmatmul.mubr.bf16.gmra.mxu0 %v409
        %v5501 = vpop.f32.mrf.mxu0
        %v5502 = vadd.f32 %v5453, %v5501
        %v5503 = vpop.f32.mrf.mxu0
        %v5504 = vpop.f32.mrf.mxu0
        %v5505 = vadd.f32 %v5453, %v5504
        %v5506 = vpop.f32.mrf.mxu0
        %5507 = vmatprep.mubr.bf16.mxu0 0
        %5508 = vmatmul.mubr.bf16.gmra.mxu0 %v412
        %v5509 = vpop.f32.mrf.mxu0
        %v5510 = vadd.f32 %v5453, %v5509
        %v5511 = vpop.f32.mrf.mxu0
        %v5512 = vpop.f32.mrf.mxu0
        %v5513 = vadd.f32 %v5453, %v5512
        %v5514 = vpop.f32.mrf.mxu0
        %5515 = vdwg.mxu0
        %v5516 = vpack.c.bf16 %v5502, %v5502
        %v5517 = vpack.c.bf16 %v5505, %v5505
        %v5518 = vpack.c.bf16 %v5510, %v5510
        %v5519 = vpack.c.bf16 %v5513, %v5513
        %s5520 = scalar_lea.vmem %s3, 240
        %v5521 = vld [vmem:[%s5520] sm:$0xf]
        %v5522 = vld [vmem:[%s5520 + $0x4] sm:$0xf]
        %v5523 = vld [vmem:[%s5520 + $0x8] sm:$0xf]
        %v5524 = vld [vmem:[%s5520 + $0xc] sm:$0xf]
        %s5525 = scalar_lea.vmem %s5, 15
        %v5526 = vld [vmem:[%s5525] sm:$0x1]
        %v5528 = vlaneseq
        %v5529 = vshrl.u32 %v5528, 7
        %v5530 = vsub.s32 0, %v5529
        %v5531 = vrot.slane %v5526, %v5530
        %v5537 = vunpack.c.l.b16 %v5521
        %v5538 = vunpack.c.l.b16 %v5522
        %v5539 = vunpack.c.l.b16 %v5523
        %v5540 = vunpack.c.l.b16 %v5524
        %v5541 = vpack.c.b16 %v5538, %v5537
        %v5542 = vpack.c.b16 %v5540, %v5539
        %5545 = vmatprep.subr.bf16.mxu0 0
        %5546 = vmatpush1.bf16.msra.mxu0 0
        %5547 = vmatprep.subr.bf16.mxu0 0
        %5548 = vmatpush1.bf16.msra.mxu0 0
        %5549 = vmatprep.subr.bf16.mxu0 0
        %5550 = vmatpush1.bf16.msra.mxu0 0
        %5551 = vmatprep.subr.bf16.mxu0 0
        %5552 = vmatpush1.bf16.msra.mxu0 0
        %5553 = vmatprep.subr.bf16.mxu0 0
        %5554 = vmatpush1.bf16.msra.mxu0 0
        %5555 = vmatprep.subr.bf16.mxu0 0
        %5556 = vmatpush1.bf16.msra.mxu0 0
        %5557 = vmatprep.subr.bf16.mxu0 0
        %5558 = vmatpush1.bf16.msra.mxu0 %v5542
        %5559 = vmatprep.subr.bf16.mxu0 0
        %5560 = vmatpush1.bf16.msra.mxu0 %v5541
        %5561 = vmatprep.subr.bf16.mxu0 0
        %5562 = vmatpush2.bf16.msra.mxu0 0
        %5563 = vmatprep.subr.bf16.mxu0 0
        %5564 = vmatpush2.bf16.msra.mxu0 0
        %5565 = vmatprep.subr.bf16.mxu0 0
        %5566 = vmatpush2.bf16.msra.mxu0 0
        %5567 = vmatprep.subr.bf16.mxu0 0
        %5568 = vmatpush2.bf16.msra.mxu0 0
        %5569 = vmatprep.subr.bf16.mxu0 0
        %5570 = vmatpush2.bf16.msra.mxu0 0
        %5571 = vmatprep.subr.bf16.mxu0 0
        %5572 = vmatpush2.bf16.msra.mxu0 0
        %5573 = vmatprep.subr.bf16.mxu0 0
        %5574 = vmatpush2.bf16.msra.mxu0 0
        %5575 = vmatprep.subr.bf16.mxu0 0
        %5576 = vmatpush2.bf16.msra.mxu0 0
        %5577 = vmatprep.mubr.bf16.mxu0 0
        %5578 = vmatmul.mubr.bf16.gmra.mxu0 %v493
        %v5579 = vpop.f32.mrf.mxu0
        %v5580 = vadd.f32 %v5531, %v5579
        %v5581 = vpop.f32.mrf.mxu0
        %v5582 = vpop.f32.mrf.mxu0
        %v5583 = vadd.f32 %v5531, %v5582
        %v5584 = vpop.f32.mrf.mxu0
        %5585 = vmatprep.mubr.bf16.mxu0 0
        %5586 = vmatmul.mubr.bf16.gmra.mxu0 %v496
        %v5587 = vpop.f32.mrf.mxu0
        %v5588 = vadd.f32 %v5531, %v5587
        %v5589 = vpop.f32.mrf.mxu0
        %v5590 = vpop.f32.mrf.mxu0
        %v5591 = vadd.f32 %v5531, %v5590
        %v5592 = vpop.f32.mrf.mxu0
        %5593 = vdwg.mxu0
        %v5594 = vpack.c.bf16 %v5580, %v5580
        %v5595 = vpack.c.bf16 %v5583, %v5583
        %v5596 = vpack.c.bf16 %v5588, %v5588
        %v5597 = vpack.c.bf16 %v5591, %v5591
        %s5598 = scalar_lea.vmem %s3, 368
        %v5599 = vld [vmem:[%s5598] sm:$0xf]
        %v5600 = vld [vmem:[%s5598 + $0x4] sm:$0xf]
        %v5601 = vld [vmem:[%s5598 + $0x8] sm:$0xf]
        %v5602 = vld [vmem:[%s5598 + $0xc] sm:$0xf]
        %s5603 = scalar_lea.vmem %s5, 23
        %v5604 = vld [vmem:[%s5603] sm:$0x1]
        %v5606 = vlaneseq
        %v5607 = vshrl.u32 %v5606, 7
        %v5608 = vsub.s32 0, %v5607
        %v5609 = vrot.slane %v5604, %v5608
        %v5615 = vunpack.c.l.b16 %v5599
        %v5616 = vunpack.c.l.b16 %v5600
        %v5617 = vunpack.c.l.b16 %v5601
        %v5618 = vunpack.c.l.b16 %v5602
        %v5619 = vpack.c.b16 %v5616, %v5615
        %v5620 = vpack.c.b16 %v5618, %v5617
        %5623 = vmatprep.subr.bf16.mxu0 0
        %5624 = vmatpush1.bf16.msra.mxu0 0
        %5625 = vmatprep.subr.bf16.mxu0 0
        %5626 = vmatpush1.bf16.msra.mxu0 0
        %5627 = vmatprep.subr.bf16.mxu0 0
        %5628 = vmatpush1.bf16.msra.mxu0 0
        %5629 = vmatprep.subr.bf16.mxu0 0
        %5630 = vmatpush1.bf16.msra.mxu0 0
        %5631 = vmatprep.subr.bf16.mxu0 0
        %5632 = vmatpush1.bf16.msra.mxu0 0
        %5633 = vmatprep.subr.bf16.mxu0 0
        %5634 = vmatpush1.bf16.msra.mxu0 0
        %5635 = vmatprep.subr.bf16.mxu0 0
        %5636 = vmatpush1.bf16.msra.mxu0 %v5620
        %5637 = vmatprep.subr.bf16.mxu0 0
        %5638 = vmatpush1.bf16.msra.mxu0 %v5619
        %5639 = vmatprep.subr.bf16.mxu0 0
        %5640 = vmatpush2.bf16.msra.mxu0 0
        %5641 = vmatprep.subr.bf16.mxu0 0
        %5642 = vmatpush2.bf16.msra.mxu0 0
        %5643 = vmatprep.subr.bf16.mxu0 0
        %5644 = vmatpush2.bf16.msra.mxu0 0
        %5645 = vmatprep.subr.bf16.mxu0 0
        %5646 = vmatpush2.bf16.msra.mxu0 0
        %5647 = vmatprep.subr.bf16.mxu0 0
        %5648 = vmatpush2.bf16.msra.mxu0 0
        %5649 = vmatprep.subr.bf16.mxu0 0
        %5650 = vmatpush2.bf16.msra.mxu0 0
        %5651 = vmatprep.subr.bf16.mxu0 0
        %5652 = vmatpush2.bf16.msra.mxu0 0
        %5653 = vmatprep.subr.bf16.mxu0 0
        %5654 = vmatpush2.bf16.msra.mxu0 0
        %5655 = vmatprep.mubr.bf16.mxu0 0
        %5656 = vmatmul.mubr.bf16.gmra.mxu0 %v577
        %v5657 = vpop.f32.mrf.mxu0
        %v5658 = vadd.f32 %v5609, %v5657
        %v5659 = vpop.f32.mrf.mxu0
        %v5660 = vpop.f32.mrf.mxu0
        %v5661 = vadd.f32 %v5609, %v5660
        %v5662 = vpop.f32.mrf.mxu0
        %5663 = vmatprep.mubr.bf16.mxu0 0
        %5664 = vmatmul.mubr.bf16.gmra.mxu0 %v580
        %v5665 = vpop.f32.mrf.mxu0
        %v5666 = vadd.f32 %v5609, %v5665
        %v5667 = vpop.f32.mrf.mxu0
        %v5668 = vpop.f32.mrf.mxu0
        %v5669 = vadd.f32 %v5609, %v5668
        %v5670 = vpop.f32.mrf.mxu0
        %5671 = vdwg.mxu0
        %v5672 = vpack.c.bf16 %v5658, %v5658
        %v5673 = vpack.c.bf16 %v5661, %v5661
        %v5674 = vpack.c.bf16 %v5666, %v5666
        %v5675 = vpack.c.bf16 %v5669, %v5669
        %v5677 = vsel %vm635, %v5516, 0
        %v5680 = vsel %vm635, %v5594, 0
        %5682 = vmatprep.subr.bf16.mxu0 0
        %5683 = vmatpush1.bf16.xpose.msra.mxu0 0
        %5684 = vmatprep.subr.bf16.mxu0 0
        %5685 = vmatpush1.bf16.xpose.msra.mxu0 0
        %5686 = vmatprep.subr.bf16.mxu0 0
        %5687 = vmatpush1.bf16.xpose.msra.mxu0 0
        %5688 = vmatprep.subr.bf16.mxu0 0
        %5689 = vmatpush1.bf16.xpose.msra.mxu0 0
        %5690 = vmatprep.subr.bf16.mxu0 0
        %5691 = vmatpush1.bf16.xpose.msra.mxu0 0
        %5692 = vmatprep.subr.bf16.mxu0 0
        %5693 = vmatpush1.bf16.xpose.msra.mxu0 0
        %5694 = vmatprep.subr.bf16.mxu0 0
        %5695 = vmatpush1.bf16.xpose.msra.mxu0 0
        %5696 = vmatprep.subr.bf16.mxu0 0
        %5697 = vmatpush1.bf16.xpose.msra.mxu0 %v5680
        %5698 = vmatprep.subr.bf16.mxu0 0
        %5699 = vmatpush2.bf16.xpose.msra.mxu0 0
        %5700 = vmatprep.subr.bf16.mxu0 0
        %5701 = vmatpush2.bf16.xpose.msra.mxu0 0
        %5702 = vmatprep.subr.bf16.mxu0 0
        %5703 = vmatpush2.bf16.xpose.msra.mxu0 0
        %5704 = vmatprep.subr.bf16.mxu0 0
        %5705 = vmatpush2.bf16.xpose.msra.mxu0 0
        %5706 = vmatprep.subr.bf16.mxu0 0
        %5707 = vmatpush2.bf16.xpose.msra.mxu0 0
        %5708 = vmatprep.subr.bf16.mxu0 0
        %5709 = vmatpush2.bf16.xpose.msra.mxu0 0
        %5710 = vmatprep.subr.bf16.mxu0 0
        %5711 = vmatpush2.bf16.xpose.msra.mxu0 0
        %5712 = vmatprep.subr.bf16.mxu0 0
        %5713 = vmatpush2.bf16.xpose.msra.mxu0 0
        %5714 = vmatprep.mubr.bf16.mxu0 0
        %5715 = vmatmul.mubr.bf16.gmra.mxu0 %v5677
        %v5716 = vpop.f32.mrf.mxu0
        %v5717 = vadd.f32 0.0, %v5716
        %v5718 = vpop.f32.mrf.mxu0
        %v5719 = vpop.f32.mrf.mxu0
        %v5720 = vpop.f32.mrf.mxu0
        %5721 = vdwg.mxu0
        %v5723 = vsel %vm635, %v5517, 0
        %v5726 = vsel %vm635, %v5595, 0
        %5728 = vmatprep.subr.bf16.mxu0 0
        %5729 = vmatpush1.bf16.xpose.msra.mxu0 0
        %5730 = vmatprep.subr.bf16.mxu0 0
        %5731 = vmatpush1.bf16.xpose.msra.mxu0 0
        %5732 = vmatprep.subr.bf16.mxu0 0
        %5733 = vmatpush1.bf16.xpose.msra.mxu0 0
        %5734 = vmatprep.subr.bf16.mxu0 0
        %5735 = vmatpush1.bf16.xpose.msra.mxu0 0
        %5736 = vmatprep.subr.bf16.mxu0 0
        %5737 = vmatpush1.bf16.xpose.msra.mxu0 0
        %5738 = vmatprep.subr.bf16.mxu0 0
        %5739 = vmatpush1.bf16.xpose.msra.mxu0 0
        %5740 = vmatprep.subr.bf16.mxu0 0
        %5741 = vmatpush1.bf16.xpose.msra.mxu0 0
        %5742 = vmatprep.subr.bf16.mxu0 0
        %5743 = vmatpush1.bf16.xpose.msra.mxu0 %v5726
        %5744 = vmatprep.subr.bf16.mxu0 0
        %5745 = vmatpush2.bf16.xpose.msra.mxu0 0
        %5746 = vmatprep.subr.bf16.mxu0 0
        %5747 = vmatpush2.bf16.xpose.msra.mxu0 0
        %5748 = vmatprep.subr.bf16.mxu0 0
        %5749 = vmatpush2.bf16.xpose.msra.mxu0 0
        %5750 = vmatprep.subr.bf16.mxu0 0
        %5751 = vmatpush2.bf16.xpose.msra.mxu0 0
        %5752 = vmatprep.subr.bf16.mxu0 0
        %5753 = vmatpush2.bf16.xpose.msra.mxu0 0
        %5754 = vmatprep.subr.bf16.mxu0 0
        %5755 = vmatpush2.bf16.xpose.msra.mxu0 0
        %5756 = vmatprep.subr.bf16.mxu0 0
        %5757 = vmatpush2.bf16.xpose.msra.mxu0 0
        %5758 = vmatprep.subr.bf16.mxu0 0
        %5759 = vmatpush2.bf16.xpose.msra.mxu0 0
        %5760 = vmatprep.mubr.bf16.mxu0 0
        %5761 = vmatmul.mubr.bf16.gmra.mxu0 %v5723
        %v5762 = vpop.f32.mrf.mxu0
        %v5763 = vadd.f32 0.0, %v5762
        %v5764 = vpop.f32.mrf.mxu0
        %v5765 = vpop.f32.mrf.mxu0
        %v5766 = vpop.f32.mrf.mxu0
        %5767 = vdwg.mxu0
        %v5769 = vsel %vm635, %v5518, 0
        %v5772 = vsel %vm635, %v5596, 0
        %5774 = vmatprep.subr.bf16.mxu0 0
        %5775 = vmatpush1.bf16.xpose.msra.mxu0 0
        %5776 = vmatprep.subr.bf16.mxu0 0
        %5777 = vmatpush1.bf16.xpose.msra.mxu0 0
        %5778 = vmatprep.subr.bf16.mxu0 0
        %5779 = vmatpush1.bf16.xpose.msra.mxu0 0
        %5780 = vmatprep.subr.bf16.mxu0 0
        %5781 = vmatpush1.bf16.xpose.msra.mxu0 0
        %5782 = vmatprep.subr.bf16.mxu0 0
        %5783 = vmatpush1.bf16.xpose.msra.mxu0 0
        %5784 = vmatprep.subr.bf16.mxu0 0
        %5785 = vmatpush1.bf16.xpose.msra.mxu0 0
        %5786 = vmatprep.subr.bf16.mxu0 0
        %5787 = vmatpush1.bf16.xpose.msra.mxu0 0
        %5788 = vmatprep.subr.bf16.mxu0 0
        %5789 = vmatpush1.bf16.xpose.msra.mxu0 %v5772
        %5790 = vmatprep.subr.bf16.mxu0 0
        %5791 = vmatpush2.bf16.xpose.msra.mxu0 0
        %5792 = vmatprep.subr.bf16.mxu0 0
        %5793 = vmatpush2.bf16.xpose.msra.mxu0 0
        %5794 = vmatprep.subr.bf16.mxu0 0
        %5795 = vmatpush2.bf16.xpose.msra.mxu0 0
        %5796 = vmatprep.subr.bf16.mxu0 0
        %5797 = vmatpush2.bf16.xpose.msra.mxu0 0
        %5798 = vmatprep.subr.bf16.mxu0 0
        %5799 = vmatpush2.bf16.xpose.msra.mxu0 0
        %5800 = vmatprep.subr.bf16.mxu0 0
        %5801 = vmatpush2.bf16.xpose.msra.mxu0 0
        %5802 = vmatprep.subr.bf16.mxu0 0
        %5803 = vmatpush2.bf16.xpose.msra.mxu0 0
        %5804 = vmatprep.subr.bf16.mxu0 0
        %5805 = vmatpush2.bf16.xpose.msra.mxu0 0
        %5806 = vmatprep.mubr.bf16.mxu0 0
        %5807 = vmatmul.mubr.bf16.gmra.mxu0 %v5769
        %v5808 = vpop.f32.mrf.mxu0
        %v5809 = vadd.f32 0.0, %v5808
        %v5810 = vpop.f32.mrf.mxu0
        %v5811 = vpop.f32.mrf.mxu0
        %v5812 = vpop.f32.mrf.mxu0
        %5813 = vdwg.mxu0
        %v5815 = vsel %vm635, %v5519, 0
        %v5818 = vsel %vm635, %v5597, 0
        %5820 = vmatprep.subr.bf16.mxu0 0
        %5821 = vmatpush1.bf16.xpose.msra.mxu0 0
        %5822 = vmatprep.subr.bf16.mxu0 0
        %5823 = vmatpush1.bf16.xpose.msra.mxu0 0
        %5824 = vmatprep.subr.bf16.mxu0 0
        %5825 = vmatpush1.bf16.xpose.msra.mxu0 0
        %5826 = vmatprep.subr.bf16.mxu0 0
        %5827 = vmatpush1.bf16.xpose.msra.mxu0 0
        %5828 = vmatprep.subr.bf16.mxu0 0
        %5829 = vmatpush1.bf16.xpose.msra.mxu0 0
        %5830 = vmatprep.subr.bf16.mxu0 0
        %5831 = vmatpush1.bf16.xpose.msra.mxu0 0
        %5832 = vmatprep.subr.bf16.mxu0 0
        %5833 = vmatpush1.bf16.xpose.msra.mxu0 0
        %5834 = vmatprep.subr.bf16.mxu0 0
        %5835 = vmatpush1.bf16.xpose.msra.mxu0 %v5818
        %5836 = vmatprep.subr.bf16.mxu0 0
        %5837 = vmatpush2.bf16.xpose.msra.mxu0 0
        %5838 = vmatprep.subr.bf16.mxu0 0
        %5839 = vmatpush2.bf16.xpose.msra.mxu0 0
        %5840 = vmatprep.subr.bf16.mxu0 0
        %5841 = vmatpush2.bf16.xpose.msra.mxu0 0
        %5842 = vmatprep.subr.bf16.mxu0 0
        %5843 = vmatpush2.bf16.xpose.msra.mxu0 0
        %5844 = vmatprep.subr.bf16.mxu0 0
        %5845 = vmatpush2.bf16.xpose.msra.mxu0 0
        %5846 = vmatprep.subr.bf16.mxu0 0
        %5847 = vmatpush2.bf16.xpose.msra.mxu0 0
        %5848 = vmatprep.subr.bf16.mxu0 0
        %5849 = vmatpush2.bf16.xpose.msra.mxu0 0
        %5850 = vmatprep.subr.bf16.mxu0 0
        %5851 = vmatpush2.bf16.xpose.msra.mxu0 0
        %5852 = vmatprep.mubr.bf16.mxu0 0
        %5853 = vmatmul.mubr.bf16.gmra.mxu0 %v5815
        %v5854 = vpop.f32.mrf.mxu0
        %v5855 = vadd.f32 0.0, %v5854
        %v5856 = vpop.f32.mrf.mxu0
        %v5857 = vpop.f32.mrf.mxu0
        %v5858 = vpop.f32.mrf.mxu0
        %5859 = vdwg.mxu0
        %v5860 = vsel %vm820, %v5717, -inf
        %5861 = vmax.xlane.f32.xlu0 %v5860
        %v5862 = vpop.xlane.xlu0 %5861
        %v5863 = vsel %vm820, %v5763, -inf
        %5864 = vmax.xlane.f32.xlu0 %v5863
        %v5865 = vpop.xlane.xlu0 %5864
        %v5866 = vsel %vm820, %v5809, -inf
        %5867 = vmax.xlane.f32.xlu0 %v5866
        %v5868 = vpop.xlane.xlu0 %5867
        %v5869 = vsel %vm820, %v5855, -inf
        %5870 = vmax.xlane.f32.xlu0 %v5869
        %v5871 = vpop.xlane.xlu0 %5870
        %v5872 = vsub.f32 %v5717, %v5862
        %v5873 = vsub.f32 %v5763, %v5865
        %v5874 = vsub.f32 %v5809, %v5868
        %v5875 = vsub.f32 %v5855, %v5871
        %v5876 = vmul.f32 %v5872, 1.442695
        %v5877 = vpow.pop %v5876
        %v5878 = vmul.f32 %v5873, 1.442695
        %v5879 = vpow.pop %v5878
        %v5880 = vmul.f32 %v5874, 1.442695
        %v5881 = vpow.pop %v5880
        %v5882 = vmul.f32 %v5875, 1.442695
        %v5883 = vpow.pop %v5882
        %v5884 = vsel %vm820, %v5877, 0.0
        %5885 = vadd.xlane.f32.xlu0 %v5884
        %v5886 = vpop.xlane.xlu0 %5885
        %v5887 = vsel %vm820, %v5879, 0.0
        %5888 = vadd.xlane.f32.xlu0 %v5887
        %v5889 = vpop.xlane.xlu0 %5888
        %v5890 = vsel %vm820, %v5881, 0.0
        %5891 = vadd.xlane.f32.xlu0 %v5890
        %v5892 = vpop.xlane.xlu0 %5891
        %v5893 = vsel %vm820, %v5883, 0.0
        %5894 = vadd.xlane.f32.xlu0 %v5893
        %v5895 = vpop.xlane.xlu0 %5894
        %v5896 = vrcp.pop %v5886
        %v5897 = vmul.f32 %v5877, %v5896
        %v5898 = vrcp.pop %v5889
        %v5899 = vmul.f32 %v5879, %v5898
        %v5900 = vrcp.pop %v5892
        %v5901 = vmul.f32 %v5881, %v5900
        %v5902 = vrcp.pop %v5895
        %v5903 = vmul.f32 %v5883, %v5902
        %s5904 = scalar_lea.vmem %s339, 224 [#allocation2]
        %5905 = vst.msk [vmem:[%s5904] sm:$0xff] %vm820, %v5897
        %5906 = vst.msk [vmem:[%s5904 + $0x8] sm:$0xff] %vm820, %v5899
        %5907 = vst.msk [vmem:[%s5904 + $0x10] sm:$0xff] %vm820, %v5901
        %5908 = vst.msk [vmem:[%s5904 + $0x18] sm:$0xff] %vm820, %v5903
        %v5909 = vpack.c.bf16 %v5897, %v5897
        %v5910 = vpack.c.bf16 %v5899, %v5899
        %v5911 = vpack.c.bf16 %v5901, %v5901
        %v5912 = vpack.c.bf16 %v5903, %v5903
        %v5914 = vsel %vm820, %v5909, 0
        %v5917 = vsel %vm876, %v5672, 0
        %5919 = vmatprep.subr.bf16.mxu0 0
        %5920 = vmatpush1.bf16.msra.mxu0 0
        %5921 = vmatprep.subr.bf16.mxu0 0
        %5922 = vmatpush1.bf16.msra.mxu0 0
        %5923 = vmatprep.subr.bf16.mxu0 0
        %5924 = vmatpush1.bf16.msra.mxu0 0
        %5925 = vmatprep.subr.bf16.mxu0 0
        %5926 = vmatpush1.bf16.msra.mxu0 0
        %5927 = vmatprep.subr.bf16.mxu0 0
        %5928 = vmatpush1.bf16.msra.mxu0 0
        %5929 = vmatprep.subr.bf16.mxu0 0
        %5930 = vmatpush1.bf16.msra.mxu0 0
        %5931 = vmatprep.subr.bf16.mxu0 0
        %5932 = vmatpush1.bf16.msra.mxu0 0
        %5933 = vmatprep.subr.bf16.mxu0 0
        %5934 = vmatpush1.bf16.msra.mxu0 %v5917
        %5935 = vmatprep.subr.bf16.mxu0 0
        %5936 = vmatpush2.bf16.msra.mxu0 0
        %5937 = vmatprep.subr.bf16.mxu0 0
        %5938 = vmatpush2.bf16.msra.mxu0 0
        %5939 = vmatprep.subr.bf16.mxu0 0
        %5940 = vmatpush2.bf16.msra.mxu0 0
        %5941 = vmatprep.subr.bf16.mxu0 0
        %5942 = vmatpush2.bf16.msra.mxu0 0
        %5943 = vmatprep.subr.bf16.mxu0 0
        %5944 = vmatpush2.bf16.msra.mxu0 0
        %5945 = vmatprep.subr.bf16.mxu0 0
        %5946 = vmatpush2.bf16.msra.mxu0 0
        %5947 = vmatprep.subr.bf16.mxu0 0
        %5948 = vmatpush2.bf16.msra.mxu0 0
        %5949 = vmatprep.subr.bf16.mxu0 0
        %5950 = vmatpush2.bf16.msra.mxu0 0
        %5951 = vmatprep.mubr.bf16.mxu0 0
        %5952 = vmatmul.mubr.bf16.gmra.mxu0 %v5914
        %v5953 = vpop.f32.mrf.mxu0
        %v5954 = vadd.f32 0.0, %v5953
        %v5955 = vpop.f32.mrf.mxu0
        %v5956 = vpop.f32.mrf.mxu0
        %v5957 = vpop.f32.mrf.mxu0
        %5958 = vdwg.mxu0
        %v5960 = vsel %vm820, %v5910, 0
        %v5963 = vsel %vm876, %v5673, 0
        %5965 = vmatprep.subr.bf16.mxu0 0
        %5966 = vmatpush1.bf16.msra.mxu0 0
        %5967 = vmatprep.subr.bf16.mxu0 0
        %5968 = vmatpush1.bf16.msra.mxu0 0
        %5969 = vmatprep.subr.bf16.mxu0 0
        %5970 = vmatpush1.bf16.msra.mxu0 0
        %5971 = vmatprep.subr.bf16.mxu0 0
        %5972 = vmatpush1.bf16.msra.mxu0 0
        %5973 = vmatprep.subr.bf16.mxu0 0
        %5974 = vmatpush1.bf16.msra.mxu0 0
        %5975 = vmatprep.subr.bf16.mxu0 0
        %5976 = vmatpush1.bf16.msra.mxu0 0
        %5977 = vmatprep.subr.bf16.mxu0 0
        %5978 = vmatpush1.bf16.msra.mxu0 0
        %5979 = vmatprep.subr.bf16.mxu0 0
        %5980 = vmatpush1.bf16.msra.mxu0 %v5963
        %5981 = vmatprep.subr.bf16.mxu0 0
        %5982 = vmatpush2.bf16.msra.mxu0 0
        %5983 = vmatprep.subr.bf16.mxu0 0
        %5984 = vmatpush2.bf16.msra.mxu0 0
        %5985 = vmatprep.subr.bf16.mxu0 0
        %5986 = vmatpush2.bf16.msra.mxu0 0
        %5987 = vmatprep.subr.bf16.mxu0 0
        %5988 = vmatpush2.bf16.msra.mxu0 0
        %5989 = vmatprep.subr.bf16.mxu0 0
        %5990 = vmatpush2.bf16.msra.mxu0 0
        %5991 = vmatprep.subr.bf16.mxu0 0
        %5992 = vmatpush2.bf16.msra.mxu0 0
        %5993 = vmatprep.subr.bf16.mxu0 0
        %5994 = vmatpush2.bf16.msra.mxu0 0
        %5995 = vmatprep.subr.bf16.mxu0 0
        %5996 = vmatpush2.bf16.msra.mxu0 0
        %5997 = vmatprep.mubr.bf16.mxu0 0
        %5998 = vmatmul.mubr.bf16.gmra.mxu0 %v5960
        %v5999 = vpop.f32.mrf.mxu0
        %v6000 = vadd.f32 0.0, %v5999
        %v6001 = vpop.f32.mrf.mxu0
        %v6002 = vpop.f32.mrf.mxu0
        %v6003 = vpop.f32.mrf.mxu0
        %6004 = vdwg.mxu0
        %v6006 = vsel %vm820, %v5911, 0
        %v6009 = vsel %vm876, %v5674, 0
        %6011 = vmatprep.subr.bf16.mxu0 0
        %6012 = vmatpush1.bf16.msra.mxu0 0
        %6013 = vmatprep.subr.bf16.mxu0 0
        %6014 = vmatpush1.bf16.msra.mxu0 0
        %6015 = vmatprep.subr.bf16.mxu0 0
        %6016 = vmatpush1.bf16.msra.mxu0 0
        %6017 = vmatprep.subr.bf16.mxu0 0
        %6018 = vmatpush1.bf16.msra.mxu0 0
        %6019 = vmatprep.subr.bf16.mxu0 0
        %6020 = vmatpush1.bf16.msra.mxu0 0
        %6021 = vmatprep.subr.bf16.mxu0 0
        %6022 = vmatpush1.bf16.msra.mxu0 0
        %6023 = vmatprep.subr.bf16.mxu0 0
        %6024 = vmatpush1.bf16.msra.mxu0 0
        %6025 = vmatprep.subr.bf16.mxu0 0
        %6026 = vmatpush1.bf16.msra.mxu0 %v6009
        %6027 = vmatprep.subr.bf16.mxu0 0
        %6028 = vmatpush2.bf16.msra.mxu0 0
        %6029 = vmatprep.subr.bf16.mxu0 0
        %6030 = vmatpush2.bf16.msra.mxu0 0
        %6031 = vmatprep.subr.bf16.mxu0 0
        %6032 = vmatpush2.bf16.msra.mxu0 0
        %6033 = vmatprep.subr.bf16.mxu0 0
        %6034 = vmatpush2.bf16.msra.mxu0 0
        %6035 = vmatprep.subr.bf16.mxu0 0
        %6036 = vmatpush2.bf16.msra.mxu0 0
        %6037 = vmatprep.subr.bf16.mxu0 0
        %6038 = vmatpush2.bf16.msra.mxu0 0
        %6039 = vmatprep.subr.bf16.mxu0 0
        %6040 = vmatpush2.bf16.msra.mxu0 0
        %6041 = vmatprep.subr.bf16.mxu0 0
        %6042 = vmatpush2.bf16.msra.mxu0 0
        %6043 = vmatprep.mubr.bf16.mxu0 0
        %6044 = vmatmul.mubr.bf16.gmra.mxu0 %v6006
        %v6045 = vpop.f32.mrf.mxu0
        %v6046 = vadd.f32 0.0, %v6045
        %v6047 = vpop.f32.mrf.mxu0
        %v6048 = vpop.f32.mrf.mxu0
        %v6049 = vpop.f32.mrf.mxu0
        %6050 = vdwg.mxu0
        %v6052 = vsel %vm820, %v5912, 0
        %v6055 = vsel %vm876, %v5675, 0
        %6057 = vmatprep.subr.bf16.mxu0 0
        %6058 = vmatpush1.bf16.msra.mxu0 0
        %6059 = vmatprep.subr.bf16.mxu0 0
        %6060 = vmatpush1.bf16.msra.mxu0 0
        %6061 = vmatprep.subr.bf16.mxu0 0
        %6062 = vmatpush1.bf16.msra.mxu0 0
        %6063 = vmatprep.subr.bf16.mxu0 0
        %6064 = vmatpush1.bf16.msra.mxu0 0
        %6065 = vmatprep.subr.bf16.mxu0 0
        %6066 = vmatpush1.bf16.msra.mxu0 0
        %6067 = vmatprep.subr.bf16.mxu0 0
        %6068 = vmatpush1.bf16.msra.mxu0 0
        %6069 = vmatprep.subr.bf16.mxu0 0
        %6070 = vmatpush1.bf16.msra.mxu0 0
        %6071 = vmatprep.subr.bf16.mxu0 0
        %6072 = vmatpush1.bf16.msra.mxu0 %v6055
        %6073 = vmatprep.subr.bf16.mxu0 0
        %6074 = vmatpush2.bf16.msra.mxu0 0
        %6075 = vmatprep.subr.bf16.mxu0 0
        %6076 = vmatpush2.bf16.msra.mxu0 0
        %6077 = vmatprep.subr.bf16.mxu0 0
        %6078 = vmatpush2.bf16.msra.mxu0 0
        %6079 = vmatprep.subr.bf16.mxu0 0
        %6080 = vmatpush2.bf16.msra.mxu0 0
        %6081 = vmatprep.subr.bf16.mxu0 0
        %6082 = vmatpush2.bf16.msra.mxu0 0
        %6083 = vmatprep.subr.bf16.mxu0 0
        %6084 = vmatpush2.bf16.msra.mxu0 0
        %6085 = vmatprep.subr.bf16.mxu0 0
        %6086 = vmatpush2.bf16.msra.mxu0 0
        %6087 = vmatprep.subr.bf16.mxu0 0
        %6088 = vmatpush2.bf16.msra.mxu0 0
        %6089 = vmatprep.mubr.bf16.mxu0 0
        %6090 = vmatmul.mubr.bf16.gmra.mxu0 %v6052
        %v6091 = vpop.f32.mrf.mxu0
        %v6092 = vadd.f32 0.0, %v6091
        %v6093 = vpop.f32.mrf.mxu0
        %v6094 = vpop.f32.mrf.mxu0
        %v6095 = vpop.f32.mrf.mxu0
        %6096 = vdwg.mxu0
        %v6097 = vpack.c.bf16 %v6000, %v5954
        %v6098 = vpack.c.bf16 %v6092, %v6046
        %s6099 = scalar_lea.vmem %s4, 14
        %v6100 = vld [vmem:[%s6099] sm:$0x3]
        %v6102 = vsel %vm635, %v6097, 0
        %v6105 = vsel %vm635, %v6098, 0
        %v6108 = vsel %vm1726, %v6100, 0
        %6110 = vmatprep.subr.bf16.mxu0 0
        %6111 = vmatpush1.bf16.msra.mxu0 0
        %6112 = vmatprep.subr.bf16.mxu0 0
        %6113 = vmatpush1.bf16.msra.mxu0 0
        %6114 = vmatprep.subr.bf16.mxu0 0
        %6115 = vmatpush1.bf16.msra.mxu0 0
        %6116 = vmatprep.subr.bf16.mxu0 0
        %6117 = vmatpush1.bf16.msra.mxu0 0
        %6118 = vmatprep.subr.bf16.mxu0 0
        %6119 = vmatpush1.bf16.msra.mxu0 0
        %6120 = vmatprep.subr.bf16.mxu0 0
        %6121 = vmatpush1.bf16.msra.mxu0 0
        %6122 = vmatprep.subr.bf16.mxu0 0
        %6123 = vmatpush1.bf16.msra.mxu0 0
        %6124 = vmatprep.subr.bf16.mxu0 0
        %6125 = vmatpush1.bf16.msra.mxu0 %v6108
        %6126 = vmatprep.subr.bf16.mxu0 0
        %6127 = vmatpush2.bf16.msra.mxu0 0
        %6128 = vmatprep.subr.bf16.mxu0 0
        %6129 = vmatpush2.bf16.msra.mxu0 0
        %6130 = vmatprep.subr.bf16.mxu0 0
        %6131 = vmatpush2.bf16.msra.mxu0 0
        %6132 = vmatprep.subr.bf16.mxu0 0
        %6133 = vmatpush2.bf16.msra.mxu0 0
        %6134 = vmatprep.subr.bf16.mxu0 0
        %6135 = vmatpush2.bf16.msra.mxu0 0
        %6136 = vmatprep.subr.bf16.mxu0 0
        %6137 = vmatpush2.bf16.msra.mxu0 0
        %6138 = vmatprep.subr.bf16.mxu0 0
        %6139 = vmatpush2.bf16.msra.mxu0 0
        %6140 = vmatprep.subr.bf16.mxu0 0
        %6141 = vmatpush2.bf16.msra.mxu0 0
        %6142 = vmatprep.mubr.bf16.mxu0 0
        %6143 = vmatmul.mubr.bf16.gmra.mxu0 %v6102
        %v6144 = vpop.f32.mrf.mxu0
        %v6145 = vadd.f32 0.0, %v6144
        %v6146 = vpop.f32.mrf.mxu0
        %v6147 = vpop.f32.mrf.mxu0
        %v6148 = vadd.f32 0.0, %v6147
        %v6149 = vpop.f32.mrf.mxu0
        %6150 = vmatprep.mubr.bf16.mxu0 0
        %6151 = vmatmul.mubr.bf16.gmra.mxu0 %v6105
        %v6152 = vpop.f32.mrf.mxu0
        %v6153 = vadd.f32 0.0, %v6152
        %v6154 = vpop.f32.mrf.mxu0
        %v6155 = vpop.f32.mrf.mxu0
        %v6156 = vadd.f32 0.0, %v6155
        %v6157 = vpop.f32.mrf.mxu0
        %6158 = vdwg.mxu0
        %v6159 = vadd.f32 %v5438, %v6145
        %v6160 = vadd.f32 %v5439, %v6148
        %v6161 = vadd.f32 %v5440, %v6153
        %v6162 = vadd.f32 %v5441, %v6156
        %v6163 = vld [vmem:[%s6] sm:$0x1]
        %v6165 = vlaneseq
        %v6166 = vshrl.u32 %v6165, 7
        %v6167 = vsub.s32 0, %v6166
        %v6168 = vrot.slane %v6163, %v6167
        %v6170 = vadd.f32 %v6159, %v6168
        %v6171 = vadd.f32 %v6160, %v6168
        %v6172 = vadd.f32 %v6161, %v6168
        %v6173 = vadd.f32 %v6162, %v6168
        %6174 = vst.msk [vmem:[%s362] sm:$0xff] %vm407, %v6170
        %6175 = vst.msk [vmem:[%s362 + $0x8] sm:$0xff] %vm407, %v6171
        %6176 = vst.msk [vmem:[%s362 + $0x10] sm:$0xff] %vm407, %v6172
        %6177 = vst.msk [vmem:[%s362 + $0x18] sm:$0xff] %vm407, %v6173
        %s6178 = smul.u32 4, %s23
        %p6179 = scmp.lt.s32.totalorder %s6178, 7
        %s6180 = scalar_select %p6179, %s6178, 7
        %s6181 = smul.addr %s6180, 8
        %s6182 = scalar_lea.vmem %s7, %s6181
        %s6183 = sand.u32 %s219, 1
        %s6184 = scalar_lea.sflag [#allocation3], %s6183
        %s6185 = sand.u32 %s219, 1
        %s6186 = smul.addr %s6185, 256
        %s6187 = scalar_lea.vmem [#allocation2], %s6186
        // Predicated region
        $region49: #{tpu_custom_call.1} parent=47 // pred_check
          %p6188 = pneg %p203
        $region50: #{tpu_custom_call.1} parent=47 // pred_check_branch
          %6190 = sbr.rel (%p6188) target = $region52
        $region51: #{tpu_custom_call.1} parent=47 // pred_region
          %s6191 = smul.u32 4, %s23
        $region52: #{tpu_custom_call.1} parent=47 // pred_fallthru
          _
        // Predicated region
        $region53: #{tpu_custom_call.1} parent=47 // pred_check
          %p6192 = pneg %p229
        $region54: #{tpu_custom_call.1} parent=47 // pred_check_branch
          %6194 = sbr.rel (%p6192) target = $region56
        $region55: #{tpu_custom_call.1} parent=47 // pred_region
          #allocation5 [shape = 'u32[6]{0}', space=smem, size = 0x18, scoped, tag = 'DMA stride descriptor']
          %s6195 = smul.u32 4, %s23
          %s6197 = ssub.s32 4096, 4096
          %6198 = vsyncadd %s6184, %s6197
          %s6199 = smul.addr %s6195, 128
          %s6200 = scalar_lea.hbm %s8, %s6199
          %s6202 = sshll.u32 1, 14
          %s6203 = sxor.u32 4294967295, %s6202
          %s6206 = sshll.u32 7, 18
          %s6207 = sxor.u32 4294967295, %s6206
          %s6208 = sand.u32 0, %s6207
          %s6210 = sor.u32 %s6208, 0
          %s6211 = sshll.u32 %s6187, 4
          %s6212 = int_to_ptr.vmem [resolvable:$true] %s6211
          %6218 = sst [smem:[#allocation5]] 512
          %s6219 = scalar_lea.smem [#allocation5], 1
          %6220 = sst [smem:[%s6219]] 1024
          %s6221 = scalar_lea.smem [#allocation5], 2
          %6222 = sst [smem:[%s6221]] 4
          %s6223 = scalar_lea.smem [#allocation5], 3
          %6224 = sst [smem:[%s6223]] 128
          %s6225 = scalar_lea.smem [#allocation5], 4
          %6226 = sst [smem:[%s6225]] 128
          %s6227 = scalar_lea.smem [#allocation5], 5
          %6228 = sst [smem:[%s6227]] 8
          %6230 = dma.general %s6212, 4096, %s6200, %s6184, 131072, [#allocation5], %s6210, 0
        $region56: #{tpu_custom_call.1} parent=47 // pred_fallthru
          _
      $region48: #{tpu_custom_call.1} parent=5 // pred_fallthru
        _
      %p6231 = scmp.le.s32.totalorder 2, %s18
      // Predicated region
      $region57: #{tpu_custom_call.1} parent=5 // pred_check
        %p6232 = pneg %p6231
      $region58: #{tpu_custom_call.1} parent=5 // pred_check_branch
        %6234 = sbr.rel (%p6232) target = $region60
      $region59: #{tpu_custom_call.1} parent=5 // pred_region
        %s6235 = ssub.s32 %s18, 2
        // Predicated region
        $region61: #{tpu_custom_call.1} parent=59 // pred_check
          %p6236 = pneg %p209
        $region62: #{tpu_custom_call.1} parent=59 // pred_check_branch
          %6238 = sbr.rel (%p6236) target = $region64
        $region63: #{tpu_custom_call.1} parent=59 // pred_region
          %s6239 = smul.u32 4, %s24
          %p6240 = scmp.lt.s32.totalorder %s6239, 7
          %s6241 = scalar_select %p6240, %s6239, 7
          %s6242 = smul.addr %s6241, 8
          %s6243 = scalar_lea.vmem %s7, %s6242
        $region64: #{tpu_custom_call.1} parent=59 // pred_fallthru
          _
        // Predicated region
        $region65: #{tpu_custom_call.1} parent=59 // pred_check
          %p6244 = pneg %p235
        $region66: #{tpu_custom_call.1} parent=59 // pred_check_branch
          %6246 = sbr.rel (%p6244) target = $region68
        $region67: #{tpu_custom_call.1} parent=59 // pred_region
          %s6247 = sand.u32 %s220, 1
          %s6248 = scalar_lea.sflag [#allocation3], %s6247
          %s6249 = sand.u32 %s220, 1
          %s6250 = smul.addr %s6249, 256
          %s6251 = scalar_lea.vmem [#allocation2], %s6250
          %6252 = dma.done %s6248, 4096
        $region68: #{tpu_custom_call.1} parent=59 // pred_fallthru
          _
      $region60: #{tpu_custom_call.1} parent=5 // pred_fallthru
        _
    $region6: #{tpu_custom_call.1} parent=1 // loop_footer
      %s22 = sadd.s32 1, %s18
    $region7: #{tpu_custom_call.1} parent=1 // loop_footer_branch
      %17 = sbr.rel target = $region3
    $region8: #{tpu_custom_call.1} parent=1 // loop_exit
      _
    %6253 = vsyncpa [#allocation3], 1
    %s6254 = scalar_lea.sflag [#allocation3], 1
    %6255 = vsyncpa %s6254, 1

</llo_original>
